<compile_context>
chip_gen: v6e
topology: v6e:2x2x1
jax: 0.10.0
libtpu: 0.0.40
codegen_flags: <defaults>
</compile_context>

<pallas_src>
import functools
import math

import jax
import jax.numpy as jnp
from jax.experimental import pallas as pl
from jax.experimental.pallas import tpu as pltpu

# ---- constants implied by DeepBind.__init__ ----
IN_CH = 4
OUT_CH = 16
KSIZE = 24
PAD = 23
PAD_VAL = 0.25
SEQ_LEN = 101                       # MaxPool1d(124) + Linear(16, 1) imply L == 101
PADDED_LEN = SEQ_LEN + 2 * PAD      # 147
LCONV = PADDED_LEN - KSIZE + 1      # 124 == MaxPool kernel -> global max over positions
LCONV_PAD = 128                     # power-of-two padded conv length for the fold-max
M_ROWS = LCONV_PAD * OUT_CH         # 2048 matmul output rows, row = l * 16 + o
K_FEAT = IN_CH * PADDED_LEN + 1     # 589 = flattened padded input + constant-1 feature
K_PAD = 640                         # lane-aligned contraction dim (multiple of 128)
NEG_MASK = -1e30                    # padded rows (l >= LCONV) can never win the max


def _round_up(n, m):
    return pl.cdiv(n, m) * m


def deepbind_kernel(g_ref, xpt_ref, wd_ref, bd_ref, o_ref):
    """One batch tile.

    g_ref   : (M_ROWS, K_PAD)  conv-as-dense-matmul constant (bias + mask folded in)
    xpt_ref : (K_PAD, BT)      flattened padded inputs, batch on lanes
    wd_ref  : (OUT_CH, 1)      dense (Linear(16,1)) weights as a column
    bd_ref  : (1, 1)           dense bias
    o_ref   : (1, BT)          sigmoid scores, batch on lanes
    """
    # Single big MXU matmul.  Rows are (l, o) position-major; the conv bias is
    # already added via the constant-1 feature, and rows with l >= LCONV carry
    # NEG_MASK so they never survive the max below.
    conv = jnp.dot(g_ref[...], xpt_ref[...], preferred_element_type=jnp.float32)

    # Global max-pool over the 128 (padded) conv positions: fold the sublane
    # axis in halves.  Every fold offset (1024, 512, ..., 16) is a multiple of
    # 8 sublanes and of 16 rows, so this is pure vreg-aligned VPU work and it
    # preserves channel = row % 16.
    pooled = conv
    while pooled.shape[0] > OUT_CH:
        h = pooled.shape[0] // 2
        pooled = jnp.maximum(pooled[:h, :], pooled[h:, :])      # -> (16, BT)

    act = jnp.maximum(pooled, 0.0)                              # ReLU after the pool
    # TODO(synk): nn.Dropout is eval-mode identity here (no RNG masking applied).
    logits = jnp.sum(act * wd_ref[...], axis=0, keepdims=True) + bd_ref[...]  # (1, BT)
    o_ref[...] = jax.nn.sigmoid(logits).astype(o_ref.dtype)


def _build_g(conv_w, conv_b):
    """Banded conv-as-matmul constant G of shape (M_ROWS, K_PAD).

    Row r = l*16 + o, column c*147 + p holds conv_w[o, c, p - l] when
    0 <= p - l < 24 and l < 124, else 0.  Column 588 multiplies the constant-1
    input feature and carries conv_b[o] for valid rows / NEG_MASK for the
    padded rows l >= 124; remaining columns are zero padding up to K_PAD.
    """
    w = conv_w.astype(jnp.float32)                              # (16, 4, 24)
    l = jnp.arange(LCONV_PAD)                                   # (128,)
    p = jnp.arange(PADDED_LEN)                                  # (147,)
    tap = p[None, :] - l[:, None]                               # (128, 147)
    valid = (tap >= 0) & (tap < KSIZE) & (l[:, None] < LCONV)
    wg = w[:, :, jnp.clip(tap, 0, KSIZE - 1)]                   # (16, 4, 128, 147)
    wg = jnp.where(valid[None, None], wg, 0.0)
    wg = wg.transpose(2, 0, 1, 3).reshape(M_ROWS, IN_CH * PADDED_LEN)   # (2048, 588)
    bias_col = jnp.where(l[:, None] < LCONV,
                         conv_b.astype(jnp.float32)[None, :],
                         NEG_MASK).reshape(M_ROWS, 1)
    pad_cols = jnp.zeros((M_ROWS, K_PAD - IN_CH * PADDED_LEN - 1), jnp.float32)
    return jnp.concatenate([wg, bias_col, pad_cols], axis=1)    # (2048, 640)


@functools.partial(jax.jit, static_argnames=("batch_tile", "compute_dtype"))
def deepbind_forward(x, conv_w, conv_b, dense_w, dense_b, *,
                     batch_tile=256, compute_dtype=jnp.bfloat16):
    """x: (B, 4, 101) float32, NCW like PyTorch Conv1d.  Returns (B, 1) float32."""
    B, C, L = x.shape
    assert C == IN_CH and L == SEQ_LEN, "MaxPool1d(124)+Linear(16,1) imply (4, 101) input"

    # --- cheap XLA-side prep on the *small* input (no 24x im2col expansion) ---
    xp = jnp.pad(x.astype(jnp.float32), ((0, 0), (0, 0), (PAD, PAD)),
                 constant_values=PAD_VAL)                       # (B, 4, 147)
    xp = xp.reshape(B, IN_CH * PADDED_LEN)                      # (B, 588), (c, p) c-major
    ones = jnp.ones((B, 1), jnp.float32)                        # carries conv bias / mask
    zeros = jnp.zeros((B, K_PAD - IN_CH * PADDED_LEN - 1), jnp.float32)
    xpt = jnp.concatenate([xp, ones, zeros], axis=1).T          # (K_PAD, B), batch on lanes

    # Batch tile: multiple of 128 lanes; pad B up so the grid divides evenly.
    bt = max(128, min(_round_up(batch_tile, 128), _round_up(B, 128)))
    Bp = _round_up(B, bt)
    if Bp != B:
        xpt = jnp.pad(xpt, ((0, 0), (0, Bp - B)))               # zero cols -> discarded
    xpt = xpt.astype(compute_dtype)

    # NOTE: in production, build g once per weight update and pass it in.
    g = _build_g(conv_w, conv_b).astype(compute_dtype)          # resident in VMEM
    wd = dense_w.reshape(OUT_CH, 1).astype(jnp.float32)
    bd = dense_b.reshape(1, 1).astype(jnp.float32)

    out = pl.pallas_call(
        deepbind_kernel,
        out_shape=jax.ShapeDtypeStruct((1, Bp), jnp.float32),
        grid=(Bp // bt,),
        in_specs=[
            pl.BlockSpec((M_ROWS, K_PAD), lambda b: (0, 0)),    # constant block
            pl.BlockSpec((K_PAD, bt), lambda b: (0, b)),        # pipelined batch tiles
            pl.BlockSpec((OUT_CH, 1), lambda b: (0, 0)),
            pl.BlockSpec((1, 1), lambda b: (0, 0)),
        ],
        out_specs=pl.BlockSpec((1, bt), lambda b: (0, b)),
        compiler_params=pltpu.CompilerParams(
            dimension_semantics=("parallel",),       # v7x: shard tiles across 2 TCs
            vmem_limit_bytes=40 * 1024 * 1024,       # fits v7x's 64 MiB with headroom
        ),
    )(g, xpt, wd, bd)
    return out[0, :B].reshape(B, 1)


def deepbind_reference(x, conv_w, conv_b, dense_w, dense_b):
    """Pure-JAX reference (same semantics as the PyTorch module in eval mode)."""
    xpad = jnp.pad(x, ((0, 0), (0, 0), (PAD, PAD)), constant_values=PAD_VAL)
    conv = jax.lax.conv_general_dilated(
        xpad, conv_w, window_strides=(1,), padding="VALID",
        dimension_numbers=("NCH", "OIH", "NCH"))
    conv = conv + conv_b[None, :, None]
    conv = jnp.maximum(conv, 0.0)
    pooled = jnp.max(conv, axis=2)                    # MaxPool1d(124) == global max
    logits = pooled @ dense_w.T + dense_b[None, :]
    return jax.nn.sigmoid(logits)


if __name__ == "__main__":
    key = jax.random.PRNGKey(0)
    kx, kw1, kb1, kw2, kb2 = jax.random.split(key, 5)

    B = 200                                           # not a tile multiple on purpose
    x = jax.random.normal(kx, (B, IN_CH, SEQ_LEN), dtype=jnp.float32)

    # Deterministic synthetic parameters (shapes from the module __init__).
    conv_w = jax.random.normal(kw1, (OUT_CH, IN_CH, KSIZE), jnp.float32) \
        * (1.0 / math.sqrt(IN_CH * KSIZE))
    conv_b = jax.random.normal(kb1, (OUT_CH,), jnp.float32) * 0.01
    dense_w = jax.random.normal(kw2, (1, OUT_CH), jnp.float32) \
        * (1.0 / math.sqrt(OUT_CH))
    dense_b = jax.random.normal(kb2, (1,), jnp.float32) * 0.01

    ref = jax.block_until_ready(
        deepbind_reference(x, conv_w, conv_b, dense_w, dense_b))

    # f32 path: tight structural-correctness check (2 grid steps with bt=128).
    out_f32 = jax.block_until_ready(
        deepbind_forward(x, conv_w, conv_b, dense_w, dense_b,
                         batch_tile=128, compute_dtype=jnp.float32))
    assert out_f32.shape == (B, 1)
    assert jnp.allclose(out_f32, ref, atol=1e-4, rtol=1e-4), \
        float(jnp.abs(out_f32 - ref).max())

    # default fast path: bf16 matmul operands, f32 accumulation.
    out_bf16 = jax.block_until_ready(
        deepbind_forward(x, conv_w, conv_b, dense_w, dense_b, batch_tile=128))
    assert out_bf16.shape == (B, 1)
    assert jnp.allclose(out_bf16, ref, atol=3e-3, rtol=3e-3), \
        float(jnp.abs(out_bf16 - ref).max())

    print("KERNEL_OK")
</pallas_src>

<mosaic_0001>
module attributes {stable_mosaic.version = 11 : i64} {
  func.func @deepbind_kernel(%arg0: i32, %arg1: memref<2048x640xf32, #tpu.memory_space<vmem>>, %arg2: memref<640x128xf32, #tpu.memory_space<vmem>>, %arg3: memref<16x1xf32, #tpu.memory_space<vmem>>, %arg4: memref<1x1xf32, #tpu.memory_space<vmem>>, %arg5: memref<1x128xf32, #tpu.memory_space<vmem>>) attributes {dimension_semantics = [#tpu.dimension_semantics<parallel>], iteration_bounds = array<i64: 2>, scalar_prefetch = 0 : i64, scratch_operands = 0 : i64, tpu.core_type = #tpu.core_type<tc>, window_params = [{pipeline_mode = #tpu.pipeline_mode<synchronous>, transform_indices = @transform_0, window_bounds = array<i64: 2048, 640>}, {transform_indices = @transform_1, window_bounds = array<i64: 640, 128>}, {pipeline_mode = #tpu.pipeline_mode<synchronous>, transform_indices = @transform_2, window_bounds = array<i64: 16, 1>}, {pipeline_mode = #tpu.pipeline_mode<synchronous>, transform_indices = @transform_3, window_bounds = array<i64: 1, 1>}, {transform_indices = @transform_4, window_bounds = array<i64: 1, 128>}]} {
    %c0 = arith.constant 0 : index
    %c0_0 = arith.constant 0 : index
    %0 = vector.load %arg1[%c0, %c0_0] : memref<2048x640xf32, #tpu.memory_space<vmem>>, vector<2048x640xf32>
    %c0_1 = arith.constant 0 : index
    %c0_2 = arith.constant 0 : index
    %1 = vector.load %arg2[%c0_1, %c0_2] : memref<640x128xf32, #tpu.memory_space<vmem>>, vector<640x128xf32>
    %cst = arith.constant dense<0.000000e+00> : vector<2048x128xf32>
    %2 = tpu.matmul %0, %1, %cst {dimension_numbers = #tpu.dot_dimension_numbers<[1], [0], [0], [1], [0, 0, 1, 1], [], []>} : vector<2048x640xf32>, vector<640x128xf32>, vector<2048x128xf32> -> vector<2048x128xf32>
    %3 = vector.extract_strided_slice %2 {offsets = [0, 0], sizes = [1024, 128], strides = [1, 1]} : vector<2048x128xf32> to vector<1024x128xf32>
    %4 = vector.extract_strided_slice %2 {offsets = [1024, 0], sizes = [1024, 128], strides = [1, 1]} : vector<2048x128xf32> to vector<1024x128xf32>
    %5 = arith.maximumf %3, %4 : vector<1024x128xf32>
    %6 = vector.extract_strided_slice %5 {offsets = [0, 0], sizes = [512, 128], strides = [1, 1]} : vector<1024x128xf32> to vector<512x128xf32>
    %7 = vector.extract_strided_slice %5 {offsets = [512, 0], sizes = [512, 128], strides = [1, 1]} : vector<1024x128xf32> to vector<512x128xf32>
    %8 = arith.maximumf %6, %7 : vector<512x128xf32>
    %9 = vector.extract_strided_slice %8 {offsets = [0, 0], sizes = [256, 128], strides = [1, 1]} : vector<512x128xf32> to vector<256x128xf32>
    %10 = vector.extract_strided_slice %8 {offsets = [256, 0], sizes = [256, 128], strides = [1, 1]} : vector<512x128xf32> to vector<256x128xf32>
    %11 = arith.maximumf %9, %10 : vector<256x128xf32>
    %12 = vector.extract_strided_slice %11 {offsets = [0, 0], sizes = [128, 128], strides = [1, 1]} : vector<256x128xf32> to vector<128x128xf32>
    %13 = vector.extract_strided_slice %11 {offsets = [128, 0], sizes = [128, 128], strides = [1, 1]} : vector<256x128xf32> to vector<128x128xf32>
    %14 = arith.maximumf %12, %13 : vector<128x128xf32>
    %15 = vector.extract_strided_slice %14 {offsets = [0, 0], sizes = [64, 128], strides = [1, 1]} : vector<128x128xf32> to vector<64x128xf32>
    %16 = vector.extract_strided_slice %14 {offsets = [64, 0], sizes = [64, 128], strides = [1, 1]} : vector<128x128xf32> to vector<64x128xf32>
    %17 = arith.maximumf %15, %16 : vector<64x128xf32>
    %18 = vector.extract_strided_slice %17 {offsets = [0, 0], sizes = [32, 128], strides = [1, 1]} : vector<64x128xf32> to vector<32x128xf32>
    %19 = vector.extract_strided_slice %17 {offsets = [32, 0], sizes = [32, 128], strides = [1, 1]} : vector<64x128xf32> to vector<32x128xf32>
    %20 = arith.maximumf %18, %19 : vector<32x128xf32>
    %21 = vector.extract_strided_slice %20 {offsets = [0, 0], sizes = [16, 128], strides = [1, 1]} : vector<32x128xf32> to vector<16x128xf32>
    %22 = vector.extract_strided_slice %20 {offsets = [16, 0], sizes = [16, 128], strides = [1, 1]} : vector<32x128xf32> to vector<16x128xf32>
    %23 = arith.maximumf %21, %22 : vector<16x128xf32>
    %cst_3 = arith.constant 0.000000e+00 : f32
    %24 = vector.broadcast %cst_3 : f32 to vector<16x128xf32>
    %25 = arith.maximumf %23, %24 : vector<16x128xf32>
    %c0_4 = arith.constant 0 : index
    %c0_5 = arith.constant 0 : index
    %26 = vector.load %arg3[%c0_4, %c0_5] : memref<16x1xf32, #tpu.memory_space<vmem>>, vector<16x1xf32>
    %27 = vector.broadcast %26 : vector<16x1xf32> to vector<16x128xf32>
    %28 = arith.mulf %25, %27 : vector<16x128xf32>
    %cst_6 = arith.constant dense<0.000000e+00> : vector<128xf32>
    %29 = vector.multi_reduction <add>, %28, %cst_6 [0] : vector<16x128xf32> to vector<128xf32>
    %30 = vector.shape_cast %29 : vector<128xf32> to vector<1x128xf32>
    %c0_7 = arith.constant 0 : index
    %c0_8 = arith.constant 0 : index
    %31 = vector.load %arg4[%c0_7, %c0_8] : memref<1x1xf32, #tpu.memory_space<vmem>>, vector<1x1xf32>
    %32 = vector.broadcast %31 : vector<1x1xf32> to vector<1x128xf32>
    %33 = arith.addf %30, %32 : vector<1x128xf32>
    %34 = arith.negf %33 : vector<1x128xf32>
    %35 = math.exp %34 : vector<1x128xf32>
    %cst_9 = arith.constant 1.000000e+00 : f32
    %36 = vector.broadcast %cst_9 : f32 to vector<1x128xf32>
    %37 = arith.addf %36, %35 : vector<1x128xf32>
    %38 = arith.divf %36, %37 : vector<1x128xf32>
    %c0_10 = arith.constant 0 : index
    %c0_11 = arith.constant 0 : index
    %39 = vector.load %arg5[%c0_10, %c0_11] : memref<1x128xf32, #tpu.memory_space<vmem>>, vector<1x128xf32>
    tpu.vector_store %arg5[%c0_10, %c0_11], %38 {strides = array<i32>} : memref<1x128xf32, #tpu.memory_space<vmem>>, vector<1x128xf32>,
    return
  }
  func.func @transform_0(%arg0: i32) -> (i32, i32) {
    %c0_i32 = arith.constant 0 : i32
    %c0_i32_0 = arith.constant 0 : i32
    %c0_i32_1 = arith.constant 0 : i32
    return %c0_i32, %c0_i32_0 : i32, i32
  }
  func.func @transform_1(%arg0: i32) -> (i32, i32) {
    %c0_i32 = arith.constant 0 : i32
    %c0_i32_0 = arith.constant 0 : i32
    return %c0_i32, %arg0 : i32, i32
  }
  func.func @transform_2(%arg0: i32) -> (i32, i32) {
    %c0_i32 = arith.constant 0 : i32
    %c0_i32_0 = arith.constant 0 : i32
    %c0_i32_1 = arith.constant 0 : i32
    return %c0_i32, %c0_i32_0 : i32, i32
  }
  func.func @transform_3(%arg0: i32) -> (i32, i32) {
    %c0_i32 = arith.constant 0 : i32
    %c0_i32_0 = arith.constant 0 : i32
    %c0_i32_1 = arith.constant 0 : i32
    return %c0_i32, %c0_i32_0 : i32, i32
  }
  func.func @transform_4(%arg0: i32) -> (i32, i32) {
    %c0_i32 = arith.constant 0 : i32
    %c0_i32_0 = arith.constant 0 : i32
    return %c0_i32, %arg0 : i32, i32
  }
}

</mosaic_0001>

<llo_original>
// kernel: deepbind_forward.1
$region0: #{deepbind_forward.1}
  #allocation0 [shape = 'u32[]', space=smem, size = 0x4, offset = 0x4, fixed_abs, tag = 'smem constant byte address 0x4 - core index']
  #allocation1 [shape = 'u32[144,128]{1,0:T(1,128)}', space=vmem, size = 0x12000, scoped, tag = 'internal scratch']
  #allocation2 [shape = 'f32[1,1]{1,0:T(1,128)S(1)}', space=vmem, size = 0x200, scoped, tag = 'scoped memory for deepbind_forward.1']
  %s0 = inlined_call_operand.vmem [shape: f32[2048,640], index: 0, kind: input, shape index: {}]
  %s1 = inlined_call_operand.vmem [shape: f32[640,256], index: 1, kind: input, shape index: {}]
  %s2 = inlined_call_operand.vmem [shape: f32[16,1], index: 2, kind: input, shape index: {}]
  %s3 = inlined_call_operand.<no memory space> [shape: f32[1,1], index: 3, kind: input, shape index: {}]
  %s4 = inlined_call_operand.vmem [shape: f32[1,256], index: 4, kind: output, shape index: {}]
  %s5 = sld [smem:[#allocation0]]
  $region87: #{deepbind_forward.1} parent=0
    _
  %s7 = ssub.s32 1, %s5
  %s8 = scalar_select 0, %s7, %s5
  %v9 = vstv %s3
  %10 = vst [vmem:[#allocation2] sm:$0x1] %v9
  $region1: #{deepbind_forward.1} parent=0
    #allocation3 [shape = 'u8[655360]{0}', space=vmem, size = 0xa0000, scoped, tag = 'input window, operand 1']
    loop: start=0, step=1, limit=4
    $region2: #{deepbind_forward.1} parent=1 // loop_pre_header
      _
    $region3: #{deepbind_forward.1} parent=1 // loop_header
      %s12 = sphi 0, %s16
      %p13 = scmp.ge.s32.totalorder %s12, 4
      %s20 = sphi 0, %s20
      %s22 = sphi 0, %s20
      %s23 = sphi 0, %s22
      %s37 = sphi 0, %s23
      %s43 = sphi 0, %s45
      %s46 = sphi 0, %s43
      %s47 = sphi 0, %s46
      %s63 = sphi 0, %s47
      %s67 = sphi 0, %s67
      %s69 = sphi 0, %s67
      %s70 = sphi 0, %s69
      %s84 = sphi 0, %s70
      %s88 = sphi 0, %s88
      %s90 = sphi 0, %s88
      %s91 = sphi 0, %s90
      %s105 = sphi 0, %s91
      %s111 = sphi 0, %s113
      %s114 = sphi 0, %s111
      %s115 = sphi 0, %s114
      %s131 = sphi 0, %s115
    $region4: #{deepbind_forward.1} parent=1 // loop_header_branch
      %15 = sbr.rel (%p13) target = $region8
    $region5: #{deepbind_forward.1} parent=1 // loop_body
      %s17 = ssub.s32 %s12, 1
      %s18 = ssub.s32 %s12, 2
      %s19 = sadd.s32 %s12, 1
      %s21 = sadd.s32 %s20, 1
      %p24 = scmp.eq.s32.totalorder %s12, 1
      %p25 = scmp.ne.s32.totalorder %s20, %s22
      %p26 = scmp.eq.s32.totalorder %s12, 0
      %p27 = por %p25, %p26
      %p28 = scmp.ne.s32.totalorder %s20, %s22
      %p29 = scmp.eq.s32.totalorder %s17, 1
      %p30 = por %p28, %p29
      %p31 = scmp.ne.s32.totalorder %s22, %s23
      %p32 = scmp.eq.s32.totalorder %s17, 0
      %p33 = por %p31, %p32
      %p34 = scmp.ne.s32.totalorder %s22, %s23
      %p35 = scmp.eq.s32.totalorder %s18, 1
      %p36 = por %p34, %p35
      %p38 = scmp.ne.s32.totalorder %s23, %s37
      %p39 = scmp.eq.s32.totalorder %s18, 0
      %p40 = por %p38, %p39
      %s41 = ssub.s32 %s12, %s19
      %p42 = scmp.eq.s32.totalorder %s41, 0
      %s44 = sadd.s32 %s43, 1
      %s45 = scalar_select %p42, %s43, %s44
      %p48 = pneg %p42
      %p49 = scmp.eq.s32.totalorder %s12, 1
      %p50 = por %p48, %p49
      %p51 = scmp.ne.s32.totalorder %s43, %s46
      %p52 = scmp.eq.s32.totalorder %s12, 0
      %p53 = por %p51, %p52
      %p54 = scmp.ne.s32.totalorder %s43, %s46
      %p55 = scmp.eq.s32.totalorder %s17, 1
      %p56 = por %p54, %p55
      %p57 = scmp.ne.s32.totalorder %s46, %s47
      %p58 = scmp.eq.s32.totalorder %s17, 0
      %p59 = por %p57, %p58
      %p60 = scmp.ne.s32.totalorder %s46, %s47
      %p61 = scmp.eq.s32.totalorder %s18, 1
      %p62 = por %p60, %p61
      %p64 = scmp.ne.s32.totalorder %s47, %s63
      %p65 = scmp.eq.s32.totalorder %s18, 0
      %p66 = por %p64, %p65
      %s68 = sadd.s32 %s67, 1
      %p71 = scmp.eq.s32.totalorder %s12, 1
      %p72 = scmp.ne.s32.totalorder %s67, %s69
      %p73 = scmp.eq.s32.totalorder %s12, 0
      %p74 = por %p72, %p73
      %p75 = scmp.ne.s32.totalorder %s67, %s69
      %p76 = scmp.eq.s32.totalorder %s17, 1
      %p77 = por %p75, %p76
      %p78 = scmp.ne.s32.totalorder %s69, %s70
      %p79 = scmp.eq.s32.totalorder %s17, 0
      %p80 = por %p78, %p79
      %p81 = scmp.ne.s32.totalorder %s69, %s70
      %p82 = scmp.eq.s32.totalorder %s18, 1
      %p83 = por %p81, %p82
      %p85 = scmp.ne.s32.totalorder %s70, %s84
      %p86 = scmp.eq.s32.totalorder %s18, 0
      %p87 = por %p85, %p86
      %s89 = sadd.s32 %s88, 1
      %p92 = scmp.eq.s32.totalorder %s12, 1
      %p93 = scmp.ne.s32.totalorder %s88, %s90
      %p94 = scmp.eq.s32.totalorder %s12, 0
      %p95 = por %p93, %p94
      %p96 = scmp.ne.s32.totalorder %s88, %s90
      %p97 = scmp.eq.s32.totalorder %s17, 1
      %p98 = por %p96, %p97
      %p99 = scmp.ne.s32.totalorder %s90, %s91
      %p100 = scmp.eq.s32.totalorder %s17, 0
      %p101 = por %p99, %p100
      %p102 = scmp.ne.s32.totalorder %s90, %s91
      %p103 = scmp.eq.s32.totalorder %s18, 1
      %p104 = por %p102, %p103
      %p106 = scmp.ne.s32.totalorder %s91, %s105
      %p107 = scmp.eq.s32.totalorder %s18, 0
      %p108 = por %p106, %p107
      %s109 = ssub.s32 %s12, %s19
      %p110 = scmp.eq.s32.totalorder %s109, 0
      %s112 = sadd.s32 %s111, 1
      %s113 = scalar_select %p110, %s111, %s112
      %p116 = pneg %p110
      %p117 = scmp.eq.s32.totalorder %s12, 1
      %p118 = por %p116, %p117
      %p119 = scmp.ne.s32.totalorder %s111, %s114
      %p120 = scmp.eq.s32.totalorder %s12, 0
      %p121 = por %p119, %p120
      %p122 = scmp.ne.s32.totalorder %s111, %s114
      %p123 = scmp.eq.s32.totalorder %s17, 1
      %p124 = por %p122, %p123
      %p125 = scmp.ne.s32.totalorder %s114, %s115
      %p126 = scmp.eq.s32.totalorder %s17, 0
      %p127 = por %p125, %p126
      %p128 = scmp.ne.s32.totalorder %s114, %s115
      %p129 = scmp.eq.s32.totalorder %s18, 1
      %p130 = por %p128, %p129
      %p132 = scmp.ne.s32.totalorder %s115, %s131
      %p133 = scmp.eq.s32.totalorder %s18, 0
      %p134 = por %p132, %p133
      %p135 = scmp.le.s32.totalorder 1, %s12
      %p136 = scmp.lt.s32.totalorder %s12, 3
      %p137 = pnand %p135, %p136
      %p138 = pneg %p137
      // Predicated region
      $region9: #{deepbind_forward.1} parent=5 // pred_check
        _
      $region10: #{deepbind_forward.1} parent=5 // pred_check_branch
        %140 = sbr.rel (%p137) target = $region12
      $region11: #{deepbind_forward.1} parent=5 // pred_region
        %s141 = ssub.s32 %s12, 1
        // Predicated region
        $region13: #{deepbind_forward.1} parent=11 // pred_check
          %p142 = pneg %p33
        $region14: #{deepbind_forward.1} parent=11 // pred_check_branch
          %144 = sbr.rel (%p142) target = $region16
        $region15: #{deepbind_forward.1} parent=11 // pred_region
          _
        $region16: #{deepbind_forward.1} parent=11 // pred_fallthru
          _
        // Predicated region
        $region17: #{deepbind_forward.1} parent=11 // pred_check
          %p145 = pneg %p80
        $region18: #{deepbind_forward.1} parent=11 // pred_check_branch
          %147 = sbr.rel (%p145) target = $region20
        $region19: #{deepbind_forward.1} parent=11 // pred_region
          _
        $region20: #{deepbind_forward.1} parent=11 // pred_fallthru
          _
        // Predicated region
        $region21: #{deepbind_forward.1} parent=11 // pred_check
          %p148 = pneg %p101
        $region22: #{deepbind_forward.1} parent=11 // pred_check_branch
          %150 = sbr.rel (%p148) target = $region24
        $region23: #{deepbind_forward.1} parent=11 // pred_region
          _
        $region24: #{deepbind_forward.1} parent=11 // pred_fallthru
          _
      $region12: #{deepbind_forward.1} parent=5 // pred_fallthru
        _
      %p151 = scmp.lt.s32.totalorder %s12, 2
      // Predicated region
      $region25: #{deepbind_forward.1} parent=5 // pred_check
        %p152 = pneg %p151
      $region26: #{deepbind_forward.1} parent=5 // pred_check_branch
        %154 = sbr.rel (%p152) target = $region28
      $region27: #{deepbind_forward.1} parent=5 // pred_region
        // Predicated region
        $region29: #{deepbind_forward.1} parent=27 // pred_check
          %p155 = pneg %p53
        $region30: #{deepbind_forward.1} parent=27 // pred_check_branch
          %157 = sbr.rel (%p155) target = $region32
        $region31: #{deepbind_forward.1} parent=27 // pred_region
          %s158 = sand.u32 %s43, 1
          %s159 = sand.u32 %s43, 1
          %s160 = smul.addr %s159, 640
          %s161 = scalar_lea.vmem [#allocation3], %s160
          %s162 = smul.addr %s12, 8
          %s163 = scalar_lea.vmem %s1, %s162
          // Predicated region
          $region33: #{deepbind_forward.1} parent=31 // pred_check
            _
          $region34: #{deepbind_forward.1} parent=31 // pred_check_branch
            %165 = sbr.rel (0) target = $region36
          $region35: #{deepbind_forward.1} parent=31 // pred_region
            // Predicated region
            $region37: #{deepbind_forward.1} parent=35 // pred_check
              _
            $region38: #{deepbind_forward.1} parent=35 // pred_check_branch
              %167 = sbr.rel (0) target = $region40
            $region39: #{deepbind_forward.1} parent=35 // pred_region
              // Predicated region
              $region52: #{deepbind_forward.1} parent=39 // pred_check
                _
              $region53: #{deepbind_forward.1} parent=39 // pred_check_branch
                %341 = sbr.rel (0) target = $region55
              $region54: #{deepbind_forward.1} parent=39 // pred_region
                loop: start=0, step=1, limit=1
                $region56: #{deepbind_forward.1} parent=54 // loop_pre_header
                  _
                $region57: #{deepbind_forward.1} parent=54 // loop_header
                  %s343 = sphi 0, %s347
                  %p344 = scmp.ge.s32.totalorder %s343, 1
                  %s348 = sphi %s163, %s163
                  %s349 = sphi %s161, %s161
                $region58: #{deepbind_forward.1} parent=54 // loop_header_branch
                  %346 = sbr.rel (%p344) target = $region62
                $region59: #{deepbind_forward.1} parent=54 // loop_body
                  %v350 = vld [vmem:[%s348] sm:$0xff]
                  %351 = vst [vmem:[%s349] sm:$0xff] %v350
                  %v352 = vld [vmem:[%s348 + $0x10] sm:$0xff]
                  %353 = vst [vmem:[%s349 + $0x8] sm:$0xff] %v352
                  %v354 = vld [vmem:[%s348 + $0x20] sm:$0xff]
                  %355 = vst [vmem:[%s349 + $0x10] sm:$0xff] %v354
                  %v356 = vld [vmem:[%s348 + $0x30] sm:$0xff]
                  %357 = vst [vmem:[%s349 + $0x18] sm:$0xff] %v356
                  %v358 = vld [vmem:[%s348 + $0x40] sm:$0xff]
                  %359 = vst [vmem:[%s349 + $0x20] sm:$0xff] %v358
                  %v360 = vld [vmem:[%s348 + $0x50] sm:$0xff]
                  %361 = vst [vmem:[%s349 + $0x28] sm:$0xff] %v360
                  %v362 = vld [vmem:[%s348 + $0x60] sm:$0xff]
                  %363 = vst [vmem:[%s349 + $0x30] sm:$0xff] %v362
                  %v364 = vld [vmem:[%s348 + $0x70] sm:$0xff]
                  %365 = vst [vmem:[%s349 + $0x38] sm:$0xff] %v364
                  %v366 = vld [vmem:[%s348 + $0x80] sm:$0xff]
                  %367 = vst [vmem:[%s349 + $0x40] sm:$0xff] %v366
                  %v368 = vld [vmem:[%s348 + $0x90] sm:$0xff]
                  %369 = vst [vmem:[%s349 + $0x48] sm:$0xff] %v368
                  %v370 = vld [vmem:[%s348 + $0xa0] sm:$0xff]
                  %371 = vst [vmem:[%s349 + $0x50] sm:$0xff] %v370
                  %v372 = vld [vmem:[%s348 + $0xb0] sm:$0xff]
                  %373 = vst [vmem:[%s349 + $0x58] sm:$0xff] %v372
                  %v374 = vld [vmem:[%s348 + $0xc0] sm:$0xff]
                  %375 = vst [vmem:[%s349 + $0x60] sm:$0xff] %v374
                  %v376 = vld [vmem:[%s348 + $0xd0] sm:$0xff]
                  %377 = vst [vmem:[%s349 + $0x68] sm:$0xff] %v376
                  %v378 = vld [vmem:[%s348 + $0xe0] sm:$0xff]
                  %379 = vst [vmem:[%s349 + $0x70] sm:$0xff] %v378
                  %v380 = vld [vmem:[%s348 + $0xf0] sm:$0xff]
                  %381 = vst [vmem:[%s349 + $0x78] sm:$0xff] %v380
                  %v382 = vld [vmem:[%s348 + $0x100] sm:$0xff]
                  %383 = vst [vmem:[%s349 + $0x80] sm:$0xff] %v382
                  %v384 = vld [vmem:[%s348 + $0x110] sm:$0xff]
                  %385 = vst [vmem:[%s349 + $0x88] sm:$0xff] %v384
                  %v386 = vld [vmem:[%s348 + $0x120] sm:$0xff]
                  %387 = vst [vmem:[%s349 + $0x90] sm:$0xff] %v386
                  %v388 = vld [vmem:[%s348 + $0x130] sm:$0xff]
                  %389 = vst [vmem:[%s349 + $0x98] sm:$0xff] %v388
                  %v390 = vld [vmem:[%s348 + $0x140] sm:$0xff]
                  %391 = vst [vmem:[%s349 + $0xa0] sm:$0xff] %v390
                  %v392 = vld [vmem:[%s348 + $0x150] sm:$0xff]
                  %393 = vst [vmem:[%s349 + $0xa8] sm:$0xff] %v392
                  %v394 = vld [vmem:[%s348 + $0x160] sm:$0xff]
                  %395 = vst [vmem:[%s349 + $0xb0] sm:$0xff] %v394
                  %v396 = vld [vmem:[%s348 + $0x170] sm:$0xff]
                  %397 = vst [vmem:[%s349 + $0xb8] sm:$0xff] %v396
                  %v398 = vld [vmem:[%s348 + $0x180] sm:$0xff]
                  %399 = vst [vmem:[%s349 + $0xc0] sm:$0xff] %v398
                  %v400 = vld [vmem:[%s348 + $0x190] sm:$0xff]
                  %401 = vst [vmem:[%s349 + $0xc8] sm:$0xff] %v400
                  %v402 = vld [vmem:[%s348 + $0x1a0] sm:$0xff]
                  %403 = vst [vmem:[%s349 + $0xd0] sm:$0xff] %v402
                  %v404 = vld [vmem:[%s348 + $0x1b0] sm:$0xff]
                  %405 = vst [vmem:[%s349 + $0xd8] sm:$0xff] %v404
                  %v406 = vld [vmem:[%s348 + $0x1c0] sm:$0xff]
                  %407 = vst [vmem:[%s349 + $0xe0] sm:$0xff] %v406
                  %v408 = vld [vmem:[%s348 + $0x1d0] sm:$0xff]
                  %409 = vst [vmem:[%s349 + $0xe8] sm:$0xff] %v408
                  %v410 = vld [vmem:[%s348 + $0x1e0] sm:$0xff]
                  %411 = vst [vmem:[%s349 + $0xf0] sm:$0xff] %v410
                  %v412 = vld [vmem:[%s348 + $0x1f0] sm:$0xff]
                  %413 = vst [vmem:[%s349 + $0xf8] sm:$0xff] %v412
                  %v414 = vld [vmem:[%s348 + $0x200] sm:$0xff]
                  %415 = vst [vmem:[%s349 + $0x100] sm:$0xff] %v414
                  %v416 = vld [vmem:[%s348 + $0x210] sm:$0xff]
                  %417 = vst [vmem:[%s349 + $0x108] sm:$0xff] %v416
                  %v418 = vld [vmem:[%s348 + $0x220] sm:$0xff]
                  %419 = vst [vmem:[%s349 + $0x110] sm:$0xff] %v418
                  %v420 = vld [vmem:[%s348 + $0x230] sm:$0xff]
                  %421 = vst [vmem:[%s349 + $0x118] sm:$0xff] %v420
                  %v422 = vld [vmem:[%s348 + $0x240] sm:$0xff]
                  %423 = vst [vmem:[%s349 + $0x120] sm:$0xff] %v422
                  %v424 = vld [vmem:[%s348 + $0x250] sm:$0xff]
                  %425 = vst [vmem:[%s349 + $0x128] sm:$0xff] %v424
                  %v426 = vld [vmem:[%s348 + $0x260] sm:$0xff]
                  %427 = vst [vmem:[%s349 + $0x130] sm:$0xff] %v426
                  %v428 = vld [vmem:[%s348 + $0x270] sm:$0xff]
                  %429 = vst [vmem:[%s349 + $0x138] sm:$0xff] %v428
                  %v430 = vld [vmem:[%s348 + $0x280] sm:$0xff]
                  %431 = vst [vmem:[%s349 + $0x140] sm:$0xff] %v430
                  %v432 = vld [vmem:[%s348 + $0x290] sm:$0xff]
                  %433 = vst [vmem:[%s349 + $0x148] sm:$0xff] %v432
                  %v434 = vld [vmem:[%s348 + $0x2a0] sm:$0xff]
                  %435 = vst [vmem:[%s349 + $0x150] sm:$0xff] %v434
                  %v436 = vld [vmem:[%s348 + $0x2b0] sm:$0xff]
                  %437 = vst [vmem:[%s349 + $0x158] sm:$0xff] %v436
                  %v438 = vld [vmem:[%s348 + $0x2c0] sm:$0xff]
                  %439 = vst [vmem:[%s349 + $0x160] sm:$0xff] %v438
                  %v440 = vld [vmem:[%s348 + $0x2d0] sm:$0xff]
                  %441 = vst [vmem:[%s349 + $0x168] sm:$0xff] %v440
                  %v442 = vld [vmem:[%s348 + $0x2e0] sm:$0xff]
                  %443 = vst [vmem:[%s349 + $0x170] sm:$0xff] %v442
                  %v444 = vld [vmem:[%s348 + $0x2f0] sm:$0xff]
                  %445 = vst [vmem:[%s349 + $0x178] sm:$0xff] %v444
                  %v446 = vld [vmem:[%s348 + $0x300] sm:$0xff]
                  %447 = vst [vmem:[%s349 + $0x180] sm:$0xff] %v446
                  %v448 = vld [vmem:[%s348 + $0x310] sm:$0xff]
                  %449 = vst [vmem:[%s349 + $0x188] sm:$0xff] %v448
                  %v450 = vld [vmem:[%s348 + $0x320] sm:$0xff]
                  %451 = vst [vmem:[%s349 + $0x190] sm:$0xff] %v450
                  %v452 = vld [vmem:[%s348 + $0x330] sm:$0xff]
                  %453 = vst [vmem:[%s349 + $0x198] sm:$0xff] %v452
                  %v454 = vld [vmem:[%s348 + $0x340] sm:$0xff]
                  %455 = vst [vmem:[%s349 + $0x1a0] sm:$0xff] %v454
                  %v456 = vld [vmem:[%s348 + $0x350] sm:$0xff]
                  %457 = vst [vmem:[%s349 + $0x1a8] sm:$0xff] %v456
                  %v458 = vld [vmem:[%s348 + $0x360] sm:$0xff]
                  %459 = vst [vmem:[%s349 + $0x1b0] sm:$0xff] %v458
                  %v460 = vld [vmem:[%s348 + $0x370] sm:$0xff]
                  %461 = vst [vmem:[%s349 + $0x1b8] sm:$0xff] %v460
                  %v462 = vld [vmem:[%s348 + $0x380] sm:$0xff]
                  %463 = vst [vmem:[%s349 + $0x1c0] sm:$0xff] %v462
                  %v464 = vld [vmem:[%s348 + $0x390] sm:$0xff]
                  %465 = vst [vmem:[%s349 + $0x1c8] sm:$0xff] %v464
                  %v466 = vld [vmem:[%s348 + $0x3a0] sm:$0xff]
                  %467 = vst [vmem:[%s349 + $0x1d0] sm:$0xff] %v466
                  %v468 = vld [vmem:[%s348 + $0x3b0] sm:$0xff]
                  %469 = vst [vmem:[%s349 + $0x1d8] sm:$0xff] %v468
                  %v470 = vld [vmem:[%s348 + $0x3c0] sm:$0xff]
                  %471 = vst [vmem:[%s349 + $0x1e0] sm:$0xff] %v470
                  %v472 = vld [vmem:[%s348 + $0x3d0] sm:$0xff]
                  %473 = vst [vmem:[%s349 + $0x1e8] sm:$0xff] %v472
                  %v474 = vld [vmem:[%s348 + $0x3e0] sm:$0xff]
                  %475 = vst [vmem:[%s349 + $0x1f0] sm:$0xff] %v474
                  %v476 = vld [vmem:[%s348 + $0x3f0] sm:$0xff]
                  %477 = vst [vmem:[%s349 + $0x1f8] sm:$0xff] %v476
                  %v478 = vld [vmem:[%s348 + $0x400] sm:$0xff]
                  %479 = vst [vmem:[%s349 + $0x200] sm:$0xff] %v478
                  %v480 = vld [vmem:[%s348 + $0x410] sm:$0xff]
                  %481 = vst [vmem:[%s349 + $0x208] sm:$0xff] %v480
                  %v482 = vld [vmem:[%s348 + $0x420] sm:$0xff]
                  %483 = vst [vmem:[%s349 + $0x210] sm:$0xff] %v482
                  %v484 = vld [vmem:[%s348 + $0x430] sm:$0xff]
                  %485 = vst [vmem:[%s349 + $0x218] sm:$0xff] %v484
                  %v486 = vld [vmem:[%s348 + $0x440] sm:$0xff]
                  %487 = vst [vmem:[%s349 + $0x220] sm:$0xff] %v486
                  %v488 = vld [vmem:[%s348 + $0x450] sm:$0xff]
                  %489 = vst [vmem:[%s349 + $0x228] sm:$0xff] %v488
                  %v490 = vld [vmem:[%s348 + $0x460] sm:$0xff]
                  %491 = vst [vmem:[%s349 + $0x230] sm:$0xff] %v490
                  %v492 = vld [vmem:[%s348 + $0x470] sm:$0xff]
                  %493 = vst [vmem:[%s349 + $0x238] sm:$0xff] %v492
                  %v494 = vld [vmem:[%s348 + $0x480] sm:$0xff]
                  %495 = vst [vmem:[%s349 + $0x240] sm:$0xff] %v494
                  %v496 = vld [vmem:[%s348 + $0x490] sm:$0xff]
                  %497 = vst [vmem:[%s349 + $0x248] sm:$0xff] %v496
                  %v498 = vld [vmem:[%s348 + $0x4a0] sm:$0xff]
                  %499 = vst [vmem:[%s349 + $0x250] sm:$0xff] %v498
                  %v500 = vld [vmem:[%s348 + $0x4b0] sm:$0xff]
                  %501 = vst [vmem:[%s349 + $0x258] sm:$0xff] %v500
                  %v502 = vld [vmem:[%s348 + $0x4c0] sm:$0xff]
                  %503 = vst [vmem:[%s349 + $0x260] sm:$0xff] %v502
                  %v504 = vld [vmem:[%s348 + $0x4d0] sm:$0xff]
                  %505 = vst [vmem:[%s349 + $0x268] sm:$0xff] %v504
                  %v506 = vld [vmem:[%s348 + $0x4e0] sm:$0xff]
                  %507 = vst [vmem:[%s349 + $0x270] sm:$0xff] %v506
                  %v508 = vld [vmem:[%s348 + $0x4f0] sm:$0xff]
                  %509 = vst [vmem:[%s349 + $0x278] sm:$0xff] %v508
                $region60: #{deepbind_forward.1} parent=54 // loop_footer
                  %s347 = sadd.s32 1, %s343
                $region61: #{deepbind_forward.1} parent=54 // loop_footer_branch
                  %342 = sbr.rel target = $region57
                $region62: #{deepbind_forward.1} parent=54 // loop_exit
                  _
              $region55: #{deepbind_forward.1} parent=39 // pred_fallthru
                _
              // Predicated region
              $region63: #{deepbind_forward.1} parent=39 // pred_check
                _
              $region64: #{deepbind_forward.1} parent=39 // pred_check_branch
                %511 = sbr.rel target = $region66
              $region65: #{deepbind_forward.1} parent=39 // pred_region
                _
              $region66: #{deepbind_forward.1} parent=39 // pred_fallthru
                _
            $region40: #{deepbind_forward.1} parent=35 // pred_fallthru
              _
            // Predicated region
            $region41: #{deepbind_forward.1} parent=35 // pred_check
              _
            $region42: #{deepbind_forward.1} parent=35 // pred_check_branch
              %169 = sbr.rel target = $region44
            $region43: #{deepbind_forward.1} parent=35 // pred_region
              %s171 = ssub.s32 256, 1
              loop: start=0, step=1, limit=1
              $region45: #{deepbind_forward.1} parent=43 // loop_pre_header
                _
              $region46: #{deepbind_forward.1} parent=43 // loop_header
                %s173 = sphi 0, %s177
                %p174 = scmp.ge.s32.totalorder %s173, 1
                %s178 = sphi %s163, %s163
                %s179 = sphi %s161, %s161
              $region47: #{deepbind_forward.1} parent=43 // loop_header_branch
                %176 = sbr.rel (%p174) target = $region51
              $region48: #{deepbind_forward.1} parent=43 // loop_body
                %v180 = vld [vmem:[%s178] sm:%s171]
                %181 = vst [vmem:[%s179] sm:%s171] %v180
                %v182 = vld [vmem:[%s178 + $0x10] sm:%s171]
                %183 = vst [vmem:[%s179 + $0x8] sm:%s171] %v182
                %v184 = vld [vmem:[%s178 + $0x20] sm:%s171]
                %185 = vst [vmem:[%s179 + $0x10] sm:%s171] %v184
                %v186 = vld [vmem:[%s178 + $0x30] sm:%s171]
                %187 = vst [vmem:[%s179 + $0x18] sm:%s171] %v186
                %v188 = vld [vmem:[%s178 + $0x40] sm:%s171]
                %189 = vst [vmem:[%s179 + $0x20] sm:%s171] %v188
                %v190 = vld [vmem:[%s178 + $0x50] sm:%s171]
                %191 = vst [vmem:[%s179 + $0x28] sm:%s171] %v190
                %v192 = vld [vmem:[%s178 + $0x60] sm:%s171]
                %193 = vst [vmem:[%s179 + $0x30] sm:%s171] %v192
                %v194 = vld [vmem:[%s178 + $0x70] sm:%s171]
                %195 = vst [vmem:[%s179 + $0x38] sm:%s171] %v194
                %v196 = vld [vmem:[%s178 + $0x80] sm:%s171]
                %197 = vst [vmem:[%s179 + $0x40] sm:%s171] %v196
                %v198 = vld [vmem:[%s178 + $0x90] sm:%s171]
                %199 = vst [vmem:[%s179 + $0x48] sm:%s171] %v198
                %v200 = vld [vmem:[%s178 + $0xa0] sm:%s171]
                %201 = vst [vmem:[%s179 + $0x50] sm:%s171] %v200
                %v202 = vld [vmem:[%s178 + $0xb0] sm:%s171]
                %203 = vst [vmem:[%s179 + $0x58] sm:%s171] %v202
                %v204 = vld [vmem:[%s178 + $0xc0] sm:%s171]
                %205 = vst [vmem:[%s179 + $0x60] sm:%s171] %v204
                %v206 = vld [vmem:[%s178 + $0xd0] sm:%s171]
                %207 = vst [vmem:[%s179 + $0x68] sm:%s171] %v206
                %v208 = vld [vmem:[%s178 + $0xe0] sm:%s171]
                %209 = vst [vmem:[%s179 + $0x70] sm:%s171] %v208
                %v210 = vld [vmem:[%s178 + $0xf0] sm:%s171]
                %211 = vst [vmem:[%s179 + $0x78] sm:%s171] %v210
                %v212 = vld [vmem:[%s178 + $0x100] sm:%s171]
                %213 = vst [vmem:[%s179 + $0x80] sm:%s171] %v212
                %v214 = vld [vmem:[%s178 + $0x110] sm:%s171]
                %215 = vst [vmem:[%s179 + $0x88] sm:%s171] %v214
                %v216 = vld [vmem:[%s178 + $0x120] sm:%s171]
                %217 = vst [vmem:[%s179 + $0x90] sm:%s171] %v216
                %v218 = vld [vmem:[%s178 + $0x130] sm:%s171]
                %219 = vst [vmem:[%s179 + $0x98] sm:%s171] %v218
                %v220 = vld [vmem:[%s178 + $0x140] sm:%s171]
                %221 = vst [vmem:[%s179 + $0xa0] sm:%s171] %v220
                %v222 = vld [vmem:[%s178 + $0x150] sm:%s171]
                %223 = vst [vmem:[%s179 + $0xa8] sm:%s171] %v222
                %v224 = vld [vmem:[%s178 + $0x160] sm:%s171]
                %225 = vst [vmem:[%s179 + $0xb0] sm:%s171] %v224
                %v226 = vld [vmem:[%s178 + $0x170] sm:%s171]
                %227 = vst [vmem:[%s179 + $0xb8] sm:%s171] %v226
                %v228 = vld [vmem:[%s178 + $0x180] sm:%s171]
                %229 = vst [vmem:[%s179 + $0xc0] sm:%s171] %v228
                %v230 = vld [vmem:[%s178 + $0x190] sm:%s171]
                %231 = vst [vmem:[%s179 + $0xc8] sm:%s171] %v230
                %v232 = vld [vmem:[%s178 + $0x1a0] sm:%s171]
                %233 = vst [vmem:[%s179 + $0xd0] sm:%s171] %v232
                %v234 = vld [vmem:[%s178 + $0x1b0] sm:%s171]
                %235 = vst [vmem:[%s179 + $0xd8] sm:%s171] %v234
                %v236 = vld [vmem:[%s178 + $0x1c0] sm:%s171]
                %237 = vst [vmem:[%s179 + $0xe0] sm:%s171] %v236
                %v238 = vld [vmem:[%s178 + $0x1d0] sm:%s171]
                %239 = vst [vmem:[%s179 + $0xe8] sm:%s171] %v238
                %v240 = vld [vmem:[%s178 + $0x1e0] sm:%s171]
                %241 = vst [vmem:[%s179 + $0xf0] sm:%s171] %v240
                %v242 = vld [vmem:[%s178 + $0x1f0] sm:%s171]
                %243 = vst [vmem:[%s179 + $0xf8] sm:%s171] %v242
                %v244 = vld [vmem:[%s178 + $0x200] sm:%s171]
                %245 = vst [vmem:[%s179 + $0x100] sm:%s171] %v244
                %v246 = vld [vmem:[%s178 + $0x210] sm:%s171]
                %247 = vst [vmem:[%s179 + $0x108] sm:%s171] %v246
                %v248 = vld [vmem:[%s178 + $0x220] sm:%s171]
                %249 = vst [vmem:[%s179 + $0x110] sm:%s171] %v248
                %v250 = vld [vmem:[%s178 + $0x230] sm:%s171]
                %251 = vst [vmem:[%s179 + $0x118] sm:%s171] %v250
                %v252 = vld [vmem:[%s178 + $0x240] sm:%s171]
                %253 = vst [vmem:[%s179 + $0x120] sm:%s171] %v252
                %v254 = vld [vmem:[%s178 + $0x250] sm:%s171]
                %255 = vst [vmem:[%s179 + $0x128] sm:%s171] %v254
                %v256 = vld [vmem:[%s178 + $0x260] sm:%s171]
                %257 = vst [vmem:[%s179 + $0x130] sm:%s171] %v256
                %v258 = vld [vmem:[%s178 + $0x270] sm:%s171]
                %259 = vst [vmem:[%s179 + $0x138] sm:%s171] %v258
                %v260 = vld [vmem:[%s178 + $0x280] sm:%s171]
                %261 = vst [vmem:[%s179 + $0x140] sm:%s171] %v260
                %v262 = vld [vmem:[%s178 + $0x290] sm:%s171]
                %263 = vst [vmem:[%s179 + $0x148] sm:%s171] %v262
                %v264 = vld [vmem:[%s178 + $0x2a0] sm:%s171]
                %265 = vst [vmem:[%s179 + $0x150] sm:%s171] %v264
                %v266 = vld [vmem:[%s178 + $0x2b0] sm:%s171]
                %267 = vst [vmem:[%s179 + $0x158] sm:%s171] %v266
                %v268 = vld [vmem:[%s178 + $0x2c0] sm:%s171]
                %269 = vst [vmem:[%s179 + $0x160] sm:%s171] %v268
                %v270 = vld [vmem:[%s178 + $0x2d0] sm:%s171]
                %271 = vst [vmem:[%s179 + $0x168] sm:%s171] %v270
                %v272 = vld [vmem:[%s178 + $0x2e0] sm:%s171]
                %273 = vst [vmem:[%s179 + $0x170] sm:%s171] %v272
                %v274 = vld [vmem:[%s178 + $0x2f0] sm:%s171]
                %275 = vst [vmem:[%s179 + $0x178] sm:%s171] %v274
                %v276 = vld [vmem:[%s178 + $0x300] sm:%s171]
                %277 = vst [vmem:[%s179 + $0x180] sm:%s171] %v276
                %v278 = vld [vmem:[%s178 + $0x310] sm:%s171]
                %279 = vst [vmem:[%s179 + $0x188] sm:%s171] %v278
                %v280 = vld [vmem:[%s178 + $0x320] sm:%s171]
                %281 = vst [vmem:[%s179 + $0x190] sm:%s171] %v280
                %v282 = vld [vmem:[%s178 + $0x330] sm:%s171]
                %283 = vst [vmem:[%s179 + $0x198] sm:%s171] %v282
                %v284 = vld [vmem:[%s178 + $0x340] sm:%s171]
                %285 = vst [vmem:[%s179 + $0x1a0] sm:%s171] %v284
                %v286 = vld [vmem:[%s178 + $0x350] sm:%s171]
                %287 = vst [vmem:[%s179 + $0x1a8] sm:%s171] %v286
                %v288 = vld [vmem:[%s178 + $0x360] sm:%s171]
                %289 = vst [vmem:[%s179 + $0x1b0] sm:%s171] %v288
                %v290 = vld [vmem:[%s178 + $0x370] sm:%s171]
                %291 = vst [vmem:[%s179 + $0x1b8] sm:%s171] %v290
                %v292 = vld [vmem:[%s178 + $0x380] sm:%s171]
                %293 = vst [vmem:[%s179 + $0x1c0] sm:%s171] %v292
                %v294 = vld [vmem:[%s178 + $0x390] sm:%s171]
                %295 = vst [vmem:[%s179 + $0x1c8] sm:%s171] %v294
                %v296 = vld [vmem:[%s178 + $0x3a0] sm:%s171]
                %297 = vst [vmem:[%s179 + $0x1d0] sm:%s171] %v296
                %v298 = vld [vmem:[%s178 + $0x3b0] sm:%s171]
                %299 = vst [vmem:[%s179 + $0x1d8] sm:%s171] %v298
                %v300 = vld [vmem:[%s178 + $0x3c0] sm:%s171]
                %301 = vst [vmem:[%s179 + $0x1e0] sm:%s171] %v300
                %v302 = vld [vmem:[%s178 + $0x3d0] sm:%s171]
                %303 = vst [vmem:[%s179 + $0x1e8] sm:%s171] %v302
                %v304 = vld [vmem:[%s178 + $0x3e0] sm:%s171]
                %305 = vst [vmem:[%s179 + $0x1f0] sm:%s171] %v304
                %v306 = vld [vmem:[%s178 + $0x3f0] sm:%s171]
                %307 = vst [vmem:[%s179 + $0x1f8] sm:%s171] %v306
                %v308 = vld [vmem:[%s178 + $0x400] sm:%s171]
                %309 = vst [vmem:[%s179 + $0x200] sm:%s171] %v308
                %v310 = vld [vmem:[%s178 + $0x410] sm:%s171]
                %311 = vst [vmem:[%s179 + $0x208] sm:%s171] %v310
                %v312 = vld [vmem:[%s178 + $0x420] sm:%s171]
                %313 = vst [vmem:[%s179 + $0x210] sm:%s171] %v312
                %v314 = vld [vmem:[%s178 + $0x430] sm:%s171]
                %315 = vst [vmem:[%s179 + $0x218] sm:%s171] %v314
                %v316 = vld [vmem:[%s178 + $0x440] sm:%s171]
                %317 = vst [vmem:[%s179 + $0x220] sm:%s171] %v316
                %v318 = vld [vmem:[%s178 + $0x450] sm:%s171]
                %319 = vst [vmem:[%s179 + $0x228] sm:%s171] %v318
                %v320 = vld [vmem:[%s178 + $0x460] sm:%s171]
                %321 = vst [vmem:[%s179 + $0x230] sm:%s171] %v320
                %v322 = vld [vmem:[%s178 + $0x470] sm:%s171]
                %323 = vst [vmem:[%s179 + $0x238] sm:%s171] %v322
                %v324 = vld [vmem:[%s178 + $0x480] sm:%s171]
                %325 = vst [vmem:[%s179 + $0x240] sm:%s171] %v324
                %v326 = vld [vmem:[%s178 + $0x490] sm:%s171]
                %327 = vst [vmem:[%s179 + $0x248] sm:%s171] %v326
                %v328 = vld [vmem:[%s178 + $0x4a0] sm:%s171]
                %329 = vst [vmem:[%s179 + $0x250] sm:%s171] %v328
                %v330 = vld [vmem:[%s178 + $0x4b0] sm:%s171]
                %331 = vst [vmem:[%s179 + $0x258] sm:%s171] %v330
                %v332 = vld [vmem:[%s178 + $0x4c0] sm:%s171]
                %333 = vst [vmem:[%s179 + $0x260] sm:%s171] %v332
                %v334 = vld [vmem:[%s178 + $0x4d0] sm:%s171]
                %335 = vst [vmem:[%s179 + $0x268] sm:%s171] %v334
                %v336 = vld [vmem:[%s178 + $0x4e0] sm:%s171]
                %337 = vst [vmem:[%s179 + $0x270] sm:%s171] %v336
                %v338 = vld [vmem:[%s178 + $0x4f0] sm:%s171]
                %339 = vst [vmem:[%s179 + $0x278] sm:%s171] %v338
              $region49: #{deepbind_forward.1} parent=43 // loop_footer
                %s177 = sadd.s32 1, %s173
              $region50: #{deepbind_forward.1} parent=43 // loop_footer_branch
                %172 = sbr.rel target = $region46
              $region51: #{deepbind_forward.1} parent=43 // loop_exit
                _
            $region44: #{deepbind_forward.1} parent=35 // pred_fallthru
              _
          $region36: #{deepbind_forward.1} parent=31 // pred_fallthru
            _
          %512 = vnop
        $region32: #{deepbind_forward.1} parent=27 // pred_fallthru
          _
      $region28: #{deepbind_forward.1} parent=5 // pred_fallthru
        _
      %p513 = scmp.le.s32.totalorder 1, %s12
      %p514 = scmp.lt.s32.totalorder %s12, 3
      %p515 = pnand %p513, %p514
      %p516 = pneg %p515
      // Predicated region
      $region67: #{deepbind_forward.1} parent=5 // pred_check
        _
      $region68: #{deepbind_forward.1} parent=5 // pred_check_branch
        %518 = sbr.rel (%p515) target = $region70
      $region69: #{deepbind_forward.1} parent=5 // pred_region
        %s519 = ssub.s32 %s12, 1
        %s520 = sand.u32 %s46, 1
        %s521 = sand.u32 %s46, 1
        %s522 = smul.addr %s521, 640
        %s523 = scalar_lea.vmem [#allocation3], %s522
        // Predicated region
        $region71: #{deepbind_forward.1} parent=69 // pred_check
          %p524 = pneg %p59
        $region72: #{deepbind_forward.1} parent=69 // pred_check_branch
          %526 = sbr.rel (%p524) target = $region74
        $region73: #{deepbind_forward.1} parent=69 // pred_region
          _
        $region74: #{deepbind_forward.1} parent=69 // pred_fallthru
          _
        %p527 = pneg %p33
        %p528 = pneg %p30
        %s529 = sand.u32 %s46, 1
        %s530 = sand.u32 %s46, 1
        %s531 = smul.addr %s530, 640
        %s532 = scalar_lea.vmem [#allocation3], %s531
        %p533 = pneg %p59
        %p534 = pneg %p56
        %p535 = pneg %p80
        %p536 = pneg %p77
        %p537 = pneg %p101
        %p538 = pneg %p98
        %p539 = pneg %p127
        %p540 = pneg %p124
        %p541 = scmp.lt.s32.totalorder %s17, 1
        %s542 = scalar_select %p541, %s17, 1
        %s543 = scalar_lea.vmem %s4, %s542
        %p544 = scmp.lt.s32.totalorder %s17, 1
        %s545 = scalar_select %p544, %s17, 1
        %s546 = scalar_lea.vmem %s4, %s545
        %v547 = vld [vmem:[%s0] sm:$0xff]
        %v548 = vld [vmem:[%s0 + $0x8] sm:$0xff]
        %v549 = vld [vmem:[%s0 + $0x10] sm:$0xff]
        %v550 = vld [vmem:[%s0 + $0x18] sm:$0xff]
        %v551 = vld [vmem:[%s0 + $0x20] sm:$0xff]
        %v552 = vld [vmem:[%s0 + $0x28] sm:$0xff]
        %v553 = vld [vmem:[%s0 + $0x30] sm:$0xff]
        %v554 = vld [vmem:[%s0 + $0x38] sm:$0xff]
        %v555 = vld [vmem:[%s0 + $0x40] sm:$0xff]
        %v556 = vld [vmem:[%s0 + $0x48] sm:$0xff]
        %v557 = vld [vmem:[%s0 + $0x50] sm:$0xff]
        %v558 = vld [vmem:[%s0 + $0x58] sm:$0xff]
        %v559 = vld [vmem:[%s0 + $0x60] sm:$0xff]
        %v560 = vld [vmem:[%s0 + $0x68] sm:$0xff]
        %v561 = vld [vmem:[%s0 + $0x70] sm:$0xff]
        %v562 = vld [vmem:[%s0 + $0x78] sm:$0xff]
        %v563 = vld [vmem:[%s0 + $0x80] sm:$0xff]
        %v564 = vld [vmem:[%s0 + $0x88] sm:$0xff]
        %v565 = vld [vmem:[%s0 + $0x90] sm:$0xff]
        %v566 = vld [vmem:[%s0 + $0x98] sm:$0xff]
        %v567 = vld [vmem:[%s0 + $0xa0] sm:$0xff]
        %v568 = vld [vmem:[%s0 + $0xa8] sm:$0xff]
        %v569 = vld [vmem:[%s0 + $0xb0] sm:$0xff]
        %v570 = vld [vmem:[%s0 + $0xb8] sm:$0xff]
        %v571 = vld [vmem:[%s0 + $0xc0] sm:$0xff]
        %v572 = vld [vmem:[%s0 + $0xc8] sm:$0xff]
        %v573 = vld [vmem:[%s0 + $0xd0] sm:$0xff]
        %v574 = vld [vmem:[%s0 + $0xd8] sm:$0xff]
        %v575 = vld [vmem:[%s0 + $0xe0] sm:$0xff]
        %v576 = vld [vmem:[%s0 + $0xe8] sm:$0xff]
        %v577 = vld [vmem:[%s0 + $0xf0] sm:$0xff]
        %v578 = vld [vmem:[%s0 + $0xf8] sm:$0xff]
        %v579 = vld [vmem:[%s0 + $0x100] sm:$0xff]
        %v580 = vld [vmem:[%s0 + $0x108] sm:$0xff]
        %v581 = vld [vmem:[%s0 + $0x110] sm:$0xff]
        %v582 = vld [vmem:[%s0 + $0x118] sm:$0xff]
        %v583 = vld [vmem:[%s0 + $0x120] sm:$0xff]
        %v584 = vld [vmem:[%s0 + $0x128] sm:$0xff]
        %v585 = vld [vmem:[%s0 + $0x130] sm:$0xff]
        %v586 = vld [vmem:[%s0 + $0x138] sm:$0xff]
        %v587 = vld [vmem:[%s0 + $0x140] sm:$0xff]
        %v588 = vld [vmem:[%s0 + $0x148] sm:$0xff]
        %v589 = vld [vmem:[%s0 + $0x150] sm:$0xff]
        %v590 = vld [vmem:[%s0 + $0x158] sm:$0xff]
        %v591 = vld [vmem:[%s0 + $0x160] sm:$0xff]
        %v592 = vld [vmem:[%s0 + $0x168] sm:$0xff]
        %v593 = vld [vmem:[%s0 + $0x170] sm:$0xff]
        %v594 = vld [vmem:[%s0 + $0x178] sm:$0xff]
        %v595 = vld [vmem:[%s0 + $0x180] sm:$0xff]
        %v596 = vld [vmem:[%s0 + $0x188] sm:$0xff]
        %v597 = vld [vmem:[%s0 + $0x190] sm:$0xff]
        %v598 = vld [vmem:[%s0 + $0x198] sm:$0xff]
        %v599 = vld [vmem:[%s0 + $0x1a0] sm:$0xff]
        %v600 = vld [vmem:[%s0 + $0x1a8] sm:$0xff]
        %v601 = vld [vmem:[%s0 + $0x1b0] sm:$0xff]
        %v602 = vld [vmem:[%s0 + $0x1b8] sm:$0xff]
        %v603 = vld [vmem:[%s0 + $0x1c0] sm:$0xff]
        %v604 = vld [vmem:[%s0 + $0x1c8] sm:$0xff]
        %v605 = vld [vmem:[%s0 + $0x1d0] sm:$0xff]
        %v606 = vld [vmem:[%s0 + $0x1d8] sm:$0xff]
        %v607 = vld [vmem:[%s0 + $0x1e0] sm:$0xff]
        %v608 = vld [vmem:[%s0 + $0x1e8] sm:$0xff]
        %v609 = vld [vmem:[%s0 + $0x1f0] sm:$0xff]
        %v610 = vld [vmem:[%s0 + $0x1f8] sm:$0xff]
        %v611 = vld [vmem:[%s0 + $0x200] sm:$0xff]
        %v612 = vld [vmem:[%s0 + $0x208] sm:$0xff]
        %v613 = vld [vmem:[%s0 + $0x210] sm:$0xff]
        %v614 = vld [vmem:[%s0 + $0x218] sm:$0xff]
        %v615 = vld [vmem:[%s0 + $0x220] sm:$0xff]
        %v616 = vld [vmem:[%s0 + $0x228] sm:$0xff]
        %v617 = vld [vmem:[%s0 + $0x230] sm:$0xff]
        %v618 = vld [vmem:[%s0 + $0x238] sm:$0xff]
        %v619 = vld [vmem:[%s0 + $0x240] sm:$0xff]
        %v620 = vld [vmem:[%s0 + $0x248] sm:$0xff]
        %v621 = vld [vmem:[%s0 + $0x250] sm:$0xff]
        %v622 = vld [vmem:[%s0 + $0x258] sm:$0xff]
        %v623 = vld [vmem:[%s0 + $0x260] sm:$0xff]
        %v624 = vld [vmem:[%s0 + $0x268] sm:$0xff]
        %v625 = vld [vmem:[%s0 + $0x270] sm:$0xff]
        %v626 = vld [vmem:[%s0 + $0x278] sm:$0xff]
        %v627 = vld [vmem:[%s0 + $0x280] sm:$0xff]
        %v628 = vld [vmem:[%s0 + $0x288] sm:$0xff]
        %v629 = vld [vmem:[%s0 + $0x290] sm:$0xff]
        %v630 = vld [vmem:[%s0 + $0x298] sm:$0xff]
        %v631 = vld [vmem:[%s0 + $0x2a0] sm:$0xff]
        %v632 = vld [vmem:[%s0 + $0x2a8] sm:$0xff]
        %v633 = vld [vmem:[%s0 + $0x2b0] sm:$0xff]
        %v634 = vld [vmem:[%s0 + $0x2b8] sm:$0xff]
        %v635 = vld [vmem:[%s0 + $0x2c0] sm:$0xff]
        %v636 = vld [vmem:[%s0 + $0x2c8] sm:$0xff]
        %v637 = vld [vmem:[%s0 + $0x2d0] sm:$0xff]
        %v638 = vld [vmem:[%s0 + $0x2d8] sm:$0xff]
        %v639 = vld [vmem:[%s0 + $0x2e0] sm:$0xff]
        %v640 = vld [vmem:[%s0 + $0x2e8] sm:$0xff]
        %v641 = vld [vmem:[%s0 + $0x2f0] sm:$0xff]
        %v642 = vld [vmem:[%s0 + $0x2f8] sm:$0xff]
        %v643 = vld [vmem:[%s0 + $0x300] sm:$0xff]
        %v644 = vld [vmem:[%s0 + $0x308] sm:$0xff]
        %v645 = vld [vmem:[%s0 + $0x310] sm:$0xff]
        %v646 = vld [vmem:[%s0 + $0x318] sm:$0xff]
        %v647 = vld [vmem:[%s0 + $0x320] sm:$0xff]
        %v648 = vld [vmem:[%s0 + $0x328] sm:$0xff]
        %v649 = vld [vmem:[%s0 + $0x330] sm:$0xff]
        %v650 = vld [vmem:[%s0 + $0x338] sm:$0xff]
        %v651 = vld [vmem:[%s0 + $0x340] sm:$0xff]
        %v652 = vld [vmem:[%s0 + $0x348] sm:$0xff]
        %v653 = vld [vmem:[%s0 + $0x350] sm:$0xff]
        %v654 = vld [vmem:[%s0 + $0x358] sm:$0xff]
        %v655 = vld [vmem:[%s0 + $0x360] sm:$0xff]
        %v656 = vld [vmem:[%s0 + $0x368] sm:$0xff]
        %v657 = vld [vmem:[%s0 + $0x370] sm:$0xff]
        %v658 = vld [vmem:[%s0 + $0x378] sm:$0xff]
        %v659 = vld [vmem:[%s0 + $0x380] sm:$0xff]
        %v660 = vld [vmem:[%s0 + $0x388] sm:$0xff]
        %v661 = vld [vmem:[%s0 + $0x390] sm:$0xff]
        %v662 = vld [vmem:[%s0 + $0x398] sm:$0xff]
        %v663 = vld [vmem:[%s0 + $0x3a0] sm:$0xff]
        %v664 = vld [vmem:[%s0 + $0x3a8] sm:$0xff]
        %v665 = vld [vmem:[%s0 + $0x3b0] sm:$0xff]
        %v666 = vld [vmem:[%s0 + $0x3b8] sm:$0xff]
        %v667 = vld [vmem:[%s0 + $0x3c0] sm:$0xff]
        %v668 = vld [vmem:[%s0 + $0x3c8] sm:$0xff]
        %v669 = vld [vmem:[%s0 + $0x3d0] sm:$0xff]
        %v670 = vld [vmem:[%s0 + $0x3d8] sm:$0xff]
        %v671 = vld [vmem:[%s0 + $0x3e0] sm:$0xff]
        %v672 = vld [vmem:[%s0 + $0x3e8] sm:$0xff]
        %v673 = vld [vmem:[%s0 + $0x3f0] sm:$0xff]
        %v674 = vld [vmem:[%s0 + $0x3f8] sm:$0xff]
        %v675 = vld [vmem:[%s0 + $0x400] sm:$0xff]
        %v676 = vld [vmem:[%s0 + $0x408] sm:$0xff]
        %v677 = vld [vmem:[%s0 + $0x410] sm:$0xff]
        %v678 = vld [vmem:[%s0 + $0x418] sm:$0xff]
        %v679 = vld [vmem:[%s0 + $0x420] sm:$0xff]
        %v680 = vld [vmem:[%s0 + $0x428] sm:$0xff]
        %v681 = vld [vmem:[%s0 + $0x430] sm:$0xff]
        %v682 = vld [vmem:[%s0 + $0x438] sm:$0xff]
        %v683 = vld [vmem:[%s0 + $0x440] sm:$0xff]
        %v684 = vld [vmem:[%s0 + $0x448] sm:$0xff]
        %v685 = vld [vmem:[%s0 + $0x450] sm:$0xff]
        %v686 = vld [vmem:[%s0 + $0x458] sm:$0xff]
        %v687 = vld [vmem:[%s0 + $0x460] sm:$0xff]
        %v688 = vld [vmem:[%s0 + $0x468] sm:$0xff]
        %v689 = vld [vmem:[%s0 + $0x470] sm:$0xff]
        %v690 = vld [vmem:[%s0 + $0x478] sm:$0xff]
        %v691 = vld [vmem:[%s0 + $0x480] sm:$0xff]
        %v692 = vld [vmem:[%s0 + $0x488] sm:$0xff]
        %v693 = vld [vmem:[%s0 + $0x490] sm:$0xff]
        %v694 = vld [vmem:[%s0 + $0x498] sm:$0xff]
        %v695 = vld [vmem:[%s0 + $0x4a0] sm:$0xff]
        %v696 = vld [vmem:[%s0 + $0x4a8] sm:$0xff]
        %v697 = vld [vmem:[%s0 + $0x4b0] sm:$0xff]
        %v698 = vld [vmem:[%s0 + $0x4b8] sm:$0xff]
        %v699 = vld [vmem:[%s0 + $0x4c0] sm:$0xff]
        %v700 = vld [vmem:[%s0 + $0x4c8] sm:$0xff]
        %v701 = vld [vmem:[%s0 + $0x4d0] sm:$0xff]
        %v702 = vld [vmem:[%s0 + $0x4d8] sm:$0xff]
        %v703 = vld [vmem:[%s0 + $0x4e0] sm:$0xff]
        %v704 = vld [vmem:[%s0 + $0x4e8] sm:$0xff]
        %v705 = vld [vmem:[%s0 + $0x4f0] sm:$0xff]
        %v706 = vld [vmem:[%s0 + $0x4f8] sm:$0xff]
        %v707 = vld [vmem:[%s0 + $0x500] sm:$0xff]
        %v708 = vld [vmem:[%s0 + $0x508] sm:$0xff]
        %v709 = vld [vmem:[%s0 + $0x510] sm:$0xff]
        %v710 = vld [vmem:[%s0 + $0x518] sm:$0xff]
        %v711 = vld [vmem:[%s0 + $0x520] sm:$0xff]
        %v712 = vld [vmem:[%s0 + $0x528] sm:$0xff]
        %v713 = vld [vmem:[%s0 + $0x530] sm:$0xff]
        %v714 = vld [vmem:[%s0 + $0x538] sm:$0xff]
        %v715 = vld [vmem:[%s0 + $0x540] sm:$0xff]
        %v716 = vld [vmem:[%s0 + $0x548] sm:$0xff]
        %v717 = vld [vmem:[%s0 + $0x550] sm:$0xff]
        %v718 = vld [vmem:[%s0 + $0x558] sm:$0xff]
        %v719 = vld [vmem:[%s0 + $0x560] sm:$0xff]
        %v720 = vld [vmem:[%s0 + $0x568] sm:$0xff]
        %v721 = vld [vmem:[%s0 + $0x570] sm:$0xff]
        %v722 = vld [vmem:[%s0 + $0x578] sm:$0xff]
        %v723 = vld [vmem:[%s0 + $0x580] sm:$0xff]
        %v724 = vld [vmem:[%s0 + $0x588] sm:$0xff]
        %v725 = vld [vmem:[%s0 + $0x590] sm:$0xff]
        %v726 = vld [vmem:[%s0 + $0x598] sm:$0xff]
        %v727 = vld [vmem:[%s0 + $0x5a0] sm:$0xff]
        %v728 = vld [vmem:[%s0 + $0x5a8] sm:$0xff]
        %v729 = vld [vmem:[%s0 + $0x5b0] sm:$0xff]
        %v730 = vld [vmem:[%s0 + $0x5b8] sm:$0xff]
        %v731 = vld [vmem:[%s0 + $0x5c0] sm:$0xff]
        %v732 = vld [vmem:[%s0 + $0x5c8] sm:$0xff]
        %v733 = vld [vmem:[%s0 + $0x5d0] sm:$0xff]
        %v734 = vld [vmem:[%s0 + $0x5d8] sm:$0xff]
        %v735 = vld [vmem:[%s0 + $0x5e0] sm:$0xff]
        %v736 = vld [vmem:[%s0 + $0x5e8] sm:$0xff]
        %v737 = vld [vmem:[%s0 + $0x5f0] sm:$0xff]
        %v738 = vld [vmem:[%s0 + $0x5f8] sm:$0xff]
        %v739 = vld [vmem:[%s0 + $0x600] sm:$0xff]
        %v740 = vld [vmem:[%s0 + $0x608] sm:$0xff]
        %v741 = vld [vmem:[%s0 + $0x610] sm:$0xff]
        %v742 = vld [vmem:[%s0 + $0x618] sm:$0xff]
        %v743 = vld [vmem:[%s0 + $0x620] sm:$0xff]
        %v744 = vld [vmem:[%s0 + $0x628] sm:$0xff]
        %v745 = vld [vmem:[%s0 + $0x630] sm:$0xff]
        %v746 = vld [vmem:[%s0 + $0x638] sm:$0xff]
        %v747 = vld [vmem:[%s0 + $0x640] sm:$0xff]
        %v748 = vld [vmem:[%s0 + $0x648] sm:$0xff]
        %v749 = vld [vmem:[%s0 + $0x650] sm:$0xff]
        %v750 = vld [vmem:[%s0 + $0x658] sm:$0xff]
        %v751 = vld [vmem:[%s0 + $0x660] sm:$0xff]
        %v752 = vld [vmem:[%s0 + $0x668] sm:$0xff]
        %v753 = vld [vmem:[%s0 + $0x670] sm:$0xff]
        %v754 = vld [vmem:[%s0 + $0x678] sm:$0xff]
        %v755 = vld [vmem:[%s0 + $0x680] sm:$0xff]
        %v756 = vld [vmem:[%s0 + $0x688] sm:$0xff]
        %v757 = vld [vmem:[%s0 + $0x690] sm:$0xff]
        %v758 = vld [vmem:[%s0 + $0x698] sm:$0xff]
        %v759 = vld [vmem:[%s0 + $0x6a0] sm:$0xff]
        %v760 = vld [vmem:[%s0 + $0x6a8] sm:$0xff]
        %v761 = vld [vmem:[%s0 + $0x6b0] sm:$0xff]
        %v762 = vld [vmem:[%s0 + $0x6b8] sm:$0xff]
        %v763 = vld [vmem:[%s0 + $0x6c0] sm:$0xff]
        %v764 = vld [vmem:[%s0 + $0x6c8] sm:$0xff]
        %v765 = vld [vmem:[%s0 + $0x6d0] sm:$0xff]
        %v766 = vld [vmem:[%s0 + $0x6d8] sm:$0xff]
        %v767 = vld [vmem:[%s0 + $0x6e0] sm:$0xff]
        %v768 = vld [vmem:[%s0 + $0x6e8] sm:$0xff]
        %v769 = vld [vmem:[%s0 + $0x6f0] sm:$0xff]
        %v770 = vld [vmem:[%s0 + $0x6f8] sm:$0xff]
        %v771 = vld [vmem:[%s0 + $0x700] sm:$0xff]
        %v772 = vld [vmem:[%s0 + $0x708] sm:$0xff]
        %v773 = vld [vmem:[%s0 + $0x710] sm:$0xff]
        %v774 = vld [vmem:[%s0 + $0x718] sm:$0xff]
        %v775 = vld [vmem:[%s0 + $0x720] sm:$0xff]
        %v776 = vld [vmem:[%s0 + $0x728] sm:$0xff]
        %v777 = vld [vmem:[%s0 + $0x730] sm:$0xff]
        %v778 = vld [vmem:[%s0 + $0x738] sm:$0xff]
        %v779 = vld [vmem:[%s0 + $0x740] sm:$0xff]
        %v780 = vld [vmem:[%s0 + $0x748] sm:$0xff]
        %v781 = vld [vmem:[%s0 + $0x750] sm:$0xff]
        %v782 = vld [vmem:[%s0 + $0x758] sm:$0xff]
        %v783 = vld [vmem:[%s0 + $0x760] sm:$0xff]
        %v784 = vld [vmem:[%s0 + $0x768] sm:$0xff]
        %v785 = vld [vmem:[%s0 + $0x770] sm:$0xff]
        %v786 = vld [vmem:[%s0 + $0x778] sm:$0xff]
        %v787 = vld [vmem:[%s0 + $0x780] sm:$0xff]
        %v788 = vld [vmem:[%s0 + $0x788] sm:$0xff]
        %v789 = vld [vmem:[%s0 + $0x790] sm:$0xff]
        %v790 = vld [vmem:[%s0 + $0x798] sm:$0xff]
        %v791 = vld [vmem:[%s0 + $0x7a0] sm:$0xff]
        %v792 = vld [vmem:[%s0 + $0x7a8] sm:$0xff]
        %v793 = vld [vmem:[%s0 + $0x7b0] sm:$0xff]
        %v794 = vld [vmem:[%s0 + $0x7b8] sm:$0xff]
        %v795 = vld [vmem:[%s0 + $0x7c0] sm:$0xff]
        %v796 = vld [vmem:[%s0 + $0x7c8] sm:$0xff]
        %v797 = vld [vmem:[%s0 + $0x7d0] sm:$0xff]
        %v798 = vld [vmem:[%s0 + $0x7d8] sm:$0xff]
        %v799 = vld [vmem:[%s0 + $0x7e0] sm:$0xff]
        %v800 = vld [vmem:[%s0 + $0x7e8] sm:$0xff]
        %v801 = vld [vmem:[%s0 + $0x7f0] sm:$0xff]
        %v802 = vld [vmem:[%s0 + $0x7f8] sm:$0xff]
        %v803 = vld [vmem:[%s0 + $0x800] sm:$0xff]
        %v804 = vld [vmem:[%s0 + $0x808] sm:$0xff]
        %v805 = vld [vmem:[%s0 + $0x810] sm:$0xff]
        %v806 = vld [vmem:[%s0 + $0x818] sm:$0xff]
        %v807 = vld [vmem:[%s0 + $0x820] sm:$0xff]
        %v808 = vld [vmem:[%s0 + $0x828] sm:$0xff]
        %v809 = vld [vmem:[%s0 + $0x830] sm:$0xff]
        %v810 = vld [vmem:[%s0 + $0x838] sm:$0xff]
        %v811 = vld [vmem:[%s0 + $0x840] sm:$0xff]
        %v812 = vld [vmem:[%s0 + $0x848] sm:$0xff]
        %v813 = vld [vmem:[%s0 + $0x850] sm:$0xff]
        %v814 = vld [vmem:[%s0 + $0x858] sm:$0xff]
        %v815 = vld [vmem:[%s0 + $0x860] sm:$0xff]
        %v816 = vld [vmem:[%s0 + $0x868] sm:$0xff]
        %v817 = vld [vmem:[%s0 + $0x870] sm:$0xff]
        %v818 = vld [vmem:[%s0 + $0x878] sm:$0xff]
        %v819 = vld [vmem:[%s0 + $0x880] sm:$0xff]
        %v820 = vld [vmem:[%s0 + $0x888] sm:$0xff]
        %v821 = vld [vmem:[%s0 + $0x890] sm:$0xff]
        %v822 = vld [vmem:[%s0 + $0x898] sm:$0xff]
        %v823 = vld [vmem:[%s0 + $0x8a0] sm:$0xff]
        %v824 = vld [vmem:[%s0 + $0x8a8] sm:$0xff]
        %v825 = vld [vmem:[%s0 + $0x8b0] sm:$0xff]
        %v826 = vld [vmem:[%s0 + $0x8b8] sm:$0xff]
        %v827 = vld [vmem:[%s0 + $0x8c0] sm:$0xff]
        %v828 = vld [vmem:[%s0 + $0x8c8] sm:$0xff]
        %v829 = vld [vmem:[%s0 + $0x8d0] sm:$0xff]
        %v830 = vld [vmem:[%s0 + $0x8d8] sm:$0xff]
        %v831 = vld [vmem:[%s0 + $0x8e0] sm:$0xff]
        %v832 = vld [vmem:[%s0 + $0x8e8] sm:$0xff]
        %v833 = vld [vmem:[%s0 + $0x8f0] sm:$0xff]
        %v834 = vld [vmem:[%s0 + $0x8f8] sm:$0xff]
        %v835 = vld [vmem:[%s0 + $0x900] sm:$0xff]
        %v836 = vld [vmem:[%s0 + $0x908] sm:$0xff]
        %v837 = vld [vmem:[%s0 + $0x910] sm:$0xff]
        %v838 = vld [vmem:[%s0 + $0x918] sm:$0xff]
        %v839 = vld [vmem:[%s0 + $0x920] sm:$0xff]
        %v840 = vld [vmem:[%s0 + $0x928] sm:$0xff]
        %v841 = vld [vmem:[%s0 + $0x930] sm:$0xff]
        %v842 = vld [vmem:[%s0 + $0x938] sm:$0xff]
        %v843 = vld [vmem:[%s0 + $0x940] sm:$0xff]
        %v844 = vld [vmem:[%s0 + $0x948] sm:$0xff]
        %v845 = vld [vmem:[%s0 + $0x950] sm:$0xff]
        %v846 = vld [vmem:[%s0 + $0x958] sm:$0xff]
        %v847 = vld [vmem:[%s0 + $0x960] sm:$0xff]
        %v848 = vld [vmem:[%s0 + $0x968] sm:$0xff]
        %v849 = vld [vmem:[%s0 + $0x970] sm:$0xff]
        %v850 = vld [vmem:[%s0 + $0x978] sm:$0xff]
        %v851 = vld [vmem:[%s0 + $0x980] sm:$0xff]
        %v852 = vld [vmem:[%s0 + $0x988] sm:$0xff]
        %v853 = vld [vmem:[%s0 + $0x990] sm:$0xff]
        %v854 = vld [vmem:[%s0 + $0x998] sm:$0xff]
        %v855 = vld [vmem:[%s0 + $0x9a0] sm:$0xff]
        %v856 = vld [vmem:[%s0 + $0x9a8] sm:$0xff]
        %v857 = vld [vmem:[%s0 + $0x9b0] sm:$0xff]
        %v858 = vld [vmem:[%s0 + $0x9b8] sm:$0xff]
        %v859 = vld [vmem:[%s0 + $0x9c0] sm:$0xff]
        %v860 = vld [vmem:[%s0 + $0x9c8] sm:$0xff]
        %v861 = vld [vmem:[%s0 + $0x9d0] sm:$0xff]
        %v862 = vld [vmem:[%s0 + $0x9d8] sm:$0xff]
        %v863 = vld [vmem:[%s0 + $0x9e0] sm:$0xff]
        %v864 = vld [vmem:[%s0 + $0x9e8] sm:$0xff]
        %v865 = vld [vmem:[%s0 + $0x9f0] sm:$0xff]
        %v866 = vld [vmem:[%s0 + $0x9f8] sm:$0xff]
        %v867 = vld [vmem:[%s0 + $0xa00] sm:$0xff]
        %v868 = vld [vmem:[%s0 + $0xa08] sm:$0xff]
        %v869 = vld [vmem:[%s0 + $0xa10] sm:$0xff]
        %v870 = vld [vmem:[%s0 + $0xa18] sm:$0xff]
        %v871 = vld [vmem:[%s0 + $0xa20] sm:$0xff]
        %v872 = vld [vmem:[%s0 + $0xa28] sm:$0xff]
        %v873 = vld [vmem:[%s0 + $0xa30] sm:$0xff]
        %v874 = vld [vmem:[%s0 + $0xa38] sm:$0xff]
        %v875 = vld [vmem:[%s0 + $0xa40] sm:$0xff]
        %v876 = vld [vmem:[%s0 + $0xa48] sm:$0xff]
        %v877 = vld [vmem:[%s0 + $0xa50] sm:$0xff]
        %v878 = vld [vmem:[%s0 + $0xa58] sm:$0xff]
        %v879 = vld [vmem:[%s0 + $0xa60] sm:$0xff]
        %v880 = vld [vmem:[%s0 + $0xa68] sm:$0xff]
        %v881 = vld [vmem:[%s0 + $0xa70] sm:$0xff]
        %v882 = vld [vmem:[%s0 + $0xa78] sm:$0xff]
        %v883 = vld [vmem:[%s0 + $0xa80] sm:$0xff]
        %v884 = vld [vmem:[%s0 + $0xa88] sm:$0xff]
        %v885 = vld [vmem:[%s0 + $0xa90] sm:$0xff]
        %v886 = vld [vmem:[%s0 + $0xa98] sm:$0xff]
        %v887 = vld [vmem:[%s0 + $0xaa0] sm:$0xff]
        %v888 = vld [vmem:[%s0 + $0xaa8] sm:$0xff]
        %v889 = vld [vmem:[%s0 + $0xab0] sm:$0xff]
        %v890 = vld [vmem:[%s0 + $0xab8] sm:$0xff]
        %v891 = vld [vmem:[%s0 + $0xac0] sm:$0xff]
        %v892 = vld [vmem:[%s0 + $0xac8] sm:$0xff]
        %v893 = vld [vmem:[%s0 + $0xad0] sm:$0xff]
        %v894 = vld [vmem:[%s0 + $0xad8] sm:$0xff]
        %v895 = vld [vmem:[%s0 + $0xae0] sm:$0xff]
        %v896 = vld [vmem:[%s0 + $0xae8] sm:$0xff]
        %v897 = vld [vmem:[%s0 + $0xaf0] sm:$0xff]
        %v898 = vld [vmem:[%s0 + $0xaf8] sm:$0xff]
        %v899 = vld [vmem:[%s0 + $0xb00] sm:$0xff]
        %v900 = vld [vmem:[%s0 + $0xb08] sm:$0xff]
        %v901 = vld [vmem:[%s0 + $0xb10] sm:$0xff]
        %v902 = vld [vmem:[%s0 + $0xb18] sm:$0xff]
        %v903 = vld [vmem:[%s0 + $0xb20] sm:$0xff]
        %v904 = vld [vmem:[%s0 + $0xb28] sm:$0xff]
        %v905 = vld [vmem:[%s0 + $0xb30] sm:$0xff]
        %v906 = vld [vmem:[%s0 + $0xb38] sm:$0xff]
        %v907 = vld [vmem:[%s0 + $0xb40] sm:$0xff]
        %v908 = vld [vmem:[%s0 + $0xb48] sm:$0xff]
        %v909 = vld [vmem:[%s0 + $0xb50] sm:$0xff]
        %v910 = vld [vmem:[%s0 + $0xb58] sm:$0xff]
        %v911 = vld [vmem:[%s0 + $0xb60] sm:$0xff]
        %v912 = vld [vmem:[%s0 + $0xb68] sm:$0xff]
        %v913 = vld [vmem:[%s0 + $0xb70] sm:$0xff]
        %v914 = vld [vmem:[%s0 + $0xb78] sm:$0xff]
        %v915 = vld [vmem:[%s0 + $0xb80] sm:$0xff]
        %v916 = vld [vmem:[%s0 + $0xb88] sm:$0xff]
        %v917 = vld [vmem:[%s0 + $0xb90] sm:$0xff]
        %v918 = vld [vmem:[%s0 + $0xb98] sm:$0xff]
        %v919 = vld [vmem:[%s0 + $0xba0] sm:$0xff]
        %v920 = vld [vmem:[%s0 + $0xba8] sm:$0xff]
        %v921 = vld [vmem:[%s0 + $0xbb0] sm:$0xff]
        %v922 = vld [vmem:[%s0 + $0xbb8] sm:$0xff]
        %v923 = vld [vmem:[%s0 + $0xbc0] sm:$0xff]
        %v924 = vld [vmem:[%s0 + $0xbc8] sm:$0xff]
        %v925 = vld [vmem:[%s0 + $0xbd0] sm:$0xff]
        %v926 = vld [vmem:[%s0 + $0xbd8] sm:$0xff]
        %v927 = vld [vmem:[%s0 + $0xbe0] sm:$0xff]
        %v928 = vld [vmem:[%s0 + $0xbe8] sm:$0xff]
        %v929 = vld [vmem:[%s0 + $0xbf0] sm:$0xff]
        %v930 = vld [vmem:[%s0 + $0xbf8] sm:$0xff]
        %v931 = vld [vmem:[%s0 + $0xc00] sm:$0xff]
        %v932 = vld [vmem:[%s0 + $0xc08] sm:$0xff]
        %v933 = vld [vmem:[%s0 + $0xc10] sm:$0xff]
        %v934 = vld [vmem:[%s0 + $0xc18] sm:$0xff]
        %v935 = vld [vmem:[%s0 + $0xc20] sm:$0xff]
        %v936 = vld [vmem:[%s0 + $0xc28] sm:$0xff]
        %v937 = vld [vmem:[%s0 + $0xc30] sm:$0xff]
        %v938 = vld [vmem:[%s0 + $0xc38] sm:$0xff]
        %v939 = vld [vmem:[%s0 + $0xc40] sm:$0xff]
        %v940 = vld [vmem:[%s0 + $0xc48] sm:$0xff]
        %v941 = vld [vmem:[%s0 + $0xc50] sm:$0xff]
        %v942 = vld [vmem:[%s0 + $0xc58] sm:$0xff]
        %v943 = vld [vmem:[%s0 + $0xc60] sm:$0xff]
        %v944 = vld [vmem:[%s0 + $0xc68] sm:$0xff]
        %v945 = vld [vmem:[%s0 + $0xc70] sm:$0xff]
        %v946 = vld [vmem:[%s0 + $0xc78] sm:$0xff]
        %v947 = vld [vmem:[%s0 + $0xc80] sm:$0xff]
        %v948 = vld [vmem:[%s0 + $0xc88] sm:$0xff]
        %v949 = vld [vmem:[%s0 + $0xc90] sm:$0xff]
        %v950 = vld [vmem:[%s0 + $0xc98] sm:$0xff]
        %v951 = vld [vmem:[%s0 + $0xca0] sm:$0xff]
        %v952 = vld [vmem:[%s0 + $0xca8] sm:$0xff]
        %v953 = vld [vmem:[%s0 + $0xcb0] sm:$0xff]
        %v954 = vld [vmem:[%s0 + $0xcb8] sm:$0xff]
        %v955 = vld [vmem:[%s0 + $0xcc0] sm:$0xff]
        %v956 = vld [vmem:[%s0 + $0xcc8] sm:$0xff]
        %v957 = vld [vmem:[%s0 + $0xcd0] sm:$0xff]
        %v958 = vld [vmem:[%s0 + $0xcd8] sm:$0xff]
        %v959 = vld [vmem:[%s0 + $0xce0] sm:$0xff]
        %v960 = vld [vmem:[%s0 + $0xce8] sm:$0xff]
        %v961 = vld [vmem:[%s0 + $0xcf0] sm:$0xff]
        %v962 = vld [vmem:[%s0 + $0xcf8] sm:$0xff]
        %v963 = vld [vmem:[%s0 + $0xd00] sm:$0xff]
        %v964 = vld [vmem:[%s0 + $0xd08] sm:$0xff]
        %v965 = vld [vmem:[%s0 + $0xd10] sm:$0xff]
        %v966 = vld [vmem:[%s0 + $0xd18] sm:$0xff]
        %v967 = vld [vmem:[%s0 + $0xd20] sm:$0xff]
        %v968 = vld [vmem:[%s0 + $0xd28] sm:$0xff]
        %v969 = vld [vmem:[%s0 + $0xd30] sm:$0xff]
        %v970 = vld [vmem:[%s0 + $0xd38] sm:$0xff]
        %v971 = vld [vmem:[%s0 + $0xd40] sm:$0xff]
        %v972 = vld [vmem:[%s0 + $0xd48] sm:$0xff]
        %v973 = vld [vmem:[%s0 + $0xd50] sm:$0xff]
        %v974 = vld [vmem:[%s0 + $0xd58] sm:$0xff]
        %v975 = vld [vmem:[%s0 + $0xd60] sm:$0xff]
        %v976 = vld [vmem:[%s0 + $0xd68] sm:$0xff]
        %v977 = vld [vmem:[%s0 + $0xd70] sm:$0xff]
        %v978 = vld [vmem:[%s0 + $0xd78] sm:$0xff]
        %v979 = vld [vmem:[%s0 + $0xd80] sm:$0xff]
        %v980 = vld [vmem:[%s0 + $0xd88] sm:$0xff]
        %v981 = vld [vmem:[%s0 + $0xd90] sm:$0xff]
        %v982 = vld [vmem:[%s0 + $0xd98] sm:$0xff]
        %v983 = vld [vmem:[%s0 + $0xda0] sm:$0xff]
        %v984 = vld [vmem:[%s0 + $0xda8] sm:$0xff]
        %v985 = vld [vmem:[%s0 + $0xdb0] sm:$0xff]
        %v986 = vld [vmem:[%s0 + $0xdb8] sm:$0xff]
        %v987 = vld [vmem:[%s0 + $0xdc0] sm:$0xff]
        %v988 = vld [vmem:[%s0 + $0xdc8] sm:$0xff]
        %v989 = vld [vmem:[%s0 + $0xdd0] sm:$0xff]
        %v990 = vld [vmem:[%s0 + $0xdd8] sm:$0xff]
        %v991 = vld [vmem:[%s0 + $0xde0] sm:$0xff]
        %v992 = vld [vmem:[%s0 + $0xde8] sm:$0xff]
        %v993 = vld [vmem:[%s0 + $0xdf0] sm:$0xff]
        %v994 = vld [vmem:[%s0 + $0xdf8] sm:$0xff]
        %v995 = vld [vmem:[%s0 + $0xe00] sm:$0xff]
        %v996 = vld [vmem:[%s0 + $0xe08] sm:$0xff]
        %v997 = vld [vmem:[%s0 + $0xe10] sm:$0xff]
        %v998 = vld [vmem:[%s0 + $0xe18] sm:$0xff]
        %v999 = vld [vmem:[%s0 + $0xe20] sm:$0xff]
        %v1000 = vld [vmem:[%s0 + $0xe28] sm:$0xff]
        %v1001 = vld [vmem:[%s0 + $0xe30] sm:$0xff]
        %v1002 = vld [vmem:[%s0 + $0xe38] sm:$0xff]
        %v1003 = vld [vmem:[%s0 + $0xe40] sm:$0xff]
        %v1004 = vld [vmem:[%s0 + $0xe48] sm:$0xff]
        %v1005 = vld [vmem:[%s0 + $0xe50] sm:$0xff]
        %v1006 = vld [vmem:[%s0 + $0xe58] sm:$0xff]
        %v1007 = vld [vmem:[%s0 + $0xe60] sm:$0xff]
        %v1008 = vld [vmem:[%s0 + $0xe68] sm:$0xff]
        %v1009 = vld [vmem:[%s0 + $0xe70] sm:$0xff]
        %v1010 = vld [vmem:[%s0 + $0xe78] sm:$0xff]
        %v1011 = vld [vmem:[%s0 + $0xe80] sm:$0xff]
        %v1012 = vld [vmem:[%s0 + $0xe88] sm:$0xff]
        %v1013 = vld [vmem:[%s0 + $0xe90] sm:$0xff]
        %v1014 = vld [vmem:[%s0 + $0xe98] sm:$0xff]
        %v1015 = vld [vmem:[%s0 + $0xea0] sm:$0xff]
        %v1016 = vld [vmem:[%s0 + $0xea8] sm:$0xff]
        %v1017 = vld [vmem:[%s0 + $0xeb0] sm:$0xff]
        %v1018 = vld [vmem:[%s0 + $0xeb8] sm:$0xff]
        %v1019 = vld [vmem:[%s0 + $0xec0] sm:$0xff]
        %v1020 = vld [vmem:[%s0 + $0xec8] sm:$0xff]
        %v1021 = vld [vmem:[%s0 + $0xed0] sm:$0xff]
        %v1022 = vld [vmem:[%s0 + $0xed8] sm:$0xff]
        %v1023 = vld [vmem:[%s0 + $0xee0] sm:$0xff]
        %v1024 = vld [vmem:[%s0 + $0xee8] sm:$0xff]
        %v1025 = vld [vmem:[%s0 + $0xef0] sm:$0xff]
        %v1026 = vld [vmem:[%s0 + $0xef8] sm:$0xff]
        %v1027 = vld [vmem:[%s0 + $0xf00] sm:$0xff]
        %v1028 = vld [vmem:[%s0 + $0xf08] sm:$0xff]
        %v1029 = vld [vmem:[%s0 + $0xf10] sm:$0xff]
        %v1030 = vld [vmem:[%s0 + $0xf18] sm:$0xff]
        %v1031 = vld [vmem:[%s0 + $0xf20] sm:$0xff]
        %v1032 = vld [vmem:[%s0 + $0xf28] sm:$0xff]
        %v1033 = vld [vmem:[%s0 + $0xf30] sm:$0xff]
        %v1034 = vld [vmem:[%s0 + $0xf38] sm:$0xff]
        %v1035 = vld [vmem:[%s0 + $0xf40] sm:$0xff]
        %v1036 = vld [vmem:[%s0 + $0xf48] sm:$0xff]
        %v1037 = vld [vmem:[%s0 + $0xf50] sm:$0xff]
        %v1038 = vld [vmem:[%s0 + $0xf58] sm:$0xff]
        %v1039 = vld [vmem:[%s0 + $0xf60] sm:$0xff]
        %v1040 = vld [vmem:[%s0 + $0xf68] sm:$0xff]
        %v1041 = vld [vmem:[%s0 + $0xf70] sm:$0xff]
        %v1042 = vld [vmem:[%s0 + $0xf78] sm:$0xff]
        %v1043 = vld [vmem:[%s0 + $0xf80] sm:$0xff]
        %v1044 = vld [vmem:[%s0 + $0xf88] sm:$0xff]
        %v1045 = vld [vmem:[%s0 + $0xf90] sm:$0xff]
        %v1046 = vld [vmem:[%s0 + $0xf98] sm:$0xff]
        %v1047 = vld [vmem:[%s0 + $0xfa0] sm:$0xff]
        %v1048 = vld [vmem:[%s0 + $0xfa8] sm:$0xff]
        %v1049 = vld [vmem:[%s0 + $0xfb0] sm:$0xff]
        %v1050 = vld [vmem:[%s0 + $0xfb8] sm:$0xff]
        %v1051 = vld [vmem:[%s0 + $0xfc0] sm:$0xff]
        %v1052 = vld [vmem:[%s0 + $0xfc8] sm:$0xff]
        %v1053 = vld [vmem:[%s0 + $0xfd0] sm:$0xff]
        %v1054 = vld [vmem:[%s0 + $0xfd8] sm:$0xff]
        %v1055 = vld [vmem:[%s0 + $0xfe0] sm:$0xff]
        %v1056 = vld [vmem:[%s0 + $0xfe8] sm:$0xff]
        %v1057 = vld [vmem:[%s0 + $0xff0] sm:$0xff]
        %v1058 = vld [vmem:[%s0 + $0xff8] sm:$0xff]
        %v1059 = vld [vmem:[%s0 + $0x1000] sm:$0xff]
        %v1060 = vld [vmem:[%s0 + $0x1008] sm:$0xff]
        %v1061 = vld [vmem:[%s0 + $0x1010] sm:$0xff]
        %v1062 = vld [vmem:[%s0 + $0x1018] sm:$0xff]
        %v1063 = vld [vmem:[%s0 + $0x1020] sm:$0xff]
        %v1064 = vld [vmem:[%s0 + $0x1028] sm:$0xff]
        %v1065 = vld [vmem:[%s0 + $0x1030] sm:$0xff]
        %v1066 = vld [vmem:[%s0 + $0x1038] sm:$0xff]
        %v1067 = vld [vmem:[%s0 + $0x1040] sm:$0xff]
        %v1068 = vld [vmem:[%s0 + $0x1048] sm:$0xff]
        %v1069 = vld [vmem:[%s0 + $0x1050] sm:$0xff]
        %v1070 = vld [vmem:[%s0 + $0x1058] sm:$0xff]
        %v1071 = vld [vmem:[%s0 + $0x1060] sm:$0xff]
        %v1072 = vld [vmem:[%s0 + $0x1068] sm:$0xff]
        %v1073 = vld [vmem:[%s0 + $0x1070] sm:$0xff]
        %v1074 = vld [vmem:[%s0 + $0x1078] sm:$0xff]
        %v1075 = vld [vmem:[%s0 + $0x1080] sm:$0xff]
        %v1076 = vld [vmem:[%s0 + $0x1088] sm:$0xff]
        %v1077 = vld [vmem:[%s0 + $0x1090] sm:$0xff]
        %v1078 = vld [vmem:[%s0 + $0x1098] sm:$0xff]
        %v1079 = vld [vmem:[%s0 + $0x10a0] sm:$0xff]
        %v1080 = vld [vmem:[%s0 + $0x10a8] sm:$0xff]
        %v1081 = vld [vmem:[%s0 + $0x10b0] sm:$0xff]
        %v1082 = vld [vmem:[%s0 + $0x10b8] sm:$0xff]
        %v1083 = vld [vmem:[%s0 + $0x10c0] sm:$0xff]
        %v1084 = vld [vmem:[%s0 + $0x10c8] sm:$0xff]
        %v1085 = vld [vmem:[%s0 + $0x10d0] sm:$0xff]
        %v1086 = vld [vmem:[%s0 + $0x10d8] sm:$0xff]
        %v1087 = vld [vmem:[%s0 + $0x10e0] sm:$0xff]
        %v1088 = vld [vmem:[%s0 + $0x10e8] sm:$0xff]
        %v1089 = vld [vmem:[%s0 + $0x10f0] sm:$0xff]
        %v1090 = vld [vmem:[%s0 + $0x10f8] sm:$0xff]
        %v1091 = vld [vmem:[%s0 + $0x1100] sm:$0xff]
        %v1092 = vld [vmem:[%s0 + $0x1108] sm:$0xff]
        %v1093 = vld [vmem:[%s0 + $0x1110] sm:$0xff]
        %v1094 = vld [vmem:[%s0 + $0x1118] sm:$0xff]
        %v1095 = vld [vmem:[%s0 + $0x1120] sm:$0xff]
        %v1096 = vld [vmem:[%s0 + $0x1128] sm:$0xff]
        %v1097 = vld [vmem:[%s0 + $0x1130] sm:$0xff]
        %v1098 = vld [vmem:[%s0 + $0x1138] sm:$0xff]
        %v1099 = vld [vmem:[%s0 + $0x1140] sm:$0xff]
        %v1100 = vld [vmem:[%s0 + $0x1148] sm:$0xff]
        %v1101 = vld [vmem:[%s0 + $0x1150] sm:$0xff]
        %v1102 = vld [vmem:[%s0 + $0x1158] sm:$0xff]
        %v1103 = vld [vmem:[%s0 + $0x1160] sm:$0xff]
        %v1104 = vld [vmem:[%s0 + $0x1168] sm:$0xff]
        %v1105 = vld [vmem:[%s0 + $0x1170] sm:$0xff]
        %v1106 = vld [vmem:[%s0 + $0x1178] sm:$0xff]
        %v1107 = vld [vmem:[%s0 + $0x1180] sm:$0xff]
        %v1108 = vld [vmem:[%s0 + $0x1188] sm:$0xff]
        %v1109 = vld [vmem:[%s0 + $0x1190] sm:$0xff]
        %v1110 = vld [vmem:[%s0 + $0x1198] sm:$0xff]
        %v1111 = vld [vmem:[%s0 + $0x11a0] sm:$0xff]
        %v1112 = vld [vmem:[%s0 + $0x11a8] sm:$0xff]
        %v1113 = vld [vmem:[%s0 + $0x11b0] sm:$0xff]
        %v1114 = vld [vmem:[%s0 + $0x11b8] sm:$0xff]
        %v1115 = vld [vmem:[%s0 + $0x11c0] sm:$0xff]
        %v1116 = vld [vmem:[%s0 + $0x11c8] sm:$0xff]
        %v1117 = vld [vmem:[%s0 + $0x11d0] sm:$0xff]
        %v1118 = vld [vmem:[%s0 + $0x11d8] sm:$0xff]
        %v1119 = vld [vmem:[%s0 + $0x11e0] sm:$0xff]
        %v1120 = vld [vmem:[%s0 + $0x11e8] sm:$0xff]
        %v1121 = vld [vmem:[%s0 + $0x11f0] sm:$0xff]
        %v1122 = vld [vmem:[%s0 + $0x11f8] sm:$0xff]
        %v1123 = vld [vmem:[%s0 + $0x1200] sm:$0xff]
        %v1124 = vld [vmem:[%s0 + $0x1208] sm:$0xff]
        %v1125 = vld [vmem:[%s0 + $0x1210] sm:$0xff]
        %v1126 = vld [vmem:[%s0 + $0x1218] sm:$0xff]
        %v1127 = vld [vmem:[%s0 + $0x1220] sm:$0xff]
        %v1128 = vld [vmem:[%s0 + $0x1228] sm:$0xff]
        %v1129 = vld [vmem:[%s0 + $0x1230] sm:$0xff]
        %v1130 = vld [vmem:[%s0 + $0x1238] sm:$0xff]
        %v1131 = vld [vmem:[%s0 + $0x1240] sm:$0xff]
        %v1132 = vld [vmem:[%s0 + $0x1248] sm:$0xff]
        %v1133 = vld [vmem:[%s0 + $0x1250] sm:$0xff]
        %v1134 = vld [vmem:[%s0 + $0x1258] sm:$0xff]
        %v1135 = vld [vmem:[%s0 + $0x1260] sm:$0xff]
        %v1136 = vld [vmem:[%s0 + $0x1268] sm:$0xff]
        %v1137 = vld [vmem:[%s0 + $0x1270] sm:$0xff]
        %v1138 = vld [vmem:[%s0 + $0x1278] sm:$0xff]
        %v1139 = vld [vmem:[%s0 + $0x1280] sm:$0xff]
        %v1140 = vld [vmem:[%s0 + $0x1288] sm:$0xff]
        %v1141 = vld [vmem:[%s0 + $0x1290] sm:$0xff]
        %v1142 = vld [vmem:[%s0 + $0x1298] sm:$0xff]
        %v1143 = vld [vmem:[%s0 + $0x12a0] sm:$0xff]
        %v1144 = vld [vmem:[%s0 + $0x12a8] sm:$0xff]
        %v1145 = vld [vmem:[%s0 + $0x12b0] sm:$0xff]
        %v1146 = vld [vmem:[%s0 + $0x12b8] sm:$0xff]
        %v1147 = vld [vmem:[%s0 + $0x12c0] sm:$0xff]
        %v1148 = vld [vmem:[%s0 + $0x12c8] sm:$0xff]
        %v1149 = vld [vmem:[%s0 + $0x12d0] sm:$0xff]
        %v1150 = vld [vmem:[%s0 + $0x12d8] sm:$0xff]
        %v1151 = vld [vmem:[%s0 + $0x12e0] sm:$0xff]
        %v1152 = vld [vmem:[%s0 + $0x12e8] sm:$0xff]
        %v1153 = vld [vmem:[%s0 + $0x12f0] sm:$0xff]
        %v1154 = vld [vmem:[%s0 + $0x12f8] sm:$0xff]
        %v1155 = vld [vmem:[%s0 + $0x1300] sm:$0xff]
        %v1156 = vld [vmem:[%s0 + $0x1308] sm:$0xff]
        %v1157 = vld [vmem:[%s0 + $0x1310] sm:$0xff]
        %v1158 = vld [vmem:[%s0 + $0x1318] sm:$0xff]
        %v1159 = vld [vmem:[%s0 + $0x1320] sm:$0xff]
        %v1160 = vld [vmem:[%s0 + $0x1328] sm:$0xff]
        %v1161 = vld [vmem:[%s0 + $0x1330] sm:$0xff]
        %v1162 = vld [vmem:[%s0 + $0x1338] sm:$0xff]
        %v1163 = vld [vmem:[%s0 + $0x1340] sm:$0xff]
        %v1164 = vld [vmem:[%s0 + $0x1348] sm:$0xff]
        %v1165 = vld [vmem:[%s0 + $0x1350] sm:$0xff]
        %v1166 = vld [vmem:[%s0 + $0x1358] sm:$0xff]
        %v1167 = vld [vmem:[%s0 + $0x1360] sm:$0xff]
        %v1168 = vld [vmem:[%s0 + $0x1368] sm:$0xff]
        %v1169 = vld [vmem:[%s0 + $0x1370] sm:$0xff]
        %v1170 = vld [vmem:[%s0 + $0x1378] sm:$0xff]
        %v1171 = vld [vmem:[%s0 + $0x1380] sm:$0xff]
        %v1172 = vld [vmem:[%s0 + $0x1388] sm:$0xff]
        %v1173 = vld [vmem:[%s0 + $0x1390] sm:$0xff]
        %v1174 = vld [vmem:[%s0 + $0x1398] sm:$0xff]
        %v1175 = vld [vmem:[%s0 + $0x13a0] sm:$0xff]
        %v1176 = vld [vmem:[%s0 + $0x13a8] sm:$0xff]
        %v1177 = vld [vmem:[%s0 + $0x13b0] sm:$0xff]
        %v1178 = vld [vmem:[%s0 + $0x13b8] sm:$0xff]
        %v1179 = vld [vmem:[%s0 + $0x13c0] sm:$0xff]
        %v1180 = vld [vmem:[%s0 + $0x13c8] sm:$0xff]
        %v1181 = vld [vmem:[%s0 + $0x13d0] sm:$0xff]
        %v1182 = vld [vmem:[%s0 + $0x13d8] sm:$0xff]
        %v1183 = vld [vmem:[%s0 + $0x13e0] sm:$0xff]
        %v1184 = vld [vmem:[%s0 + $0x13e8] sm:$0xff]
        %v1185 = vld [vmem:[%s0 + $0x13f0] sm:$0xff]
        %v1186 = vld [vmem:[%s0 + $0x13f8] sm:$0xff]
        %v1187 = vld [vmem:[%s0 + $0x1400] sm:$0xff]
        %v1188 = vld [vmem:[%s0 + $0x1408] sm:$0xff]
        %v1189 = vld [vmem:[%s0 + $0x1410] sm:$0xff]
        %v1190 = vld [vmem:[%s0 + $0x1418] sm:$0xff]
        %v1191 = vld [vmem:[%s0 + $0x1420] sm:$0xff]
        %v1192 = vld [vmem:[%s0 + $0x1428] sm:$0xff]
        %v1193 = vld [vmem:[%s0 + $0x1430] sm:$0xff]
        %v1194 = vld [vmem:[%s0 + $0x1438] sm:$0xff]
        %v1195 = vld [vmem:[%s0 + $0x1440] sm:$0xff]
        %v1196 = vld [vmem:[%s0 + $0x1448] sm:$0xff]
        %v1197 = vld [vmem:[%s0 + $0x1450] sm:$0xff]
        %v1198 = vld [vmem:[%s0 + $0x1458] sm:$0xff]
        %v1199 = vld [vmem:[%s0 + $0x1460] sm:$0xff]
        %v1200 = vld [vmem:[%s0 + $0x1468] sm:$0xff]
        %v1201 = vld [vmem:[%s0 + $0x1470] sm:$0xff]
        %v1202 = vld [vmem:[%s0 + $0x1478] sm:$0xff]
        %v1203 = vld [vmem:[%s0 + $0x1480] sm:$0xff]
        %v1204 = vld [vmem:[%s0 + $0x1488] sm:$0xff]
        %v1205 = vld [vmem:[%s0 + $0x1490] sm:$0xff]
        %v1206 = vld [vmem:[%s0 + $0x1498] sm:$0xff]
        %v1207 = vld [vmem:[%s0 + $0x14a0] sm:$0xff]
        %v1208 = vld [vmem:[%s0 + $0x14a8] sm:$0xff]
        %v1209 = vld [vmem:[%s0 + $0x14b0] sm:$0xff]
        %v1210 = vld [vmem:[%s0 + $0x14b8] sm:$0xff]
        %v1211 = vld [vmem:[%s0 + $0x14c0] sm:$0xff]
        %v1212 = vld [vmem:[%s0 + $0x14c8] sm:$0xff]
        %v1213 = vld [vmem:[%s0 + $0x14d0] sm:$0xff]
        %v1214 = vld [vmem:[%s0 + $0x14d8] sm:$0xff]
        %v1215 = vld [vmem:[%s0 + $0x14e0] sm:$0xff]
        %v1216 = vld [vmem:[%s0 + $0x14e8] sm:$0xff]
        %v1217 = vld [vmem:[%s0 + $0x14f0] sm:$0xff]
        %v1218 = vld [vmem:[%s0 + $0x14f8] sm:$0xff]
        %v1219 = vld [vmem:[%s0 + $0x1500] sm:$0xff]
        %v1220 = vld [vmem:[%s0 + $0x1508] sm:$0xff]
        %v1221 = vld [vmem:[%s0 + $0x1510] sm:$0xff]
        %v1222 = vld [vmem:[%s0 + $0x1518] sm:$0xff]
        %v1223 = vld [vmem:[%s0 + $0x1520] sm:$0xff]
        %v1224 = vld [vmem:[%s0 + $0x1528] sm:$0xff]
        %v1225 = vld [vmem:[%s0 + $0x1530] sm:$0xff]
        %v1226 = vld [vmem:[%s0 + $0x1538] sm:$0xff]
        %v1227 = vld [vmem:[%s0 + $0x1540] sm:$0xff]
        %v1228 = vld [vmem:[%s0 + $0x1548] sm:$0xff]
        %v1229 = vld [vmem:[%s0 + $0x1550] sm:$0xff]
        %v1230 = vld [vmem:[%s0 + $0x1558] sm:$0xff]
        %v1231 = vld [vmem:[%s0 + $0x1560] sm:$0xff]
        %v1232 = vld [vmem:[%s0 + $0x1568] sm:$0xff]
        %v1233 = vld [vmem:[%s0 + $0x1570] sm:$0xff]
        %v1234 = vld [vmem:[%s0 + $0x1578] sm:$0xff]
        %v1235 = vld [vmem:[%s0 + $0x1580] sm:$0xff]
        %v1236 = vld [vmem:[%s0 + $0x1588] sm:$0xff]
        %v1237 = vld [vmem:[%s0 + $0x1590] sm:$0xff]
        %v1238 = vld [vmem:[%s0 + $0x1598] sm:$0xff]
        %v1239 = vld [vmem:[%s0 + $0x15a0] sm:$0xff]
        %v1240 = vld [vmem:[%s0 + $0x15a8] sm:$0xff]
        %v1241 = vld [vmem:[%s0 + $0x15b0] sm:$0xff]
        %v1242 = vld [vmem:[%s0 + $0x15b8] sm:$0xff]
        %v1243 = vld [vmem:[%s0 + $0x15c0] sm:$0xff]
        %v1244 = vld [vmem:[%s0 + $0x15c8] sm:$0xff]
        %v1245 = vld [vmem:[%s0 + $0x15d0] sm:$0xff]
        %v1246 = vld [vmem:[%s0 + $0x15d8] sm:$0xff]
        %v1247 = vld [vmem:[%s0 + $0x15e0] sm:$0xff]
        %v1248 = vld [vmem:[%s0 + $0x15e8] sm:$0xff]
        %v1249 = vld [vmem:[%s0 + $0x15f0] sm:$0xff]
        %v1250 = vld [vmem:[%s0 + $0x15f8] sm:$0xff]
        %v1251 = vld [vmem:[%s0 + $0x1600] sm:$0xff]
        %v1252 = vld [vmem:[%s0 + $0x1608] sm:$0xff]
        %v1253 = vld [vmem:[%s0 + $0x1610] sm:$0xff]
        %v1254 = vld [vmem:[%s0 + $0x1618] sm:$0xff]
        %v1255 = vld [vmem:[%s0 + $0x1620] sm:$0xff]
        %v1256 = vld [vmem:[%s0 + $0x1628] sm:$0xff]
        %v1257 = vld [vmem:[%s0 + $0x1630] sm:$0xff]
        %v1258 = vld [vmem:[%s0 + $0x1638] sm:$0xff]
        %v1259 = vld [vmem:[%s0 + $0x1640] sm:$0xff]
        %v1260 = vld [vmem:[%s0 + $0x1648] sm:$0xff]
        %v1261 = vld [vmem:[%s0 + $0x1650] sm:$0xff]
        %v1262 = vld [vmem:[%s0 + $0x1658] sm:$0xff]
        %v1263 = vld [vmem:[%s0 + $0x1660] sm:$0xff]
        %v1264 = vld [vmem:[%s0 + $0x1668] sm:$0xff]
        %v1265 = vld [vmem:[%s0 + $0x1670] sm:$0xff]
        %v1266 = vld [vmem:[%s0 + $0x1678] sm:$0xff]
        %v1267 = vld [vmem:[%s0 + $0x1680] sm:$0xff]
        %v1268 = vld [vmem:[%s0 + $0x1688] sm:$0xff]
        %v1269 = vld [vmem:[%s0 + $0x1690] sm:$0xff]
        %v1270 = vld [vmem:[%s0 + $0x1698] sm:$0xff]
        %v1271 = vld [vmem:[%s0 + $0x16a0] sm:$0xff]
        %v1272 = vld [vmem:[%s0 + $0x16a8] sm:$0xff]
        %v1273 = vld [vmem:[%s0 + $0x16b0] sm:$0xff]
        %v1274 = vld [vmem:[%s0 + $0x16b8] sm:$0xff]
        %v1275 = vld [vmem:[%s0 + $0x16c0] sm:$0xff]
        %v1276 = vld [vmem:[%s0 + $0x16c8] sm:$0xff]
        %v1277 = vld [vmem:[%s0 + $0x16d0] sm:$0xff]
        %v1278 = vld [vmem:[%s0 + $0x16d8] sm:$0xff]
        %v1279 = vld [vmem:[%s0 + $0x16e0] sm:$0xff]
        %v1280 = vld [vmem:[%s0 + $0x16e8] sm:$0xff]
        %v1281 = vld [vmem:[%s0 + $0x16f0] sm:$0xff]
        %v1282 = vld [vmem:[%s0 + $0x16f8] sm:$0xff]
        %v1283 = vld [vmem:[%s0 + $0x1700] sm:$0xff]
        %v1284 = vld [vmem:[%s0 + $0x1708] sm:$0xff]
        %v1285 = vld [vmem:[%s0 + $0x1710] sm:$0xff]
        %v1286 = vld [vmem:[%s0 + $0x1718] sm:$0xff]
        %v1287 = vld [vmem:[%s0 + $0x1720] sm:$0xff]
        %v1288 = vld [vmem:[%s0 + $0x1728] sm:$0xff]
        %v1289 = vld [vmem:[%s0 + $0x1730] sm:$0xff]
        %v1290 = vld [vmem:[%s0 + $0x1738] sm:$0xff]
        %v1291 = vld [vmem:[%s0 + $0x1740] sm:$0xff]
        %v1292 = vld [vmem:[%s0 + $0x1748] sm:$0xff]
        %v1293 = vld [vmem:[%s0 + $0x1750] sm:$0xff]
        %v1294 = vld [vmem:[%s0 + $0x1758] sm:$0xff]
        %v1295 = vld [vmem:[%s0 + $0x1760] sm:$0xff]
        %v1296 = vld [vmem:[%s0 + $0x1768] sm:$0xff]
        %v1297 = vld [vmem:[%s0 + $0x1770] sm:$0xff]
        %v1298 = vld [vmem:[%s0 + $0x1778] sm:$0xff]
        %v1299 = vld [vmem:[%s0 + $0x1780] sm:$0xff]
        %v1300 = vld [vmem:[%s0 + $0x1788] sm:$0xff]
        %v1301 = vld [vmem:[%s0 + $0x1790] sm:$0xff]
        %v1302 = vld [vmem:[%s0 + $0x1798] sm:$0xff]
        %v1303 = vld [vmem:[%s0 + $0x17a0] sm:$0xff]
        %v1304 = vld [vmem:[%s0 + $0x17a8] sm:$0xff]
        %v1305 = vld [vmem:[%s0 + $0x17b0] sm:$0xff]
        %v1306 = vld [vmem:[%s0 + $0x17b8] sm:$0xff]
        %v1307 = vld [vmem:[%s0 + $0x17c0] sm:$0xff]
        %v1308 = vld [vmem:[%s0 + $0x17c8] sm:$0xff]
        %v1309 = vld [vmem:[%s0 + $0x17d0] sm:$0xff]
        %v1310 = vld [vmem:[%s0 + $0x17d8] sm:$0xff]
        %v1311 = vld [vmem:[%s0 + $0x17e0] sm:$0xff]
        %v1312 = vld [vmem:[%s0 + $0x17e8] sm:$0xff]
        %v1313 = vld [vmem:[%s0 + $0x17f0] sm:$0xff]
        %v1314 = vld [vmem:[%s0 + $0x17f8] sm:$0xff]
        %v1315 = vld [vmem:[%s0 + $0x1800] sm:$0xff]
        %v1316 = vld [vmem:[%s0 + $0x1808] sm:$0xff]
        %v1317 = vld [vmem:[%s0 + $0x1810] sm:$0xff]
        %v1318 = vld [vmem:[%s0 + $0x1818] sm:$0xff]
        %v1319 = vld [vmem:[%s0 + $0x1820] sm:$0xff]
        %v1320 = vld [vmem:[%s0 + $0x1828] sm:$0xff]
        %v1321 = vld [vmem:[%s0 + $0x1830] sm:$0xff]
        %v1322 = vld [vmem:[%s0 + $0x1838] sm:$0xff]
        %v1323 = vld [vmem:[%s0 + $0x1840] sm:$0xff]
        %v1324 = vld [vmem:[%s0 + $0x1848] sm:$0xff]
        %v1325 = vld [vmem:[%s0 + $0x1850] sm:$0xff]
        %v1326 = vld [vmem:[%s0 + $0x1858] sm:$0xff]
        %v1327 = vld [vmem:[%s0 + $0x1860] sm:$0xff]
        %v1328 = vld [vmem:[%s0 + $0x1868] sm:$0xff]
        %v1329 = vld [vmem:[%s0 + $0x1870] sm:$0xff]
        %v1330 = vld [vmem:[%s0 + $0x1878] sm:$0xff]
        %v1331 = vld [vmem:[%s0 + $0x1880] sm:$0xff]
        %v1332 = vld [vmem:[%s0 + $0x1888] sm:$0xff]
        %v1333 = vld [vmem:[%s0 + $0x1890] sm:$0xff]
        %v1334 = vld [vmem:[%s0 + $0x1898] sm:$0xff]
        %v1335 = vld [vmem:[%s0 + $0x18a0] sm:$0xff]
        %v1336 = vld [vmem:[%s0 + $0x18a8] sm:$0xff]
        %v1337 = vld [vmem:[%s0 + $0x18b0] sm:$0xff]
        %v1338 = vld [vmem:[%s0 + $0x18b8] sm:$0xff]
        %v1339 = vld [vmem:[%s0 + $0x18c0] sm:$0xff]
        %v1340 = vld [vmem:[%s0 + $0x18c8] sm:$0xff]
        %v1341 = vld [vmem:[%s0 + $0x18d0] sm:$0xff]
        %v1342 = vld [vmem:[%s0 + $0x18d8] sm:$0xff]
        %v1343 = vld [vmem:[%s0 + $0x18e0] sm:$0xff]
        %v1344 = vld [vmem:[%s0 + $0x18e8] sm:$0xff]
        %v1345 = vld [vmem:[%s0 + $0x18f0] sm:$0xff]
        %v1346 = vld [vmem:[%s0 + $0x18f8] sm:$0xff]
        %v1347 = vld [vmem:[%s0 + $0x1900] sm:$0xff]
        %v1348 = vld [vmem:[%s0 + $0x1908] sm:$0xff]
        %v1349 = vld [vmem:[%s0 + $0x1910] sm:$0xff]
        %v1350 = vld [vmem:[%s0 + $0x1918] sm:$0xff]
        %v1351 = vld [vmem:[%s0 + $0x1920] sm:$0xff]
        %v1352 = vld [vmem:[%s0 + $0x1928] sm:$0xff]
        %v1353 = vld [vmem:[%s0 + $0x1930] sm:$0xff]
        %v1354 = vld [vmem:[%s0 + $0x1938] sm:$0xff]
        %v1355 = vld [vmem:[%s0 + $0x1940] sm:$0xff]
        %v1356 = vld [vmem:[%s0 + $0x1948] sm:$0xff]
        %v1357 = vld [vmem:[%s0 + $0x1950] sm:$0xff]
        %v1358 = vld [vmem:[%s0 + $0x1958] sm:$0xff]
        %v1359 = vld [vmem:[%s0 + $0x1960] sm:$0xff]
        %v1360 = vld [vmem:[%s0 + $0x1968] sm:$0xff]
        %v1361 = vld [vmem:[%s0 + $0x1970] sm:$0xff]
        %v1362 = vld [vmem:[%s0 + $0x1978] sm:$0xff]
        %v1363 = vld [vmem:[%s0 + $0x1980] sm:$0xff]
        %v1364 = vld [vmem:[%s0 + $0x1988] sm:$0xff]
        %v1365 = vld [vmem:[%s0 + $0x1990] sm:$0xff]
        %v1366 = vld [vmem:[%s0 + $0x1998] sm:$0xff]
        %v1367 = vld [vmem:[%s0 + $0x19a0] sm:$0xff]
        %v1368 = vld [vmem:[%s0 + $0x19a8] sm:$0xff]
        %v1369 = vld [vmem:[%s0 + $0x19b0] sm:$0xff]
        %v1370 = vld [vmem:[%s0 + $0x19b8] sm:$0xff]
        %v1371 = vld [vmem:[%s0 + $0x19c0] sm:$0xff]
        %v1372 = vld [vmem:[%s0 + $0x19c8] sm:$0xff]
        %v1373 = vld [vmem:[%s0 + $0x19d0] sm:$0xff]
        %v1374 = vld [vmem:[%s0 + $0x19d8] sm:$0xff]
        %v1375 = vld [vmem:[%s0 + $0x19e0] sm:$0xff]
        %v1376 = vld [vmem:[%s0 + $0x19e8] sm:$0xff]
        %v1377 = vld [vmem:[%s0 + $0x19f0] sm:$0xff]
        %v1378 = vld [vmem:[%s0 + $0x19f8] sm:$0xff]
        %v1379 = vld [vmem:[%s0 + $0x1a00] sm:$0xff]
        %v1380 = vld [vmem:[%s0 + $0x1a08] sm:$0xff]
        %v1381 = vld [vmem:[%s0 + $0x1a10] sm:$0xff]
        %v1382 = vld [vmem:[%s0 + $0x1a18] sm:$0xff]
        %v1383 = vld [vmem:[%s0 + $0x1a20] sm:$0xff]
        %v1384 = vld [vmem:[%s0 + $0x1a28] sm:$0xff]
        %v1385 = vld [vmem:[%s0 + $0x1a30] sm:$0xff]
        %v1386 = vld [vmem:[%s0 + $0x1a38] sm:$0xff]
        %v1387 = vld [vmem:[%s0 + $0x1a40] sm:$0xff]
        %v1388 = vld [vmem:[%s0 + $0x1a48] sm:$0xff]
        %v1389 = vld [vmem:[%s0 + $0x1a50] sm:$0xff]
        %v1390 = vld [vmem:[%s0 + $0x1a58] sm:$0xff]
        %v1391 = vld [vmem:[%s0 + $0x1a60] sm:$0xff]
        %v1392 = vld [vmem:[%s0 + $0x1a68] sm:$0xff]
        %v1393 = vld [vmem:[%s0 + $0x1a70] sm:$0xff]
        %v1394 = vld [vmem:[%s0 + $0x1a78] sm:$0xff]
        %v1395 = vld [vmem:[%s0 + $0x1a80] sm:$0xff]
        %v1396 = vld [vmem:[%s0 + $0x1a88] sm:$0xff]
        %v1397 = vld [vmem:[%s0 + $0x1a90] sm:$0xff]
        %v1398 = vld [vmem:[%s0 + $0x1a98] sm:$0xff]
        %v1399 = vld [vmem:[%s0 + $0x1aa0] sm:$0xff]
        %v1400 = vld [vmem:[%s0 + $0x1aa8] sm:$0xff]
        %v1401 = vld [vmem:[%s0 + $0x1ab0] sm:$0xff]
        %v1402 = vld [vmem:[%s0 + $0x1ab8] sm:$0xff]
        %v1403 = vld [vmem:[%s0 + $0x1ac0] sm:$0xff]
        %v1404 = vld [vmem:[%s0 + $0x1ac8] sm:$0xff]
        %v1405 = vld [vmem:[%s0 + $0x1ad0] sm:$0xff]
        %v1406 = vld [vmem:[%s0 + $0x1ad8] sm:$0xff]
        %v1407 = vld [vmem:[%s0 + $0x1ae0] sm:$0xff]
        %v1408 = vld [vmem:[%s0 + $0x1ae8] sm:$0xff]
        %v1409 = vld [vmem:[%s0 + $0x1af0] sm:$0xff]
        %v1410 = vld [vmem:[%s0 + $0x1af8] sm:$0xff]
        %v1411 = vld [vmem:[%s0 + $0x1b00] sm:$0xff]
        %v1412 = vld [vmem:[%s0 + $0x1b08] sm:$0xff]
        %v1413 = vld [vmem:[%s0 + $0x1b10] sm:$0xff]
        %v1414 = vld [vmem:[%s0 + $0x1b18] sm:$0xff]
        %v1415 = vld [vmem:[%s0 + $0x1b20] sm:$0xff]
        %v1416 = vld [vmem:[%s0 + $0x1b28] sm:$0xff]
        %v1417 = vld [vmem:[%s0 + $0x1b30] sm:$0xff]
        %v1418 = vld [vmem:[%s0 + $0x1b38] sm:$0xff]
        %v1419 = vld [vmem:[%s0 + $0x1b40] sm:$0xff]
        %v1420 = vld [vmem:[%s0 + $0x1b48] sm:$0xff]
        %v1421 = vld [vmem:[%s0 + $0x1b50] sm:$0xff]
        %v1422 = vld [vmem:[%s0 + $0x1b58] sm:$0xff]
        %v1423 = vld [vmem:[%s0 + $0x1b60] sm:$0xff]
        %v1424 = vld [vmem:[%s0 + $0x1b68] sm:$0xff]
        %v1425 = vld [vmem:[%s0 + $0x1b70] sm:$0xff]
        %v1426 = vld [vmem:[%s0 + $0x1b78] sm:$0xff]
        %v1427 = vld [vmem:[%s0 + $0x1b80] sm:$0xff]
        %v1428 = vld [vmem:[%s0 + $0x1b88] sm:$0xff]
        %v1429 = vld [vmem:[%s0 + $0x1b90] sm:$0xff]
        %v1430 = vld [vmem:[%s0 + $0x1b98] sm:$0xff]
        %v1431 = vld [vmem:[%s0 + $0x1ba0] sm:$0xff]
        %v1432 = vld [vmem:[%s0 + $0x1ba8] sm:$0xff]
        %v1433 = vld [vmem:[%s0 + $0x1bb0] sm:$0xff]
        %v1434 = vld [vmem:[%s0 + $0x1bb8] sm:$0xff]
        %v1435 = vld [vmem:[%s0 + $0x1bc0] sm:$0xff]
        %v1436 = vld [vmem:[%s0 + $0x1bc8] sm:$0xff]
        %v1437 = vld [vmem:[%s0 + $0x1bd0] sm:$0xff]
        %v1438 = vld [vmem:[%s0 + $0x1bd8] sm:$0xff]
        %v1439 = vld [vmem:[%s0 + $0x1be0] sm:$0xff]
        %v1440 = vld [vmem:[%s0 + $0x1be8] sm:$0xff]
        %v1441 = vld [vmem:[%s0 + $0x1bf0] sm:$0xff]
        %v1442 = vld [vmem:[%s0 + $0x1bf8] sm:$0xff]
        %v1443 = vld [vmem:[%s0 + $0x1c00] sm:$0xff]
        %v1444 = vld [vmem:[%s0 + $0x1c08] sm:$0xff]
        %v1445 = vld [vmem:[%s0 + $0x1c10] sm:$0xff]
        %v1446 = vld [vmem:[%s0 + $0x1c18] sm:$0xff]
        %v1447 = vld [vmem:[%s0 + $0x1c20] sm:$0xff]
        %v1448 = vld [vmem:[%s0 + $0x1c28] sm:$0xff]
        %v1449 = vld [vmem:[%s0 + $0x1c30] sm:$0xff]
        %v1450 = vld [vmem:[%s0 + $0x1c38] sm:$0xff]
        %v1451 = vld [vmem:[%s0 + $0x1c40] sm:$0xff]
        %v1452 = vld [vmem:[%s0 + $0x1c48] sm:$0xff]
        %v1453 = vld [vmem:[%s0 + $0x1c50] sm:$0xff]
        %v1454 = vld [vmem:[%s0 + $0x1c58] sm:$0xff]
        %v1455 = vld [vmem:[%s0 + $0x1c60] sm:$0xff]
        %v1456 = vld [vmem:[%s0 + $0x1c68] sm:$0xff]
        %v1457 = vld [vmem:[%s0 + $0x1c70] sm:$0xff]
        %v1458 = vld [vmem:[%s0 + $0x1c78] sm:$0xff]
        %v1459 = vld [vmem:[%s0 + $0x1c80] sm:$0xff]
        %v1460 = vld [vmem:[%s0 + $0x1c88] sm:$0xff]
        %v1461 = vld [vmem:[%s0 + $0x1c90] sm:$0xff]
        %v1462 = vld [vmem:[%s0 + $0x1c98] sm:$0xff]
        %v1463 = vld [vmem:[%s0 + $0x1ca0] sm:$0xff]
        %v1464 = vld [vmem:[%s0 + $0x1ca8] sm:$0xff]
        %v1465 = vld [vmem:[%s0 + $0x1cb0] sm:$0xff]
        %v1466 = vld [vmem:[%s0 + $0x1cb8] sm:$0xff]
        %v1467 = vld [vmem:[%s0 + $0x1cc0] sm:$0xff]
        %v1468 = vld [vmem:[%s0 + $0x1cc8] sm:$0xff]
        %v1469 = vld [vmem:[%s0 + $0x1cd0] sm:$0xff]
        %v1470 = vld [vmem:[%s0 + $0x1cd8] sm:$0xff]
        %v1471 = vld [vmem:[%s0 + $0x1ce0] sm:$0xff]
        %v1472 = vld [vmem:[%s0 + $0x1ce8] sm:$0xff]
        %v1473 = vld [vmem:[%s0 + $0x1cf0] sm:$0xff]
        %v1474 = vld [vmem:[%s0 + $0x1cf8] sm:$0xff]
        %v1475 = vld [vmem:[%s0 + $0x1d00] sm:$0xff]
        %v1476 = vld [vmem:[%s0 + $0x1d08] sm:$0xff]
        %v1477 = vld [vmem:[%s0 + $0x1d10] sm:$0xff]
        %v1478 = vld [vmem:[%s0 + $0x1d18] sm:$0xff]
        %v1479 = vld [vmem:[%s0 + $0x1d20] sm:$0xff]
        %v1480 = vld [vmem:[%s0 + $0x1d28] sm:$0xff]
        %v1481 = vld [vmem:[%s0 + $0x1d30] sm:$0xff]
        %v1482 = vld [vmem:[%s0 + $0x1d38] sm:$0xff]
        %v1483 = vld [vmem:[%s0 + $0x1d40] sm:$0xff]
        %v1484 = vld [vmem:[%s0 + $0x1d48] sm:$0xff]
        %v1485 = vld [vmem:[%s0 + $0x1d50] sm:$0xff]
        %v1486 = vld [vmem:[%s0 + $0x1d58] sm:$0xff]
        %v1487 = vld [vmem:[%s0 + $0x1d60] sm:$0xff]
        %v1488 = vld [vmem:[%s0 + $0x1d68] sm:$0xff]
        %v1489 = vld [vmem:[%s0 + $0x1d70] sm:$0xff]
        %v1490 = vld [vmem:[%s0 + $0x1d78] sm:$0xff]
        %v1491 = vld [vmem:[%s0 + $0x1d80] sm:$0xff]
        %v1492 = vld [vmem:[%s0 + $0x1d88] sm:$0xff]
        %v1493 = vld [vmem:[%s0 + $0x1d90] sm:$0xff]
        %v1494 = vld [vmem:[%s0 + $0x1d98] sm:$0xff]
        %v1495 = vld [vmem:[%s0 + $0x1da0] sm:$0xff]
        %v1496 = vld [vmem:[%s0 + $0x1da8] sm:$0xff]
        %v1497 = vld [vmem:[%s0 + $0x1db0] sm:$0xff]
        %v1498 = vld [vmem:[%s0 + $0x1db8] sm:$0xff]
        %v1499 = vld [vmem:[%s0 + $0x1dc0] sm:$0xff]
        %v1500 = vld [vmem:[%s0 + $0x1dc8] sm:$0xff]
        %v1501 = vld [vmem:[%s0 + $0x1dd0] sm:$0xff]
        %v1502 = vld [vmem:[%s0 + $0x1dd8] sm:$0xff]
        %v1503 = vld [vmem:[%s0 + $0x1de0] sm:$0xff]
        %v1504 = vld [vmem:[%s0 + $0x1de8] sm:$0xff]
        %v1505 = vld [vmem:[%s0 + $0x1df0] sm:$0xff]
        %v1506 = vld [vmem:[%s0 + $0x1df8] sm:$0xff]
        %v1507 = vld [vmem:[%s0 + $0x1e00] sm:$0xff]
        %v1508 = vld [vmem:[%s0 + $0x1e08] sm:$0xff]
        %v1509 = vld [vmem:[%s0 + $0x1e10] sm:$0xff]
        %v1510 = vld [vmem:[%s0 + $0x1e18] sm:$0xff]
        %v1511 = vld [vmem:[%s0 + $0x1e20] sm:$0xff]
        %v1512 = vld [vmem:[%s0 + $0x1e28] sm:$0xff]
        %v1513 = vld [vmem:[%s0 + $0x1e30] sm:$0xff]
        %v1514 = vld [vmem:[%s0 + $0x1e38] sm:$0xff]
        %v1515 = vld [vmem:[%s0 + $0x1e40] sm:$0xff]
        %v1516 = vld [vmem:[%s0 + $0x1e48] sm:$0xff]
        %v1517 = vld [vmem:[%s0 + $0x1e50] sm:$0xff]
        %v1518 = vld [vmem:[%s0 + $0x1e58] sm:$0xff]
        %v1519 = vld [vmem:[%s0 + $0x1e60] sm:$0xff]
        %v1520 = vld [vmem:[%s0 + $0x1e68] sm:$0xff]
        %v1521 = vld [vmem:[%s0 + $0x1e70] sm:$0xff]
        %v1522 = vld [vmem:[%s0 + $0x1e78] sm:$0xff]
        %v1523 = vld [vmem:[%s0 + $0x1e80] sm:$0xff]
        %v1524 = vld [vmem:[%s0 + $0x1e88] sm:$0xff]
        %v1525 = vld [vmem:[%s0 + $0x1e90] sm:$0xff]
        %v1526 = vld [vmem:[%s0 + $0x1e98] sm:$0xff]
        %v1527 = vld [vmem:[%s0 + $0x1ea0] sm:$0xff]
        %v1528 = vld [vmem:[%s0 + $0x1ea8] sm:$0xff]
        %v1529 = vld [vmem:[%s0 + $0x1eb0] sm:$0xff]
        %v1530 = vld [vmem:[%s0 + $0x1eb8] sm:$0xff]
        %v1531 = vld [vmem:[%s0 + $0x1ec0] sm:$0xff]
        %v1532 = vld [vmem:[%s0 + $0x1ec8] sm:$0xff]
        %v1533 = vld [vmem:[%s0 + $0x1ed0] sm:$0xff]
        %v1534 = vld [vmem:[%s0 + $0x1ed8] sm:$0xff]
        %v1535 = vld [vmem:[%s0 + $0x1ee0] sm:$0xff]
        %v1536 = vld [vmem:[%s0 + $0x1ee8] sm:$0xff]
        %v1537 = vld [vmem:[%s0 + $0x1ef0] sm:$0xff]
        %v1538 = vld [vmem:[%s0 + $0x1ef8] sm:$0xff]
        %v1539 = vld [vmem:[%s0 + $0x1f00] sm:$0xff]
        %v1540 = vld [vmem:[%s0 + $0x1f08] sm:$0xff]
        %v1541 = vld [vmem:[%s0 + $0x1f10] sm:$0xff]
        %v1542 = vld [vmem:[%s0 + $0x1f18] sm:$0xff]
        %v1543 = vld [vmem:[%s0 + $0x1f20] sm:$0xff]
        %v1544 = vld [vmem:[%s0 + $0x1f28] sm:$0xff]
        %v1545 = vld [vmem:[%s0 + $0x1f30] sm:$0xff]
        %v1546 = vld [vmem:[%s0 + $0x1f38] sm:$0xff]
        %v1547 = vld [vmem:[%s0 + $0x1f40] sm:$0xff]
        %v1548 = vld [vmem:[%s0 + $0x1f48] sm:$0xff]
        %v1549 = vld [vmem:[%s0 + $0x1f50] sm:$0xff]
        %v1550 = vld [vmem:[%s0 + $0x1f58] sm:$0xff]
        %v1551 = vld [vmem:[%s0 + $0x1f60] sm:$0xff]
        %v1552 = vld [vmem:[%s0 + $0x1f68] sm:$0xff]
        %v1553 = vld [vmem:[%s0 + $0x1f70] sm:$0xff]
        %v1554 = vld [vmem:[%s0 + $0x1f78] sm:$0xff]
        %v1555 = vld [vmem:[%s0 + $0x1f80] sm:$0xff]
        %v1556 = vld [vmem:[%s0 + $0x1f88] sm:$0xff]
        %v1557 = vld [vmem:[%s0 + $0x1f90] sm:$0xff]
        %v1558 = vld [vmem:[%s0 + $0x1f98] sm:$0xff]
        %v1559 = vld [vmem:[%s0 + $0x1fa0] sm:$0xff]
        %v1560 = vld [vmem:[%s0 + $0x1fa8] sm:$0xff]
        %v1561 = vld [vmem:[%s0 + $0x1fb0] sm:$0xff]
        %v1562 = vld [vmem:[%s0 + $0x1fb8] sm:$0xff]
        %v1563 = vld [vmem:[%s0 + $0x1fc0] sm:$0xff]
        %v1564 = vld [vmem:[%s0 + $0x1fc8] sm:$0xff]
        %v1565 = vld [vmem:[%s0 + $0x1fd0] sm:$0xff]
        %v1566 = vld [vmem:[%s0 + $0x1fd8] sm:$0xff]
        %v1567 = vld [vmem:[%s0 + $0x1fe0] sm:$0xff]
        %v1568 = vld [vmem:[%s0 + $0x1fe8] sm:$0xff]
        %v1569 = vld [vmem:[%s0 + $0x1ff0] sm:$0xff]
        %v1570 = vld [vmem:[%s0 + $0x1ff8] sm:$0xff]
        %v1571 = vld [vmem:[%s0 + $0x2000] sm:$0xff]
        %v1572 = vld [vmem:[%s0 + $0x2008] sm:$0xff]
        %v1573 = vld [vmem:[%s0 + $0x2010] sm:$0xff]
        %v1574 = vld [vmem:[%s0 + $0x2018] sm:$0xff]
        %v1575 = vld [vmem:[%s0 + $0x2020] sm:$0xff]
        %v1576 = vld [vmem:[%s0 + $0x2028] sm:$0xff]
        %v1577 = vld [vmem:[%s0 + $0x2030] sm:$0xff]
        %v1578 = vld [vmem:[%s0 + $0x2038] sm:$0xff]
        %v1579 = vld [vmem:[%s0 + $0x2040] sm:$0xff]
        %v1580 = vld [vmem:[%s0 + $0x2048] sm:$0xff]
        %v1581 = vld [vmem:[%s0 + $0x2050] sm:$0xff]
        %v1582 = vld [vmem:[%s0 + $0x2058] sm:$0xff]
        %v1583 = vld [vmem:[%s0 + $0x2060] sm:$0xff]
        %v1584 = vld [vmem:[%s0 + $0x2068] sm:$0xff]
        %v1585 = vld [vmem:[%s0 + $0x2070] sm:$0xff]
        %v1586 = vld [vmem:[%s0 + $0x2078] sm:$0xff]
        %v1587 = vld [vmem:[%s0 + $0x2080] sm:$0xff]
        %v1588 = vld [vmem:[%s0 + $0x2088] sm:$0xff]
        %v1589 = vld [vmem:[%s0 + $0x2090] sm:$0xff]
        %v1590 = vld [vmem:[%s0 + $0x2098] sm:$0xff]
        %v1591 = vld [vmem:[%s0 + $0x20a0] sm:$0xff]
        %v1592 = vld [vmem:[%s0 + $0x20a8] sm:$0xff]
        %v1593 = vld [vmem:[%s0 + $0x20b0] sm:$0xff]
        %v1594 = vld [vmem:[%s0 + $0x20b8] sm:$0xff]
        %v1595 = vld [vmem:[%s0 + $0x20c0] sm:$0xff]
        %v1596 = vld [vmem:[%s0 + $0x20c8] sm:$0xff]
        %v1597 = vld [vmem:[%s0 + $0x20d0] sm:$0xff]
        %v1598 = vld [vmem:[%s0 + $0x20d8] sm:$0xff]
        %v1599 = vld [vmem:[%s0 + $0x20e0] sm:$0xff]
        %v1600 = vld [vmem:[%s0 + $0x20e8] sm:$0xff]
        %v1601 = vld [vmem:[%s0 + $0x20f0] sm:$0xff]
        %v1602 = vld [vmem:[%s0 + $0x20f8] sm:$0xff]
        %v1603 = vld [vmem:[%s0 + $0x2100] sm:$0xff]
        %v1604 = vld [vmem:[%s0 + $0x2108] sm:$0xff]
        %v1605 = vld [vmem:[%s0 + $0x2110] sm:$0xff]
        %v1606 = vld [vmem:[%s0 + $0x2118] sm:$0xff]
        %v1607 = vld [vmem:[%s0 + $0x2120] sm:$0xff]
        %v1608 = vld [vmem:[%s0 + $0x2128] sm:$0xff]
        %v1609 = vld [vmem:[%s0 + $0x2130] sm:$0xff]
        %v1610 = vld [vmem:[%s0 + $0x2138] sm:$0xff]
        %v1611 = vld [vmem:[%s0 + $0x2140] sm:$0xff]
        %v1612 = vld [vmem:[%s0 + $0x2148] sm:$0xff]
        %v1613 = vld [vmem:[%s0 + $0x2150] sm:$0xff]
        %v1614 = vld [vmem:[%s0 + $0x2158] sm:$0xff]
        %v1615 = vld [vmem:[%s0 + $0x2160] sm:$0xff]
        %v1616 = vld [vmem:[%s0 + $0x2168] sm:$0xff]
        %v1617 = vld [vmem:[%s0 + $0x2170] sm:$0xff]
        %v1618 = vld [vmem:[%s0 + $0x2178] sm:$0xff]
        %v1619 = vld [vmem:[%s0 + $0x2180] sm:$0xff]
        %v1620 = vld [vmem:[%s0 + $0x2188] sm:$0xff]
        %v1621 = vld [vmem:[%s0 + $0x2190] sm:$0xff]
        %v1622 = vld [vmem:[%s0 + $0x2198] sm:$0xff]
        %v1623 = vld [vmem:[%s0 + $0x21a0] sm:$0xff]
        %v1624 = vld [vmem:[%s0 + $0x21a8] sm:$0xff]
        %v1625 = vld [vmem:[%s0 + $0x21b0] sm:$0xff]
        %v1626 = vld [vmem:[%s0 + $0x21b8] sm:$0xff]
        %v1627 = vld [vmem:[%s0 + $0x21c0] sm:$0xff]
        %v1628 = vld [vmem:[%s0 + $0x21c8] sm:$0xff]
        %v1629 = vld [vmem:[%s0 + $0x21d0] sm:$0xff]
        %v1630 = vld [vmem:[%s0 + $0x21d8] sm:$0xff]
        %v1631 = vld [vmem:[%s0 + $0x21e0] sm:$0xff]
        %v1632 = vld [vmem:[%s0 + $0x21e8] sm:$0xff]
        %v1633 = vld [vmem:[%s0 + $0x21f0] sm:$0xff]
        %v1634 = vld [vmem:[%s0 + $0x21f8] sm:$0xff]
        %v1635 = vld [vmem:[%s0 + $0x2200] sm:$0xff]
        %v1636 = vld [vmem:[%s0 + $0x2208] sm:$0xff]
        %v1637 = vld [vmem:[%s0 + $0x2210] sm:$0xff]
        %v1638 = vld [vmem:[%s0 + $0x2218] sm:$0xff]
        %v1639 = vld [vmem:[%s0 + $0x2220] sm:$0xff]
        %v1640 = vld [vmem:[%s0 + $0x2228] sm:$0xff]
        %v1641 = vld [vmem:[%s0 + $0x2230] sm:$0xff]
        %v1642 = vld [vmem:[%s0 + $0x2238] sm:$0xff]
        %v1643 = vld [vmem:[%s0 + $0x2240] sm:$0xff]
        %v1644 = vld [vmem:[%s0 + $0x2248] sm:$0xff]
        %v1645 = vld [vmem:[%s0 + $0x2250] sm:$0xff]
        %v1646 = vld [vmem:[%s0 + $0x2258] sm:$0xff]
        %v1647 = vld [vmem:[%s0 + $0x2260] sm:$0xff]
        %v1648 = vld [vmem:[%s0 + $0x2268] sm:$0xff]
        %v1649 = vld [vmem:[%s0 + $0x2270] sm:$0xff]
        %v1650 = vld [vmem:[%s0 + $0x2278] sm:$0xff]
        %v1651 = vld [vmem:[%s0 + $0x2280] sm:$0xff]
        %v1652 = vld [vmem:[%s0 + $0x2288] sm:$0xff]
        %v1653 = vld [vmem:[%s0 + $0x2290] sm:$0xff]
        %v1654 = vld [vmem:[%s0 + $0x2298] sm:$0xff]
        %v1655 = vld [vmem:[%s0 + $0x22a0] sm:$0xff]
        %v1656 = vld [vmem:[%s0 + $0x22a8] sm:$0xff]
        %v1657 = vld [vmem:[%s0 + $0x22b0] sm:$0xff]
        %v1658 = vld [vmem:[%s0 + $0x22b8] sm:$0xff]
        %v1659 = vld [vmem:[%s0 + $0x22c0] sm:$0xff]
        %v1660 = vld [vmem:[%s0 + $0x22c8] sm:$0xff]
        %v1661 = vld [vmem:[%s0 + $0x22d0] sm:$0xff]
        %v1662 = vld [vmem:[%s0 + $0x22d8] sm:$0xff]
        %v1663 = vld [vmem:[%s0 + $0x22e0] sm:$0xff]
        %v1664 = vld [vmem:[%s0 + $0x22e8] sm:$0xff]
        %v1665 = vld [vmem:[%s0 + $0x22f0] sm:$0xff]
        %v1666 = vld [vmem:[%s0 + $0x22f8] sm:$0xff]
        %v1667 = vld [vmem:[%s0 + $0x2300] sm:$0xff]
        %v1668 = vld [vmem:[%s0 + $0x2308] sm:$0xff]
        %v1669 = vld [vmem:[%s0 + $0x2310] sm:$0xff]
        %v1670 = vld [vmem:[%s0 + $0x2318] sm:$0xff]
        %v1671 = vld [vmem:[%s0 + $0x2320] sm:$0xff]
        %v1672 = vld [vmem:[%s0 + $0x2328] sm:$0xff]
        %v1673 = vld [vmem:[%s0 + $0x2330] sm:$0xff]
        %v1674 = vld [vmem:[%s0 + $0x2338] sm:$0xff]
        %v1675 = vld [vmem:[%s0 + $0x2340] sm:$0xff]
        %v1676 = vld [vmem:[%s0 + $0x2348] sm:$0xff]
        %v1677 = vld [vmem:[%s0 + $0x2350] sm:$0xff]
        %v1678 = vld [vmem:[%s0 + $0x2358] sm:$0xff]
        %v1679 = vld [vmem:[%s0 + $0x2360] sm:$0xff]
        %v1680 = vld [vmem:[%s0 + $0x2368] sm:$0xff]
        %v1681 = vld [vmem:[%s0 + $0x2370] sm:$0xff]
        %v1682 = vld [vmem:[%s0 + $0x2378] sm:$0xff]
        %v1683 = vld [vmem:[%s0 + $0x2380] sm:$0xff]
        %v1684 = vld [vmem:[%s0 + $0x2388] sm:$0xff]
        %v1685 = vld [vmem:[%s0 + $0x2390] sm:$0xff]
        %v1686 = vld [vmem:[%s0 + $0x2398] sm:$0xff]
        %v1687 = vld [vmem:[%s0 + $0x23a0] sm:$0xff]
        %v1688 = vld [vmem:[%s0 + $0x23a8] sm:$0xff]
        %v1689 = vld [vmem:[%s0 + $0x23b0] sm:$0xff]
        %v1690 = vld [vmem:[%s0 + $0x23b8] sm:$0xff]
        %v1691 = vld [vmem:[%s0 + $0x23c0] sm:$0xff]
        %v1692 = vld [vmem:[%s0 + $0x23c8] sm:$0xff]
        %v1693 = vld [vmem:[%s0 + $0x23d0] sm:$0xff]
        %v1694 = vld [vmem:[%s0 + $0x23d8] sm:$0xff]
        %v1695 = vld [vmem:[%s0 + $0x23e0] sm:$0xff]
        %v1696 = vld [vmem:[%s0 + $0x23e8] sm:$0xff]
        %v1697 = vld [vmem:[%s0 + $0x23f0] sm:$0xff]
        %v1698 = vld [vmem:[%s0 + $0x23f8] sm:$0xff]
        %v1699 = vld [vmem:[%s0 + $0x2400] sm:$0xff]
        %v1700 = vld [vmem:[%s0 + $0x2408] sm:$0xff]
        %v1701 = vld [vmem:[%s0 + $0x2410] sm:$0xff]
        %v1702 = vld [vmem:[%s0 + $0x2418] sm:$0xff]
        %v1703 = vld [vmem:[%s0 + $0x2420] sm:$0xff]
        %v1704 = vld [vmem:[%s0 + $0x2428] sm:$0xff]
        %v1705 = vld [vmem:[%s0 + $0x2430] sm:$0xff]
        %v1706 = vld [vmem:[%s0 + $0x2438] sm:$0xff]
        %v1707 = vld [vmem:[%s0 + $0x2440] sm:$0xff]
        %v1708 = vld [vmem:[%s0 + $0x2448] sm:$0xff]
        %v1709 = vld [vmem:[%s0 + $0x2450] sm:$0xff]
        %v1710 = vld [vmem:[%s0 + $0x2458] sm:$0xff]
        %v1711 = vld [vmem:[%s0 + $0x2460] sm:$0xff]
        %v1712 = vld [vmem:[%s0 + $0x2468] sm:$0xff]
        %v1713 = vld [vmem:[%s0 + $0x2470] sm:$0xff]
        %v1714 = vld [vmem:[%s0 + $0x2478] sm:$0xff]
        %v1715 = vld [vmem:[%s0 + $0x2480] sm:$0xff]
        %v1716 = vld [vmem:[%s0 + $0x2488] sm:$0xff]
        %v1717 = vld [vmem:[%s0 + $0x2490] sm:$0xff]
        %v1718 = vld [vmem:[%s0 + $0x2498] sm:$0xff]
        %v1719 = vld [vmem:[%s0 + $0x24a0] sm:$0xff]
        %v1720 = vld [vmem:[%s0 + $0x24a8] sm:$0xff]
        %v1721 = vld [vmem:[%s0 + $0x24b0] sm:$0xff]
        %v1722 = vld [vmem:[%s0 + $0x24b8] sm:$0xff]
        %v1723 = vld [vmem:[%s0 + $0x24c0] sm:$0xff]
        %v1724 = vld [vmem:[%s0 + $0x24c8] sm:$0xff]
        %v1725 = vld [vmem:[%s0 + $0x24d0] sm:$0xff]
        %v1726 = vld [vmem:[%s0 + $0x24d8] sm:$0xff]
        %v1727 = vld [vmem:[%s0 + $0x24e0] sm:$0xff]
        %v1728 = vld [vmem:[%s0 + $0x24e8] sm:$0xff]
        %v1729 = vld [vmem:[%s0 + $0x24f0] sm:$0xff]
        %v1730 = vld [vmem:[%s0 + $0x24f8] sm:$0xff]
        %v1731 = vld [vmem:[%s0 + $0x2500] sm:$0xff]
        %v1732 = vld [vmem:[%s0 + $0x2508] sm:$0xff]
        %v1733 = vld [vmem:[%s0 + $0x2510] sm:$0xff]
        %v1734 = vld [vmem:[%s0 + $0x2518] sm:$0xff]
        %v1735 = vld [vmem:[%s0 + $0x2520] sm:$0xff]
        %v1736 = vld [vmem:[%s0 + $0x2528] sm:$0xff]
        %v1737 = vld [vmem:[%s0 + $0x2530] sm:$0xff]
        %v1738 = vld [vmem:[%s0 + $0x2538] sm:$0xff]
        %v1739 = vld [vmem:[%s0 + $0x2540] sm:$0xff]
        %v1740 = vld [vmem:[%s0 + $0x2548] sm:$0xff]
        %v1741 = vld [vmem:[%s0 + $0x2550] sm:$0xff]
        %v1742 = vld [vmem:[%s0 + $0x2558] sm:$0xff]
        %v1743 = vld [vmem:[%s0 + $0x2560] sm:$0xff]
        %v1744 = vld [vmem:[%s0 + $0x2568] sm:$0xff]
        %v1745 = vld [vmem:[%s0 + $0x2570] sm:$0xff]
        %v1746 = vld [vmem:[%s0 + $0x2578] sm:$0xff]
        %v1747 = vld [vmem:[%s0 + $0x2580] sm:$0xff]
        %v1748 = vld [vmem:[%s0 + $0x2588] sm:$0xff]
        %v1749 = vld [vmem:[%s0 + $0x2590] sm:$0xff]
        %v1750 = vld [vmem:[%s0 + $0x2598] sm:$0xff]
        %v1751 = vld [vmem:[%s0 + $0x25a0] sm:$0xff]
        %v1752 = vld [vmem:[%s0 + $0x25a8] sm:$0xff]
        %v1753 = vld [vmem:[%s0 + $0x25b0] sm:$0xff]
        %v1754 = vld [vmem:[%s0 + $0x25b8] sm:$0xff]
        %v1755 = vld [vmem:[%s0 + $0x25c0] sm:$0xff]
        %v1756 = vld [vmem:[%s0 + $0x25c8] sm:$0xff]
        %v1757 = vld [vmem:[%s0 + $0x25d0] sm:$0xff]
        %v1758 = vld [vmem:[%s0 + $0x25d8] sm:$0xff]
        %v1759 = vld [vmem:[%s0 + $0x25e0] sm:$0xff]
        %v1760 = vld [vmem:[%s0 + $0x25e8] sm:$0xff]
        %v1761 = vld [vmem:[%s0 + $0x25f0] sm:$0xff]
        %v1762 = vld [vmem:[%s0 + $0x25f8] sm:$0xff]
        %v1763 = vld [vmem:[%s0 + $0x2600] sm:$0xff]
        %v1764 = vld [vmem:[%s0 + $0x2608] sm:$0xff]
        %v1765 = vld [vmem:[%s0 + $0x2610] sm:$0xff]
        %v1766 = vld [vmem:[%s0 + $0x2618] sm:$0xff]
        %v1767 = vld [vmem:[%s0 + $0x2620] sm:$0xff]
        %v1768 = vld [vmem:[%s0 + $0x2628] sm:$0xff]
        %v1769 = vld [vmem:[%s0 + $0x2630] sm:$0xff]
        %v1770 = vld [vmem:[%s0 + $0x2638] sm:$0xff]
        %v1771 = vld [vmem:[%s0 + $0x2640] sm:$0xff]
        %v1772 = vld [vmem:[%s0 + $0x2648] sm:$0xff]
        %v1773 = vld [vmem:[%s0 + $0x2650] sm:$0xff]
        %v1774 = vld [vmem:[%s0 + $0x2658] sm:$0xff]
        %v1775 = vld [vmem:[%s0 + $0x2660] sm:$0xff]
        %v1776 = vld [vmem:[%s0 + $0x2668] sm:$0xff]
        %v1777 = vld [vmem:[%s0 + $0x2670] sm:$0xff]
        %v1778 = vld [vmem:[%s0 + $0x2678] sm:$0xff]
        %v1779 = vld [vmem:[%s0 + $0x2680] sm:$0xff]
        %v1780 = vld [vmem:[%s0 + $0x2688] sm:$0xff]
        %v1781 = vld [vmem:[%s0 + $0x2690] sm:$0xff]
        %v1782 = vld [vmem:[%s0 + $0x2698] sm:$0xff]
        %v1783 = vld [vmem:[%s0 + $0x26a0] sm:$0xff]
        %v1784 = vld [vmem:[%s0 + $0x26a8] sm:$0xff]
        %v1785 = vld [vmem:[%s0 + $0x26b0] sm:$0xff]
        %v1786 = vld [vmem:[%s0 + $0x26b8] sm:$0xff]
        %v1787 = vld [vmem:[%s0 + $0x26c0] sm:$0xff]
        %v1788 = vld [vmem:[%s0 + $0x26c8] sm:$0xff]
        %v1789 = vld [vmem:[%s0 + $0x26d0] sm:$0xff]
        %v1790 = vld [vmem:[%s0 + $0x26d8] sm:$0xff]
        %v1791 = vld [vmem:[%s0 + $0x26e0] sm:$0xff]
        %v1792 = vld [vmem:[%s0 + $0x26e8] sm:$0xff]
        %v1793 = vld [vmem:[%s0 + $0x26f0] sm:$0xff]
        %v1794 = vld [vmem:[%s0 + $0x26f8] sm:$0xff]
        %v1795 = vld [vmem:[%s0 + $0x2700] sm:$0xff]
        %v1796 = vld [vmem:[%s0 + $0x2708] sm:$0xff]
        %v1797 = vld [vmem:[%s0 + $0x2710] sm:$0xff]
        %v1798 = vld [vmem:[%s0 + $0x2718] sm:$0xff]
        %v1799 = vld [vmem:[%s0 + $0x2720] sm:$0xff]
        %v1800 = vld [vmem:[%s0 + $0x2728] sm:$0xff]
        %v1801 = vld [vmem:[%s0 + $0x2730] sm:$0xff]
        %v1802 = vld [vmem:[%s0 + $0x2738] sm:$0xff]
        %v1803 = vld [vmem:[%s0 + $0x2740] sm:$0xff]
        %v1804 = vld [vmem:[%s0 + $0x2748] sm:$0xff]
        %v1805 = vld [vmem:[%s0 + $0x2750] sm:$0xff]
        %v1806 = vld [vmem:[%s0 + $0x2758] sm:$0xff]
        %v1807 = vld [vmem:[%s0 + $0x2760] sm:$0xff]
        %v1808 = vld [vmem:[%s0 + $0x2768] sm:$0xff]
        %v1809 = vld [vmem:[%s0 + $0x2770] sm:$0xff]
        %v1810 = vld [vmem:[%s0 + $0x2778] sm:$0xff]
        %v1811 = vld [vmem:[%s0 + $0x2780] sm:$0xff]
        %v1812 = vld [vmem:[%s0 + $0x2788] sm:$0xff]
        %v1813 = vld [vmem:[%s0 + $0x2790] sm:$0xff]
        %v1814 = vld [vmem:[%s0 + $0x2798] sm:$0xff]
        %v1815 = vld [vmem:[%s0 + $0x27a0] sm:$0xff]
        %v1816 = vld [vmem:[%s0 + $0x27a8] sm:$0xff]
        %v1817 = vld [vmem:[%s0 + $0x27b0] sm:$0xff]
        %v1818 = vld [vmem:[%s0 + $0x27b8] sm:$0xff]
        %v1819 = vld [vmem:[%s0 + $0x27c0] sm:$0xff]
        %v1820 = vld [vmem:[%s0 + $0x27c8] sm:$0xff]
        %v1821 = vld [vmem:[%s0 + $0x27d0] sm:$0xff]
        %v1822 = vld [vmem:[%s0 + $0x27d8] sm:$0xff]
        %v1823 = vld [vmem:[%s0 + $0x27e0] sm:$0xff]
        %v1824 = vld [vmem:[%s0 + $0x27e8] sm:$0xff]
        %v1825 = vld [vmem:[%s0 + $0x27f0] sm:$0xff]
        %v1826 = vld [vmem:[%s0 + $0x27f8] sm:$0xff]
        %v1827 = vld [vmem:[%s523] sm:$0xff]
        %v1828 = vld [vmem:[%s523 + $0x8] sm:$0xff]
        %v1829 = vld [vmem:[%s523 + $0x10] sm:$0xff]
        %v1830 = vld [vmem:[%s523 + $0x18] sm:$0xff]
        %v1831 = vld [vmem:[%s523 + $0x20] sm:$0xff]
        %v1832 = vld [vmem:[%s523 + $0x28] sm:$0xff]
        %v1833 = vld [vmem:[%s523 + $0x30] sm:$0xff]
        %v1834 = vld [vmem:[%s523 + $0x38] sm:$0xff]
        %v1835 = vld [vmem:[%s523 + $0x40] sm:$0xff]
        %v1836 = vld [vmem:[%s523 + $0x48] sm:$0xff]
        %v1837 = vld [vmem:[%s523 + $0x50] sm:$0xff]
        %v1838 = vld [vmem:[%s523 + $0x58] sm:$0xff]
        %v1839 = vld [vmem:[%s523 + $0x60] sm:$0xff]
        %v1840 = vld [vmem:[%s523 + $0x68] sm:$0xff]
        %v1841 = vld [vmem:[%s523 + $0x70] sm:$0xff]
        %v1842 = vld [vmem:[%s523 + $0x78] sm:$0xff]
        %v1843 = vld [vmem:[%s523 + $0x80] sm:$0xff]
        %v1844 = vld [vmem:[%s523 + $0x88] sm:$0xff]
        %v1845 = vld [vmem:[%s523 + $0x90] sm:$0xff]
        %v1846 = vld [vmem:[%s523 + $0x98] sm:$0xff]
        %v1847 = vld [vmem:[%s523 + $0xa0] sm:$0xff]
        %v1848 = vld [vmem:[%s523 + $0xa8] sm:$0xff]
        %v1849 = vld [vmem:[%s523 + $0xb0] sm:$0xff]
        %v1850 = vld [vmem:[%s523 + $0xb8] sm:$0xff]
        %v1851 = vld [vmem:[%s523 + $0xc0] sm:$0xff]
        %v1852 = vld [vmem:[%s523 + $0xc8] sm:$0xff]
        %v1853 = vld [vmem:[%s523 + $0xd0] sm:$0xff]
        %v1854 = vld [vmem:[%s523 + $0xd8] sm:$0xff]
        %v1855 = vld [vmem:[%s523 + $0xe0] sm:$0xff]
        %v1856 = vld [vmem:[%s523 + $0xe8] sm:$0xff]
        %v1857 = vld [vmem:[%s523 + $0xf0] sm:$0xff]
        %v1858 = vld [vmem:[%s523 + $0xf8] sm:$0xff]
        %v1859 = vld [vmem:[%s523 + $0x100] sm:$0xff]
        %v1860 = vld [vmem:[%s523 + $0x108] sm:$0xff]
        %v1861 = vld [vmem:[%s523 + $0x110] sm:$0xff]
        %v1862 = vld [vmem:[%s523 + $0x118] sm:$0xff]
        %v1863 = vld [vmem:[%s523 + $0x120] sm:$0xff]
        %v1864 = vld [vmem:[%s523 + $0x128] sm:$0xff]
        %v1865 = vld [vmem:[%s523 + $0x130] sm:$0xff]
        %v1866 = vld [vmem:[%s523 + $0x138] sm:$0xff]
        %v1867 = vld [vmem:[%s523 + $0x140] sm:$0xff]
        %v1868 = vld [vmem:[%s523 + $0x148] sm:$0xff]
        %v1869 = vld [vmem:[%s523 + $0x150] sm:$0xff]
        %v1870 = vld [vmem:[%s523 + $0x158] sm:$0xff]
        %v1871 = vld [vmem:[%s523 + $0x160] sm:$0xff]
        %v1872 = vld [vmem:[%s523 + $0x168] sm:$0xff]
        %v1873 = vld [vmem:[%s523 + $0x170] sm:$0xff]
        %v1874 = vld [vmem:[%s523 + $0x178] sm:$0xff]
        %v1875 = vld [vmem:[%s523 + $0x180] sm:$0xff]
        %v1876 = vld [vmem:[%s523 + $0x188] sm:$0xff]
        %v1877 = vld [vmem:[%s523 + $0x190] sm:$0xff]
        %v1878 = vld [vmem:[%s523 + $0x198] sm:$0xff]
        %v1879 = vld [vmem:[%s523 + $0x1a0] sm:$0xff]
        %v1880 = vld [vmem:[%s523 + $0x1a8] sm:$0xff]
        %v1881 = vld [vmem:[%s523 + $0x1b0] sm:$0xff]
        %v1882 = vld [vmem:[%s523 + $0x1b8] sm:$0xff]
        %v1883 = vld [vmem:[%s523 + $0x1c0] sm:$0xff]
        %v1884 = vld [vmem:[%s523 + $0x1c8] sm:$0xff]
        %v1885 = vld [vmem:[%s523 + $0x1d0] sm:$0xff]
        %v1886 = vld [vmem:[%s523 + $0x1d8] sm:$0xff]
        %v1887 = vld [vmem:[%s523 + $0x1e0] sm:$0xff]
        %v1888 = vld [vmem:[%s523 + $0x1e8] sm:$0xff]
        %v1889 = vld [vmem:[%s523 + $0x1f0] sm:$0xff]
        %v1890 = vld [vmem:[%s523 + $0x1f8] sm:$0xff]
        %v1891 = vld [vmem:[%s523 + $0x200] sm:$0xff]
        %v1892 = vld [vmem:[%s523 + $0x208] sm:$0xff]
        %v1893 = vld [vmem:[%s523 + $0x210] sm:$0xff]
        %v1894 = vld [vmem:[%s523 + $0x218] sm:$0xff]
        %v1895 = vld [vmem:[%s523 + $0x220] sm:$0xff]
        %v1896 = vld [vmem:[%s523 + $0x228] sm:$0xff]
        %v1897 = vld [vmem:[%s523 + $0x230] sm:$0xff]
        %v1898 = vld [vmem:[%s523 + $0x238] sm:$0xff]
        %v1899 = vld [vmem:[%s523 + $0x240] sm:$0xff]
        %v1900 = vld [vmem:[%s523 + $0x248] sm:$0xff]
        %v1901 = vld [vmem:[%s523 + $0x250] sm:$0xff]
        %v1902 = vld [vmem:[%s523 + $0x258] sm:$0xff]
        %v1903 = vld [vmem:[%s523 + $0x260] sm:$0xff]
        %v1904 = vld [vmem:[%s523 + $0x268] sm:$0xff]
        %v1905 = vld [vmem:[%s523 + $0x270] sm:$0xff]
        %v1906 = vld [vmem:[%s523 + $0x278] sm:$0xff]
        %1907 = vmatprep.subr.mxu0 0.0
        %1908 = vmatpush1.msra.mxu0 %v1842
        %1909 = vmatprep.subr.mxu0 0.0
        %1910 = vmatpush1.msra.mxu0 %v1841
        %1911 = vmatprep.subr.mxu0 0.0
        %1912 = vmatpush1.msra.mxu0 %v1840
        %1913 = vmatprep.subr.mxu0 0.0
        %1914 = vmatpush1.msra.mxu0 %v1839
        %1915 = vmatprep.subr.mxu0 0.0
        %1916 = vmatpush1.msra.mxu0 %v1838
        %1917 = vmatprep.subr.mxu0 0.0
        %1918 = vmatpush1.msra.mxu0 %v1837
        %1919 = vmatprep.subr.mxu0 0.0
        %1920 = vmatpush1.msra.mxu0 %v1836
        %1921 = vmatprep.subr.mxu0 0.0
        %1922 = vmatpush1.msra.mxu0 %v1835
        %1923 = vmatprep.subr.mxu0 0.0
        %1924 = vmatpush1.msra.mxu0 %v1834
        %1925 = vmatprep.subr.mxu0 0.0
        %1926 = vmatpush1.msra.mxu0 %v1833
        %1927 = vmatprep.subr.mxu0 0.0
        %1928 = vmatpush1.msra.mxu0 %v1832
        %1929 = vmatprep.subr.mxu0 0.0
        %1930 = vmatpush1.msra.mxu0 %v1831
        %1931 = vmatprep.subr.mxu0 0.0
        %1932 = vmatpush1.msra.mxu0 %v1830
        %1933 = vmatprep.subr.mxu0 0.0
        %1934 = vmatpush1.msra.mxu0 %v1829
        %1935 = vmatprep.subr.mxu0 0.0
        %1936 = vmatpush1.msra.mxu0 %v1828
        %1937 = vmatprep.subr.mxu0 0.0
        %1938 = vmatpush1.msra.mxu0 %v1827
        %1939 = vmatprep.subr.mxu0 0.0
        %1940 = vmatpush2.msra.mxu0 %v1858
        %1941 = vmatprep.subr.mxu0 0.0
        %1942 = vmatpush2.msra.mxu0 %v1857
        %1943 = vmatprep.subr.mxu0 0.0
        %1944 = vmatpush2.msra.mxu0 %v1856
        %1945 = vmatprep.subr.mxu0 0.0
        %1946 = vmatpush2.msra.mxu0 %v1855
        %1947 = vmatprep.subr.mxu0 0.0
        %1948 = vmatpush2.msra.mxu0 %v1854
        %1949 = vmatprep.subr.mxu0 0.0
        %1950 = vmatpush2.msra.mxu0 %v1853
        %1951 = vmatprep.subr.mxu0 0.0
        %1952 = vmatpush2.msra.mxu0 %v1852
        %1953 = vmatprep.subr.mxu0 0.0
        %1954 = vmatpush2.msra.mxu0 %v1851
        %1955 = vmatprep.subr.mxu0 0.0
        %1956 = vmatpush2.msra.mxu0 %v1850
        %1957 = vmatprep.subr.mxu0 0.0
        %1958 = vmatpush2.msra.mxu0 %v1849
        %1959 = vmatprep.subr.mxu0 0.0
        %1960 = vmatpush2.msra.mxu0 %v1848
        %1961 = vmatprep.subr.mxu0 0.0
        %1962 = vmatpush2.msra.mxu0 %v1847
        %1963 = vmatprep.subr.mxu0 0.0
        %1964 = vmatpush2.msra.mxu0 %v1846
        %1965 = vmatprep.subr.mxu0 0.0
        %1966 = vmatpush2.msra.mxu0 %v1845
        %1967 = vmatprep.subr.mxu0 0.0
        %1968 = vmatpush2.msra.mxu0 %v1844
        %1969 = vmatprep.subr.mxu0 0.0
        %1970 = vmatpush2.msra.mxu0 %v1843
        %1971 = vmatprep.mubr.f32.mxu0 %v548
        %1972 = vmatmul.mubr.f32.gmra.mxu0 %v547
        %v1973 = vpop.f32.mrf.mxu0
        %v1974 = vadd.f32 0.0, %v1973
        %v1975 = vpop.f32.mrf.mxu0
        %1976 = vmatprep.mubr.f32.mxu0 %v553
        %1977 = vmatmul.mubr.f32.gmra.mxu0 %v552
        %v1978 = vpop.f32.mrf.mxu0
        %v1979 = vadd.f32 0.0, %v1978
        %v1980 = vpop.f32.mrf.mxu0
        %1981 = vmatprep.mubr.f32.mxu0 %v558
        %1982 = vmatmul.mubr.f32.gmra.mxu0 %v557
        %v1983 = vpop.f32.mrf.mxu0
        %v1984 = vadd.f32 0.0, %v1983
        %v1985 = vpop.f32.mrf.mxu0
        %1986 = vmatprep.mubr.f32.mxu0 %v563
        %1987 = vmatmul.mubr.f32.gmra.mxu0 %v562
        %v1988 = vpop.f32.mrf.mxu0
        %v1989 = vadd.f32 0.0, %v1988
        %v1990 = vpop.f32.mrf.mxu0
        %1991 = vmatprep.mubr.f32.mxu0 %v568
        %1992 = vmatmul.mubr.f32.gmra.mxu0 %v567
        %v1993 = vpop.f32.mrf.mxu0
        %v1994 = vadd.f32 0.0, %v1993
        %v1995 = vpop.f32.mrf.mxu0
        %1996 = vmatprep.mubr.f32.mxu0 %v573
        %1997 = vmatmul.mubr.f32.gmra.mxu0 %v572
        %v1998 = vpop.f32.mrf.mxu0
        %v1999 = vadd.f32 0.0, %v1998
        %v2000 = vpop.f32.mrf.mxu0
        %2001 = vmatprep.mubr.f32.mxu0 %v578
        %2002 = vmatmul.mubr.f32.gmra.mxu0 %v577
        %v2003 = vpop.f32.mrf.mxu0
        %v2004 = vadd.f32 0.0, %v2003
        %v2005 = vpop.f32.mrf.mxu0
        %2006 = vmatprep.mubr.f32.mxu0 %v583
        %2007 = vmatmul.mubr.f32.gmra.mxu0 %v582
        %v2008 = vpop.f32.mrf.mxu0
        %v2009 = vadd.f32 0.0, %v2008
        %v2010 = vpop.f32.mrf.mxu0
        %2011 = vmatprep.mubr.f32.mxu0 %v588
        %2012 = vmatmul.mubr.f32.gmra.mxu0 %v587
        %v2013 = vpop.f32.mrf.mxu0
        %v2014 = vadd.f32 0.0, %v2013
        %v2015 = vpop.f32.mrf.mxu0
        %2016 = vmatprep.mubr.f32.mxu0 %v593
        %2017 = vmatmul.mubr.f32.gmra.mxu0 %v592
        %v2018 = vpop.f32.mrf.mxu0
        %v2019 = vadd.f32 0.0, %v2018
        %v2020 = vpop.f32.mrf.mxu0
        %2021 = vmatprep.mubr.f32.mxu0 %v598
        %2022 = vmatmul.mubr.f32.gmra.mxu0 %v597
        %v2023 = vpop.f32.mrf.mxu0
        %v2024 = vadd.f32 0.0, %v2023
        %v2025 = vpop.f32.mrf.mxu0
        %2026 = vmatprep.mubr.f32.mxu0 %v603
        %2027 = vmatmul.mubr.f32.gmra.mxu0 %v602
        %v2028 = vpop.f32.mrf.mxu0
        %v2029 = vadd.f32 0.0, %v2028
        %v2030 = vpop.f32.mrf.mxu0
        %2031 = vmatprep.mubr.f32.mxu0 %v608
        %2032 = vmatmul.mubr.f32.gmra.mxu0 %v607
        %v2033 = vpop.f32.mrf.mxu0
        %v2034 = vadd.f32 0.0, %v2033
        %v2035 = vpop.f32.mrf.mxu0
        %2036 = vmatprep.mubr.f32.mxu0 %v613
        %2037 = vmatmul.mubr.f32.gmra.mxu0 %v612
        %v2038 = vpop.f32.mrf.mxu0
        %v2039 = vadd.f32 0.0, %v2038
        %v2040 = vpop.f32.mrf.mxu0
        %2041 = vmatprep.mubr.f32.mxu0 %v618
        %2042 = vmatmul.mubr.f32.gmra.mxu0 %v617
        %v2043 = vpop.f32.mrf.mxu0
        %v2044 = vadd.f32 0.0, %v2043
        %v2045 = vpop.f32.mrf.mxu0
        %2046 = vmatprep.mubr.f32.mxu0 %v623
        %2047 = vmatmul.mubr.f32.gmra.mxu0 %v622
        %v2048 = vpop.f32.mrf.mxu0
        %v2049 = vadd.f32 0.0, %v2048
        %v2050 = vpop.f32.mrf.mxu0
        %2051 = vmatprep.mubr.f32.mxu0 %v628
        %2052 = vmatmul.mubr.f32.gmra.mxu0 %v627
        %v2053 = vpop.f32.mrf.mxu0
        %v2054 = vadd.f32 0.0, %v2053
        %v2055 = vpop.f32.mrf.mxu0
        %2056 = vmatprep.mubr.f32.mxu0 %v633
        %2057 = vmatmul.mubr.f32.gmra.mxu0 %v632
        %v2058 = vpop.f32.mrf.mxu0
        %v2059 = vadd.f32 0.0, %v2058
        %v2060 = vpop.f32.mrf.mxu0
        %2061 = vmatprep.mubr.f32.mxu0 %v638
        %2062 = vmatmul.mubr.f32.gmra.mxu0 %v637
        %v2063 = vpop.f32.mrf.mxu0
        %v2064 = vadd.f32 0.0, %v2063
        %v2065 = vpop.f32.mrf.mxu0
        %2066 = vmatprep.mubr.f32.mxu0 %v643
        %2067 = vmatmul.mubr.f32.gmra.mxu0 %v642
        %v2068 = vpop.f32.mrf.mxu0
        %v2069 = vadd.f32 0.0, %v2068
        %v2070 = vpop.f32.mrf.mxu0
        %2071 = vmatprep.mubr.f32.mxu0 %v648
        %2072 = vmatmul.mubr.f32.gmra.mxu0 %v647
        %v2073 = vpop.f32.mrf.mxu0
        %v2074 = vadd.f32 0.0, %v2073
        %v2075 = vpop.f32.mrf.mxu0
        %2076 = vmatprep.mubr.f32.mxu0 %v653
        %2077 = vmatmul.mubr.f32.gmra.mxu0 %v652
        %v2078 = vpop.f32.mrf.mxu0
        %v2079 = vadd.f32 0.0, %v2078
        %v2080 = vpop.f32.mrf.mxu0
        %2081 = vmatprep.mubr.f32.mxu0 %v658
        %2082 = vmatmul.mubr.f32.gmra.mxu0 %v657
        %v2083 = vpop.f32.mrf.mxu0
        %v2084 = vadd.f32 0.0, %v2083
        %v2085 = vpop.f32.mrf.mxu0
        %2086 = vmatprep.mubr.f32.mxu0 %v663
        %2087 = vmatmul.mubr.f32.gmra.mxu0 %v662
        %v2088 = vpop.f32.mrf.mxu0
        %v2089 = vadd.f32 0.0, %v2088
        %v2090 = vpop.f32.mrf.mxu0
        %2091 = vmatprep.mubr.f32.mxu0 %v668
        %2092 = vmatmul.mubr.f32.gmra.mxu0 %v667
        %v2093 = vpop.f32.mrf.mxu0
        %v2094 = vadd.f32 0.0, %v2093
        %v2095 = vpop.f32.mrf.mxu0
        %2096 = vmatprep.mubr.f32.mxu0 %v673
        %2097 = vmatmul.mubr.f32.gmra.mxu0 %v672
        %v2098 = vpop.f32.mrf.mxu0
        %v2099 = vadd.f32 0.0, %v2098
        %v2100 = vpop.f32.mrf.mxu0
        %2101 = vmatprep.mubr.f32.mxu0 %v678
        %2102 = vmatmul.mubr.f32.gmra.mxu0 %v677
        %v2103 = vpop.f32.mrf.mxu0
        %v2104 = vadd.f32 0.0, %v2103
        %v2105 = vpop.f32.mrf.mxu0
        %2106 = vmatprep.mubr.f32.mxu0 %v683
        %2107 = vmatmul.mubr.f32.gmra.mxu0 %v682
        %v2108 = vpop.f32.mrf.mxu0
        %v2109 = vadd.f32 0.0, %v2108
        %v2110 = vpop.f32.mrf.mxu0
        %2111 = vmatprep.mubr.f32.mxu0 %v688
        %2112 = vmatmul.mubr.f32.gmra.mxu0 %v687
        %v2113 = vpop.f32.mrf.mxu0
        %v2114 = vadd.f32 0.0, %v2113
        %v2115 = vpop.f32.mrf.mxu0
        %2116 = vmatprep.mubr.f32.mxu0 %v693
        %2117 = vmatmul.mubr.f32.gmra.mxu0 %v692
        %v2118 = vpop.f32.mrf.mxu0
        %v2119 = vadd.f32 0.0, %v2118
        %v2120 = vpop.f32.mrf.mxu0
        %2121 = vmatprep.mubr.f32.mxu0 %v698
        %2122 = vmatmul.mubr.f32.gmra.mxu0 %v697
        %v2123 = vpop.f32.mrf.mxu0
        %v2124 = vadd.f32 0.0, %v2123
        %v2125 = vpop.f32.mrf.mxu0
        %2126 = vmatprep.mubr.f32.mxu0 %v703
        %2127 = vmatmul.mubr.f32.gmra.mxu0 %v702
        %v2128 = vpop.f32.mrf.mxu0
        %v2129 = vadd.f32 0.0, %v2128
        %v2130 = vpop.f32.mrf.mxu0
        %2131 = vmatprep.mubr.f32.mxu0 %v708
        %2132 = vmatmul.mubr.f32.gmra.mxu0 %v707
        %v2133 = vpop.f32.mrf.mxu0
        %v2134 = vadd.f32 0.0, %v2133
        %v2135 = vpop.f32.mrf.mxu0
        %2136 = vmatprep.mubr.f32.mxu0 %v713
        %2137 = vmatmul.mubr.f32.gmra.mxu0 %v712
        %v2138 = vpop.f32.mrf.mxu0
        %v2139 = vadd.f32 0.0, %v2138
        %v2140 = vpop.f32.mrf.mxu0
        %2141 = vmatprep.mubr.f32.mxu0 %v718
        %2142 = vmatmul.mubr.f32.gmra.mxu0 %v717
        %v2143 = vpop.f32.mrf.mxu0
        %v2144 = vadd.f32 0.0, %v2143
        %v2145 = vpop.f32.mrf.mxu0
        %2146 = vmatprep.mubr.f32.mxu0 %v723
        %2147 = vmatmul.mubr.f32.gmra.mxu0 %v722
        %v2148 = vpop.f32.mrf.mxu0
        %v2149 = vadd.f32 0.0, %v2148
        %v2150 = vpop.f32.mrf.mxu0
        %2151 = vmatprep.mubr.f32.mxu0 %v728
        %2152 = vmatmul.mubr.f32.gmra.mxu0 %v727
        %v2153 = vpop.f32.mrf.mxu0
        %v2154 = vadd.f32 0.0, %v2153
        %v2155 = vpop.f32.mrf.mxu0
        %2156 = vmatprep.mubr.f32.mxu0 %v733
        %2157 = vmatmul.mubr.f32.gmra.mxu0 %v732
        %v2158 = vpop.f32.mrf.mxu0
        %v2159 = vadd.f32 0.0, %v2158
        %v2160 = vpop.f32.mrf.mxu0
        %2161 = vmatprep.mubr.f32.mxu0 %v738
        %2162 = vmatmul.mubr.f32.gmra.mxu0 %v737
        %v2163 = vpop.f32.mrf.mxu0
        %v2164 = vadd.f32 0.0, %v2163
        %v2165 = vpop.f32.mrf.mxu0
        %2166 = vmatprep.mubr.f32.mxu0 %v743
        %2167 = vmatmul.mubr.f32.gmra.mxu0 %v742
        %v2168 = vpop.f32.mrf.mxu0
        %v2169 = vadd.f32 0.0, %v2168
        %v2170 = vpop.f32.mrf.mxu0
        %2171 = vmatprep.mubr.f32.mxu0 %v748
        %2172 = vmatmul.mubr.f32.gmra.mxu0 %v747
        %v2173 = vpop.f32.mrf.mxu0
        %v2174 = vadd.f32 0.0, %v2173
        %v2175 = vpop.f32.mrf.mxu0
        %2176 = vmatprep.mubr.f32.mxu0 %v753
        %2177 = vmatmul.mubr.f32.gmra.mxu0 %v752
        %v2178 = vpop.f32.mrf.mxu0
        %v2179 = vadd.f32 0.0, %v2178
        %v2180 = vpop.f32.mrf.mxu0
        %2181 = vmatprep.mubr.f32.mxu0 %v758
        %2182 = vmatmul.mubr.f32.gmra.mxu0 %v757
        %v2183 = vpop.f32.mrf.mxu0
        %v2184 = vadd.f32 0.0, %v2183
        %v2185 = vpop.f32.mrf.mxu0
        %2186 = vmatprep.mubr.f32.mxu0 %v763
        %2187 = vmatmul.mubr.f32.gmra.mxu0 %v762
        %v2188 = vpop.f32.mrf.mxu0
        %v2189 = vadd.f32 0.0, %v2188
        %v2190 = vpop.f32.mrf.mxu0
        %2191 = vmatprep.mubr.f32.mxu0 %v768
        %2192 = vmatmul.mubr.f32.gmra.mxu0 %v767
        %v2193 = vpop.f32.mrf.mxu0
        %v2194 = vadd.f32 0.0, %v2193
        %v2195 = vpop.f32.mrf.mxu0
        %2196 = vmatprep.mubr.f32.mxu0 %v773
        %2197 = vmatmul.mubr.f32.gmra.mxu0 %v772
        %v2198 = vpop.f32.mrf.mxu0
        %v2199 = vadd.f32 0.0, %v2198
        %v2200 = vpop.f32.mrf.mxu0
        %2201 = vmatprep.mubr.f32.mxu0 %v778
        %2202 = vmatmul.mubr.f32.gmra.mxu0 %v777
        %v2203 = vpop.f32.mrf.mxu0
        %v2204 = vadd.f32 0.0, %v2203
        %v2205 = vpop.f32.mrf.mxu0
        %2206 = vmatprep.mubr.f32.mxu0 %v783
        %2207 = vmatmul.mubr.f32.gmra.mxu0 %v782
        %v2208 = vpop.f32.mrf.mxu0
        %v2209 = vadd.f32 0.0, %v2208
        %v2210 = vpop.f32.mrf.mxu0
        %2211 = vmatprep.mubr.f32.mxu0 %v788
        %2212 = vmatmul.mubr.f32.gmra.mxu0 %v787
        %v2213 = vpop.f32.mrf.mxu0
        %v2214 = vadd.f32 0.0, %v2213
        %v2215 = vpop.f32.mrf.mxu0
        %2216 = vmatprep.mubr.f32.mxu0 %v793
        %2217 = vmatmul.mubr.f32.gmra.mxu0 %v792
        %v2218 = vpop.f32.mrf.mxu0
        %v2219 = vadd.f32 0.0, %v2218
        %v2220 = vpop.f32.mrf.mxu0
        %2221 = vmatprep.mubr.f32.mxu0 %v798
        %2222 = vmatmul.mubr.f32.gmra.mxu0 %v797
        %v2223 = vpop.f32.mrf.mxu0
        %v2224 = vadd.f32 0.0, %v2223
        %v2225 = vpop.f32.mrf.mxu0
        %2226 = vmatprep.mubr.f32.mxu0 %v803
        %2227 = vmatmul.mubr.f32.gmra.mxu0 %v802
        %v2228 = vpop.f32.mrf.mxu0
        %v2229 = vadd.f32 0.0, %v2228
        %v2230 = vpop.f32.mrf.mxu0
        %2231 = vmatprep.mubr.f32.mxu0 %v808
        %2232 = vmatmul.mubr.f32.gmra.mxu0 %v807
        %v2233 = vpop.f32.mrf.mxu0
        %v2234 = vadd.f32 0.0, %v2233
        %v2235 = vpop.f32.mrf.mxu0
        %2236 = vmatprep.mubr.f32.mxu0 %v813
        %2237 = vmatmul.mubr.f32.gmra.mxu0 %v812
        %v2238 = vpop.f32.mrf.mxu0
        %v2239 = vadd.f32 0.0, %v2238
        %v2240 = vpop.f32.mrf.mxu0
        %2241 = vmatprep.mubr.f32.mxu0 %v818
        %2242 = vmatmul.mubr.f32.gmra.mxu0 %v817
        %v2243 = vpop.f32.mrf.mxu0
        %v2244 = vadd.f32 0.0, %v2243
        %v2245 = vpop.f32.mrf.mxu0
        %2246 = vmatprep.mubr.f32.mxu0 %v823
        %2247 = vmatmul.mubr.f32.gmra.mxu0 %v822
        %v2248 = vpop.f32.mrf.mxu0
        %v2249 = vadd.f32 0.0, %v2248
        %v2250 = vpop.f32.mrf.mxu0
        %2251 = vmatprep.mubr.f32.mxu0 %v828
        %2252 = vmatmul.mubr.f32.gmra.mxu0 %v827
        %v2253 = vpop.f32.mrf.mxu0
        %v2254 = vadd.f32 0.0, %v2253
        %v2255 = vpop.f32.mrf.mxu0
        %2256 = vmatprep.mubr.f32.mxu0 %v833
        %2257 = vmatmul.mubr.f32.gmra.mxu0 %v832
        %v2258 = vpop.f32.mrf.mxu0
        %v2259 = vadd.f32 0.0, %v2258
        %v2260 = vpop.f32.mrf.mxu0
        %2261 = vmatprep.mubr.f32.mxu0 %v838
        %2262 = vmatmul.mubr.f32.gmra.mxu0 %v837
        %v2263 = vpop.f32.mrf.mxu0
        %v2264 = vadd.f32 0.0, %v2263
        %v2265 = vpop.f32.mrf.mxu0
        %2266 = vmatprep.mubr.f32.mxu0 %v843
        %2267 = vmatmul.mubr.f32.gmra.mxu0 %v842
        %v2268 = vpop.f32.mrf.mxu0
        %v2269 = vadd.f32 0.0, %v2268
        %v2270 = vpop.f32.mrf.mxu0
        %2271 = vmatprep.mubr.f32.mxu0 %v848
        %2272 = vmatmul.mubr.f32.gmra.mxu0 %v847
        %v2273 = vpop.f32.mrf.mxu0
        %v2274 = vadd.f32 0.0, %v2273
        %v2275 = vpop.f32.mrf.mxu0
        %2276 = vmatprep.mubr.f32.mxu0 %v853
        %2277 = vmatmul.mubr.f32.gmra.mxu0 %v852
        %v2278 = vpop.f32.mrf.mxu0
        %v2279 = vadd.f32 0.0, %v2278
        %v2280 = vpop.f32.mrf.mxu0
        %2281 = vmatprep.mubr.f32.mxu0 %v858
        %2282 = vmatmul.mubr.f32.gmra.mxu0 %v857
        %v2283 = vpop.f32.mrf.mxu0
        %v2284 = vadd.f32 0.0, %v2283
        %v2285 = vpop.f32.mrf.mxu0
        %2286 = vmatprep.mubr.f32.mxu0 %v863
        %2287 = vmatmul.mubr.f32.gmra.mxu0 %v862
        %v2288 = vpop.f32.mrf.mxu0
        %v2289 = vadd.f32 0.0, %v2288
        %v2290 = vpop.f32.mrf.mxu0
        %2291 = vmatprep.mubr.f32.mxu0 %v868
        %2292 = vmatmul.mubr.f32.gmra.mxu0 %v867
        %v2293 = vpop.f32.mrf.mxu0
        %v2294 = vadd.f32 0.0, %v2293
        %v2295 = vpop.f32.mrf.mxu0
        %2296 = vmatprep.mubr.f32.mxu0 %v873
        %2297 = vmatmul.mubr.f32.gmra.mxu0 %v872
        %v2298 = vpop.f32.mrf.mxu0
        %v2299 = vadd.f32 0.0, %v2298
        %v2300 = vpop.f32.mrf.mxu0
        %2301 = vmatprep.mubr.f32.mxu0 %v878
        %2302 = vmatmul.mubr.f32.gmra.mxu0 %v877
        %v2303 = vpop.f32.mrf.mxu0
        %v2304 = vadd.f32 0.0, %v2303
        %v2305 = vpop.f32.mrf.mxu0
        %2306 = vmatprep.mubr.f32.mxu0 %v883
        %2307 = vmatmul.mubr.f32.gmra.mxu0 %v882
        %v2308 = vpop.f32.mrf.mxu0
        %v2309 = vadd.f32 0.0, %v2308
        %v2310 = vpop.f32.mrf.mxu0
        %2311 = vmatprep.mubr.f32.mxu0 %v888
        %2312 = vmatmul.mubr.f32.gmra.mxu0 %v887
        %v2313 = vpop.f32.mrf.mxu0
        %v2314 = vadd.f32 0.0, %v2313
        %v2315 = vpop.f32.mrf.mxu0
        %2316 = vmatprep.mubr.f32.mxu0 %v893
        %2317 = vmatmul.mubr.f32.gmra.mxu0 %v892
        %v2318 = vpop.f32.mrf.mxu0
        %v2319 = vadd.f32 0.0, %v2318
        %v2320 = vpop.f32.mrf.mxu0
        %2321 = vmatprep.mubr.f32.mxu0 %v898
        %2322 = vmatmul.mubr.f32.gmra.mxu0 %v897
        %v2323 = vpop.f32.mrf.mxu0
        %v2324 = vadd.f32 0.0, %v2323
        %v2325 = vpop.f32.mrf.mxu0
        %2326 = vmatprep.mubr.f32.mxu0 %v903
        %2327 = vmatmul.mubr.f32.gmra.mxu0 %v902
        %v2328 = vpop.f32.mrf.mxu0
        %v2329 = vadd.f32 0.0, %v2328
        %v2330 = vpop.f32.mrf.mxu0
        %2331 = vmatprep.mubr.f32.mxu0 %v908
        %2332 = vmatmul.mubr.f32.gmra.mxu0 %v907
        %v2333 = vpop.f32.mrf.mxu0
        %v2334 = vadd.f32 0.0, %v2333
        %v2335 = vpop.f32.mrf.mxu0
        %2336 = vmatprep.mubr.f32.mxu0 %v913
        %2337 = vmatmul.mubr.f32.gmra.mxu0 %v912
        %v2338 = vpop.f32.mrf.mxu0
        %v2339 = vadd.f32 0.0, %v2338
        %v2340 = vpop.f32.mrf.mxu0
        %2341 = vmatprep.mubr.f32.mxu0 %v918
        %2342 = vmatmul.mubr.f32.gmra.mxu0 %v917
        %v2343 = vpop.f32.mrf.mxu0
        %v2344 = vadd.f32 0.0, %v2343
        %v2345 = vpop.f32.mrf.mxu0
        %2346 = vmatprep.mubr.f32.mxu0 %v923
        %2347 = vmatmul.mubr.f32.gmra.mxu0 %v922
        %v2348 = vpop.f32.mrf.mxu0
        %v2349 = vadd.f32 0.0, %v2348
        %v2350 = vpop.f32.mrf.mxu0
        %2351 = vmatprep.mubr.f32.mxu0 %v928
        %2352 = vmatmul.mubr.f32.gmra.mxu0 %v927
        %v2353 = vpop.f32.mrf.mxu0
        %v2354 = vadd.f32 0.0, %v2353
        %v2355 = vpop.f32.mrf.mxu0
        %2356 = vmatprep.mubr.f32.mxu0 %v933
        %2357 = vmatmul.mubr.f32.gmra.mxu0 %v932
        %v2358 = vpop.f32.mrf.mxu0
        %v2359 = vadd.f32 0.0, %v2358
        %v2360 = vpop.f32.mrf.mxu0
        %2361 = vmatprep.mubr.f32.mxu0 %v938
        %2362 = vmatmul.mubr.f32.gmra.mxu0 %v937
        %v2363 = vpop.f32.mrf.mxu0
        %v2364 = vadd.f32 0.0, %v2363
        %v2365 = vpop.f32.mrf.mxu0
        %2366 = vmatprep.mubr.f32.mxu0 %v943
        %2367 = vmatmul.mubr.f32.gmra.mxu0 %v942
        %v2368 = vpop.f32.mrf.mxu0
        %v2369 = vadd.f32 0.0, %v2368
        %v2370 = vpop.f32.mrf.mxu0
        %2371 = vmatprep.mubr.f32.mxu0 %v948
        %2372 = vmatmul.mubr.f32.gmra.mxu0 %v947
        %v2373 = vpop.f32.mrf.mxu0
        %v2374 = vadd.f32 0.0, %v2373
        %v2375 = vpop.f32.mrf.mxu0
        %2376 = vmatprep.mubr.f32.mxu0 %v953
        %2377 = vmatmul.mubr.f32.gmra.mxu0 %v952
        %v2378 = vpop.f32.mrf.mxu0
        %v2379 = vadd.f32 0.0, %v2378
        %v2380 = vpop.f32.mrf.mxu0
        %2381 = vmatprep.mubr.f32.mxu0 %v958
        %2382 = vmatmul.mubr.f32.gmra.mxu0 %v957
        %v2383 = vpop.f32.mrf.mxu0
        %v2384 = vadd.f32 0.0, %v2383
        %v2385 = vpop.f32.mrf.mxu0
        %2386 = vmatprep.mubr.f32.mxu0 %v963
        %2387 = vmatmul.mubr.f32.gmra.mxu0 %v962
        %v2388 = vpop.f32.mrf.mxu0
        %v2389 = vadd.f32 0.0, %v2388
        %v2390 = vpop.f32.mrf.mxu0
        %2391 = vmatprep.mubr.f32.mxu0 %v968
        %2392 = vmatmul.mubr.f32.gmra.mxu0 %v967
        %v2393 = vpop.f32.mrf.mxu0
        %v2394 = vadd.f32 0.0, %v2393
        %v2395 = vpop.f32.mrf.mxu0
        %2396 = vmatprep.mubr.f32.mxu0 %v973
        %2397 = vmatmul.mubr.f32.gmra.mxu0 %v972
        %v2398 = vpop.f32.mrf.mxu0
        %v2399 = vadd.f32 0.0, %v2398
        %v2400 = vpop.f32.mrf.mxu0
        %2401 = vmatprep.mubr.f32.mxu0 %v978
        %2402 = vmatmul.mubr.f32.gmra.mxu0 %v977
        %v2403 = vpop.f32.mrf.mxu0
        %v2404 = vadd.f32 0.0, %v2403
        %v2405 = vpop.f32.mrf.mxu0
        %2406 = vmatprep.mubr.f32.mxu0 %v983
        %2407 = vmatmul.mubr.f32.gmra.mxu0 %v982
        %v2408 = vpop.f32.mrf.mxu0
        %v2409 = vadd.f32 0.0, %v2408
        %v2410 = vpop.f32.mrf.mxu0
        %2411 = vmatprep.mubr.f32.mxu0 %v988
        %2412 = vmatmul.mubr.f32.gmra.mxu0 %v987
        %v2413 = vpop.f32.mrf.mxu0
        %v2414 = vadd.f32 0.0, %v2413
        %v2415 = vpop.f32.mrf.mxu0
        %2416 = vmatprep.mubr.f32.mxu0 %v993
        %2417 = vmatmul.mubr.f32.gmra.mxu0 %v992
        %v2418 = vpop.f32.mrf.mxu0
        %v2419 = vadd.f32 0.0, %v2418
        %v2420 = vpop.f32.mrf.mxu0
        %2421 = vmatprep.mubr.f32.mxu0 %v998
        %2422 = vmatmul.mubr.f32.gmra.mxu0 %v997
        %v2423 = vpop.f32.mrf.mxu0
        %v2424 = vadd.f32 0.0, %v2423
        %v2425 = vpop.f32.mrf.mxu0
        %2426 = vmatprep.mubr.f32.mxu0 %v1003
        %2427 = vmatmul.mubr.f32.gmra.mxu0 %v1002
        %v2428 = vpop.f32.mrf.mxu0
        %v2429 = vadd.f32 0.0, %v2428
        %v2430 = vpop.f32.mrf.mxu0
        %2431 = vmatprep.mubr.f32.mxu0 %v1008
        %2432 = vmatmul.mubr.f32.gmra.mxu0 %v1007
        %v2433 = vpop.f32.mrf.mxu0
        %v2434 = vadd.f32 0.0, %v2433
        %v2435 = vpop.f32.mrf.mxu0
        %2436 = vmatprep.mubr.f32.mxu0 %v1013
        %2437 = vmatmul.mubr.f32.gmra.mxu0 %v1012
        %v2438 = vpop.f32.mrf.mxu0
        %v2439 = vadd.f32 0.0, %v2438
        %v2440 = vpop.f32.mrf.mxu0
        %2441 = vmatprep.mubr.f32.mxu0 %v1018
        %2442 = vmatmul.mubr.f32.gmra.mxu0 %v1017
        %v2443 = vpop.f32.mrf.mxu0
        %v2444 = vadd.f32 0.0, %v2443
        %v2445 = vpop.f32.mrf.mxu0
        %2446 = vmatprep.mubr.f32.mxu0 %v1023
        %2447 = vmatmul.mubr.f32.gmra.mxu0 %v1022
        %v2448 = vpop.f32.mrf.mxu0
        %v2449 = vadd.f32 0.0, %v2448
        %v2450 = vpop.f32.mrf.mxu0
        %2451 = vmatprep.mubr.f32.mxu0 %v1028
        %2452 = vmatmul.mubr.f32.gmra.mxu0 %v1027
        %v2453 = vpop.f32.mrf.mxu0
        %v2454 = vadd.f32 0.0, %v2453
        %v2455 = vpop.f32.mrf.mxu0
        %2456 = vmatprep.mubr.f32.mxu0 %v1033
        %2457 = vmatmul.mubr.f32.gmra.mxu0 %v1032
        %v2458 = vpop.f32.mrf.mxu0
        %v2459 = vadd.f32 0.0, %v2458
        %v2460 = vpop.f32.mrf.mxu0
        %2461 = vmatprep.mubr.f32.mxu0 %v1038
        %2462 = vmatmul.mubr.f32.gmra.mxu0 %v1037
        %v2463 = vpop.f32.mrf.mxu0
        %v2464 = vadd.f32 0.0, %v2463
        %v2465 = vpop.f32.mrf.mxu0
        %2466 = vmatprep.mubr.f32.mxu0 %v1043
        %2467 = vmatmul.mubr.f32.gmra.mxu0 %v1042
        %v2468 = vpop.f32.mrf.mxu0
        %v2469 = vadd.f32 0.0, %v2468
        %v2470 = vpop.f32.mrf.mxu0
        %2471 = vmatprep.mubr.f32.mxu0 %v1048
        %2472 = vmatmul.mubr.f32.gmra.mxu0 %v1047
        %v2473 = vpop.f32.mrf.mxu0
        %v2474 = vadd.f32 0.0, %v2473
        %v2475 = vpop.f32.mrf.mxu0
        %2476 = vmatprep.mubr.f32.mxu0 %v1053
        %2477 = vmatmul.mubr.f32.gmra.mxu0 %v1052
        %v2478 = vpop.f32.mrf.mxu0
        %v2479 = vadd.f32 0.0, %v2478
        %v2480 = vpop.f32.mrf.mxu0
        %2481 = vmatprep.mubr.f32.mxu0 %v1058
        %2482 = vmatmul.mubr.f32.gmra.mxu0 %v1057
        %v2483 = vpop.f32.mrf.mxu0
        %v2484 = vadd.f32 0.0, %v2483
        %v2485 = vpop.f32.mrf.mxu0
        %2486 = vmatprep.mubr.f32.mxu0 %v1063
        %2487 = vmatmul.mubr.f32.gmra.mxu0 %v1062
        %v2488 = vpop.f32.mrf.mxu0
        %v2489 = vadd.f32 0.0, %v2488
        %v2490 = vpop.f32.mrf.mxu0
        %2491 = vmatprep.mubr.f32.mxu0 %v1068
        %2492 = vmatmul.mubr.f32.gmra.mxu0 %v1067
        %v2493 = vpop.f32.mrf.mxu0
        %v2494 = vadd.f32 0.0, %v2493
        %v2495 = vpop.f32.mrf.mxu0
        %2496 = vmatprep.mubr.f32.mxu0 %v1073
        %2497 = vmatmul.mubr.f32.gmra.mxu0 %v1072
        %v2498 = vpop.f32.mrf.mxu0
        %v2499 = vadd.f32 0.0, %v2498
        %v2500 = vpop.f32.mrf.mxu0
        %2501 = vmatprep.mubr.f32.mxu0 %v1078
        %2502 = vmatmul.mubr.f32.gmra.mxu0 %v1077
        %v2503 = vpop.f32.mrf.mxu0
        %v2504 = vadd.f32 0.0, %v2503
        %v2505 = vpop.f32.mrf.mxu0
        %2506 = vmatprep.mubr.f32.mxu0 %v1083
        %2507 = vmatmul.mubr.f32.gmra.mxu0 %v1082
        %v2508 = vpop.f32.mrf.mxu0
        %v2509 = vadd.f32 0.0, %v2508
        %v2510 = vpop.f32.mrf.mxu0
        %2511 = vmatprep.mubr.f32.mxu0 %v1088
        %2512 = vmatmul.mubr.f32.gmra.mxu0 %v1087
        %v2513 = vpop.f32.mrf.mxu0
        %v2514 = vadd.f32 0.0, %v2513
        %v2515 = vpop.f32.mrf.mxu0
        %2516 = vmatprep.mubr.f32.mxu0 %v1093
        %2517 = vmatmul.mubr.f32.gmra.mxu0 %v1092
        %v2518 = vpop.f32.mrf.mxu0
        %v2519 = vadd.f32 0.0, %v2518
        %v2520 = vpop.f32.mrf.mxu0
        %2521 = vmatprep.mubr.f32.mxu0 %v1098
        %2522 = vmatmul.mubr.f32.gmra.mxu0 %v1097
        %v2523 = vpop.f32.mrf.mxu0
        %v2524 = vadd.f32 0.0, %v2523
        %v2525 = vpop.f32.mrf.mxu0
        %2526 = vmatprep.mubr.f32.mxu0 %v1103
        %2527 = vmatmul.mubr.f32.gmra.mxu0 %v1102
        %v2528 = vpop.f32.mrf.mxu0
        %v2529 = vadd.f32 0.0, %v2528
        %v2530 = vpop.f32.mrf.mxu0
        %2531 = vmatprep.mubr.f32.mxu0 %v1108
        %2532 = vmatmul.mubr.f32.gmra.mxu0 %v1107
        %v2533 = vpop.f32.mrf.mxu0
        %v2534 = vadd.f32 0.0, %v2533
        %v2535 = vpop.f32.mrf.mxu0
        %2536 = vmatprep.mubr.f32.mxu0 %v1113
        %2537 = vmatmul.mubr.f32.gmra.mxu0 %v1112
        %v2538 = vpop.f32.mrf.mxu0
        %v2539 = vadd.f32 0.0, %v2538
        %v2540 = vpop.f32.mrf.mxu0
        %2541 = vmatprep.mubr.f32.mxu0 %v1118
        %2542 = vmatmul.mubr.f32.gmra.mxu0 %v1117
        %v2543 = vpop.f32.mrf.mxu0
        %v2544 = vadd.f32 0.0, %v2543
        %v2545 = vpop.f32.mrf.mxu0
        %2546 = vmatprep.mubr.f32.mxu0 %v1123
        %2547 = vmatmul.mubr.f32.gmra.mxu0 %v1122
        %v2548 = vpop.f32.mrf.mxu0
        %v2549 = vadd.f32 0.0, %v2548
        %v2550 = vpop.f32.mrf.mxu0
        %2551 = vmatprep.mubr.f32.mxu0 %v1128
        %2552 = vmatmul.mubr.f32.gmra.mxu0 %v1127
        %v2553 = vpop.f32.mrf.mxu0
        %v2554 = vadd.f32 0.0, %v2553
        %v2555 = vpop.f32.mrf.mxu0
        %2556 = vmatprep.mubr.f32.mxu0 %v1133
        %2557 = vmatmul.mubr.f32.gmra.mxu0 %v1132
        %v2558 = vpop.f32.mrf.mxu0
        %v2559 = vadd.f32 0.0, %v2558
        %v2560 = vpop.f32.mrf.mxu0
        %2561 = vmatprep.mubr.f32.mxu0 %v1138
        %2562 = vmatmul.mubr.f32.gmra.mxu0 %v1137
        %v2563 = vpop.f32.mrf.mxu0
        %v2564 = vadd.f32 0.0, %v2563
        %v2565 = vpop.f32.mrf.mxu0
        %2566 = vmatprep.mubr.f32.mxu0 %v1143
        %2567 = vmatmul.mubr.f32.gmra.mxu0 %v1142
        %v2568 = vpop.f32.mrf.mxu0
        %v2569 = vadd.f32 0.0, %v2568
        %v2570 = vpop.f32.mrf.mxu0
        %2571 = vmatprep.mubr.f32.mxu0 %v1148
        %2572 = vmatmul.mubr.f32.gmra.mxu0 %v1147
        %v2573 = vpop.f32.mrf.mxu0
        %v2574 = vadd.f32 0.0, %v2573
        %v2575 = vpop.f32.mrf.mxu0
        %2576 = vmatprep.mubr.f32.mxu0 %v1153
        %2577 = vmatmul.mubr.f32.gmra.mxu0 %v1152
        %v2578 = vpop.f32.mrf.mxu0
        %v2579 = vadd.f32 0.0, %v2578
        %v2580 = vpop.f32.mrf.mxu0
        %2581 = vmatprep.mubr.f32.mxu0 %v1158
        %2582 = vmatmul.mubr.f32.gmra.mxu0 %v1157
        %v2583 = vpop.f32.mrf.mxu0
        %v2584 = vadd.f32 0.0, %v2583
        %v2585 = vpop.f32.mrf.mxu0
        %2586 = vmatprep.mubr.f32.mxu0 %v1163
        %2587 = vmatmul.mubr.f32.gmra.mxu0 %v1162
        %v2588 = vpop.f32.mrf.mxu0
        %v2589 = vadd.f32 0.0, %v2588
        %v2590 = vpop.f32.mrf.mxu0
        %2591 = vmatprep.mubr.f32.mxu0 %v1168
        %2592 = vmatmul.mubr.f32.gmra.mxu0 %v1167
        %v2593 = vpop.f32.mrf.mxu0
        %v2594 = vadd.f32 0.0, %v2593
        %v2595 = vpop.f32.mrf.mxu0
        %2596 = vmatprep.mubr.f32.mxu0 %v1173
        %2597 = vmatmul.mubr.f32.gmra.mxu0 %v1172
        %v2598 = vpop.f32.mrf.mxu0
        %v2599 = vadd.f32 0.0, %v2598
        %v2600 = vpop.f32.mrf.mxu0
        %2601 = vmatprep.mubr.f32.mxu0 %v1178
        %2602 = vmatmul.mubr.f32.gmra.mxu0 %v1177
        %v2603 = vpop.f32.mrf.mxu0
        %v2604 = vadd.f32 0.0, %v2603
        %v2605 = vpop.f32.mrf.mxu0
        %2606 = vmatprep.mubr.f32.mxu0 %v1183
        %2607 = vmatmul.mubr.f32.gmra.mxu0 %v1182
        %v2608 = vpop.f32.mrf.mxu0
        %v2609 = vadd.f32 0.0, %v2608
        %v2610 = vpop.f32.mrf.mxu0
        %2611 = vmatprep.mubr.f32.mxu0 %v1188
        %2612 = vmatmul.mubr.f32.gmra.mxu0 %v1187
        %v2613 = vpop.f32.mrf.mxu0
        %v2614 = vadd.f32 0.0, %v2613
        %v2615 = vpop.f32.mrf.mxu0
        %2616 = vmatprep.mubr.f32.mxu0 %v1193
        %2617 = vmatmul.mubr.f32.gmra.mxu0 %v1192
        %v2618 = vpop.f32.mrf.mxu0
        %v2619 = vadd.f32 0.0, %v2618
        %v2620 = vpop.f32.mrf.mxu0
        %2621 = vmatprep.mubr.f32.mxu0 %v1198
        %2622 = vmatmul.mubr.f32.gmra.mxu0 %v1197
        %v2623 = vpop.f32.mrf.mxu0
        %v2624 = vadd.f32 0.0, %v2623
        %v2625 = vpop.f32.mrf.mxu0
        %2626 = vmatprep.mubr.f32.mxu0 %v1203
        %2627 = vmatmul.mubr.f32.gmra.mxu0 %v1202
        %v2628 = vpop.f32.mrf.mxu0
        %v2629 = vadd.f32 0.0, %v2628
        %v2630 = vpop.f32.mrf.mxu0
        %2631 = vmatprep.mubr.f32.mxu0 %v1208
        %2632 = vmatmul.mubr.f32.gmra.mxu0 %v1207
        %v2633 = vpop.f32.mrf.mxu0
        %v2634 = vadd.f32 0.0, %v2633
        %v2635 = vpop.f32.mrf.mxu0
        %2636 = vmatprep.mubr.f32.mxu0 %v1213
        %2637 = vmatmul.mubr.f32.gmra.mxu0 %v1212
        %v2638 = vpop.f32.mrf.mxu0
        %v2639 = vadd.f32 0.0, %v2638
        %v2640 = vpop.f32.mrf.mxu0
        %2641 = vmatprep.mubr.f32.mxu0 %v1218
        %2642 = vmatmul.mubr.f32.gmra.mxu0 %v1217
        %v2643 = vpop.f32.mrf.mxu0
        %v2644 = vadd.f32 0.0, %v2643
        %v2645 = vpop.f32.mrf.mxu0
        %2646 = vmatprep.mubr.f32.mxu0 %v1223
        %2647 = vmatmul.mubr.f32.gmra.mxu0 %v1222
        %v2648 = vpop.f32.mrf.mxu0
        %v2649 = vadd.f32 0.0, %v2648
        %v2650 = vpop.f32.mrf.mxu0
        %2651 = vmatprep.mubr.f32.mxu0 %v1228
        %2652 = vmatmul.mubr.f32.gmra.mxu0 %v1227
        %v2653 = vpop.f32.mrf.mxu0
        %v2654 = vadd.f32 0.0, %v2653
        %v2655 = vpop.f32.mrf.mxu0
        %2656 = vmatprep.mubr.f32.mxu0 %v1233
        %2657 = vmatmul.mubr.f32.gmra.mxu0 %v1232
        %v2658 = vpop.f32.mrf.mxu0
        %v2659 = vadd.f32 0.0, %v2658
        %v2660 = vpop.f32.mrf.mxu0
        %2661 = vmatprep.mubr.f32.mxu0 %v1238
        %2662 = vmatmul.mubr.f32.gmra.mxu0 %v1237
        %v2663 = vpop.f32.mrf.mxu0
        %v2664 = vadd.f32 0.0, %v2663
        %v2665 = vpop.f32.mrf.mxu0
        %2666 = vmatprep.mubr.f32.mxu0 %v1243
        %2667 = vmatmul.mubr.f32.gmra.mxu0 %v1242
        %v2668 = vpop.f32.mrf.mxu0
        %v2669 = vadd.f32 0.0, %v2668
        %v2670 = vpop.f32.mrf.mxu0
        %2671 = vmatprep.mubr.f32.mxu0 %v1248
        %2672 = vmatmul.mubr.f32.gmra.mxu0 %v1247
        %v2673 = vpop.f32.mrf.mxu0
        %v2674 = vadd.f32 0.0, %v2673
        %v2675 = vpop.f32.mrf.mxu0
        %2676 = vmatprep.mubr.f32.mxu0 %v1253
        %2677 = vmatmul.mubr.f32.gmra.mxu0 %v1252
        %v2678 = vpop.f32.mrf.mxu0
        %v2679 = vadd.f32 0.0, %v2678
        %v2680 = vpop.f32.mrf.mxu0
        %2681 = vmatprep.mubr.f32.mxu0 %v1258
        %2682 = vmatmul.mubr.f32.gmra.mxu0 %v1257
        %v2683 = vpop.f32.mrf.mxu0
        %v2684 = vadd.f32 0.0, %v2683
        %v2685 = vpop.f32.mrf.mxu0
        %2686 = vmatprep.mubr.f32.mxu0 %v1263
        %2687 = vmatmul.mubr.f32.gmra.mxu0 %v1262
        %v2688 = vpop.f32.mrf.mxu0
        %v2689 = vadd.f32 0.0, %v2688
        %v2690 = vpop.f32.mrf.mxu0
        %2691 = vmatprep.mubr.f32.mxu0 %v1268
        %2692 = vmatmul.mubr.f32.gmra.mxu0 %v1267
        %v2693 = vpop.f32.mrf.mxu0
        %v2694 = vadd.f32 0.0, %v2693
        %v2695 = vpop.f32.mrf.mxu0
        %2696 = vmatprep.mubr.f32.mxu0 %v1273
        %2697 = vmatmul.mubr.f32.gmra.mxu0 %v1272
        %v2698 = vpop.f32.mrf.mxu0
        %v2699 = vadd.f32 0.0, %v2698
        %v2700 = vpop.f32.mrf.mxu0
        %2701 = vmatprep.mubr.f32.mxu0 %v1278
        %2702 = vmatmul.mubr.f32.gmra.mxu0 %v1277
        %v2703 = vpop.f32.mrf.mxu0
        %v2704 = vadd.f32 0.0, %v2703
        %v2705 = vpop.f32.mrf.mxu0
        %2706 = vmatprep.mubr.f32.mxu0 %v1283
        %2707 = vmatmul.mubr.f32.gmra.mxu0 %v1282
        %v2708 = vpop.f32.mrf.mxu0
        %v2709 = vadd.f32 0.0, %v2708
        %v2710 = vpop.f32.mrf.mxu0
        %2711 = vmatprep.mubr.f32.mxu0 %v1288
        %2712 = vmatmul.mubr.f32.gmra.mxu0 %v1287
        %v2713 = vpop.f32.mrf.mxu0
        %v2714 = vadd.f32 0.0, %v2713
        %v2715 = vpop.f32.mrf.mxu0
        %2716 = vmatprep.mubr.f32.mxu0 %v1293
        %2717 = vmatmul.mubr.f32.gmra.mxu0 %v1292
        %v2718 = vpop.f32.mrf.mxu0
        %v2719 = vadd.f32 0.0, %v2718
        %v2720 = vpop.f32.mrf.mxu0
        %2721 = vmatprep.mubr.f32.mxu0 %v1298
        %2722 = vmatmul.mubr.f32.gmra.mxu0 %v1297
        %v2723 = vpop.f32.mrf.mxu0
        %v2724 = vadd.f32 0.0, %v2723
        %v2725 = vpop.f32.mrf.mxu0
        %2726 = vmatprep.mubr.f32.mxu0 %v1303
        %2727 = vmatmul.mubr.f32.gmra.mxu0 %v1302
        %v2728 = vpop.f32.mrf.mxu0
        %v2729 = vadd.f32 0.0, %v2728
        %v2730 = vpop.f32.mrf.mxu0
        %2731 = vmatprep.mubr.f32.mxu0 %v1308
        %2732 = vmatmul.mubr.f32.gmra.mxu0 %v1307
        %v2733 = vpop.f32.mrf.mxu0
        %v2734 = vadd.f32 0.0, %v2733
        %v2735 = vpop.f32.mrf.mxu0
        %2736 = vmatprep.mubr.f32.mxu0 %v1313
        %2737 = vmatmul.mubr.f32.gmra.mxu0 %v1312
        %v2738 = vpop.f32.mrf.mxu0
        %v2739 = vadd.f32 0.0, %v2738
        %v2740 = vpop.f32.mrf.mxu0
        %2741 = vmatprep.mubr.f32.mxu0 %v1318
        %2742 = vmatmul.mubr.f32.gmra.mxu0 %v1317
        %v2743 = vpop.f32.mrf.mxu0
        %v2744 = vadd.f32 0.0, %v2743
        %v2745 = vpop.f32.mrf.mxu0
        %2746 = vmatprep.mubr.f32.mxu0 %v1323
        %2747 = vmatmul.mubr.f32.gmra.mxu0 %v1322
        %v2748 = vpop.f32.mrf.mxu0
        %v2749 = vadd.f32 0.0, %v2748
        %v2750 = vpop.f32.mrf.mxu0
        %2751 = vmatprep.mubr.f32.mxu0 %v1328
        %2752 = vmatmul.mubr.f32.gmra.mxu0 %v1327
        %v2753 = vpop.f32.mrf.mxu0
        %v2754 = vadd.f32 0.0, %v2753
        %v2755 = vpop.f32.mrf.mxu0
        %2756 = vmatprep.mubr.f32.mxu0 %v1333
        %2757 = vmatmul.mubr.f32.gmra.mxu0 %v1332
        %v2758 = vpop.f32.mrf.mxu0
        %v2759 = vadd.f32 0.0, %v2758
        %v2760 = vpop.f32.mrf.mxu0
        %2761 = vmatprep.mubr.f32.mxu0 %v1338
        %2762 = vmatmul.mubr.f32.gmra.mxu0 %v1337
        %v2763 = vpop.f32.mrf.mxu0
        %v2764 = vadd.f32 0.0, %v2763
        %v2765 = vpop.f32.mrf.mxu0
        %2766 = vmatprep.mubr.f32.mxu0 %v1343
        %2767 = vmatmul.mubr.f32.gmra.mxu0 %v1342
        %v2768 = vpop.f32.mrf.mxu0
        %v2769 = vadd.f32 0.0, %v2768
        %v2770 = vpop.f32.mrf.mxu0
        %2771 = vmatprep.mubr.f32.mxu0 %v1348
        %2772 = vmatmul.mubr.f32.gmra.mxu0 %v1347
        %v2773 = vpop.f32.mrf.mxu0
        %v2774 = vadd.f32 0.0, %v2773
        %v2775 = vpop.f32.mrf.mxu0
        %2776 = vmatprep.mubr.f32.mxu0 %v1353
        %2777 = vmatmul.mubr.f32.gmra.mxu0 %v1352
        %v2778 = vpop.f32.mrf.mxu0
        %v2779 = vadd.f32 0.0, %v2778
        %v2780 = vpop.f32.mrf.mxu0
        %2781 = vmatprep.mubr.f32.mxu0 %v1358
        %2782 = vmatmul.mubr.f32.gmra.mxu0 %v1357
        %v2783 = vpop.f32.mrf.mxu0
        %v2784 = vadd.f32 0.0, %v2783
        %v2785 = vpop.f32.mrf.mxu0
        %2786 = vmatprep.mubr.f32.mxu0 %v1363
        %2787 = vmatmul.mubr.f32.gmra.mxu0 %v1362
        %v2788 = vpop.f32.mrf.mxu0
        %v2789 = vadd.f32 0.0, %v2788
        %v2790 = vpop.f32.mrf.mxu0
        %2791 = vmatprep.mubr.f32.mxu0 %v1368
        %2792 = vmatmul.mubr.f32.gmra.mxu0 %v1367
        %v2793 = vpop.f32.mrf.mxu0
        %v2794 = vadd.f32 0.0, %v2793
        %v2795 = vpop.f32.mrf.mxu0
        %2796 = vmatprep.mubr.f32.mxu0 %v1373
        %2797 = vmatmul.mubr.f32.gmra.mxu0 %v1372
        %v2798 = vpop.f32.mrf.mxu0
        %v2799 = vadd.f32 0.0, %v2798
        %v2800 = vpop.f32.mrf.mxu0
        %2801 = vmatprep.mubr.f32.mxu0 %v1378
        %2802 = vmatmul.mubr.f32.gmra.mxu0 %v1377
        %v2803 = vpop.f32.mrf.mxu0
        %v2804 = vadd.f32 0.0, %v2803
        %v2805 = vpop.f32.mrf.mxu0
        %2806 = vmatprep.mubr.f32.mxu0 %v1383
        %2807 = vmatmul.mubr.f32.gmra.mxu0 %v1382
        %v2808 = vpop.f32.mrf.mxu0
        %v2809 = vadd.f32 0.0, %v2808
        %v2810 = vpop.f32.mrf.mxu0
        %2811 = vmatprep.mubr.f32.mxu0 %v1388
        %2812 = vmatmul.mubr.f32.gmra.mxu0 %v1387
        %v2813 = vpop.f32.mrf.mxu0
        %v2814 = vadd.f32 0.0, %v2813
        %v2815 = vpop.f32.mrf.mxu0
        %2816 = vmatprep.mubr.f32.mxu0 %v1393
        %2817 = vmatmul.mubr.f32.gmra.mxu0 %v1392
        %v2818 = vpop.f32.mrf.mxu0
        %v2819 = vadd.f32 0.0, %v2818
        %v2820 = vpop.f32.mrf.mxu0
        %2821 = vmatprep.mubr.f32.mxu0 %v1398
        %2822 = vmatmul.mubr.f32.gmra.mxu0 %v1397
        %v2823 = vpop.f32.mrf.mxu0
        %v2824 = vadd.f32 0.0, %v2823
        %v2825 = vpop.f32.mrf.mxu0
        %2826 = vmatprep.mubr.f32.mxu0 %v1403
        %2827 = vmatmul.mubr.f32.gmra.mxu0 %v1402
        %v2828 = vpop.f32.mrf.mxu0
        %v2829 = vadd.f32 0.0, %v2828
        %v2830 = vpop.f32.mrf.mxu0
        %2831 = vmatprep.mubr.f32.mxu0 %v1408
        %2832 = vmatmul.mubr.f32.gmra.mxu0 %v1407
        %v2833 = vpop.f32.mrf.mxu0
        %v2834 = vadd.f32 0.0, %v2833
        %v2835 = vpop.f32.mrf.mxu0
        %2836 = vmatprep.mubr.f32.mxu0 %v1413
        %2837 = vmatmul.mubr.f32.gmra.mxu0 %v1412
        %v2838 = vpop.f32.mrf.mxu0
        %v2839 = vadd.f32 0.0, %v2838
        %v2840 = vpop.f32.mrf.mxu0
        %2841 = vmatprep.mubr.f32.mxu0 %v1418
        %2842 = vmatmul.mubr.f32.gmra.mxu0 %v1417
        %v2843 = vpop.f32.mrf.mxu0
        %v2844 = vadd.f32 0.0, %v2843
        %v2845 = vpop.f32.mrf.mxu0
        %2846 = vmatprep.mubr.f32.mxu0 %v1423
        %2847 = vmatmul.mubr.f32.gmra.mxu0 %v1422
        %v2848 = vpop.f32.mrf.mxu0
        %v2849 = vadd.f32 0.0, %v2848
        %v2850 = vpop.f32.mrf.mxu0
        %2851 = vmatprep.mubr.f32.mxu0 %v1428
        %2852 = vmatmul.mubr.f32.gmra.mxu0 %v1427
        %v2853 = vpop.f32.mrf.mxu0
        %v2854 = vadd.f32 0.0, %v2853
        %v2855 = vpop.f32.mrf.mxu0
        %2856 = vmatprep.mubr.f32.mxu0 %v1433
        %2857 = vmatmul.mubr.f32.gmra.mxu0 %v1432
        %v2858 = vpop.f32.mrf.mxu0
        %v2859 = vadd.f32 0.0, %v2858
        %v2860 = vpop.f32.mrf.mxu0
        %2861 = vmatprep.mubr.f32.mxu0 %v1438
        %2862 = vmatmul.mubr.f32.gmra.mxu0 %v1437
        %v2863 = vpop.f32.mrf.mxu0
        %v2864 = vadd.f32 0.0, %v2863
        %v2865 = vpop.f32.mrf.mxu0
        %2866 = vmatprep.mubr.f32.mxu0 %v1443
        %2867 = vmatmul.mubr.f32.gmra.mxu0 %v1442
        %v2868 = vpop.f32.mrf.mxu0
        %v2869 = vadd.f32 0.0, %v2868
        %v2870 = vpop.f32.mrf.mxu0
        %2871 = vmatprep.mubr.f32.mxu0 %v1448
        %2872 = vmatmul.mubr.f32.gmra.mxu0 %v1447
        %v2873 = vpop.f32.mrf.mxu0
        %v2874 = vadd.f32 0.0, %v2873
        %v2875 = vpop.f32.mrf.mxu0
        %2876 = vmatprep.mubr.f32.mxu0 %v1453
        %2877 = vmatmul.mubr.f32.gmra.mxu0 %v1452
        %v2878 = vpop.f32.mrf.mxu0
        %v2879 = vadd.f32 0.0, %v2878
        %v2880 = vpop.f32.mrf.mxu0
        %2881 = vmatprep.mubr.f32.mxu0 %v1458
        %2882 = vmatmul.mubr.f32.gmra.mxu0 %v1457
        %v2883 = vpop.f32.mrf.mxu0
        %v2884 = vadd.f32 0.0, %v2883
        %v2885 = vpop.f32.mrf.mxu0
        %2886 = vmatprep.mubr.f32.mxu0 %v1463
        %2887 = vmatmul.mubr.f32.gmra.mxu0 %v1462
        %v2888 = vpop.f32.mrf.mxu0
        %v2889 = vadd.f32 0.0, %v2888
        %v2890 = vpop.f32.mrf.mxu0
        %2891 = vmatprep.mubr.f32.mxu0 %v1468
        %2892 = vmatmul.mubr.f32.gmra.mxu0 %v1467
        %v2893 = vpop.f32.mrf.mxu0
        %v2894 = vadd.f32 0.0, %v2893
        %v2895 = vpop.f32.mrf.mxu0
        %2896 = vmatprep.mubr.f32.mxu0 %v1473
        %2897 = vmatmul.mubr.f32.gmra.mxu0 %v1472
        %v2898 = vpop.f32.mrf.mxu0
        %v2899 = vadd.f32 0.0, %v2898
        %v2900 = vpop.f32.mrf.mxu0
        %2901 = vmatprep.mubr.f32.mxu0 %v1478
        %2902 = vmatmul.mubr.f32.gmra.mxu0 %v1477
        %v2903 = vpop.f32.mrf.mxu0
        %v2904 = vadd.f32 0.0, %v2903
        %v2905 = vpop.f32.mrf.mxu0
        %2906 = vmatprep.mubr.f32.mxu0 %v1483
        %2907 = vmatmul.mubr.f32.gmra.mxu0 %v1482
        %v2908 = vpop.f32.mrf.mxu0
        %v2909 = vadd.f32 0.0, %v2908
        %v2910 = vpop.f32.mrf.mxu0
        %2911 = vmatprep.mubr.f32.mxu0 %v1488
        %2912 = vmatmul.mubr.f32.gmra.mxu0 %v1487
        %v2913 = vpop.f32.mrf.mxu0
        %v2914 = vadd.f32 0.0, %v2913
        %v2915 = vpop.f32.mrf.mxu0
        %2916 = vmatprep.mubr.f32.mxu0 %v1493
        %2917 = vmatmul.mubr.f32.gmra.mxu0 %v1492
        %v2918 = vpop.f32.mrf.mxu0
        %v2919 = vadd.f32 0.0, %v2918
        %v2920 = vpop.f32.mrf.mxu0
        %2921 = vmatprep.mubr.f32.mxu0 %v1498
        %2922 = vmatmul.mubr.f32.gmra.mxu0 %v1497
        %v2923 = vpop.f32.mrf.mxu0
        %v2924 = vadd.f32 0.0, %v2923
        %v2925 = vpop.f32.mrf.mxu0
        %2926 = vmatprep.mubr.f32.mxu0 %v1503
        %2927 = vmatmul.mubr.f32.gmra.mxu0 %v1502
        %v2928 = vpop.f32.mrf.mxu0
        %v2929 = vadd.f32 0.0, %v2928
        %v2930 = vpop.f32.mrf.mxu0
        %2931 = vmatprep.mubr.f32.mxu0 %v1508
        %2932 = vmatmul.mubr.f32.gmra.mxu0 %v1507
        %v2933 = vpop.f32.mrf.mxu0
        %v2934 = vadd.f32 0.0, %v2933
        %v2935 = vpop.f32.mrf.mxu0
        %2936 = vmatprep.mubr.f32.mxu0 %v1513
        %2937 = vmatmul.mubr.f32.gmra.mxu0 %v1512
        %v2938 = vpop.f32.mrf.mxu0
        %v2939 = vadd.f32 0.0, %v2938
        %v2940 = vpop.f32.mrf.mxu0
        %2941 = vmatprep.mubr.f32.mxu0 %v1518
        %2942 = vmatmul.mubr.f32.gmra.mxu0 %v1517
        %v2943 = vpop.f32.mrf.mxu0
        %v2944 = vadd.f32 0.0, %v2943
        %v2945 = vpop.f32.mrf.mxu0
        %2946 = vmatprep.mubr.f32.mxu0 %v1523
        %2947 = vmatmul.mubr.f32.gmra.mxu0 %v1522
        %v2948 = vpop.f32.mrf.mxu0
        %v2949 = vadd.f32 0.0, %v2948
        %v2950 = vpop.f32.mrf.mxu0
        %2951 = vmatprep.mubr.f32.mxu0 %v1528
        %2952 = vmatmul.mubr.f32.gmra.mxu0 %v1527
        %v2953 = vpop.f32.mrf.mxu0
        %v2954 = vadd.f32 0.0, %v2953
        %v2955 = vpop.f32.mrf.mxu0
        %2956 = vmatprep.mubr.f32.mxu0 %v1533
        %2957 = vmatmul.mubr.f32.gmra.mxu0 %v1532
        %v2958 = vpop.f32.mrf.mxu0
        %v2959 = vadd.f32 0.0, %v2958
        %v2960 = vpop.f32.mrf.mxu0
        %2961 = vmatprep.mubr.f32.mxu0 %v1538
        %2962 = vmatmul.mubr.f32.gmra.mxu0 %v1537
        %v2963 = vpop.f32.mrf.mxu0
        %v2964 = vadd.f32 0.0, %v2963
        %v2965 = vpop.f32.mrf.mxu0
        %2966 = vmatprep.mubr.f32.mxu0 %v1543
        %2967 = vmatmul.mubr.f32.gmra.mxu0 %v1542
        %v2968 = vpop.f32.mrf.mxu0
        %v2969 = vadd.f32 0.0, %v2968
        %v2970 = vpop.f32.mrf.mxu0
        %2971 = vmatprep.mubr.f32.mxu0 %v1548
        %2972 = vmatmul.mubr.f32.gmra.mxu0 %v1547
        %v2973 = vpop.f32.mrf.mxu0
        %v2974 = vadd.f32 0.0, %v2973
        %v2975 = vpop.f32.mrf.mxu0
        %2976 = vmatprep.mubr.f32.mxu0 %v1553
        %2977 = vmatmul.mubr.f32.gmra.mxu0 %v1552
        %v2978 = vpop.f32.mrf.mxu0
        %v2979 = vadd.f32 0.0, %v2978
        %v2980 = vpop.f32.mrf.mxu0
        %2981 = vmatprep.mubr.f32.mxu0 %v1558
        %2982 = vmatmul.mubr.f32.gmra.mxu0 %v1557
        %v2983 = vpop.f32.mrf.mxu0
        %v2984 = vadd.f32 0.0, %v2983
        %v2985 = vpop.f32.mrf.mxu0
        %2986 = vmatprep.mubr.f32.mxu0 %v1563
        %2987 = vmatmul.mubr.f32.gmra.mxu0 %v1562
        %v2988 = vpop.f32.mrf.mxu0
        %v2989 = vadd.f32 0.0, %v2988
        %v2990 = vpop.f32.mrf.mxu0
        %2991 = vmatprep.mubr.f32.mxu0 %v1568
        %2992 = vmatmul.mubr.f32.gmra.mxu0 %v1567
        %v2993 = vpop.f32.mrf.mxu0
        %v2994 = vadd.f32 0.0, %v2993
        %v2995 = vpop.f32.mrf.mxu0
        %2996 = vmatprep.mubr.f32.mxu0 %v1573
        %2997 = vmatmul.mubr.f32.gmra.mxu0 %v1572
        %v2998 = vpop.f32.mrf.mxu0
        %v2999 = vadd.f32 0.0, %v2998
        %v3000 = vpop.f32.mrf.mxu0
        %3001 = vmatprep.mubr.f32.mxu0 %v1578
        %3002 = vmatmul.mubr.f32.gmra.mxu0 %v1577
        %v3003 = vpop.f32.mrf.mxu0
        %v3004 = vadd.f32 0.0, %v3003
        %v3005 = vpop.f32.mrf.mxu0
        %3006 = vmatprep.mubr.f32.mxu0 %v1583
        %3007 = vmatmul.mubr.f32.gmra.mxu0 %v1582
        %v3008 = vpop.f32.mrf.mxu0
        %v3009 = vadd.f32 0.0, %v3008
        %v3010 = vpop.f32.mrf.mxu0
        %3011 = vmatprep.mubr.f32.mxu0 %v1588
        %3012 = vmatmul.mubr.f32.gmra.mxu0 %v1587
        %v3013 = vpop.f32.mrf.mxu0
        %v3014 = vadd.f32 0.0, %v3013
        %v3015 = vpop.f32.mrf.mxu0
        %3016 = vmatprep.mubr.f32.mxu0 %v1593
        %3017 = vmatmul.mubr.f32.gmra.mxu0 %v1592
        %v3018 = vpop.f32.mrf.mxu0
        %v3019 = vadd.f32 0.0, %v3018
        %v3020 = vpop.f32.mrf.mxu0
        %3021 = vmatprep.mubr.f32.mxu0 %v1598
        %3022 = vmatmul.mubr.f32.gmra.mxu0 %v1597
        %v3023 = vpop.f32.mrf.mxu0
        %v3024 = vadd.f32 0.0, %v3023
        %v3025 = vpop.f32.mrf.mxu0
        %3026 = vmatprep.mubr.f32.mxu0 %v1603
        %3027 = vmatmul.mubr.f32.gmra.mxu0 %v1602
        %v3028 = vpop.f32.mrf.mxu0
        %v3029 = vadd.f32 0.0, %v3028
        %v3030 = vpop.f32.mrf.mxu0
        %3031 = vmatprep.mubr.f32.mxu0 %v1608
        %3032 = vmatmul.mubr.f32.gmra.mxu0 %v1607
        %v3033 = vpop.f32.mrf.mxu0
        %v3034 = vadd.f32 0.0, %v3033
        %v3035 = vpop.f32.mrf.mxu0
        %3036 = vmatprep.mubr.f32.mxu0 %v1613
        %3037 = vmatmul.mubr.f32.gmra.mxu0 %v1612
        %v3038 = vpop.f32.mrf.mxu0
        %v3039 = vadd.f32 0.0, %v3038
        %v3040 = vpop.f32.mrf.mxu0
        %3041 = vmatprep.mubr.f32.mxu0 %v1618
        %3042 = vmatmul.mubr.f32.gmra.mxu0 %v1617
        %v3043 = vpop.f32.mrf.mxu0
        %v3044 = vadd.f32 0.0, %v3043
        %v3045 = vpop.f32.mrf.mxu0
        %3046 = vmatprep.mubr.f32.mxu0 %v1623
        %3047 = vmatmul.mubr.f32.gmra.mxu0 %v1622
        %v3048 = vpop.f32.mrf.mxu0
        %v3049 = vadd.f32 0.0, %v3048
        %v3050 = vpop.f32.mrf.mxu0
        %3051 = vmatprep.mubr.f32.mxu0 %v1628
        %3052 = vmatmul.mubr.f32.gmra.mxu0 %v1627
        %v3053 = vpop.f32.mrf.mxu0
        %v3054 = vadd.f32 0.0, %v3053
        %v3055 = vpop.f32.mrf.mxu0
        %3056 = vmatprep.mubr.f32.mxu0 %v1633
        %3057 = vmatmul.mubr.f32.gmra.mxu0 %v1632
        %v3058 = vpop.f32.mrf.mxu0
        %v3059 = vadd.f32 0.0, %v3058
        %v3060 = vpop.f32.mrf.mxu0
        %3061 = vmatprep.mubr.f32.mxu0 %v1638
        %3062 = vmatmul.mubr.f32.gmra.mxu0 %v1637
        %v3063 = vpop.f32.mrf.mxu0
        %v3064 = vadd.f32 0.0, %v3063
        %v3065 = vpop.f32.mrf.mxu0
        %3066 = vmatprep.mubr.f32.mxu0 %v1643
        %3067 = vmatmul.mubr.f32.gmra.mxu0 %v1642
        %v3068 = vpop.f32.mrf.mxu0
        %v3069 = vadd.f32 0.0, %v3068
        %v3070 = vpop.f32.mrf.mxu0
        %3071 = vmatprep.mubr.f32.mxu0 %v1648
        %3072 = vmatmul.mubr.f32.gmra.mxu0 %v1647
        %v3073 = vpop.f32.mrf.mxu0
        %v3074 = vadd.f32 0.0, %v3073
        %v3075 = vpop.f32.mrf.mxu0
        %3076 = vmatprep.mubr.f32.mxu0 %v1653
        %3077 = vmatmul.mubr.f32.gmra.mxu0 %v1652
        %v3078 = vpop.f32.mrf.mxu0
        %v3079 = vadd.f32 0.0, %v3078
        %v3080 = vpop.f32.mrf.mxu0
        %3081 = vmatprep.mubr.f32.mxu0 %v1658
        %3082 = vmatmul.mubr.f32.gmra.mxu0 %v1657
        %v3083 = vpop.f32.mrf.mxu0
        %v3084 = vadd.f32 0.0, %v3083
        %v3085 = vpop.f32.mrf.mxu0
        %3086 = vmatprep.mubr.f32.mxu0 %v1663
        %3087 = vmatmul.mubr.f32.gmra.mxu0 %v1662
        %v3088 = vpop.f32.mrf.mxu0
        %v3089 = vadd.f32 0.0, %v3088
        %v3090 = vpop.f32.mrf.mxu0
        %3091 = vmatprep.mubr.f32.mxu0 %v1668
        %3092 = vmatmul.mubr.f32.gmra.mxu0 %v1667
        %v3093 = vpop.f32.mrf.mxu0
        %v3094 = vadd.f32 0.0, %v3093
        %v3095 = vpop.f32.mrf.mxu0
        %3096 = vmatprep.mubr.f32.mxu0 %v1673
        %3097 = vmatmul.mubr.f32.gmra.mxu0 %v1672
        %v3098 = vpop.f32.mrf.mxu0
        %v3099 = vadd.f32 0.0, %v3098
        %v3100 = vpop.f32.mrf.mxu0
        %3101 = vmatprep.mubr.f32.mxu0 %v1678
        %3102 = vmatmul.mubr.f32.gmra.mxu0 %v1677
        %v3103 = vpop.f32.mrf.mxu0
        %v3104 = vadd.f32 0.0, %v3103
        %v3105 = vpop.f32.mrf.mxu0
        %3106 = vmatprep.mubr.f32.mxu0 %v1683
        %3107 = vmatmul.mubr.f32.gmra.mxu0 %v1682
        %v3108 = vpop.f32.mrf.mxu0
        %v3109 = vadd.f32 0.0, %v3108
        %v3110 = vpop.f32.mrf.mxu0
        %3111 = vmatprep.mubr.f32.mxu0 %v1688
        %3112 = vmatmul.mubr.f32.gmra.mxu0 %v1687
        %v3113 = vpop.f32.mrf.mxu0
        %v3114 = vadd.f32 0.0, %v3113
        %v3115 = vpop.f32.mrf.mxu0
        %3116 = vmatprep.mubr.f32.mxu0 %v1693
        %3117 = vmatmul.mubr.f32.gmra.mxu0 %v1692
        %v3118 = vpop.f32.mrf.mxu0
        %v3119 = vadd.f32 0.0, %v3118
        %v3120 = vpop.f32.mrf.mxu0
        %3121 = vmatprep.mubr.f32.mxu0 %v1698
        %3122 = vmatmul.mubr.f32.gmra.mxu0 %v1697
        %v3123 = vpop.f32.mrf.mxu0
        %v3124 = vadd.f32 0.0, %v3123
        %v3125 = vpop.f32.mrf.mxu0
        %3126 = vmatprep.mubr.f32.mxu0 %v1703
        %3127 = vmatmul.mubr.f32.gmra.mxu0 %v1702
        %v3128 = vpop.f32.mrf.mxu0
        %v3129 = vadd.f32 0.0, %v3128
        %v3130 = vpop.f32.mrf.mxu0
        %3131 = vmatprep.mubr.f32.mxu0 %v1708
        %3132 = vmatmul.mubr.f32.gmra.mxu0 %v1707
        %v3133 = vpop.f32.mrf.mxu0
        %v3134 = vadd.f32 0.0, %v3133
        %v3135 = vpop.f32.mrf.mxu0
        %3136 = vmatprep.mubr.f32.mxu0 %v1713
        %3137 = vmatmul.mubr.f32.gmra.mxu0 %v1712
        %v3138 = vpop.f32.mrf.mxu0
        %v3139 = vadd.f32 0.0, %v3138
        %v3140 = vpop.f32.mrf.mxu0
        %3141 = vmatprep.mubr.f32.mxu0 %v1718
        %3142 = vmatmul.mubr.f32.gmra.mxu0 %v1717
        %v3143 = vpop.f32.mrf.mxu0
        %v3144 = vadd.f32 0.0, %v3143
        %v3145 = vpop.f32.mrf.mxu0
        %3146 = vmatprep.mubr.f32.mxu0 %v1723
        %3147 = vmatmul.mubr.f32.gmra.mxu0 %v1722
        %v3148 = vpop.f32.mrf.mxu0
        %v3149 = vadd.f32 0.0, %v3148
        %v3150 = vpop.f32.mrf.mxu0
        %3151 = vmatprep.mubr.f32.mxu0 %v1728
        %3152 = vmatmul.mubr.f32.gmra.mxu0 %v1727
        %v3153 = vpop.f32.mrf.mxu0
        %v3154 = vadd.f32 0.0, %v3153
        %v3155 = vpop.f32.mrf.mxu0
        %3156 = vmatprep.mubr.f32.mxu0 %v1733
        %3157 = vmatmul.mubr.f32.gmra.mxu0 %v1732
        %v3158 = vpop.f32.mrf.mxu0
        %v3159 = vadd.f32 0.0, %v3158
        %v3160 = vpop.f32.mrf.mxu0
        %3161 = vmatprep.mubr.f32.mxu0 %v1738
        %3162 = vmatmul.mubr.f32.gmra.mxu0 %v1737
        %v3163 = vpop.f32.mrf.mxu0
        %v3164 = vadd.f32 0.0, %v3163
        %v3165 = vpop.f32.mrf.mxu0
        %3166 = vmatprep.mubr.f32.mxu0 %v1743
        %3167 = vmatmul.mubr.f32.gmra.mxu0 %v1742
        %v3168 = vpop.f32.mrf.mxu0
        %v3169 = vadd.f32 0.0, %v3168
        %v3170 = vpop.f32.mrf.mxu0
        %3171 = vmatprep.mubr.f32.mxu0 %v1748
        %3172 = vmatmul.mubr.f32.gmra.mxu0 %v1747
        %v3173 = vpop.f32.mrf.mxu0
        %v3174 = vadd.f32 0.0, %v3173
        %v3175 = vpop.f32.mrf.mxu0
        %3176 = vmatprep.mubr.f32.mxu0 %v1753
        %3177 = vmatmul.mubr.f32.gmra.mxu0 %v1752
        %v3178 = vpop.f32.mrf.mxu0
        %v3179 = vadd.f32 0.0, %v3178
        %v3180 = vpop.f32.mrf.mxu0
        %3181 = vmatprep.mubr.f32.mxu0 %v1758
        %3182 = vmatmul.mubr.f32.gmra.mxu0 %v1757
        %v3183 = vpop.f32.mrf.mxu0
        %v3184 = vadd.f32 0.0, %v3183
        %v3185 = vpop.f32.mrf.mxu0
        %3186 = vmatprep.mubr.f32.mxu0 %v1763
        %3187 = vmatmul.mubr.f32.gmra.mxu0 %v1762
        %v3188 = vpop.f32.mrf.mxu0
        %v3189 = vadd.f32 0.0, %v3188
        %v3190 = vpop.f32.mrf.mxu0
        %3191 = vmatprep.mubr.f32.mxu0 %v1768
        %3192 = vmatmul.mubr.f32.gmra.mxu0 %v1767
        %v3193 = vpop.f32.mrf.mxu0
        %v3194 = vadd.f32 0.0, %v3193
        %v3195 = vpop.f32.mrf.mxu0
        %3196 = vmatprep.mubr.f32.mxu0 %v1773
        %3197 = vmatmul.mubr.f32.gmra.mxu0 %v1772
        %v3198 = vpop.f32.mrf.mxu0
        %v3199 = vadd.f32 0.0, %v3198
        %v3200 = vpop.f32.mrf.mxu0
        %3201 = vmatprep.mubr.f32.mxu0 %v1778
        %3202 = vmatmul.mubr.f32.gmra.mxu0 %v1777
        %v3203 = vpop.f32.mrf.mxu0
        %v3204 = vadd.f32 0.0, %v3203
        %v3205 = vpop.f32.mrf.mxu0
        %3206 = vmatprep.mubr.f32.mxu0 %v1783
        %3207 = vmatmul.mubr.f32.gmra.mxu0 %v1782
        %v3208 = vpop.f32.mrf.mxu0
        %v3209 = vadd.f32 0.0, %v3208
        %v3210 = vpop.f32.mrf.mxu0
        %3211 = vmatprep.mubr.f32.mxu0 %v1788
        %3212 = vmatmul.mubr.f32.gmra.mxu0 %v1787
        %v3213 = vpop.f32.mrf.mxu0
        %v3214 = vadd.f32 0.0, %v3213
        %v3215 = vpop.f32.mrf.mxu0
        %3216 = vmatprep.mubr.f32.mxu0 %v1793
        %3217 = vmatmul.mubr.f32.gmra.mxu0 %v1792
        %v3218 = vpop.f32.mrf.mxu0
        %v3219 = vadd.f32 0.0, %v3218
        %v3220 = vpop.f32.mrf.mxu0
        %3221 = vmatprep.mubr.f32.mxu0 %v1798
        %3222 = vmatmul.mubr.f32.gmra.mxu0 %v1797
        %v3223 = vpop.f32.mrf.mxu0
        %v3224 = vadd.f32 0.0, %v3223
        %v3225 = vpop.f32.mrf.mxu0
        %3226 = vmatprep.mubr.f32.mxu0 %v1803
        %3227 = vmatmul.mubr.f32.gmra.mxu0 %v1802
        %v3228 = vpop.f32.mrf.mxu0
        %v3229 = vadd.f32 0.0, %v3228
        %v3230 = vpop.f32.mrf.mxu0
        %3231 = vmatprep.mubr.f32.mxu0 %v1808
        %3232 = vmatmul.mubr.f32.gmra.mxu0 %v1807
        %v3233 = vpop.f32.mrf.mxu0
        %v3234 = vadd.f32 0.0, %v3233
        %v3235 = vpop.f32.mrf.mxu0
        %3236 = vmatprep.mubr.f32.mxu0 %v1813
        %3237 = vmatmul.mubr.f32.gmra.mxu0 %v1812
        %v3238 = vpop.f32.mrf.mxu0
        %v3239 = vadd.f32 0.0, %v3238
        %v3240 = vpop.f32.mrf.mxu0
        %3241 = vmatprep.mubr.f32.mxu0 %v1818
        %3242 = vmatmul.mubr.f32.gmra.mxu0 %v1817
        %v3243 = vpop.f32.mrf.mxu0
        %v3244 = vadd.f32 0.0, %v3243
        %v3245 = vpop.f32.mrf.mxu0
        %3246 = vmatprep.mubr.f32.mxu0 %v1823
        %3247 = vmatmul.mubr.f32.gmra.mxu0 %v1822
        %v3248 = vpop.f32.mrf.mxu0
        %v3249 = vadd.f32 0.0, %v3248
        %v3250 = vpop.f32.mrf.mxu0
        %3251 = vdwg.mxu0
        %3252 = vmatprep.subr.mxu0 0.0
        %3253 = vmatpush1.msra.mxu0 %v1874
        %3254 = vmatprep.subr.mxu0 0.0
        %3255 = vmatpush1.msra.mxu0 %v1873
        %3256 = vmatprep.subr.mxu0 0.0
        %3257 = vmatpush1.msra.mxu0 %v1872
        %3258 = vmatprep.subr.mxu0 0.0
        %3259 = vmatpush1.msra.mxu0 %v1871
        %3260 = vmatprep.subr.mxu0 0.0
        %3261 = vmatpush1.msra.mxu0 %v1870
        %3262 = vmatprep.subr.mxu0 0.0
        %3263 = vmatpush1.msra.mxu0 %v1869
        %3264 = vmatprep.subr.mxu0 0.0
        %3265 = vmatpush1.msra.mxu0 %v1868
        %3266 = vmatprep.subr.mxu0 0.0
        %3267 = vmatpush1.msra.mxu0 %v1867
        %3268 = vmatprep.subr.mxu0 0.0
        %3269 = vmatpush1.msra.mxu0 %v1866
        %3270 = vmatprep.subr.mxu0 0.0
        %3271 = vmatpush1.msra.mxu0 %v1865
        %3272 = vmatprep.subr.mxu0 0.0
        %3273 = vmatpush1.msra.mxu0 %v1864
        %3274 = vmatprep.subr.mxu0 0.0
        %3275 = vmatpush1.msra.mxu0 %v1863
        %3276 = vmatprep.subr.mxu0 0.0
        %3277 = vmatpush1.msra.mxu0 %v1862
        %3278 = vmatprep.subr.mxu0 0.0
        %3279 = vmatpush1.msra.mxu0 %v1861
        %3280 = vmatprep.subr.mxu0 0.0
        %3281 = vmatpush1.msra.mxu0 %v1860
        %3282 = vmatprep.subr.mxu0 0.0
        %3283 = vmatpush1.msra.mxu0 %v1859
        %3284 = vmatprep.subr.mxu0 0.0
        %3285 = vmatpush2.msra.mxu0 %v1890
        %3286 = vmatprep.subr.mxu0 0.0
        %3287 = vmatpush2.msra.mxu0 %v1889
        %3288 = vmatprep.subr.mxu0 0.0
        %3289 = vmatpush2.msra.mxu0 %v1888
        %3290 = vmatprep.subr.mxu0 0.0
        %3291 = vmatpush2.msra.mxu0 %v1887
        %3292 = vmatprep.subr.mxu0 0.0
        %3293 = vmatpush2.msra.mxu0 %v1886
        %3294 = vmatprep.subr.mxu0 0.0
        %3295 = vmatpush2.msra.mxu0 %v1885
        %3296 = vmatprep.subr.mxu0 0.0
        %3297 = vmatpush2.msra.mxu0 %v1884
        %3298 = vmatprep.subr.mxu0 0.0
        %3299 = vmatpush2.msra.mxu0 %v1883
        %3300 = vmatprep.subr.mxu0 0.0
        %3301 = vmatpush2.msra.mxu0 %v1882
        %3302 = vmatprep.subr.mxu0 0.0
        %3303 = vmatpush2.msra.mxu0 %v1881
        %3304 = vmatprep.subr.mxu0 0.0
        %3305 = vmatpush2.msra.mxu0 %v1880
        %3306 = vmatprep.subr.mxu0 0.0
        %3307 = vmatpush2.msra.mxu0 %v1879
        %3308 = vmatprep.subr.mxu0 0.0
        %3309 = vmatpush2.msra.mxu0 %v1878
        %3310 = vmatprep.subr.mxu0 0.0
        %3311 = vmatpush2.msra.mxu0 %v1877
        %3312 = vmatprep.subr.mxu0 0.0
        %3313 = vmatpush2.msra.mxu0 %v1876
        %3314 = vmatprep.subr.mxu0 0.0
        %3315 = vmatpush2.msra.mxu0 %v1875
        %3316 = vmatprep.mubr.f32.mxu0 %v550
        %3317 = vmatmul.mubr.f32.gmra.mxu0 %v549
        %v3318 = vpop.f32.mrf.mxu0
        %v3319 = vadd.f32 %v1974, %v3318
        %v3320 = vpop.f32.mrf.mxu0
        %3321 = vmatprep.mubr.f32.mxu0 %v555
        %3322 = vmatmul.mubr.f32.gmra.mxu0 %v554
        %v3323 = vpop.f32.mrf.mxu0
        %v3324 = vadd.f32 %v1979, %v3323
        %v3325 = vpop.f32.mrf.mxu0
        %3326 = vmatprep.mubr.f32.mxu0 %v560
        %3327 = vmatmul.mubr.f32.gmra.mxu0 %v559
        %v3328 = vpop.f32.mrf.mxu0
        %v3329 = vadd.f32 %v1984, %v3328
        %v3330 = vpop.f32.mrf.mxu0
        %3331 = vmatprep.mubr.f32.mxu0 %v565
        %3332 = vmatmul.mubr.f32.gmra.mxu0 %v564
        %v3333 = vpop.f32.mrf.mxu0
        %v3334 = vadd.f32 %v1989, %v3333
        %v3335 = vpop.f32.mrf.mxu0
        %3336 = vmatprep.mubr.f32.mxu0 %v570
        %3337 = vmatmul.mubr.f32.gmra.mxu0 %v569
        %v3338 = vpop.f32.mrf.mxu0
        %v3339 = vadd.f32 %v1994, %v3338
        %v3340 = vpop.f32.mrf.mxu0
        %3341 = vmatprep.mubr.f32.mxu0 %v575
        %3342 = vmatmul.mubr.f32.gmra.mxu0 %v574
        %v3343 = vpop.f32.mrf.mxu0
        %v3344 = vadd.f32 %v1999, %v3343
        %v3345 = vpop.f32.mrf.mxu0
        %3346 = vmatprep.mubr.f32.mxu0 %v580
        %3347 = vmatmul.mubr.f32.gmra.mxu0 %v579
        %v3348 = vpop.f32.mrf.mxu0
        %v3349 = vadd.f32 %v2004, %v3348
        %v3350 = vpop.f32.mrf.mxu0
        %3351 = vmatprep.mubr.f32.mxu0 %v585
        %3352 = vmatmul.mubr.f32.gmra.mxu0 %v584
        %v3353 = vpop.f32.mrf.mxu0
        %v3354 = vadd.f32 %v2009, %v3353
        %v3355 = vpop.f32.mrf.mxu0
        %3356 = vmatprep.mubr.f32.mxu0 %v590
        %3357 = vmatmul.mubr.f32.gmra.mxu0 %v589
        %v3358 = vpop.f32.mrf.mxu0
        %v3359 = vadd.f32 %v2014, %v3358
        %v3360 = vpop.f32.mrf.mxu0
        %3361 = vmatprep.mubr.f32.mxu0 %v595
        %3362 = vmatmul.mubr.f32.gmra.mxu0 %v594
        %v3363 = vpop.f32.mrf.mxu0
        %v3364 = vadd.f32 %v2019, %v3363
        %v3365 = vpop.f32.mrf.mxu0
        %3366 = vmatprep.mubr.f32.mxu0 %v600
        %3367 = vmatmul.mubr.f32.gmra.mxu0 %v599
        %v3368 = vpop.f32.mrf.mxu0
        %v3369 = vadd.f32 %v2024, %v3368
        %v3370 = vpop.f32.mrf.mxu0
        %3371 = vmatprep.mubr.f32.mxu0 %v605
        %3372 = vmatmul.mubr.f32.gmra.mxu0 %v604
        %v3373 = vpop.f32.mrf.mxu0
        %v3374 = vadd.f32 %v2029, %v3373
        %v3375 = vpop.f32.mrf.mxu0
        %3376 = vmatprep.mubr.f32.mxu0 %v610
        %3377 = vmatmul.mubr.f32.gmra.mxu0 %v609
        %v3378 = vpop.f32.mrf.mxu0
        %v3379 = vadd.f32 %v2034, %v3378
        %v3380 = vpop.f32.mrf.mxu0
        %3381 = vmatprep.mubr.f32.mxu0 %v615
        %3382 = vmatmul.mubr.f32.gmra.mxu0 %v614
        %v3383 = vpop.f32.mrf.mxu0
        %v3384 = vadd.f32 %v2039, %v3383
        %v3385 = vpop.f32.mrf.mxu0
        %3386 = vmatprep.mubr.f32.mxu0 %v620
        %3387 = vmatmul.mubr.f32.gmra.mxu0 %v619
        %v3388 = vpop.f32.mrf.mxu0
        %v3389 = vadd.f32 %v2044, %v3388
        %v3390 = vpop.f32.mrf.mxu0
        %3391 = vmatprep.mubr.f32.mxu0 %v625
        %3392 = vmatmul.mubr.f32.gmra.mxu0 %v624
        %v3393 = vpop.f32.mrf.mxu0
        %v3394 = vadd.f32 %v2049, %v3393
        %v3395 = vpop.f32.mrf.mxu0
        %3396 = vmatprep.mubr.f32.mxu0 %v630
        %3397 = vmatmul.mubr.f32.gmra.mxu0 %v629
        %v3398 = vpop.f32.mrf.mxu0
        %v3399 = vadd.f32 %v2054, %v3398
        %v3400 = vpop.f32.mrf.mxu0
        %3401 = vmatprep.mubr.f32.mxu0 %v635
        %3402 = vmatmul.mubr.f32.gmra.mxu0 %v634
        %v3403 = vpop.f32.mrf.mxu0
        %v3404 = vadd.f32 %v2059, %v3403
        %v3405 = vpop.f32.mrf.mxu0
        %3406 = vmatprep.mubr.f32.mxu0 %v640
        %3407 = vmatmul.mubr.f32.gmra.mxu0 %v639
        %v3408 = vpop.f32.mrf.mxu0
        %v3409 = vadd.f32 %v2064, %v3408
        %v3410 = vpop.f32.mrf.mxu0
        %3411 = vmatprep.mubr.f32.mxu0 %v645
        %3412 = vmatmul.mubr.f32.gmra.mxu0 %v644
        %v3413 = vpop.f32.mrf.mxu0
        %v3414 = vadd.f32 %v2069, %v3413
        %v3415 = vpop.f32.mrf.mxu0
        %3416 = vmatprep.mubr.f32.mxu0 %v650
        %3417 = vmatmul.mubr.f32.gmra.mxu0 %v649
        %v3418 = vpop.f32.mrf.mxu0
        %v3419 = vadd.f32 %v2074, %v3418
        %v3420 = vpop.f32.mrf.mxu0
        %3421 = vmatprep.mubr.f32.mxu0 %v655
        %3422 = vmatmul.mubr.f32.gmra.mxu0 %v654
        %v3423 = vpop.f32.mrf.mxu0
        %v3424 = vadd.f32 %v2079, %v3423
        %v3425 = vpop.f32.mrf.mxu0
        %3426 = vmatprep.mubr.f32.mxu0 %v660
        %3427 = vmatmul.mubr.f32.gmra.mxu0 %v659
        %v3428 = vpop.f32.mrf.mxu0
        %v3429 = vadd.f32 %v2084, %v3428
        %v3430 = vpop.f32.mrf.mxu0
        %3431 = vmatprep.mubr.f32.mxu0 %v665
        %3432 = vmatmul.mubr.f32.gmra.mxu0 %v664
        %v3433 = vpop.f32.mrf.mxu0
        %v3434 = vadd.f32 %v2089, %v3433
        %v3435 = vpop.f32.mrf.mxu0
        %3436 = vmatprep.mubr.f32.mxu0 %v670
        %3437 = vmatmul.mubr.f32.gmra.mxu0 %v669
        %v3438 = vpop.f32.mrf.mxu0
        %v3439 = vadd.f32 %v2094, %v3438
        %v3440 = vpop.f32.mrf.mxu0
        %3441 = vmatprep.mubr.f32.mxu0 %v675
        %3442 = vmatmul.mubr.f32.gmra.mxu0 %v674
        %v3443 = vpop.f32.mrf.mxu0
        %v3444 = vadd.f32 %v2099, %v3443
        %v3445 = vpop.f32.mrf.mxu0
        %3446 = vmatprep.mubr.f32.mxu0 %v680
        %3447 = vmatmul.mubr.f32.gmra.mxu0 %v679
        %v3448 = vpop.f32.mrf.mxu0
        %v3449 = vadd.f32 %v2104, %v3448
        %v3450 = vpop.f32.mrf.mxu0
        %3451 = vmatprep.mubr.f32.mxu0 %v685
        %3452 = vmatmul.mubr.f32.gmra.mxu0 %v684
        %v3453 = vpop.f32.mrf.mxu0
        %v3454 = vadd.f32 %v2109, %v3453
        %v3455 = vpop.f32.mrf.mxu0
        %3456 = vmatprep.mubr.f32.mxu0 %v690
        %3457 = vmatmul.mubr.f32.gmra.mxu0 %v689
        %v3458 = vpop.f32.mrf.mxu0
        %v3459 = vadd.f32 %v2114, %v3458
        %v3460 = vpop.f32.mrf.mxu0
        %3461 = vmatprep.mubr.f32.mxu0 %v695
        %3462 = vmatmul.mubr.f32.gmra.mxu0 %v694
        %v3463 = vpop.f32.mrf.mxu0
        %v3464 = vadd.f32 %v2119, %v3463
        %v3465 = vpop.f32.mrf.mxu0
        %3466 = vmatprep.mubr.f32.mxu0 %v700
        %3467 = vmatmul.mubr.f32.gmra.mxu0 %v699
        %v3468 = vpop.f32.mrf.mxu0
        %v3469 = vadd.f32 %v2124, %v3468
        %v3470 = vpop.f32.mrf.mxu0
        %3471 = vmatprep.mubr.f32.mxu0 %v705
        %3472 = vmatmul.mubr.f32.gmra.mxu0 %v704
        %v3473 = vpop.f32.mrf.mxu0
        %v3474 = vadd.f32 %v2129, %v3473
        %v3475 = vpop.f32.mrf.mxu0
        %3476 = vmatprep.mubr.f32.mxu0 %v710
        %3477 = vmatmul.mubr.f32.gmra.mxu0 %v709
        %v3478 = vpop.f32.mrf.mxu0
        %v3479 = vadd.f32 %v2134, %v3478
        %v3480 = vpop.f32.mrf.mxu0
        %3481 = vmatprep.mubr.f32.mxu0 %v715
        %3482 = vmatmul.mubr.f32.gmra.mxu0 %v714
        %v3483 = vpop.f32.mrf.mxu0
        %v3484 = vadd.f32 %v2139, %v3483
        %v3485 = vpop.f32.mrf.mxu0
        %3486 = vmatprep.mubr.f32.mxu0 %v720
        %3487 = vmatmul.mubr.f32.gmra.mxu0 %v719
        %v3488 = vpop.f32.mrf.mxu0
        %v3489 = vadd.f32 %v2144, %v3488
        %v3490 = vpop.f32.mrf.mxu0
        %3491 = vmatprep.mubr.f32.mxu0 %v725
        %3492 = vmatmul.mubr.f32.gmra.mxu0 %v724
        %v3493 = vpop.f32.mrf.mxu0
        %v3494 = vadd.f32 %v2149, %v3493
        %v3495 = vpop.f32.mrf.mxu0
        %3496 = vmatprep.mubr.f32.mxu0 %v730
        %3497 = vmatmul.mubr.f32.gmra.mxu0 %v729
        %v3498 = vpop.f32.mrf.mxu0
        %v3499 = vadd.f32 %v2154, %v3498
        %v3500 = vpop.f32.mrf.mxu0
        %3501 = vmatprep.mubr.f32.mxu0 %v735
        %3502 = vmatmul.mubr.f32.gmra.mxu0 %v734
        %v3503 = vpop.f32.mrf.mxu0
        %v3504 = vadd.f32 %v2159, %v3503
        %v3505 = vpop.f32.mrf.mxu0
        %3506 = vmatprep.mubr.f32.mxu0 %v740
        %3507 = vmatmul.mubr.f32.gmra.mxu0 %v739
        %v3508 = vpop.f32.mrf.mxu0
        %v3509 = vadd.f32 %v2164, %v3508
        %v3510 = vpop.f32.mrf.mxu0
        %3511 = vmatprep.mubr.f32.mxu0 %v745
        %3512 = vmatmul.mubr.f32.gmra.mxu0 %v744
        %v3513 = vpop.f32.mrf.mxu0
        %v3514 = vadd.f32 %v2169, %v3513
        %v3515 = vpop.f32.mrf.mxu0
        %3516 = vmatprep.mubr.f32.mxu0 %v750
        %3517 = vmatmul.mubr.f32.gmra.mxu0 %v749
        %v3518 = vpop.f32.mrf.mxu0
        %v3519 = vadd.f32 %v2174, %v3518
        %v3520 = vpop.f32.mrf.mxu0
        %3521 = vmatprep.mubr.f32.mxu0 %v755
        %3522 = vmatmul.mubr.f32.gmra.mxu0 %v754
        %v3523 = vpop.f32.mrf.mxu0
        %v3524 = vadd.f32 %v2179, %v3523
        %v3525 = vpop.f32.mrf.mxu0
        %3526 = vmatprep.mubr.f32.mxu0 %v760
        %3527 = vmatmul.mubr.f32.gmra.mxu0 %v759
        %v3528 = vpop.f32.mrf.mxu0
        %v3529 = vadd.f32 %v2184, %v3528
        %v3530 = vpop.f32.mrf.mxu0
        %3531 = vmatprep.mubr.f32.mxu0 %v765
        %3532 = vmatmul.mubr.f32.gmra.mxu0 %v764
        %v3533 = vpop.f32.mrf.mxu0
        %v3534 = vadd.f32 %v2189, %v3533
        %v3535 = vpop.f32.mrf.mxu0
        %3536 = vmatprep.mubr.f32.mxu0 %v770
        %3537 = vmatmul.mubr.f32.gmra.mxu0 %v769
        %v3538 = vpop.f32.mrf.mxu0
        %v3539 = vadd.f32 %v2194, %v3538
        %v3540 = vpop.f32.mrf.mxu0
        %3541 = vmatprep.mubr.f32.mxu0 %v775
        %3542 = vmatmul.mubr.f32.gmra.mxu0 %v774
        %v3543 = vpop.f32.mrf.mxu0
        %v3544 = vadd.f32 %v2199, %v3543
        %v3545 = vpop.f32.mrf.mxu0
        %3546 = vmatprep.mubr.f32.mxu0 %v780
        %3547 = vmatmul.mubr.f32.gmra.mxu0 %v779
        %v3548 = vpop.f32.mrf.mxu0
        %v3549 = vadd.f32 %v2204, %v3548
        %v3550 = vpop.f32.mrf.mxu0
        %3551 = vmatprep.mubr.f32.mxu0 %v785
        %3552 = vmatmul.mubr.f32.gmra.mxu0 %v784
        %v3553 = vpop.f32.mrf.mxu0
        %v3554 = vadd.f32 %v2209, %v3553
        %v3555 = vpop.f32.mrf.mxu0
        %3556 = vmatprep.mubr.f32.mxu0 %v790
        %3557 = vmatmul.mubr.f32.gmra.mxu0 %v789
        %v3558 = vpop.f32.mrf.mxu0
        %v3559 = vadd.f32 %v2214, %v3558
        %v3560 = vpop.f32.mrf.mxu0
        %3561 = vmatprep.mubr.f32.mxu0 %v795
        %3562 = vmatmul.mubr.f32.gmra.mxu0 %v794
        %v3563 = vpop.f32.mrf.mxu0
        %v3564 = vadd.f32 %v2219, %v3563
        %v3565 = vpop.f32.mrf.mxu0
        %3566 = vmatprep.mubr.f32.mxu0 %v800
        %3567 = vmatmul.mubr.f32.gmra.mxu0 %v799
        %v3568 = vpop.f32.mrf.mxu0
        %v3569 = vadd.f32 %v2224, %v3568
        %v3570 = vpop.f32.mrf.mxu0
        %3571 = vmatprep.mubr.f32.mxu0 %v805
        %3572 = vmatmul.mubr.f32.gmra.mxu0 %v804
        %v3573 = vpop.f32.mrf.mxu0
        %v3574 = vadd.f32 %v2229, %v3573
        %v3575 = vpop.f32.mrf.mxu0
        %3576 = vmatprep.mubr.f32.mxu0 %v810
        %3577 = vmatmul.mubr.f32.gmra.mxu0 %v809
        %v3578 = vpop.f32.mrf.mxu0
        %v3579 = vadd.f32 %v2234, %v3578
        %v3580 = vpop.f32.mrf.mxu0
        %3581 = vmatprep.mubr.f32.mxu0 %v815
        %3582 = vmatmul.mubr.f32.gmra.mxu0 %v814
        %v3583 = vpop.f32.mrf.mxu0
        %v3584 = vadd.f32 %v2239, %v3583
        %v3585 = vpop.f32.mrf.mxu0
        %3586 = vmatprep.mubr.f32.mxu0 %v820
        %3587 = vmatmul.mubr.f32.gmra.mxu0 %v819
        %v3588 = vpop.f32.mrf.mxu0
        %v3589 = vadd.f32 %v2244, %v3588
        %v3590 = vpop.f32.mrf.mxu0
        %3591 = vmatprep.mubr.f32.mxu0 %v825
        %3592 = vmatmul.mubr.f32.gmra.mxu0 %v824
        %v3593 = vpop.f32.mrf.mxu0
        %v3594 = vadd.f32 %v2249, %v3593
        %v3595 = vpop.f32.mrf.mxu0
        %3596 = vmatprep.mubr.f32.mxu0 %v830
        %3597 = vmatmul.mubr.f32.gmra.mxu0 %v829
        %v3598 = vpop.f32.mrf.mxu0
        %v3599 = vadd.f32 %v2254, %v3598
        %v3600 = vpop.f32.mrf.mxu0
        %3601 = vmatprep.mubr.f32.mxu0 %v835
        %3602 = vmatmul.mubr.f32.gmra.mxu0 %v834
        %v3603 = vpop.f32.mrf.mxu0
        %v3604 = vadd.f32 %v2259, %v3603
        %v3605 = vpop.f32.mrf.mxu0
        %3606 = vmatprep.mubr.f32.mxu0 %v840
        %3607 = vmatmul.mubr.f32.gmra.mxu0 %v839
        %v3608 = vpop.f32.mrf.mxu0
        %v3609 = vadd.f32 %v2264, %v3608
        %v3610 = vpop.f32.mrf.mxu0
        %3611 = vmatprep.mubr.f32.mxu0 %v845
        %3612 = vmatmul.mubr.f32.gmra.mxu0 %v844
        %v3613 = vpop.f32.mrf.mxu0
        %v3614 = vadd.f32 %v2269, %v3613
        %v3615 = vpop.f32.mrf.mxu0
        %3616 = vmatprep.mubr.f32.mxu0 %v850
        %3617 = vmatmul.mubr.f32.gmra.mxu0 %v849
        %v3618 = vpop.f32.mrf.mxu0
        %v3619 = vadd.f32 %v2274, %v3618
        %v3620 = vpop.f32.mrf.mxu0
        %3621 = vmatprep.mubr.f32.mxu0 %v855
        %3622 = vmatmul.mubr.f32.gmra.mxu0 %v854
        %v3623 = vpop.f32.mrf.mxu0
        %v3624 = vadd.f32 %v2279, %v3623
        %v3625 = vpop.f32.mrf.mxu0
        %3626 = vmatprep.mubr.f32.mxu0 %v860
        %3627 = vmatmul.mubr.f32.gmra.mxu0 %v859
        %v3628 = vpop.f32.mrf.mxu0
        %v3629 = vadd.f32 %v2284, %v3628
        %v3630 = vpop.f32.mrf.mxu0
        %3631 = vmatprep.mubr.f32.mxu0 %v865
        %3632 = vmatmul.mubr.f32.gmra.mxu0 %v864
        %v3633 = vpop.f32.mrf.mxu0
        %v3634 = vadd.f32 %v2289, %v3633
        %v3635 = vpop.f32.mrf.mxu0
        %3636 = vmatprep.mubr.f32.mxu0 %v870
        %3637 = vmatmul.mubr.f32.gmra.mxu0 %v869
        %v3638 = vpop.f32.mrf.mxu0
        %v3639 = vadd.f32 %v2294, %v3638
        %v3640 = vpop.f32.mrf.mxu0
        %3641 = vmatprep.mubr.f32.mxu0 %v875
        %3642 = vmatmul.mubr.f32.gmra.mxu0 %v874
        %v3643 = vpop.f32.mrf.mxu0
        %v3644 = vadd.f32 %v2299, %v3643
        %v3645 = vpop.f32.mrf.mxu0
        %3646 = vmatprep.mubr.f32.mxu0 %v880
        %3647 = vmatmul.mubr.f32.gmra.mxu0 %v879
        %v3648 = vpop.f32.mrf.mxu0
        %v3649 = vadd.f32 %v2304, %v3648
        %v3650 = vpop.f32.mrf.mxu0
        %3651 = vmatprep.mubr.f32.mxu0 %v885
        %3652 = vmatmul.mubr.f32.gmra.mxu0 %v884
        %v3653 = vpop.f32.mrf.mxu0
        %v3654 = vadd.f32 %v2309, %v3653
        %v3655 = vpop.f32.mrf.mxu0
        %3656 = vmatprep.mubr.f32.mxu0 %v890
        %3657 = vmatmul.mubr.f32.gmra.mxu0 %v889
        %v3658 = vpop.f32.mrf.mxu0
        %v3659 = vadd.f32 %v2314, %v3658
        %v3660 = vpop.f32.mrf.mxu0
        %3661 = vmatprep.mubr.f32.mxu0 %v895
        %3662 = vmatmul.mubr.f32.gmra.mxu0 %v894
        %v3663 = vpop.f32.mrf.mxu0
        %v3664 = vadd.f32 %v2319, %v3663
        %v3665 = vpop.f32.mrf.mxu0
        %3666 = vmatprep.mubr.f32.mxu0 %v900
        %3667 = vmatmul.mubr.f32.gmra.mxu0 %v899
        %v3668 = vpop.f32.mrf.mxu0
        %v3669 = vadd.f32 %v2324, %v3668
        %v3670 = vpop.f32.mrf.mxu0
        %3671 = vmatprep.mubr.f32.mxu0 %v905
        %3672 = vmatmul.mubr.f32.gmra.mxu0 %v904
        %v3673 = vpop.f32.mrf.mxu0
        %v3674 = vadd.f32 %v2329, %v3673
        %v3675 = vpop.f32.mrf.mxu0
        %3676 = vmatprep.mubr.f32.mxu0 %v910
        %3677 = vmatmul.mubr.f32.gmra.mxu0 %v909
        %v3678 = vpop.f32.mrf.mxu0
        %v3679 = vadd.f32 %v2334, %v3678
        %v3680 = vpop.f32.mrf.mxu0
        %3681 = vmatprep.mubr.f32.mxu0 %v915
        %3682 = vmatmul.mubr.f32.gmra.mxu0 %v914
        %v3683 = vpop.f32.mrf.mxu0
        %v3684 = vadd.f32 %v2339, %v3683
        %v3685 = vpop.f32.mrf.mxu0
        %3686 = vmatprep.mubr.f32.mxu0 %v920
        %3687 = vmatmul.mubr.f32.gmra.mxu0 %v919
        %v3688 = vpop.f32.mrf.mxu0
        %v3689 = vadd.f32 %v2344, %v3688
        %v3690 = vpop.f32.mrf.mxu0
        %3691 = vmatprep.mubr.f32.mxu0 %v925
        %3692 = vmatmul.mubr.f32.gmra.mxu0 %v924
        %v3693 = vpop.f32.mrf.mxu0
        %v3694 = vadd.f32 %v2349, %v3693
        %v3695 = vpop.f32.mrf.mxu0
        %3696 = vmatprep.mubr.f32.mxu0 %v930
        %3697 = vmatmul.mubr.f32.gmra.mxu0 %v929
        %v3698 = vpop.f32.mrf.mxu0
        %v3699 = vadd.f32 %v2354, %v3698
        %v3700 = vpop.f32.mrf.mxu0
        %3701 = vmatprep.mubr.f32.mxu0 %v935
        %3702 = vmatmul.mubr.f32.gmra.mxu0 %v934
        %v3703 = vpop.f32.mrf.mxu0
        %v3704 = vadd.f32 %v2359, %v3703
        %v3705 = vpop.f32.mrf.mxu0
        %3706 = vmatprep.mubr.f32.mxu0 %v940
        %3707 = vmatmul.mubr.f32.gmra.mxu0 %v939
        %v3708 = vpop.f32.mrf.mxu0
        %v3709 = vadd.f32 %v2364, %v3708
        %v3710 = vpop.f32.mrf.mxu0
        %3711 = vmatprep.mubr.f32.mxu0 %v945
        %3712 = vmatmul.mubr.f32.gmra.mxu0 %v944
        %v3713 = vpop.f32.mrf.mxu0
        %v3714 = vadd.f32 %v2369, %v3713
        %v3715 = vpop.f32.mrf.mxu0
        %3716 = vmatprep.mubr.f32.mxu0 %v950
        %3717 = vmatmul.mubr.f32.gmra.mxu0 %v949
        %v3718 = vpop.f32.mrf.mxu0
        %v3719 = vadd.f32 %v2374, %v3718
        %v3720 = vpop.f32.mrf.mxu0
        %3721 = vmatprep.mubr.f32.mxu0 %v955
        %3722 = vmatmul.mubr.f32.gmra.mxu0 %v954
        %v3723 = vpop.f32.mrf.mxu0
        %v3724 = vadd.f32 %v2379, %v3723
        %v3725 = vpop.f32.mrf.mxu0
        %3726 = vmatprep.mubr.f32.mxu0 %v960
        %3727 = vmatmul.mubr.f32.gmra.mxu0 %v959
        %v3728 = vpop.f32.mrf.mxu0
        %v3729 = vadd.f32 %v2384, %v3728
        %v3730 = vpop.f32.mrf.mxu0
        %3731 = vmatprep.mubr.f32.mxu0 %v965
        %3732 = vmatmul.mubr.f32.gmra.mxu0 %v964
        %v3733 = vpop.f32.mrf.mxu0
        %v3734 = vadd.f32 %v2389, %v3733
        %v3735 = vpop.f32.mrf.mxu0
        %3736 = vmatprep.mubr.f32.mxu0 %v970
        %3737 = vmatmul.mubr.f32.gmra.mxu0 %v969
        %v3738 = vpop.f32.mrf.mxu0
        %v3739 = vadd.f32 %v2394, %v3738
        %v3740 = vpop.f32.mrf.mxu0
        %3741 = vmatprep.mubr.f32.mxu0 %v975
        %3742 = vmatmul.mubr.f32.gmra.mxu0 %v974
        %v3743 = vpop.f32.mrf.mxu0
        %v3744 = vadd.f32 %v2399, %v3743
        %v3745 = vpop.f32.mrf.mxu0
        %3746 = vmatprep.mubr.f32.mxu0 %v980
        %3747 = vmatmul.mubr.f32.gmra.mxu0 %v979
        %v3748 = vpop.f32.mrf.mxu0
        %v3749 = vadd.f32 %v2404, %v3748
        %v3750 = vpop.f32.mrf.mxu0
        %3751 = vmatprep.mubr.f32.mxu0 %v985
        %3752 = vmatmul.mubr.f32.gmra.mxu0 %v984
        %v3753 = vpop.f32.mrf.mxu0
        %v3754 = vadd.f32 %v2409, %v3753
        %v3755 = vpop.f32.mrf.mxu0
        %3756 = vmatprep.mubr.f32.mxu0 %v990
        %3757 = vmatmul.mubr.f32.gmra.mxu0 %v989
        %v3758 = vpop.f32.mrf.mxu0
        %v3759 = vadd.f32 %v2414, %v3758
        %v3760 = vpop.f32.mrf.mxu0
        %3761 = vmatprep.mubr.f32.mxu0 %v995
        %3762 = vmatmul.mubr.f32.gmra.mxu0 %v994
        %v3763 = vpop.f32.mrf.mxu0
        %v3764 = vadd.f32 %v2419, %v3763
        %v3765 = vpop.f32.mrf.mxu0
        %3766 = vmatprep.mubr.f32.mxu0 %v1000
        %3767 = vmatmul.mubr.f32.gmra.mxu0 %v999
        %v3768 = vpop.f32.mrf.mxu0
        %v3769 = vadd.f32 %v2424, %v3768
        %v3770 = vpop.f32.mrf.mxu0
        %3771 = vmatprep.mubr.f32.mxu0 %v1005
        %3772 = vmatmul.mubr.f32.gmra.mxu0 %v1004
        %v3773 = vpop.f32.mrf.mxu0
        %v3774 = vadd.f32 %v2429, %v3773
        %v3775 = vpop.f32.mrf.mxu0
        %3776 = vmatprep.mubr.f32.mxu0 %v1010
        %3777 = vmatmul.mubr.f32.gmra.mxu0 %v1009
        %v3778 = vpop.f32.mrf.mxu0
        %v3779 = vadd.f32 %v2434, %v3778
        %v3780 = vpop.f32.mrf.mxu0
        %3781 = vmatprep.mubr.f32.mxu0 %v1015
        %3782 = vmatmul.mubr.f32.gmra.mxu0 %v1014
        %v3783 = vpop.f32.mrf.mxu0
        %v3784 = vadd.f32 %v2439, %v3783
        %v3785 = vpop.f32.mrf.mxu0
        %3786 = vmatprep.mubr.f32.mxu0 %v1020
        %3787 = vmatmul.mubr.f32.gmra.mxu0 %v1019
        %v3788 = vpop.f32.mrf.mxu0
        %v3789 = vadd.f32 %v2444, %v3788
        %v3790 = vpop.f32.mrf.mxu0
        %3791 = vmatprep.mubr.f32.mxu0 %v1025
        %3792 = vmatmul.mubr.f32.gmra.mxu0 %v1024
        %v3793 = vpop.f32.mrf.mxu0
        %v3794 = vadd.f32 %v2449, %v3793
        %v3795 = vpop.f32.mrf.mxu0
        %3796 = vmatprep.mubr.f32.mxu0 %v1030
        %3797 = vmatmul.mubr.f32.gmra.mxu0 %v1029
        %v3798 = vpop.f32.mrf.mxu0
        %v3799 = vadd.f32 %v2454, %v3798
        %v3800 = vpop.f32.mrf.mxu0
        %3801 = vmatprep.mubr.f32.mxu0 %v1035
        %3802 = vmatmul.mubr.f32.gmra.mxu0 %v1034
        %v3803 = vpop.f32.mrf.mxu0
        %v3804 = vadd.f32 %v2459, %v3803
        %v3805 = vpop.f32.mrf.mxu0
        %3806 = vmatprep.mubr.f32.mxu0 %v1040
        %3807 = vmatmul.mubr.f32.gmra.mxu0 %v1039
        %v3808 = vpop.f32.mrf.mxu0
        %v3809 = vadd.f32 %v2464, %v3808
        %v3810 = vpop.f32.mrf.mxu0
        %3811 = vmatprep.mubr.f32.mxu0 %v1045
        %3812 = vmatmul.mubr.f32.gmra.mxu0 %v1044
        %v3813 = vpop.f32.mrf.mxu0
        %v3814 = vadd.f32 %v2469, %v3813
        %v3815 = vpop.f32.mrf.mxu0
        %3816 = vmatprep.mubr.f32.mxu0 %v1050
        %3817 = vmatmul.mubr.f32.gmra.mxu0 %v1049
        %v3818 = vpop.f32.mrf.mxu0
        %v3819 = vadd.f32 %v2474, %v3818
        %v3820 = vpop.f32.mrf.mxu0
        %3821 = vmatprep.mubr.f32.mxu0 %v1055
        %3822 = vmatmul.mubr.f32.gmra.mxu0 %v1054
        %v3823 = vpop.f32.mrf.mxu0
        %v3824 = vadd.f32 %v2479, %v3823
        %v3825 = vpop.f32.mrf.mxu0
        %3826 = vmatprep.mubr.f32.mxu0 %v1060
        %3827 = vmatmul.mubr.f32.gmra.mxu0 %v1059
        %v3828 = vpop.f32.mrf.mxu0
        %v3829 = vadd.f32 %v2484, %v3828
        %v3830 = vpop.f32.mrf.mxu0
        %3831 = vmatprep.mubr.f32.mxu0 %v1065
        %3832 = vmatmul.mubr.f32.gmra.mxu0 %v1064
        %v3833 = vpop.f32.mrf.mxu0
        %v3834 = vadd.f32 %v2489, %v3833
        %v3835 = vpop.f32.mrf.mxu0
        %3836 = vmatprep.mubr.f32.mxu0 %v1070
        %3837 = vmatmul.mubr.f32.gmra.mxu0 %v1069
        %v3838 = vpop.f32.mrf.mxu0
        %v3839 = vadd.f32 %v2494, %v3838
        %v3840 = vpop.f32.mrf.mxu0
        %3841 = vmatprep.mubr.f32.mxu0 %v1075
        %3842 = vmatmul.mubr.f32.gmra.mxu0 %v1074
        %v3843 = vpop.f32.mrf.mxu0
        %v3844 = vadd.f32 %v2499, %v3843
        %v3845 = vpop.f32.mrf.mxu0
        %3846 = vmatprep.mubr.f32.mxu0 %v1080
        %3847 = vmatmul.mubr.f32.gmra.mxu0 %v1079
        %v3848 = vpop.f32.mrf.mxu0
        %v3849 = vadd.f32 %v2504, %v3848
        %v3850 = vpop.f32.mrf.mxu0
        %3851 = vmatprep.mubr.f32.mxu0 %v1085
        %3852 = vmatmul.mubr.f32.gmra.mxu0 %v1084
        %v3853 = vpop.f32.mrf.mxu0
        %v3854 = vadd.f32 %v2509, %v3853
        %v3855 = vpop.f32.mrf.mxu0
        %3856 = vmatprep.mubr.f32.mxu0 %v1090
        %3857 = vmatmul.mubr.f32.gmra.mxu0 %v1089
        %v3858 = vpop.f32.mrf.mxu0
        %v3859 = vadd.f32 %v2514, %v3858
        %v3860 = vpop.f32.mrf.mxu0
        %3861 = vmatprep.mubr.f32.mxu0 %v1095
        %3862 = vmatmul.mubr.f32.gmra.mxu0 %v1094
        %v3863 = vpop.f32.mrf.mxu0
        %v3864 = vadd.f32 %v2519, %v3863
        %v3865 = vpop.f32.mrf.mxu0
        %3866 = vmatprep.mubr.f32.mxu0 %v1100
        %3867 = vmatmul.mubr.f32.gmra.mxu0 %v1099
        %v3868 = vpop.f32.mrf.mxu0
        %v3869 = vadd.f32 %v2524, %v3868
        %v3870 = vpop.f32.mrf.mxu0
        %3871 = vmatprep.mubr.f32.mxu0 %v1105
        %3872 = vmatmul.mubr.f32.gmra.mxu0 %v1104
        %v3873 = vpop.f32.mrf.mxu0
        %v3874 = vadd.f32 %v2529, %v3873
        %v3875 = vpop.f32.mrf.mxu0
        %3876 = vmatprep.mubr.f32.mxu0 %v1110
        %3877 = vmatmul.mubr.f32.gmra.mxu0 %v1109
        %v3878 = vpop.f32.mrf.mxu0
        %v3879 = vadd.f32 %v2534, %v3878
        %v3880 = vpop.f32.mrf.mxu0
        %3881 = vmatprep.mubr.f32.mxu0 %v1115
        %3882 = vmatmul.mubr.f32.gmra.mxu0 %v1114
        %v3883 = vpop.f32.mrf.mxu0
        %v3884 = vadd.f32 %v2539, %v3883
        %v3885 = vpop.f32.mrf.mxu0
        %3886 = vmatprep.mubr.f32.mxu0 %v1120
        %3887 = vmatmul.mubr.f32.gmra.mxu0 %v1119
        %v3888 = vpop.f32.mrf.mxu0
        %v3889 = vadd.f32 %v2544, %v3888
        %v3890 = vpop.f32.mrf.mxu0
        %3891 = vmatprep.mubr.f32.mxu0 %v1125
        %3892 = vmatmul.mubr.f32.gmra.mxu0 %v1124
        %v3893 = vpop.f32.mrf.mxu0
        %v3894 = vadd.f32 %v2549, %v3893
        %v3895 = vpop.f32.mrf.mxu0
        %3896 = vmatprep.mubr.f32.mxu0 %v1130
        %3897 = vmatmul.mubr.f32.gmra.mxu0 %v1129
        %v3898 = vpop.f32.mrf.mxu0
        %v3899 = vadd.f32 %v2554, %v3898
        %v3900 = vpop.f32.mrf.mxu0
        %3901 = vmatprep.mubr.f32.mxu0 %v1135
        %3902 = vmatmul.mubr.f32.gmra.mxu0 %v1134
        %v3903 = vpop.f32.mrf.mxu0
        %v3904 = vadd.f32 %v2559, %v3903
        %v3905 = vpop.f32.mrf.mxu0
        %3906 = vmatprep.mubr.f32.mxu0 %v1140
        %3907 = vmatmul.mubr.f32.gmra.mxu0 %v1139
        %v3908 = vpop.f32.mrf.mxu0
        %v3909 = vadd.f32 %v2564, %v3908
        %v3910 = vpop.f32.mrf.mxu0
        %3911 = vmatprep.mubr.f32.mxu0 %v1145
        %3912 = vmatmul.mubr.f32.gmra.mxu0 %v1144
        %v3913 = vpop.f32.mrf.mxu0
        %v3914 = vadd.f32 %v2569, %v3913
        %v3915 = vpop.f32.mrf.mxu0
        %3916 = vmatprep.mubr.f32.mxu0 %v1150
        %3917 = vmatmul.mubr.f32.gmra.mxu0 %v1149
        %v3918 = vpop.f32.mrf.mxu0
        %v3919 = vadd.f32 %v2574, %v3918
        %v3920 = vpop.f32.mrf.mxu0
        %3921 = vmatprep.mubr.f32.mxu0 %v1155
        %3922 = vmatmul.mubr.f32.gmra.mxu0 %v1154
        %v3923 = vpop.f32.mrf.mxu0
        %v3924 = vadd.f32 %v2579, %v3923
        %v3925 = vpop.f32.mrf.mxu0
        %3926 = vmatprep.mubr.f32.mxu0 %v1160
        %3927 = vmatmul.mubr.f32.gmra.mxu0 %v1159
        %v3928 = vpop.f32.mrf.mxu0
        %v3929 = vadd.f32 %v2584, %v3928
        %v3930 = vpop.f32.mrf.mxu0
        %3931 = vmatprep.mubr.f32.mxu0 %v1165
        %3932 = vmatmul.mubr.f32.gmra.mxu0 %v1164
        %v3933 = vpop.f32.mrf.mxu0
        %v3934 = vadd.f32 %v2589, %v3933
        %v3935 = vpop.f32.mrf.mxu0
        %3936 = vmatprep.mubr.f32.mxu0 %v1170
        %3937 = vmatmul.mubr.f32.gmra.mxu0 %v1169
        %v3938 = vpop.f32.mrf.mxu0
        %v3939 = vadd.f32 %v2594, %v3938
        %v3940 = vpop.f32.mrf.mxu0
        %3941 = vmatprep.mubr.f32.mxu0 %v1175
        %3942 = vmatmul.mubr.f32.gmra.mxu0 %v1174
        %v3943 = vpop.f32.mrf.mxu0
        %v3944 = vadd.f32 %v2599, %v3943
        %v3945 = vpop.f32.mrf.mxu0
        %3946 = vmatprep.mubr.f32.mxu0 %v1180
        %3947 = vmatmul.mubr.f32.gmra.mxu0 %v1179
        %v3948 = vpop.f32.mrf.mxu0
        %v3949 = vadd.f32 %v2604, %v3948
        %v3950 = vpop.f32.mrf.mxu0
        %3951 = vmatprep.mubr.f32.mxu0 %v1185
        %3952 = vmatmul.mubr.f32.gmra.mxu0 %v1184
        %v3953 = vpop.f32.mrf.mxu0
        %v3954 = vadd.f32 %v2609, %v3953
        %v3955 = vpop.f32.mrf.mxu0
        %3956 = vmatprep.mubr.f32.mxu0 %v1190
        %3957 = vmatmul.mubr.f32.gmra.mxu0 %v1189
        %v3958 = vpop.f32.mrf.mxu0
        %v3959 = vadd.f32 %v2614, %v3958
        %v3960 = vpop.f32.mrf.mxu0
        %3961 = vmatprep.mubr.f32.mxu0 %v1195
        %3962 = vmatmul.mubr.f32.gmra.mxu0 %v1194
        %v3963 = vpop.f32.mrf.mxu0
        %v3964 = vadd.f32 %v2619, %v3963
        %v3965 = vpop.f32.mrf.mxu0
        %3966 = vmatprep.mubr.f32.mxu0 %v1200
        %3967 = vmatmul.mubr.f32.gmra.mxu0 %v1199
        %v3968 = vpop.f32.mrf.mxu0
        %v3969 = vadd.f32 %v2624, %v3968
        %v3970 = vpop.f32.mrf.mxu0
        %3971 = vmatprep.mubr.f32.mxu0 %v1205
        %3972 = vmatmul.mubr.f32.gmra.mxu0 %v1204
        %v3973 = vpop.f32.mrf.mxu0
        %v3974 = vadd.f32 %v2629, %v3973
        %v3975 = vpop.f32.mrf.mxu0
        %3976 = vmatprep.mubr.f32.mxu0 %v1210
        %3977 = vmatmul.mubr.f32.gmra.mxu0 %v1209
        %v3978 = vpop.f32.mrf.mxu0
        %v3979 = vadd.f32 %v2634, %v3978
        %v3980 = vpop.f32.mrf.mxu0
        %3981 = vmatprep.mubr.f32.mxu0 %v1215
        %3982 = vmatmul.mubr.f32.gmra.mxu0 %v1214
        %v3983 = vpop.f32.mrf.mxu0
        %v3984 = vadd.f32 %v2639, %v3983
        %v3985 = vpop.f32.mrf.mxu0
        %3986 = vmatprep.mubr.f32.mxu0 %v1220
        %3987 = vmatmul.mubr.f32.gmra.mxu0 %v1219
        %v3988 = vpop.f32.mrf.mxu0
        %v3989 = vadd.f32 %v2644, %v3988
        %v3990 = vpop.f32.mrf.mxu0
        %3991 = vmatprep.mubr.f32.mxu0 %v1225
        %3992 = vmatmul.mubr.f32.gmra.mxu0 %v1224
        %v3993 = vpop.f32.mrf.mxu0
        %v3994 = vadd.f32 %v2649, %v3993
        %v3995 = vpop.f32.mrf.mxu0
        %3996 = vmatprep.mubr.f32.mxu0 %v1230
        %3997 = vmatmul.mubr.f32.gmra.mxu0 %v1229
        %v3998 = vpop.f32.mrf.mxu0
        %v3999 = vadd.f32 %v2654, %v3998
        %v4000 = vpop.f32.mrf.mxu0
        %4001 = vmatprep.mubr.f32.mxu0 %v1235
        %4002 = vmatmul.mubr.f32.gmra.mxu0 %v1234
        %v4003 = vpop.f32.mrf.mxu0
        %v4004 = vadd.f32 %v2659, %v4003
        %v4005 = vpop.f32.mrf.mxu0
        %4006 = vmatprep.mubr.f32.mxu0 %v1240
        %4007 = vmatmul.mubr.f32.gmra.mxu0 %v1239
        %v4008 = vpop.f32.mrf.mxu0
        %v4009 = vadd.f32 %v2664, %v4008
        %v4010 = vpop.f32.mrf.mxu0
        %4011 = vmatprep.mubr.f32.mxu0 %v1245
        %4012 = vmatmul.mubr.f32.gmra.mxu0 %v1244
        %v4013 = vpop.f32.mrf.mxu0
        %v4014 = vadd.f32 %v2669, %v4013
        %v4015 = vpop.f32.mrf.mxu0
        %4016 = vmatprep.mubr.f32.mxu0 %v1250
        %4017 = vmatmul.mubr.f32.gmra.mxu0 %v1249
        %v4018 = vpop.f32.mrf.mxu0
        %v4019 = vadd.f32 %v2674, %v4018
        %v4020 = vpop.f32.mrf.mxu0
        %4021 = vmatprep.mubr.f32.mxu0 %v1255
        %4022 = vmatmul.mubr.f32.gmra.mxu0 %v1254
        %v4023 = vpop.f32.mrf.mxu0
        %v4024 = vadd.f32 %v2679, %v4023
        %v4025 = vpop.f32.mrf.mxu0
        %4026 = vmatprep.mubr.f32.mxu0 %v1260
        %4027 = vmatmul.mubr.f32.gmra.mxu0 %v1259
        %v4028 = vpop.f32.mrf.mxu0
        %v4029 = vadd.f32 %v2684, %v4028
        %v4030 = vpop.f32.mrf.mxu0
        %4031 = vmatprep.mubr.f32.mxu0 %v1265
        %4032 = vmatmul.mubr.f32.gmra.mxu0 %v1264
        %v4033 = vpop.f32.mrf.mxu0
        %v4034 = vadd.f32 %v2689, %v4033
        %v4035 = vpop.f32.mrf.mxu0
        %4036 = vmatprep.mubr.f32.mxu0 %v1270
        %4037 = vmatmul.mubr.f32.gmra.mxu0 %v1269
        %v4038 = vpop.f32.mrf.mxu0
        %v4039 = vadd.f32 %v2694, %v4038
        %v4040 = vpop.f32.mrf.mxu0
        %4041 = vmatprep.mubr.f32.mxu0 %v1275
        %4042 = vmatmul.mubr.f32.gmra.mxu0 %v1274
        %v4043 = vpop.f32.mrf.mxu0
        %v4044 = vadd.f32 %v2699, %v4043
        %v4045 = vpop.f32.mrf.mxu0
        %4046 = vmatprep.mubr.f32.mxu0 %v1280
        %4047 = vmatmul.mubr.f32.gmra.mxu0 %v1279
        %v4048 = vpop.f32.mrf.mxu0
        %v4049 = vadd.f32 %v2704, %v4048
        %v4050 = vpop.f32.mrf.mxu0
        %4051 = vmatprep.mubr.f32.mxu0 %v1285
        %4052 = vmatmul.mubr.f32.gmra.mxu0 %v1284
        %v4053 = vpop.f32.mrf.mxu0
        %v4054 = vadd.f32 %v2709, %v4053
        %v4055 = vpop.f32.mrf.mxu0
        %4056 = vmatprep.mubr.f32.mxu0 %v1290
        %4057 = vmatmul.mubr.f32.gmra.mxu0 %v1289
        %v4058 = vpop.f32.mrf.mxu0
        %v4059 = vadd.f32 %v2714, %v4058
        %v4060 = vpop.f32.mrf.mxu0
        %4061 = vmatprep.mubr.f32.mxu0 %v1295
        %4062 = vmatmul.mubr.f32.gmra.mxu0 %v1294
        %v4063 = vpop.f32.mrf.mxu0
        %v4064 = vadd.f32 %v2719, %v4063
        %v4065 = vpop.f32.mrf.mxu0
        %4066 = vmatprep.mubr.f32.mxu0 %v1300
        %4067 = vmatmul.mubr.f32.gmra.mxu0 %v1299
        %v4068 = vpop.f32.mrf.mxu0
        %v4069 = vadd.f32 %v2724, %v4068
        %v4070 = vpop.f32.mrf.mxu0
        %4071 = vmatprep.mubr.f32.mxu0 %v1305
        %4072 = vmatmul.mubr.f32.gmra.mxu0 %v1304
        %v4073 = vpop.f32.mrf.mxu0
        %v4074 = vadd.f32 %v2729, %v4073
        %v4075 = vpop.f32.mrf.mxu0
        %4076 = vmatprep.mubr.f32.mxu0 %v1310
        %4077 = vmatmul.mubr.f32.gmra.mxu0 %v1309
        %v4078 = vpop.f32.mrf.mxu0
        %v4079 = vadd.f32 %v2734, %v4078
        %v4080 = vpop.f32.mrf.mxu0
        %4081 = vmatprep.mubr.f32.mxu0 %v1315
        %4082 = vmatmul.mubr.f32.gmra.mxu0 %v1314
        %v4083 = vpop.f32.mrf.mxu0
        %v4084 = vadd.f32 %v2739, %v4083
        %v4085 = vpop.f32.mrf.mxu0
        %4086 = vmatprep.mubr.f32.mxu0 %v1320
        %4087 = vmatmul.mubr.f32.gmra.mxu0 %v1319
        %v4088 = vpop.f32.mrf.mxu0
        %v4089 = vadd.f32 %v2744, %v4088
        %v4090 = vpop.f32.mrf.mxu0
        %4091 = vmatprep.mubr.f32.mxu0 %v1325
        %4092 = vmatmul.mubr.f32.gmra.mxu0 %v1324
        %v4093 = vpop.f32.mrf.mxu0
        %v4094 = vadd.f32 %v2749, %v4093
        %v4095 = vpop.f32.mrf.mxu0
        %4096 = vmatprep.mubr.f32.mxu0 %v1330
        %4097 = vmatmul.mubr.f32.gmra.mxu0 %v1329
        %v4098 = vpop.f32.mrf.mxu0
        %v4099 = vadd.f32 %v2754, %v4098
        %v4100 = vpop.f32.mrf.mxu0
        %4101 = vmatprep.mubr.f32.mxu0 %v1335
        %4102 = vmatmul.mubr.f32.gmra.mxu0 %v1334
        %v4103 = vpop.f32.mrf.mxu0
        %v4104 = vadd.f32 %v2759, %v4103
        %v4105 = vpop.f32.mrf.mxu0
        %4106 = vmatprep.mubr.f32.mxu0 %v1340
        %4107 = vmatmul.mubr.f32.gmra.mxu0 %v1339
        %v4108 = vpop.f32.mrf.mxu0
        %v4109 = vadd.f32 %v2764, %v4108
        %v4110 = vpop.f32.mrf.mxu0
        %4111 = vmatprep.mubr.f32.mxu0 %v1345
        %4112 = vmatmul.mubr.f32.gmra.mxu0 %v1344
        %v4113 = vpop.f32.mrf.mxu0
        %v4114 = vadd.f32 %v2769, %v4113
        %v4115 = vpop.f32.mrf.mxu0
        %4116 = vmatprep.mubr.f32.mxu0 %v1350
        %4117 = vmatmul.mubr.f32.gmra.mxu0 %v1349
        %v4118 = vpop.f32.mrf.mxu0
        %v4119 = vadd.f32 %v2774, %v4118
        %v4120 = vpop.f32.mrf.mxu0
        %4121 = vmatprep.mubr.f32.mxu0 %v1355
        %4122 = vmatmul.mubr.f32.gmra.mxu0 %v1354
        %v4123 = vpop.f32.mrf.mxu0
        %v4124 = vadd.f32 %v2779, %v4123
        %v4125 = vpop.f32.mrf.mxu0
        %4126 = vmatprep.mubr.f32.mxu0 %v1360
        %4127 = vmatmul.mubr.f32.gmra.mxu0 %v1359
        %v4128 = vpop.f32.mrf.mxu0
        %v4129 = vadd.f32 %v2784, %v4128
        %v4130 = vpop.f32.mrf.mxu0
        %4131 = vmatprep.mubr.f32.mxu0 %v1365
        %4132 = vmatmul.mubr.f32.gmra.mxu0 %v1364
        %v4133 = vpop.f32.mrf.mxu0
        %v4134 = vadd.f32 %v2789, %v4133
        %v4135 = vpop.f32.mrf.mxu0
        %4136 = vmatprep.mubr.f32.mxu0 %v1370
        %4137 = vmatmul.mubr.f32.gmra.mxu0 %v1369
        %v4138 = vpop.f32.mrf.mxu0
        %v4139 = vadd.f32 %v2794, %v4138
        %v4140 = vpop.f32.mrf.mxu0
        %4141 = vmatprep.mubr.f32.mxu0 %v1375
        %4142 = vmatmul.mubr.f32.gmra.mxu0 %v1374
        %v4143 = vpop.f32.mrf.mxu0
        %v4144 = vadd.f32 %v2799, %v4143
        %v4145 = vpop.f32.mrf.mxu0
        %4146 = vmatprep.mubr.f32.mxu0 %v1380
        %4147 = vmatmul.mubr.f32.gmra.mxu0 %v1379
        %v4148 = vpop.f32.mrf.mxu0
        %v4149 = vadd.f32 %v2804, %v4148
        %v4150 = vpop.f32.mrf.mxu0
        %4151 = vmatprep.mubr.f32.mxu0 %v1385
        %4152 = vmatmul.mubr.f32.gmra.mxu0 %v1384
        %v4153 = vpop.f32.mrf.mxu0
        %v4154 = vadd.f32 %v2809, %v4153
        %v4155 = vpop.f32.mrf.mxu0
        %4156 = vmatprep.mubr.f32.mxu0 %v1390
        %4157 = vmatmul.mubr.f32.gmra.mxu0 %v1389
        %v4158 = vpop.f32.mrf.mxu0
        %v4159 = vadd.f32 %v2814, %v4158
        %v4160 = vpop.f32.mrf.mxu0
        %4161 = vmatprep.mubr.f32.mxu0 %v1395
        %4162 = vmatmul.mubr.f32.gmra.mxu0 %v1394
        %v4163 = vpop.f32.mrf.mxu0
        %v4164 = vadd.f32 %v2819, %v4163
        %v4165 = vpop.f32.mrf.mxu0
        %4166 = vmatprep.mubr.f32.mxu0 %v1400
        %4167 = vmatmul.mubr.f32.gmra.mxu0 %v1399
        %v4168 = vpop.f32.mrf.mxu0
        %v4169 = vadd.f32 %v2824, %v4168
        %v4170 = vpop.f32.mrf.mxu0
        %4171 = vmatprep.mubr.f32.mxu0 %v1405
        %4172 = vmatmul.mubr.f32.gmra.mxu0 %v1404
        %v4173 = vpop.f32.mrf.mxu0
        %v4174 = vadd.f32 %v2829, %v4173
        %v4175 = vpop.f32.mrf.mxu0
        %4176 = vmatprep.mubr.f32.mxu0 %v1410
        %4177 = vmatmul.mubr.f32.gmra.mxu0 %v1409
        %v4178 = vpop.f32.mrf.mxu0
        %v4179 = vadd.f32 %v2834, %v4178
        %v4180 = vpop.f32.mrf.mxu0
        %4181 = vmatprep.mubr.f32.mxu0 %v1415
        %4182 = vmatmul.mubr.f32.gmra.mxu0 %v1414
        %v4183 = vpop.f32.mrf.mxu0
        %v4184 = vadd.f32 %v2839, %v4183
        %v4185 = vpop.f32.mrf.mxu0
        %4186 = vmatprep.mubr.f32.mxu0 %v1420
        %4187 = vmatmul.mubr.f32.gmra.mxu0 %v1419
        %v4188 = vpop.f32.mrf.mxu0
        %v4189 = vadd.f32 %v2844, %v4188
        %v4190 = vpop.f32.mrf.mxu0
        %4191 = vmatprep.mubr.f32.mxu0 %v1425
        %4192 = vmatmul.mubr.f32.gmra.mxu0 %v1424
        %v4193 = vpop.f32.mrf.mxu0
        %v4194 = vadd.f32 %v2849, %v4193
        %v4195 = vpop.f32.mrf.mxu0
        %4196 = vmatprep.mubr.f32.mxu0 %v1430
        %4197 = vmatmul.mubr.f32.gmra.mxu0 %v1429
        %v4198 = vpop.f32.mrf.mxu0
        %v4199 = vadd.f32 %v2854, %v4198
        %v4200 = vpop.f32.mrf.mxu0
        %4201 = vmatprep.mubr.f32.mxu0 %v1435
        %4202 = vmatmul.mubr.f32.gmra.mxu0 %v1434
        %v4203 = vpop.f32.mrf.mxu0
        %v4204 = vadd.f32 %v2859, %v4203
        %v4205 = vpop.f32.mrf.mxu0
        %4206 = vmatprep.mubr.f32.mxu0 %v1440
        %4207 = vmatmul.mubr.f32.gmra.mxu0 %v1439
        %v4208 = vpop.f32.mrf.mxu0
        %v4209 = vadd.f32 %v2864, %v4208
        %v4210 = vpop.f32.mrf.mxu0
        %4211 = vmatprep.mubr.f32.mxu0 %v1445
        %4212 = vmatmul.mubr.f32.gmra.mxu0 %v1444
        %v4213 = vpop.f32.mrf.mxu0
        %v4214 = vadd.f32 %v2869, %v4213
        %v4215 = vpop.f32.mrf.mxu0
        %4216 = vmatprep.mubr.f32.mxu0 %v1450
        %4217 = vmatmul.mubr.f32.gmra.mxu0 %v1449
        %v4218 = vpop.f32.mrf.mxu0
        %v4219 = vadd.f32 %v2874, %v4218
        %v4220 = vpop.f32.mrf.mxu0
        %4221 = vmatprep.mubr.f32.mxu0 %v1455
        %4222 = vmatmul.mubr.f32.gmra.mxu0 %v1454
        %v4223 = vpop.f32.mrf.mxu0
        %v4224 = vadd.f32 %v2879, %v4223
        %v4225 = vpop.f32.mrf.mxu0
        %4226 = vmatprep.mubr.f32.mxu0 %v1460
        %4227 = vmatmul.mubr.f32.gmra.mxu0 %v1459
        %v4228 = vpop.f32.mrf.mxu0
        %v4229 = vadd.f32 %v2884, %v4228
        %v4230 = vpop.f32.mrf.mxu0
        %4231 = vmatprep.mubr.f32.mxu0 %v1465
        %4232 = vmatmul.mubr.f32.gmra.mxu0 %v1464
        %v4233 = vpop.f32.mrf.mxu0
        %v4234 = vadd.f32 %v2889, %v4233
        %v4235 = vpop.f32.mrf.mxu0
        %4236 = vmatprep.mubr.f32.mxu0 %v1470
        %4237 = vmatmul.mubr.f32.gmra.mxu0 %v1469
        %v4238 = vpop.f32.mrf.mxu0
        %v4239 = vadd.f32 %v2894, %v4238
        %v4240 = vpop.f32.mrf.mxu0
        %4241 = vmatprep.mubr.f32.mxu0 %v1475
        %4242 = vmatmul.mubr.f32.gmra.mxu0 %v1474
        %v4243 = vpop.f32.mrf.mxu0
        %v4244 = vadd.f32 %v2899, %v4243
        %v4245 = vpop.f32.mrf.mxu0
        %4246 = vmatprep.mubr.f32.mxu0 %v1480
        %4247 = vmatmul.mubr.f32.gmra.mxu0 %v1479
        %v4248 = vpop.f32.mrf.mxu0
        %v4249 = vadd.f32 %v2904, %v4248
        %v4250 = vpop.f32.mrf.mxu0
        %4251 = vmatprep.mubr.f32.mxu0 %v1485
        %4252 = vmatmul.mubr.f32.gmra.mxu0 %v1484
        %v4253 = vpop.f32.mrf.mxu0
        %v4254 = vadd.f32 %v2909, %v4253
        %v4255 = vpop.f32.mrf.mxu0
        %4256 = vmatprep.mubr.f32.mxu0 %v1490
        %4257 = vmatmul.mubr.f32.gmra.mxu0 %v1489
        %v4258 = vpop.f32.mrf.mxu0
        %v4259 = vadd.f32 %v2914, %v4258
        %v4260 = vpop.f32.mrf.mxu0
        %4261 = vmatprep.mubr.f32.mxu0 %v1495
        %4262 = vmatmul.mubr.f32.gmra.mxu0 %v1494
        %v4263 = vpop.f32.mrf.mxu0
        %v4264 = vadd.f32 %v2919, %v4263
        %v4265 = vpop.f32.mrf.mxu0
        %4266 = vmatprep.mubr.f32.mxu0 %v1500
        %4267 = vmatmul.mubr.f32.gmra.mxu0 %v1499
        %v4268 = vpop.f32.mrf.mxu0
        %v4269 = vadd.f32 %v2924, %v4268
        %v4270 = vpop.f32.mrf.mxu0
        %4271 = vmatprep.mubr.f32.mxu0 %v1505
        %4272 = vmatmul.mubr.f32.gmra.mxu0 %v1504
        %v4273 = vpop.f32.mrf.mxu0
        %v4274 = vadd.f32 %v2929, %v4273
        %v4275 = vpop.f32.mrf.mxu0
        %4276 = vmatprep.mubr.f32.mxu0 %v1510
        %4277 = vmatmul.mubr.f32.gmra.mxu0 %v1509
        %v4278 = vpop.f32.mrf.mxu0
        %v4279 = vadd.f32 %v2934, %v4278
        %v4280 = vpop.f32.mrf.mxu0
        %4281 = vmatprep.mubr.f32.mxu0 %v1515
        %4282 = vmatmul.mubr.f32.gmra.mxu0 %v1514
        %v4283 = vpop.f32.mrf.mxu0
        %v4284 = vadd.f32 %v2939, %v4283
        %v4285 = vpop.f32.mrf.mxu0
        %4286 = vmatprep.mubr.f32.mxu0 %v1520
        %4287 = vmatmul.mubr.f32.gmra.mxu0 %v1519
        %v4288 = vpop.f32.mrf.mxu0
        %v4289 = vadd.f32 %v2944, %v4288
        %v4290 = vpop.f32.mrf.mxu0
        %4291 = vmatprep.mubr.f32.mxu0 %v1525
        %4292 = vmatmul.mubr.f32.gmra.mxu0 %v1524
        %v4293 = vpop.f32.mrf.mxu0
        %v4294 = vadd.f32 %v2949, %v4293
        %v4295 = vpop.f32.mrf.mxu0
        %4296 = vmatprep.mubr.f32.mxu0 %v1530
        %4297 = vmatmul.mubr.f32.gmra.mxu0 %v1529
        %v4298 = vpop.f32.mrf.mxu0
        %v4299 = vadd.f32 %v2954, %v4298
        %v4300 = vpop.f32.mrf.mxu0
        %4301 = vmatprep.mubr.f32.mxu0 %v1535
        %4302 = vmatmul.mubr.f32.gmra.mxu0 %v1534
        %v4303 = vpop.f32.mrf.mxu0
        %v4304 = vadd.f32 %v2959, %v4303
        %v4305 = vpop.f32.mrf.mxu0
        %4306 = vmatprep.mubr.f32.mxu0 %v1540
        %4307 = vmatmul.mubr.f32.gmra.mxu0 %v1539
        %v4308 = vpop.f32.mrf.mxu0
        %v4309 = vadd.f32 %v2964, %v4308
        %v4310 = vpop.f32.mrf.mxu0
        %4311 = vmatprep.mubr.f32.mxu0 %v1545
        %4312 = vmatmul.mubr.f32.gmra.mxu0 %v1544
        %v4313 = vpop.f32.mrf.mxu0
        %v4314 = vadd.f32 %v2969, %v4313
        %v4315 = vpop.f32.mrf.mxu0
        %4316 = vmatprep.mubr.f32.mxu0 %v1550
        %4317 = vmatmul.mubr.f32.gmra.mxu0 %v1549
        %v4318 = vpop.f32.mrf.mxu0
        %v4319 = vadd.f32 %v2974, %v4318
        %v4320 = vpop.f32.mrf.mxu0
        %4321 = vmatprep.mubr.f32.mxu0 %v1555
        %4322 = vmatmul.mubr.f32.gmra.mxu0 %v1554
        %v4323 = vpop.f32.mrf.mxu0
        %v4324 = vadd.f32 %v2979, %v4323
        %v4325 = vpop.f32.mrf.mxu0
        %4326 = vmatprep.mubr.f32.mxu0 %v1560
        %4327 = vmatmul.mubr.f32.gmra.mxu0 %v1559
        %v4328 = vpop.f32.mrf.mxu0
        %v4329 = vadd.f32 %v2984, %v4328
        %v4330 = vpop.f32.mrf.mxu0
        %4331 = vmatprep.mubr.f32.mxu0 %v1565
        %4332 = vmatmul.mubr.f32.gmra.mxu0 %v1564
        %v4333 = vpop.f32.mrf.mxu0
        %v4334 = vadd.f32 %v2989, %v4333
        %v4335 = vpop.f32.mrf.mxu0
        %4336 = vmatprep.mubr.f32.mxu0 %v1570
        %4337 = vmatmul.mubr.f32.gmra.mxu0 %v1569
        %v4338 = vpop.f32.mrf.mxu0
        %v4339 = vadd.f32 %v2994, %v4338
        %v4340 = vpop.f32.mrf.mxu0
        %4341 = vmatprep.mubr.f32.mxu0 %v1575
        %4342 = vmatmul.mubr.f32.gmra.mxu0 %v1574
        %v4343 = vpop.f32.mrf.mxu0
        %v4344 = vadd.f32 %v2999, %v4343
        %v4345 = vpop.f32.mrf.mxu0
        %4346 = vmatprep.mubr.f32.mxu0 %v1580
        %4347 = vmatmul.mubr.f32.gmra.mxu0 %v1579
        %v4348 = vpop.f32.mrf.mxu0
        %v4349 = vadd.f32 %v3004, %v4348
        %v4350 = vpop.f32.mrf.mxu0
        %4351 = vmatprep.mubr.f32.mxu0 %v1585
        %4352 = vmatmul.mubr.f32.gmra.mxu0 %v1584
        %v4353 = vpop.f32.mrf.mxu0
        %v4354 = vadd.f32 %v3009, %v4353
        %v4355 = vpop.f32.mrf.mxu0
        %4356 = vmatprep.mubr.f32.mxu0 %v1590
        %4357 = vmatmul.mubr.f32.gmra.mxu0 %v1589
        %v4358 = vpop.f32.mrf.mxu0
        %v4359 = vadd.f32 %v3014, %v4358
        %v4360 = vpop.f32.mrf.mxu0
        %4361 = vmatprep.mubr.f32.mxu0 %v1595
        %4362 = vmatmul.mubr.f32.gmra.mxu0 %v1594
        %v4363 = vpop.f32.mrf.mxu0
        %v4364 = vadd.f32 %v3019, %v4363
        %v4365 = vpop.f32.mrf.mxu0
        %4366 = vmatprep.mubr.f32.mxu0 %v1600
        %4367 = vmatmul.mubr.f32.gmra.mxu0 %v1599
        %v4368 = vpop.f32.mrf.mxu0
        %v4369 = vadd.f32 %v3024, %v4368
        %v4370 = vpop.f32.mrf.mxu0
        %4371 = vmatprep.mubr.f32.mxu0 %v1605
        %4372 = vmatmul.mubr.f32.gmra.mxu0 %v1604
        %v4373 = vpop.f32.mrf.mxu0
        %v4374 = vadd.f32 %v3029, %v4373
        %v4375 = vpop.f32.mrf.mxu0
        %4376 = vmatprep.mubr.f32.mxu0 %v1610
        %4377 = vmatmul.mubr.f32.gmra.mxu0 %v1609
        %v4378 = vpop.f32.mrf.mxu0
        %v4379 = vadd.f32 %v3034, %v4378
        %v4380 = vpop.f32.mrf.mxu0
        %4381 = vmatprep.mubr.f32.mxu0 %v1615
        %4382 = vmatmul.mubr.f32.gmra.mxu0 %v1614
        %v4383 = vpop.f32.mrf.mxu0
        %v4384 = vadd.f32 %v3039, %v4383
        %v4385 = vpop.f32.mrf.mxu0
        %4386 = vmatprep.mubr.f32.mxu0 %v1620
        %4387 = vmatmul.mubr.f32.gmra.mxu0 %v1619
        %v4388 = vpop.f32.mrf.mxu0
        %v4389 = vadd.f32 %v3044, %v4388
        %v4390 = vpop.f32.mrf.mxu0
        %4391 = vmatprep.mubr.f32.mxu0 %v1625
        %4392 = vmatmul.mubr.f32.gmra.mxu0 %v1624
        %v4393 = vpop.f32.mrf.mxu0
        %v4394 = vadd.f32 %v3049, %v4393
        %v4395 = vpop.f32.mrf.mxu0
        %4396 = vmatprep.mubr.f32.mxu0 %v1630
        %4397 = vmatmul.mubr.f32.gmra.mxu0 %v1629
        %v4398 = vpop.f32.mrf.mxu0
        %v4399 = vadd.f32 %v3054, %v4398
        %v4400 = vpop.f32.mrf.mxu0
        %4401 = vmatprep.mubr.f32.mxu0 %v1635
        %4402 = vmatmul.mubr.f32.gmra.mxu0 %v1634
        %v4403 = vpop.f32.mrf.mxu0
        %v4404 = vadd.f32 %v3059, %v4403
        %v4405 = vpop.f32.mrf.mxu0
        %4406 = vmatprep.mubr.f32.mxu0 %v1640
        %4407 = vmatmul.mubr.f32.gmra.mxu0 %v1639
        %v4408 = vpop.f32.mrf.mxu0
        %v4409 = vadd.f32 %v3064, %v4408
        %v4410 = vpop.f32.mrf.mxu0
        %4411 = vmatprep.mubr.f32.mxu0 %v1645
        %4412 = vmatmul.mubr.f32.gmra.mxu0 %v1644
        %v4413 = vpop.f32.mrf.mxu0
        %v4414 = vadd.f32 %v3069, %v4413
        %v4415 = vpop.f32.mrf.mxu0
        %4416 = vmatprep.mubr.f32.mxu0 %v1650
        %4417 = vmatmul.mubr.f32.gmra.mxu0 %v1649
        %v4418 = vpop.f32.mrf.mxu0
        %v4419 = vadd.f32 %v3074, %v4418
        %v4420 = vpop.f32.mrf.mxu0
        %4421 = vmatprep.mubr.f32.mxu0 %v1655
        %4422 = vmatmul.mubr.f32.gmra.mxu0 %v1654
        %v4423 = vpop.f32.mrf.mxu0
        %v4424 = vadd.f32 %v3079, %v4423
        %v4425 = vpop.f32.mrf.mxu0
        %4426 = vmatprep.mubr.f32.mxu0 %v1660
        %4427 = vmatmul.mubr.f32.gmra.mxu0 %v1659
        %v4428 = vpop.f32.mrf.mxu0
        %v4429 = vadd.f32 %v3084, %v4428
        %v4430 = vpop.f32.mrf.mxu0
        %4431 = vmatprep.mubr.f32.mxu0 %v1665
        %4432 = vmatmul.mubr.f32.gmra.mxu0 %v1664
        %v4433 = vpop.f32.mrf.mxu0
        %v4434 = vadd.f32 %v3089, %v4433
        %v4435 = vpop.f32.mrf.mxu0
        %4436 = vmatprep.mubr.f32.mxu0 %v1670
        %4437 = vmatmul.mubr.f32.gmra.mxu0 %v1669
        %v4438 = vpop.f32.mrf.mxu0
        %v4439 = vadd.f32 %v3094, %v4438
        %v4440 = vpop.f32.mrf.mxu0
        %4441 = vmatprep.mubr.f32.mxu0 %v1675
        %4442 = vmatmul.mubr.f32.gmra.mxu0 %v1674
        %v4443 = vpop.f32.mrf.mxu0
        %v4444 = vadd.f32 %v3099, %v4443
        %v4445 = vpop.f32.mrf.mxu0
        %4446 = vmatprep.mubr.f32.mxu0 %v1680
        %4447 = vmatmul.mubr.f32.gmra.mxu0 %v1679
        %v4448 = vpop.f32.mrf.mxu0
        %v4449 = vadd.f32 %v3104, %v4448
        %v4450 = vpop.f32.mrf.mxu0
        %4451 = vmatprep.mubr.f32.mxu0 %v1685
        %4452 = vmatmul.mubr.f32.gmra.mxu0 %v1684
        %v4453 = vpop.f32.mrf.mxu0
        %v4454 = vadd.f32 %v3109, %v4453
        %v4455 = vpop.f32.mrf.mxu0
        %4456 = vmatprep.mubr.f32.mxu0 %v1690
        %4457 = vmatmul.mubr.f32.gmra.mxu0 %v1689
        %v4458 = vpop.f32.mrf.mxu0
        %v4459 = vadd.f32 %v3114, %v4458
        %v4460 = vpop.f32.mrf.mxu0
        %4461 = vmatprep.mubr.f32.mxu0 %v1695
        %4462 = vmatmul.mubr.f32.gmra.mxu0 %v1694
        %v4463 = vpop.f32.mrf.mxu0
        %v4464 = vadd.f32 %v3119, %v4463
        %v4465 = vpop.f32.mrf.mxu0
        %4466 = vmatprep.mubr.f32.mxu0 %v1700
        %4467 = vmatmul.mubr.f32.gmra.mxu0 %v1699
        %v4468 = vpop.f32.mrf.mxu0
        %v4469 = vadd.f32 %v3124, %v4468
        %v4470 = vpop.f32.mrf.mxu0
        %4471 = vmatprep.mubr.f32.mxu0 %v1705
        %4472 = vmatmul.mubr.f32.gmra.mxu0 %v1704
        %v4473 = vpop.f32.mrf.mxu0
        %v4474 = vadd.f32 %v3129, %v4473
        %v4475 = vpop.f32.mrf.mxu0
        %4476 = vmatprep.mubr.f32.mxu0 %v1710
        %4477 = vmatmul.mubr.f32.gmra.mxu0 %v1709
        %v4478 = vpop.f32.mrf.mxu0
        %v4479 = vadd.f32 %v3134, %v4478
        %v4480 = vpop.f32.mrf.mxu0
        %4481 = vmatprep.mubr.f32.mxu0 %v1715
        %4482 = vmatmul.mubr.f32.gmra.mxu0 %v1714
        %v4483 = vpop.f32.mrf.mxu0
        %v4484 = vadd.f32 %v3139, %v4483
        %v4485 = vpop.f32.mrf.mxu0
        %4486 = vmatprep.mubr.f32.mxu0 %v1720
        %4487 = vmatmul.mubr.f32.gmra.mxu0 %v1719
        %v4488 = vpop.f32.mrf.mxu0
        %v4489 = vadd.f32 %v3144, %v4488
        %v4490 = vpop.f32.mrf.mxu0
        %4491 = vmatprep.mubr.f32.mxu0 %v1725
        %4492 = vmatmul.mubr.f32.gmra.mxu0 %v1724
        %v4493 = vpop.f32.mrf.mxu0
        %v4494 = vadd.f32 %v3149, %v4493
        %v4495 = vpop.f32.mrf.mxu0
        %4496 = vmatprep.mubr.f32.mxu0 %v1730
        %4497 = vmatmul.mubr.f32.gmra.mxu0 %v1729
        %v4498 = vpop.f32.mrf.mxu0
        %v4499 = vadd.f32 %v3154, %v4498
        %v4500 = vpop.f32.mrf.mxu0
        %4501 = vmatprep.mubr.f32.mxu0 %v1735
        %4502 = vmatmul.mubr.f32.gmra.mxu0 %v1734
        %v4503 = vpop.f32.mrf.mxu0
        %v4504 = vadd.f32 %v3159, %v4503
        %v4505 = vpop.f32.mrf.mxu0
        %4506 = vmatprep.mubr.f32.mxu0 %v1740
        %4507 = vmatmul.mubr.f32.gmra.mxu0 %v1739
        %v4508 = vpop.f32.mrf.mxu0
        %v4509 = vadd.f32 %v3164, %v4508
        %v4510 = vpop.f32.mrf.mxu0
        %4511 = vmatprep.mubr.f32.mxu0 %v1745
        %4512 = vmatmul.mubr.f32.gmra.mxu0 %v1744
        %v4513 = vpop.f32.mrf.mxu0
        %v4514 = vadd.f32 %v3169, %v4513
        %v4515 = vpop.f32.mrf.mxu0
        %4516 = vmatprep.mubr.f32.mxu0 %v1750
        %4517 = vmatmul.mubr.f32.gmra.mxu0 %v1749
        %v4518 = vpop.f32.mrf.mxu0
        %v4519 = vadd.f32 %v3174, %v4518
        %v4520 = vpop.f32.mrf.mxu0
        %4521 = vmatprep.mubr.f32.mxu0 %v1755
        %4522 = vmatmul.mubr.f32.gmra.mxu0 %v1754
        %v4523 = vpop.f32.mrf.mxu0
        %v4524 = vadd.f32 %v3179, %v4523
        %v4525 = vpop.f32.mrf.mxu0
        %4526 = vmatprep.mubr.f32.mxu0 %v1760
        %4527 = vmatmul.mubr.f32.gmra.mxu0 %v1759
        %v4528 = vpop.f32.mrf.mxu0
        %v4529 = vadd.f32 %v3184, %v4528
        %v4530 = vpop.f32.mrf.mxu0
        %4531 = vmatprep.mubr.f32.mxu0 %v1765
        %4532 = vmatmul.mubr.f32.gmra.mxu0 %v1764
        %v4533 = vpop.f32.mrf.mxu0
        %v4534 = vadd.f32 %v3189, %v4533
        %v4535 = vpop.f32.mrf.mxu0
        %4536 = vmatprep.mubr.f32.mxu0 %v1770
        %4537 = vmatmul.mubr.f32.gmra.mxu0 %v1769
        %v4538 = vpop.f32.mrf.mxu0
        %v4539 = vadd.f32 %v3194, %v4538
        %v4540 = vpop.f32.mrf.mxu0
        %4541 = vmatprep.mubr.f32.mxu0 %v1775
        %4542 = vmatmul.mubr.f32.gmra.mxu0 %v1774
        %v4543 = vpop.f32.mrf.mxu0
        %v4544 = vadd.f32 %v3199, %v4543
        %v4545 = vpop.f32.mrf.mxu0
        %4546 = vmatprep.mubr.f32.mxu0 %v1780
        %4547 = vmatmul.mubr.f32.gmra.mxu0 %v1779
        %v4548 = vpop.f32.mrf.mxu0
        %v4549 = vadd.f32 %v3204, %v4548
        %v4550 = vpop.f32.mrf.mxu0
        %4551 = vmatprep.mubr.f32.mxu0 %v1785
        %4552 = vmatmul.mubr.f32.gmra.mxu0 %v1784
        %v4553 = vpop.f32.mrf.mxu0
        %v4554 = vadd.f32 %v3209, %v4553
        %v4555 = vpop.f32.mrf.mxu0
        %4556 = vmatprep.mubr.f32.mxu0 %v1790
        %4557 = vmatmul.mubr.f32.gmra.mxu0 %v1789
        %v4558 = vpop.f32.mrf.mxu0
        %v4559 = vadd.f32 %v3214, %v4558
        %v4560 = vpop.f32.mrf.mxu0
        %4561 = vmatprep.mubr.f32.mxu0 %v1795
        %4562 = vmatmul.mubr.f32.gmra.mxu0 %v1794
        %v4563 = vpop.f32.mrf.mxu0
        %v4564 = vadd.f32 %v3219, %v4563
        %v4565 = vpop.f32.mrf.mxu0
        %4566 = vmatprep.mubr.f32.mxu0 %v1800
        %4567 = vmatmul.mubr.f32.gmra.mxu0 %v1799
        %v4568 = vpop.f32.mrf.mxu0
        %v4569 = vadd.f32 %v3224, %v4568
        %v4570 = vpop.f32.mrf.mxu0
        %4571 = vmatprep.mubr.f32.mxu0 %v1805
        %4572 = vmatmul.mubr.f32.gmra.mxu0 %v1804
        %v4573 = vpop.f32.mrf.mxu0
        %v4574 = vadd.f32 %v3229, %v4573
        %v4575 = vpop.f32.mrf.mxu0
        %4576 = vmatprep.mubr.f32.mxu0 %v1810
        %4577 = vmatmul.mubr.f32.gmra.mxu0 %v1809
        %v4578 = vpop.f32.mrf.mxu0
        %v4579 = vadd.f32 %v3234, %v4578
        %v4580 = vpop.f32.mrf.mxu0
        %4581 = vmatprep.mubr.f32.mxu0 %v1815
        %4582 = vmatmul.mubr.f32.gmra.mxu0 %v1814
        %v4583 = vpop.f32.mrf.mxu0
        %v4584 = vadd.f32 %v3239, %v4583
        %v4585 = vpop.f32.mrf.mxu0
        %4586 = vmatprep.mubr.f32.mxu0 %v1820
        %4587 = vmatmul.mubr.f32.gmra.mxu0 %v1819
        %v4588 = vpop.f32.mrf.mxu0
        %v4589 = vadd.f32 %v3244, %v4588
        %v4590 = vpop.f32.mrf.mxu0
        %4591 = vmatprep.mubr.f32.mxu0 %v1825
        %4592 = vmatmul.mubr.f32.gmra.mxu0 %v1824
        %v4593 = vpop.f32.mrf.mxu0
        %v4594 = vadd.f32 %v3249, %v4593
        %v4595 = vpop.f32.mrf.mxu0
        %4596 = vdwg.mxu0
        %4597 = vmatprep.subr.mxu0 0.0
        %4598 = vmatpush1.msra.mxu0 %v1906
        %4599 = vmatprep.subr.mxu0 0.0
        %4600 = vmatpush1.msra.mxu0 %v1905
        %4601 = vmatprep.subr.mxu0 0.0
        %4602 = vmatpush1.msra.mxu0 %v1904
        %4603 = vmatprep.subr.mxu0 0.0
        %4604 = vmatpush1.msra.mxu0 %v1903
        %4605 = vmatprep.subr.mxu0 0.0
        %4606 = vmatpush1.msra.mxu0 %v1902
        %4607 = vmatprep.subr.mxu0 0.0
        %4608 = vmatpush1.msra.mxu0 %v1901
        %4609 = vmatprep.subr.mxu0 0.0
        %4610 = vmatpush1.msra.mxu0 %v1900
        %4611 = vmatprep.subr.mxu0 0.0
        %4612 = vmatpush1.msra.mxu0 %v1899
        %4613 = vmatprep.subr.mxu0 0.0
        %4614 = vmatpush1.msra.mxu0 %v1898
        %4615 = vmatprep.subr.mxu0 0.0
        %4616 = vmatpush1.msra.mxu0 %v1897
        %4617 = vmatprep.subr.mxu0 0.0
        %4618 = vmatpush1.msra.mxu0 %v1896
        %4619 = vmatprep.subr.mxu0 0.0
        %4620 = vmatpush1.msra.mxu0 %v1895
        %4621 = vmatprep.subr.mxu0 0.0
        %4622 = vmatpush1.msra.mxu0 %v1894
        %4623 = vmatprep.subr.mxu0 0.0
        %4624 = vmatpush1.msra.mxu0 %v1893
        %4625 = vmatprep.subr.mxu0 0.0
        %4626 = vmatpush1.msra.mxu0 %v1892
        %4627 = vmatprep.subr.mxu0 0.0
        %4628 = vmatpush1.msra.mxu0 %v1891
        %4629 = vmatprep.subr.mxu0 0.0
        %4630 = vmatpush2.msra.mxu0 0.0
        %4631 = vmatprep.subr.mxu0 0.0
        %4632 = vmatpush2.msra.mxu0 0.0
        %4633 = vmatprep.subr.mxu0 0.0
        %4634 = vmatpush2.msra.mxu0 0.0
        %4635 = vmatprep.subr.mxu0 0.0
        %4636 = vmatpush2.msra.mxu0 0.0
        %4637 = vmatprep.subr.mxu0 0.0
        %4638 = vmatpush2.msra.mxu0 0.0
        %4639 = vmatprep.subr.mxu0 0.0
        %4640 = vmatpush2.msra.mxu0 0.0
        %4641 = vmatprep.subr.mxu0 0.0
        %4642 = vmatpush2.msra.mxu0 0.0
        %4643 = vmatprep.subr.mxu0 0.0
        %4644 = vmatpush2.msra.mxu0 0.0
        %4645 = vmatprep.subr.mxu0 0.0
        %4646 = vmatpush2.msra.mxu0 0.0
        %4647 = vmatprep.subr.mxu0 0.0
        %4648 = vmatpush2.msra.mxu0 0.0
        %4649 = vmatprep.subr.mxu0 0.0
        %4650 = vmatpush2.msra.mxu0 0.0
        %4651 = vmatprep.subr.mxu0 0.0
        %4652 = vmatpush2.msra.mxu0 0.0
        %4653 = vmatprep.subr.mxu0 0.0
        %4654 = vmatpush2.msra.mxu0 0.0
        %4655 = vmatprep.subr.mxu0 0.0
        %4656 = vmatpush2.msra.mxu0 0.0
        %4657 = vmatprep.subr.mxu0 0.0
        %4658 = vmatpush2.msra.mxu0 0.0
        %4659 = vmatprep.subr.mxu0 0.0
        %4660 = vmatpush2.msra.mxu0 0.0
        %4661 = vmatprep.mubr.f32.mxu0 0.0
        %4662 = vmatmul.mubr.f32.gmra.mxu0 %v551
        %v4663 = vpop.f32.mrf.mxu0
        %v4664 = vadd.f32 %v3319, %v4663
        %v4665 = vpop.f32.mrf.mxu0
        %4666 = vmatprep.mubr.f32.mxu0 0.0
        %4667 = vmatmul.mubr.f32.gmra.mxu0 %v556
        %v4668 = vpop.f32.mrf.mxu0
        %v4669 = vadd.f32 %v3324, %v4668
        %v4670 = vpop.f32.mrf.mxu0
        %4671 = vmatprep.mubr.f32.mxu0 0.0
        %4672 = vmatmul.mubr.f32.gmra.mxu0 %v561
        %v4673 = vpop.f32.mrf.mxu0
        %v4674 = vadd.f32 %v3329, %v4673
        %v4675 = vpop.f32.mrf.mxu0
        %4676 = vmatprep.mubr.f32.mxu0 0.0
        %4677 = vmatmul.mubr.f32.gmra.mxu0 %v566
        %v4678 = vpop.f32.mrf.mxu0
        %v4679 = vadd.f32 %v3334, %v4678
        %v4680 = vpop.f32.mrf.mxu0
        %4681 = vmatprep.mubr.f32.mxu0 0.0
        %4682 = vmatmul.mubr.f32.gmra.mxu0 %v571
        %v4683 = vpop.f32.mrf.mxu0
        %v4684 = vadd.f32 %v3339, %v4683
        %v4685 = vpop.f32.mrf.mxu0
        %4686 = vmatprep.mubr.f32.mxu0 0.0
        %4687 = vmatmul.mubr.f32.gmra.mxu0 %v576
        %v4688 = vpop.f32.mrf.mxu0
        %v4689 = vadd.f32 %v3344, %v4688
        %v4690 = vpop.f32.mrf.mxu0
        %4691 = vmatprep.mubr.f32.mxu0 0.0
        %4692 = vmatmul.mubr.f32.gmra.mxu0 %v581
        %v4693 = vpop.f32.mrf.mxu0
        %v4694 = vadd.f32 %v3349, %v4693
        %v4695 = vpop.f32.mrf.mxu0
        %4696 = vmatprep.mubr.f32.mxu0 0.0
        %4697 = vmatmul.mubr.f32.gmra.mxu0 %v586
        %v4698 = vpop.f32.mrf.mxu0
        %v4699 = vadd.f32 %v3354, %v4698
        %v4700 = vpop.f32.mrf.mxu0
        %4701 = vmatprep.mubr.f32.mxu0 0.0
        %4702 = vmatmul.mubr.f32.gmra.mxu0 %v591
        %v4703 = vpop.f32.mrf.mxu0
        %v4704 = vadd.f32 %v3359, %v4703
        %v4705 = vpop.f32.mrf.mxu0
        %4706 = vmatprep.mubr.f32.mxu0 0.0
        %4707 = vmatmul.mubr.f32.gmra.mxu0 %v596
        %v4708 = vpop.f32.mrf.mxu0
        %v4709 = vadd.f32 %v3364, %v4708
        %v4710 = vpop.f32.mrf.mxu0
        %4711 = vmatprep.mubr.f32.mxu0 0.0
        %4712 = vmatmul.mubr.f32.gmra.mxu0 %v601
        %v4713 = vpop.f32.mrf.mxu0
        %v4714 = vadd.f32 %v3369, %v4713
        %v4715 = vpop.f32.mrf.mxu0
        %4716 = vmatprep.mubr.f32.mxu0 0.0
        %4717 = vmatmul.mubr.f32.gmra.mxu0 %v606
        %v4718 = vpop.f32.mrf.mxu0
        %v4719 = vadd.f32 %v3374, %v4718
        %v4720 = vpop.f32.mrf.mxu0
        %4721 = vmatprep.mubr.f32.mxu0 0.0
        %4722 = vmatmul.mubr.f32.gmra.mxu0 %v611
        %v4723 = vpop.f32.mrf.mxu0
        %v4724 = vadd.f32 %v3379, %v4723
        %v4725 = vpop.f32.mrf.mxu0
        %4726 = vmatprep.mubr.f32.mxu0 0.0
        %4727 = vmatmul.mubr.f32.gmra.mxu0 %v616
        %v4728 = vpop.f32.mrf.mxu0
        %v4729 = vadd.f32 %v3384, %v4728
        %v4730 = vpop.f32.mrf.mxu0
        %4731 = vmatprep.mubr.f32.mxu0 0.0
        %4732 = vmatmul.mubr.f32.gmra.mxu0 %v621
        %v4733 = vpop.f32.mrf.mxu0
        %v4734 = vadd.f32 %v3389, %v4733
        %v4735 = vpop.f32.mrf.mxu0
        %4736 = vmatprep.mubr.f32.mxu0 0.0
        %4737 = vmatmul.mubr.f32.gmra.mxu0 %v626
        %v4738 = vpop.f32.mrf.mxu0
        %v4739 = vadd.f32 %v3394, %v4738
        %v4740 = vpop.f32.mrf.mxu0
        %4741 = vmatprep.mubr.f32.mxu0 0.0
        %4742 = vmatmul.mubr.f32.gmra.mxu0 %v631
        %v4743 = vpop.f32.mrf.mxu0
        %v4744 = vadd.f32 %v3399, %v4743
        %v4745 = vpop.f32.mrf.mxu0
        %4746 = vmatprep.mubr.f32.mxu0 0.0
        %4747 = vmatmul.mubr.f32.gmra.mxu0 %v636
        %v4748 = vpop.f32.mrf.mxu0
        %v4749 = vadd.f32 %v3404, %v4748
        %v4750 = vpop.f32.mrf.mxu0
        %4751 = vmatprep.mubr.f32.mxu0 0.0
        %4752 = vmatmul.mubr.f32.gmra.mxu0 %v641
        %v4753 = vpop.f32.mrf.mxu0
        %v4754 = vadd.f32 %v3409, %v4753
        %v4755 = vpop.f32.mrf.mxu0
        %4756 = vmatprep.mubr.f32.mxu0 0.0
        %4757 = vmatmul.mubr.f32.gmra.mxu0 %v646
        %v4758 = vpop.f32.mrf.mxu0
        %v4759 = vadd.f32 %v3414, %v4758
        %v4760 = vpop.f32.mrf.mxu0
        %4761 = vmatprep.mubr.f32.mxu0 0.0
        %4762 = vmatmul.mubr.f32.gmra.mxu0 %v651
        %v4763 = vpop.f32.mrf.mxu0
        %v4764 = vadd.f32 %v3419, %v4763
        %v4765 = vpop.f32.mrf.mxu0
        %4766 = vmatprep.mubr.f32.mxu0 0.0
        %4767 = vmatmul.mubr.f32.gmra.mxu0 %v656
        %v4768 = vpop.f32.mrf.mxu0
        %v4769 = vadd.f32 %v3424, %v4768
        %v4770 = vpop.f32.mrf.mxu0
        %4771 = vmatprep.mubr.f32.mxu0 0.0
        %4772 = vmatmul.mubr.f32.gmra.mxu0 %v661
        %v4773 = vpop.f32.mrf.mxu0
        %v4774 = vadd.f32 %v3429, %v4773
        %v4775 = vpop.f32.mrf.mxu0
        %4776 = vmatprep.mubr.f32.mxu0 0.0
        %4777 = vmatmul.mubr.f32.gmra.mxu0 %v666
        %v4778 = vpop.f32.mrf.mxu0
        %v4779 = vadd.f32 %v3434, %v4778
        %v4780 = vpop.f32.mrf.mxu0
        %4781 = vmatprep.mubr.f32.mxu0 0.0
        %4782 = vmatmul.mubr.f32.gmra.mxu0 %v671
        %v4783 = vpop.f32.mrf.mxu0
        %v4784 = vadd.f32 %v3439, %v4783
        %v4785 = vpop.f32.mrf.mxu0
        %4786 = vmatprep.mubr.f32.mxu0 0.0
        %4787 = vmatmul.mubr.f32.gmra.mxu0 %v676
        %v4788 = vpop.f32.mrf.mxu0
        %v4789 = vadd.f32 %v3444, %v4788
        %v4790 = vpop.f32.mrf.mxu0
        %4791 = vmatprep.mubr.f32.mxu0 0.0
        %4792 = vmatmul.mubr.f32.gmra.mxu0 %v681
        %v4793 = vpop.f32.mrf.mxu0
        %v4794 = vadd.f32 %v3449, %v4793
        %v4795 = vpop.f32.mrf.mxu0
        %4796 = vmatprep.mubr.f32.mxu0 0.0
        %4797 = vmatmul.mubr.f32.gmra.mxu0 %v686
        %v4798 = vpop.f32.mrf.mxu0
        %v4799 = vadd.f32 %v3454, %v4798
        %v4800 = vpop.f32.mrf.mxu0
        %4801 = vmatprep.mubr.f32.mxu0 0.0
        %4802 = vmatmul.mubr.f32.gmra.mxu0 %v691
        %v4803 = vpop.f32.mrf.mxu0
        %v4804 = vadd.f32 %v3459, %v4803
        %v4805 = vpop.f32.mrf.mxu0
        %4806 = vmatprep.mubr.f32.mxu0 0.0
        %4807 = vmatmul.mubr.f32.gmra.mxu0 %v696
        %v4808 = vpop.f32.mrf.mxu0
        %v4809 = vadd.f32 %v3464, %v4808
        %v4810 = vpop.f32.mrf.mxu0
        %4811 = vmatprep.mubr.f32.mxu0 0.0
        %4812 = vmatmul.mubr.f32.gmra.mxu0 %v701
        %v4813 = vpop.f32.mrf.mxu0
        %v4814 = vadd.f32 %v3469, %v4813
        %v4815 = vpop.f32.mrf.mxu0
        %4816 = vmatprep.mubr.f32.mxu0 0.0
        %4817 = vmatmul.mubr.f32.gmra.mxu0 %v706
        %v4818 = vpop.f32.mrf.mxu0
        %v4819 = vadd.f32 %v3474, %v4818
        %v4820 = vpop.f32.mrf.mxu0
        %4821 = vmatprep.mubr.f32.mxu0 0.0
        %4822 = vmatmul.mubr.f32.gmra.mxu0 %v711
        %v4823 = vpop.f32.mrf.mxu0
        %v4824 = vadd.f32 %v3479, %v4823
        %v4825 = vpop.f32.mrf.mxu0
        %4826 = vmatprep.mubr.f32.mxu0 0.0
        %4827 = vmatmul.mubr.f32.gmra.mxu0 %v716
        %v4828 = vpop.f32.mrf.mxu0
        %v4829 = vadd.f32 %v3484, %v4828
        %v4830 = vpop.f32.mrf.mxu0
        %4831 = vmatprep.mubr.f32.mxu0 0.0
        %4832 = vmatmul.mubr.f32.gmra.mxu0 %v721
        %v4833 = vpop.f32.mrf.mxu0
        %v4834 = vadd.f32 %v3489, %v4833
        %v4835 = vpop.f32.mrf.mxu0
        %4836 = vmatprep.mubr.f32.mxu0 0.0
        %4837 = vmatmul.mubr.f32.gmra.mxu0 %v726
        %v4838 = vpop.f32.mrf.mxu0
        %v4839 = vadd.f32 %v3494, %v4838
        %v4840 = vpop.f32.mrf.mxu0
        %4841 = vmatprep.mubr.f32.mxu0 0.0
        %4842 = vmatmul.mubr.f32.gmra.mxu0 %v731
        %v4843 = vpop.f32.mrf.mxu0
        %v4844 = vadd.f32 %v3499, %v4843
        %v4845 = vpop.f32.mrf.mxu0
        %4846 = vmatprep.mubr.f32.mxu0 0.0
        %4847 = vmatmul.mubr.f32.gmra.mxu0 %v736
        %v4848 = vpop.f32.mrf.mxu0
        %v4849 = vadd.f32 %v3504, %v4848
        %v4850 = vpop.f32.mrf.mxu0
        %4851 = vmatprep.mubr.f32.mxu0 0.0
        %4852 = vmatmul.mubr.f32.gmra.mxu0 %v741
        %v4853 = vpop.f32.mrf.mxu0
        %v4854 = vadd.f32 %v3509, %v4853
        %v4855 = vpop.f32.mrf.mxu0
        %4856 = vmatprep.mubr.f32.mxu0 0.0
        %4857 = vmatmul.mubr.f32.gmra.mxu0 %v746
        %v4858 = vpop.f32.mrf.mxu0
        %v4859 = vadd.f32 %v3514, %v4858
        %v4860 = vpop.f32.mrf.mxu0
        %4861 = vmatprep.mubr.f32.mxu0 0.0
        %4862 = vmatmul.mubr.f32.gmra.mxu0 %v751
        %v4863 = vpop.f32.mrf.mxu0
        %v4864 = vadd.f32 %v3519, %v4863
        %v4865 = vpop.f32.mrf.mxu0
        %4866 = vmatprep.mubr.f32.mxu0 0.0
        %4867 = vmatmul.mubr.f32.gmra.mxu0 %v756
        %v4868 = vpop.f32.mrf.mxu0
        %v4869 = vadd.f32 %v3524, %v4868
        %v4870 = vpop.f32.mrf.mxu0
        %4871 = vmatprep.mubr.f32.mxu0 0.0
        %4872 = vmatmul.mubr.f32.gmra.mxu0 %v761
        %v4873 = vpop.f32.mrf.mxu0
        %v4874 = vadd.f32 %v3529, %v4873
        %v4875 = vpop.f32.mrf.mxu0
        %4876 = vmatprep.mubr.f32.mxu0 0.0
        %4877 = vmatmul.mubr.f32.gmra.mxu0 %v766
        %v4878 = vpop.f32.mrf.mxu0
        %v4879 = vadd.f32 %v3534, %v4878
        %v4880 = vpop.f32.mrf.mxu0
        %4881 = vmatprep.mubr.f32.mxu0 0.0
        %4882 = vmatmul.mubr.f32.gmra.mxu0 %v771
        %v4883 = vpop.f32.mrf.mxu0
        %v4884 = vadd.f32 %v3539, %v4883
        %v4885 = vpop.f32.mrf.mxu0
        %4886 = vmatprep.mubr.f32.mxu0 0.0
        %4887 = vmatmul.mubr.f32.gmra.mxu0 %v776
        %v4888 = vpop.f32.mrf.mxu0
        %v4889 = vadd.f32 %v3544, %v4888
        %v4890 = vpop.f32.mrf.mxu0
        %4891 = vmatprep.mubr.f32.mxu0 0.0
        %4892 = vmatmul.mubr.f32.gmra.mxu0 %v781
        %v4893 = vpop.f32.mrf.mxu0
        %v4894 = vadd.f32 %v3549, %v4893
        %v4895 = vpop.f32.mrf.mxu0
        %4896 = vmatprep.mubr.f32.mxu0 0.0
        %4897 = vmatmul.mubr.f32.gmra.mxu0 %v786
        %v4898 = vpop.f32.mrf.mxu0
        %v4899 = vadd.f32 %v3554, %v4898
        %v4900 = vpop.f32.mrf.mxu0
        %4901 = vmatprep.mubr.f32.mxu0 0.0
        %4902 = vmatmul.mubr.f32.gmra.mxu0 %v791
        %v4903 = vpop.f32.mrf.mxu0
        %v4904 = vadd.f32 %v3559, %v4903
        %v4905 = vpop.f32.mrf.mxu0
        %4906 = vmatprep.mubr.f32.mxu0 0.0
        %4907 = vmatmul.mubr.f32.gmra.mxu0 %v796
        %v4908 = vpop.f32.mrf.mxu0
        %v4909 = vadd.f32 %v3564, %v4908
        %v4910 = vpop.f32.mrf.mxu0
        %4911 = vmatprep.mubr.f32.mxu0 0.0
        %4912 = vmatmul.mubr.f32.gmra.mxu0 %v801
        %v4913 = vpop.f32.mrf.mxu0
        %v4914 = vadd.f32 %v3569, %v4913
        %v4915 = vpop.f32.mrf.mxu0
        %4916 = vmatprep.mubr.f32.mxu0 0.0
        %4917 = vmatmul.mubr.f32.gmra.mxu0 %v806
        %v4918 = vpop.f32.mrf.mxu0
        %v4919 = vadd.f32 %v3574, %v4918
        %v4920 = vpop.f32.mrf.mxu0
        %4921 = vmatprep.mubr.f32.mxu0 0.0
        %4922 = vmatmul.mubr.f32.gmra.mxu0 %v811
        %v4923 = vpop.f32.mrf.mxu0
        %v4924 = vadd.f32 %v3579, %v4923
        %v4925 = vpop.f32.mrf.mxu0
        %4926 = vmatprep.mubr.f32.mxu0 0.0
        %4927 = vmatmul.mubr.f32.gmra.mxu0 %v816
        %v4928 = vpop.f32.mrf.mxu0
        %v4929 = vadd.f32 %v3584, %v4928
        %v4930 = vpop.f32.mrf.mxu0
        %4931 = vmatprep.mubr.f32.mxu0 0.0
        %4932 = vmatmul.mubr.f32.gmra.mxu0 %v821
        %v4933 = vpop.f32.mrf.mxu0
        %v4934 = vadd.f32 %v3589, %v4933
        %v4935 = vpop.f32.mrf.mxu0
        %4936 = vmatprep.mubr.f32.mxu0 0.0
        %4937 = vmatmul.mubr.f32.gmra.mxu0 %v826
        %v4938 = vpop.f32.mrf.mxu0
        %v4939 = vadd.f32 %v3594, %v4938
        %v4940 = vpop.f32.mrf.mxu0
        %4941 = vmatprep.mubr.f32.mxu0 0.0
        %4942 = vmatmul.mubr.f32.gmra.mxu0 %v831
        %v4943 = vpop.f32.mrf.mxu0
        %v4944 = vadd.f32 %v3599, %v4943
        %v4945 = vpop.f32.mrf.mxu0
        %4946 = vmatprep.mubr.f32.mxu0 0.0
        %4947 = vmatmul.mubr.f32.gmra.mxu0 %v836
        %v4948 = vpop.f32.mrf.mxu0
        %v4949 = vadd.f32 %v3604, %v4948
        %v4950 = vpop.f32.mrf.mxu0
        %4951 = vmatprep.mubr.f32.mxu0 0.0
        %4952 = vmatmul.mubr.f32.gmra.mxu0 %v841
        %v4953 = vpop.f32.mrf.mxu0
        %v4954 = vadd.f32 %v3609, %v4953
        %v4955 = vpop.f32.mrf.mxu0
        %4956 = vmatprep.mubr.f32.mxu0 0.0
        %4957 = vmatmul.mubr.f32.gmra.mxu0 %v846
        %v4958 = vpop.f32.mrf.mxu0
        %v4959 = vadd.f32 %v3614, %v4958
        %v4960 = vpop.f32.mrf.mxu0
        %4961 = vmatprep.mubr.f32.mxu0 0.0
        %4962 = vmatmul.mubr.f32.gmra.mxu0 %v851
        %v4963 = vpop.f32.mrf.mxu0
        %v4964 = vadd.f32 %v3619, %v4963
        %v4965 = vpop.f32.mrf.mxu0
        %4966 = vmatprep.mubr.f32.mxu0 0.0
        %4967 = vmatmul.mubr.f32.gmra.mxu0 %v856
        %v4968 = vpop.f32.mrf.mxu0
        %v4969 = vadd.f32 %v3624, %v4968
        %v4970 = vpop.f32.mrf.mxu0
        %4971 = vmatprep.mubr.f32.mxu0 0.0
        %4972 = vmatmul.mubr.f32.gmra.mxu0 %v861
        %v4973 = vpop.f32.mrf.mxu0
        %v4974 = vadd.f32 %v3629, %v4973
        %v4975 = vpop.f32.mrf.mxu0
        %4976 = vmatprep.mubr.f32.mxu0 0.0
        %4977 = vmatmul.mubr.f32.gmra.mxu0 %v866
        %v4978 = vpop.f32.mrf.mxu0
        %v4979 = vadd.f32 %v3634, %v4978
        %v4980 = vpop.f32.mrf.mxu0
        %4981 = vmatprep.mubr.f32.mxu0 0.0
        %4982 = vmatmul.mubr.f32.gmra.mxu0 %v871
        %v4983 = vpop.f32.mrf.mxu0
        %v4984 = vadd.f32 %v3639, %v4983
        %v4985 = vpop.f32.mrf.mxu0
        %4986 = vmatprep.mubr.f32.mxu0 0.0
        %4987 = vmatmul.mubr.f32.gmra.mxu0 %v876
        %v4988 = vpop.f32.mrf.mxu0
        %v4989 = vadd.f32 %v3644, %v4988
        %v4990 = vpop.f32.mrf.mxu0
        %4991 = vmatprep.mubr.f32.mxu0 0.0
        %4992 = vmatmul.mubr.f32.gmra.mxu0 %v881
        %v4993 = vpop.f32.mrf.mxu0
        %v4994 = vadd.f32 %v3649, %v4993
        %v4995 = vpop.f32.mrf.mxu0
        %4996 = vmatprep.mubr.f32.mxu0 0.0
        %4997 = vmatmul.mubr.f32.gmra.mxu0 %v886
        %v4998 = vpop.f32.mrf.mxu0
        %v4999 = vadd.f32 %v3654, %v4998
        %v5000 = vpop.f32.mrf.mxu0
        %5001 = vmatprep.mubr.f32.mxu0 0.0
        %5002 = vmatmul.mubr.f32.gmra.mxu0 %v891
        %v5003 = vpop.f32.mrf.mxu0
        %v5004 = vadd.f32 %v3659, %v5003
        %v5005 = vpop.f32.mrf.mxu0
        %5006 = vmatprep.mubr.f32.mxu0 0.0
        %5007 = vmatmul.mubr.f32.gmra.mxu0 %v896
        %v5008 = vpop.f32.mrf.mxu0
        %v5009 = vadd.f32 %v3664, %v5008
        %v5010 = vpop.f32.mrf.mxu0
        %5011 = vmatprep.mubr.f32.mxu0 0.0
        %5012 = vmatmul.mubr.f32.gmra.mxu0 %v901
        %v5013 = vpop.f32.mrf.mxu0
        %v5014 = vadd.f32 %v3669, %v5013
        %v5015 = vpop.f32.mrf.mxu0
        %5016 = vmatprep.mubr.f32.mxu0 0.0
        %5017 = vmatmul.mubr.f32.gmra.mxu0 %v906
        %v5018 = vpop.f32.mrf.mxu0
        %v5019 = vadd.f32 %v3674, %v5018
        %v5020 = vpop.f32.mrf.mxu0
        %5021 = vmatprep.mubr.f32.mxu0 0.0
        %5022 = vmatmul.mubr.f32.gmra.mxu0 %v911
        %v5023 = vpop.f32.mrf.mxu0
        %v5024 = vadd.f32 %v3679, %v5023
        %v5025 = vpop.f32.mrf.mxu0
        %5026 = vmatprep.mubr.f32.mxu0 0.0
        %5027 = vmatmul.mubr.f32.gmra.mxu0 %v916
        %v5028 = vpop.f32.mrf.mxu0
        %v5029 = vadd.f32 %v3684, %v5028
        %v5030 = vpop.f32.mrf.mxu0
        %5031 = vmatprep.mubr.f32.mxu0 0.0
        %5032 = vmatmul.mubr.f32.gmra.mxu0 %v921
        %v5033 = vpop.f32.mrf.mxu0
        %v5034 = vadd.f32 %v3689, %v5033
        %v5035 = vpop.f32.mrf.mxu0
        %5036 = vmatprep.mubr.f32.mxu0 0.0
        %5037 = vmatmul.mubr.f32.gmra.mxu0 %v926
        %v5038 = vpop.f32.mrf.mxu0
        %v5039 = vadd.f32 %v3694, %v5038
        %v5040 = vpop.f32.mrf.mxu0
        %5041 = vmatprep.mubr.f32.mxu0 0.0
        %5042 = vmatmul.mubr.f32.gmra.mxu0 %v931
        %v5043 = vpop.f32.mrf.mxu0
        %v5044 = vadd.f32 %v3699, %v5043
        %v5045 = vpop.f32.mrf.mxu0
        %5046 = vmatprep.mubr.f32.mxu0 0.0
        %5047 = vmatmul.mubr.f32.gmra.mxu0 %v936
        %v5048 = vpop.f32.mrf.mxu0
        %v5049 = vadd.f32 %v3704, %v5048
        %v5050 = vpop.f32.mrf.mxu0
        %5051 = vmatprep.mubr.f32.mxu0 0.0
        %5052 = vmatmul.mubr.f32.gmra.mxu0 %v941
        %v5053 = vpop.f32.mrf.mxu0
        %v5054 = vadd.f32 %v3709, %v5053
        %v5055 = vpop.f32.mrf.mxu0
        %5056 = vmatprep.mubr.f32.mxu0 0.0
        %5057 = vmatmul.mubr.f32.gmra.mxu0 %v946
        %v5058 = vpop.f32.mrf.mxu0
        %v5059 = vadd.f32 %v3714, %v5058
        %v5060 = vpop.f32.mrf.mxu0
        %5061 = vmatprep.mubr.f32.mxu0 0.0
        %5062 = vmatmul.mubr.f32.gmra.mxu0 %v951
        %v5063 = vpop.f32.mrf.mxu0
        %v5064 = vadd.f32 %v3719, %v5063
        %v5065 = vpop.f32.mrf.mxu0
        %5066 = vmatprep.mubr.f32.mxu0 0.0
        %5067 = vmatmul.mubr.f32.gmra.mxu0 %v956
        %v5068 = vpop.f32.mrf.mxu0
        %v5069 = vadd.f32 %v3724, %v5068
        %v5070 = vpop.f32.mrf.mxu0
        %5071 = vmatprep.mubr.f32.mxu0 0.0
        %5072 = vmatmul.mubr.f32.gmra.mxu0 %v961
        %v5073 = vpop.f32.mrf.mxu0
        %v5074 = vadd.f32 %v3729, %v5073
        %v5075 = vpop.f32.mrf.mxu0
        %5076 = vmatprep.mubr.f32.mxu0 0.0
        %5077 = vmatmul.mubr.f32.gmra.mxu0 %v966
        %v5078 = vpop.f32.mrf.mxu0
        %v5079 = vadd.f32 %v3734, %v5078
        %v5080 = vpop.f32.mrf.mxu0
        %5081 = vmatprep.mubr.f32.mxu0 0.0
        %5082 = vmatmul.mubr.f32.gmra.mxu0 %v971
        %v5083 = vpop.f32.mrf.mxu0
        %v5084 = vadd.f32 %v3739, %v5083
        %v5085 = vpop.f32.mrf.mxu0
        %5086 = vmatprep.mubr.f32.mxu0 0.0
        %5087 = vmatmul.mubr.f32.gmra.mxu0 %v976
        %v5088 = vpop.f32.mrf.mxu0
        %v5089 = vadd.f32 %v3744, %v5088
        %v5090 = vpop.f32.mrf.mxu0
        %5091 = vmatprep.mubr.f32.mxu0 0.0
        %5092 = vmatmul.mubr.f32.gmra.mxu0 %v981
        %v5093 = vpop.f32.mrf.mxu0
        %v5094 = vadd.f32 %v3749, %v5093
        %v5095 = vpop.f32.mrf.mxu0
        %5096 = vmatprep.mubr.f32.mxu0 0.0
        %5097 = vmatmul.mubr.f32.gmra.mxu0 %v986
        %v5098 = vpop.f32.mrf.mxu0
        %v5099 = vadd.f32 %v3754, %v5098
        %v5100 = vpop.f32.mrf.mxu0
        %5101 = vmatprep.mubr.f32.mxu0 0.0
        %5102 = vmatmul.mubr.f32.gmra.mxu0 %v991
        %v5103 = vpop.f32.mrf.mxu0
        %v5104 = vadd.f32 %v3759, %v5103
        %v5105 = vpop.f32.mrf.mxu0
        %5106 = vmatprep.mubr.f32.mxu0 0.0
        %5107 = vmatmul.mubr.f32.gmra.mxu0 %v996
        %v5108 = vpop.f32.mrf.mxu0
        %v5109 = vadd.f32 %v3764, %v5108
        %v5110 = vpop.f32.mrf.mxu0
        %5111 = vmatprep.mubr.f32.mxu0 0.0
        %5112 = vmatmul.mubr.f32.gmra.mxu0 %v1001
        %v5113 = vpop.f32.mrf.mxu0
        %v5114 = vadd.f32 %v3769, %v5113
        %v5115 = vpop.f32.mrf.mxu0
        %5116 = vmatprep.mubr.f32.mxu0 0.0
        %5117 = vmatmul.mubr.f32.gmra.mxu0 %v1006
        %v5118 = vpop.f32.mrf.mxu0
        %v5119 = vadd.f32 %v3774, %v5118
        %v5120 = vpop.f32.mrf.mxu0
        %5121 = vmatprep.mubr.f32.mxu0 0.0
        %5122 = vmatmul.mubr.f32.gmra.mxu0 %v1011
        %v5123 = vpop.f32.mrf.mxu0
        %v5124 = vadd.f32 %v3779, %v5123
        %v5125 = vpop.f32.mrf.mxu0
        %5126 = vmatprep.mubr.f32.mxu0 0.0
        %5127 = vmatmul.mubr.f32.gmra.mxu0 %v1016
        %v5128 = vpop.f32.mrf.mxu0
        %v5129 = vadd.f32 %v3784, %v5128
        %v5130 = vpop.f32.mrf.mxu0
        %5131 = vmatprep.mubr.f32.mxu0 0.0
        %5132 = vmatmul.mubr.f32.gmra.mxu0 %v1021
        %v5133 = vpop.f32.mrf.mxu0
        %v5134 = vadd.f32 %v3789, %v5133
        %v5135 = vpop.f32.mrf.mxu0
        %5136 = vmatprep.mubr.f32.mxu0 0.0
        %5137 = vmatmul.mubr.f32.gmra.mxu0 %v1026
        %v5138 = vpop.f32.mrf.mxu0
        %v5139 = vadd.f32 %v3794, %v5138
        %v5140 = vpop.f32.mrf.mxu0
        %5141 = vmatprep.mubr.f32.mxu0 0.0
        %5142 = vmatmul.mubr.f32.gmra.mxu0 %v1031
        %v5143 = vpop.f32.mrf.mxu0
        %v5144 = vadd.f32 %v3799, %v5143
        %v5145 = vpop.f32.mrf.mxu0
        %5146 = vmatprep.mubr.f32.mxu0 0.0
        %5147 = vmatmul.mubr.f32.gmra.mxu0 %v1036
        %v5148 = vpop.f32.mrf.mxu0
        %v5149 = vadd.f32 %v3804, %v5148
        %v5150 = vpop.f32.mrf.mxu0
        %5151 = vmatprep.mubr.f32.mxu0 0.0
        %5152 = vmatmul.mubr.f32.gmra.mxu0 %v1041
        %v5153 = vpop.f32.mrf.mxu0
        %v5154 = vadd.f32 %v3809, %v5153
        %v5155 = vpop.f32.mrf.mxu0
        %5156 = vmatprep.mubr.f32.mxu0 0.0
        %5157 = vmatmul.mubr.f32.gmra.mxu0 %v1046
        %v5158 = vpop.f32.mrf.mxu0
        %v5159 = vadd.f32 %v3814, %v5158
        %v5160 = vpop.f32.mrf.mxu0
        %5161 = vmatprep.mubr.f32.mxu0 0.0
        %5162 = vmatmul.mubr.f32.gmra.mxu0 %v1051
        %v5163 = vpop.f32.mrf.mxu0
        %v5164 = vadd.f32 %v3819, %v5163
        %v5165 = vpop.f32.mrf.mxu0
        %5166 = vmatprep.mubr.f32.mxu0 0.0
        %5167 = vmatmul.mubr.f32.gmra.mxu0 %v1056
        %v5168 = vpop.f32.mrf.mxu0
        %v5169 = vadd.f32 %v3824, %v5168
        %v5170 = vpop.f32.mrf.mxu0
        %5171 = vmatprep.mubr.f32.mxu0 0.0
        %5172 = vmatmul.mubr.f32.gmra.mxu0 %v1061
        %v5173 = vpop.f32.mrf.mxu0
        %v5174 = vadd.f32 %v3829, %v5173
        %v5175 = vpop.f32.mrf.mxu0
        %5176 = vmatprep.mubr.f32.mxu0 0.0
        %5177 = vmatmul.mubr.f32.gmra.mxu0 %v1066
        %v5178 = vpop.f32.mrf.mxu0
        %v5179 = vadd.f32 %v3834, %v5178
        %v5180 = vpop.f32.mrf.mxu0
        %5181 = vmatprep.mubr.f32.mxu0 0.0
        %5182 = vmatmul.mubr.f32.gmra.mxu0 %v1071
        %v5183 = vpop.f32.mrf.mxu0
        %v5184 = vadd.f32 %v3839, %v5183
        %v5185 = vpop.f32.mrf.mxu0
        %5186 = vmatprep.mubr.f32.mxu0 0.0
        %5187 = vmatmul.mubr.f32.gmra.mxu0 %v1076
        %v5188 = vpop.f32.mrf.mxu0
        %v5189 = vadd.f32 %v3844, %v5188
        %v5190 = vpop.f32.mrf.mxu0
        %5191 = vmatprep.mubr.f32.mxu0 0.0
        %5192 = vmatmul.mubr.f32.gmra.mxu0 %v1081
        %v5193 = vpop.f32.mrf.mxu0
        %v5194 = vadd.f32 %v3849, %v5193
        %v5195 = vpop.f32.mrf.mxu0
        %5196 = vmatprep.mubr.f32.mxu0 0.0
        %5197 = vmatmul.mubr.f32.gmra.mxu0 %v1086
        %v5198 = vpop.f32.mrf.mxu0
        %v5199 = vadd.f32 %v3854, %v5198
        %v5200 = vpop.f32.mrf.mxu0
        %5201 = vmatprep.mubr.f32.mxu0 0.0
        %5202 = vmatmul.mubr.f32.gmra.mxu0 %v1091
        %v5203 = vpop.f32.mrf.mxu0
        %v5204 = vadd.f32 %v3859, %v5203
        %v5205 = vpop.f32.mrf.mxu0
        %5206 = vmatprep.mubr.f32.mxu0 0.0
        %5207 = vmatmul.mubr.f32.gmra.mxu0 %v1096
        %v5208 = vpop.f32.mrf.mxu0
        %v5209 = vadd.f32 %v3864, %v5208
        %v5210 = vpop.f32.mrf.mxu0
        %5211 = vmatprep.mubr.f32.mxu0 0.0
        %5212 = vmatmul.mubr.f32.gmra.mxu0 %v1101
        %v5213 = vpop.f32.mrf.mxu0
        %v5214 = vadd.f32 %v3869, %v5213
        %v5215 = vpop.f32.mrf.mxu0
        %5216 = vmatprep.mubr.f32.mxu0 0.0
        %5217 = vmatmul.mubr.f32.gmra.mxu0 %v1106
        %v5218 = vpop.f32.mrf.mxu0
        %v5219 = vadd.f32 %v3874, %v5218
        %v5220 = vpop.f32.mrf.mxu0
        %5221 = vmatprep.mubr.f32.mxu0 0.0
        %5222 = vmatmul.mubr.f32.gmra.mxu0 %v1111
        %v5223 = vpop.f32.mrf.mxu0
        %v5224 = vadd.f32 %v3879, %v5223
        %v5225 = vpop.f32.mrf.mxu0
        %5226 = vmatprep.mubr.f32.mxu0 0.0
        %5227 = vmatmul.mubr.f32.gmra.mxu0 %v1116
        %v5228 = vpop.f32.mrf.mxu0
        %v5229 = vadd.f32 %v3884, %v5228
        %v5230 = vpop.f32.mrf.mxu0
        %5231 = vmatprep.mubr.f32.mxu0 0.0
        %5232 = vmatmul.mubr.f32.gmra.mxu0 %v1121
        %v5233 = vpop.f32.mrf.mxu0
        %v5234 = vadd.f32 %v3889, %v5233
        %v5235 = vpop.f32.mrf.mxu0
        %5236 = vmatprep.mubr.f32.mxu0 0.0
        %5237 = vmatmul.mubr.f32.gmra.mxu0 %v1126
        %v5238 = vpop.f32.mrf.mxu0
        %v5239 = vadd.f32 %v3894, %v5238
        %v5240 = vpop.f32.mrf.mxu0
        %5241 = vmatprep.mubr.f32.mxu0 0.0
        %5242 = vmatmul.mubr.f32.gmra.mxu0 %v1131
        %v5243 = vpop.f32.mrf.mxu0
        %v5244 = vadd.f32 %v3899, %v5243
        %v5245 = vpop.f32.mrf.mxu0
        %5246 = vmatprep.mubr.f32.mxu0 0.0
        %5247 = vmatmul.mubr.f32.gmra.mxu0 %v1136
        %v5248 = vpop.f32.mrf.mxu0
        %v5249 = vadd.f32 %v3904, %v5248
        %v5250 = vpop.f32.mrf.mxu0
        %5251 = vmatprep.mubr.f32.mxu0 0.0
        %5252 = vmatmul.mubr.f32.gmra.mxu0 %v1141
        %v5253 = vpop.f32.mrf.mxu0
        %v5254 = vadd.f32 %v3909, %v5253
        %v5255 = vpop.f32.mrf.mxu0
        %5256 = vmatprep.mubr.f32.mxu0 0.0
        %5257 = vmatmul.mubr.f32.gmra.mxu0 %v1146
        %v5258 = vpop.f32.mrf.mxu0
        %v5259 = vadd.f32 %v3914, %v5258
        %v5260 = vpop.f32.mrf.mxu0
        %5261 = vmatprep.mubr.f32.mxu0 0.0
        %5262 = vmatmul.mubr.f32.gmra.mxu0 %v1151
        %v5263 = vpop.f32.mrf.mxu0
        %v5264 = vadd.f32 %v3919, %v5263
        %v5265 = vpop.f32.mrf.mxu0
        %5266 = vmatprep.mubr.f32.mxu0 0.0
        %5267 = vmatmul.mubr.f32.gmra.mxu0 %v1156
        %v5268 = vpop.f32.mrf.mxu0
        %v5269 = vadd.f32 %v3924, %v5268
        %v5270 = vpop.f32.mrf.mxu0
        %5271 = vmatprep.mubr.f32.mxu0 0.0
        %5272 = vmatmul.mubr.f32.gmra.mxu0 %v1161
        %v5273 = vpop.f32.mrf.mxu0
        %v5274 = vadd.f32 %v3929, %v5273
        %v5275 = vpop.f32.mrf.mxu0
        %5276 = vmatprep.mubr.f32.mxu0 0.0
        %5277 = vmatmul.mubr.f32.gmra.mxu0 %v1166
        %v5278 = vpop.f32.mrf.mxu0
        %v5279 = vadd.f32 %v3934, %v5278
        %v5280 = vpop.f32.mrf.mxu0
        %5281 = vmatprep.mubr.f32.mxu0 0.0
        %5282 = vmatmul.mubr.f32.gmra.mxu0 %v1171
        %v5283 = vpop.f32.mrf.mxu0
        %v5284 = vadd.f32 %v3939, %v5283
        %v5285 = vpop.f32.mrf.mxu0
        %5286 = vmatprep.mubr.f32.mxu0 0.0
        %5287 = vmatmul.mubr.f32.gmra.mxu0 %v1176
        %v5288 = vpop.f32.mrf.mxu0
        %v5289 = vadd.f32 %v3944, %v5288
        %v5290 = vpop.f32.mrf.mxu0
        %5291 = vmatprep.mubr.f32.mxu0 0.0
        %5292 = vmatmul.mubr.f32.gmra.mxu0 %v1181
        %v5293 = vpop.f32.mrf.mxu0
        %v5294 = vadd.f32 %v3949, %v5293
        %v5295 = vpop.f32.mrf.mxu0
        %5296 = vmatprep.mubr.f32.mxu0 0.0
        %5297 = vmatmul.mubr.f32.gmra.mxu0 %v1186
        %v5298 = vpop.f32.mrf.mxu0
        %v5299 = vadd.f32 %v3954, %v5298
        %v5300 = vpop.f32.mrf.mxu0
        %5301 = vmatprep.mubr.f32.mxu0 0.0
        %5302 = vmatmul.mubr.f32.gmra.mxu0 %v1191
        %v5303 = vpop.f32.mrf.mxu0
        %v5304 = vadd.f32 %v3959, %v5303
        %v5305 = vpop.f32.mrf.mxu0
        %5306 = vmatprep.mubr.f32.mxu0 0.0
        %5307 = vmatmul.mubr.f32.gmra.mxu0 %v1196
        %v5308 = vpop.f32.mrf.mxu0
        %v5309 = vadd.f32 %v3964, %v5308
        %v5310 = vpop.f32.mrf.mxu0
        %5311 = vmatprep.mubr.f32.mxu0 0.0
        %5312 = vmatmul.mubr.f32.gmra.mxu0 %v1201
        %v5313 = vpop.f32.mrf.mxu0
        %v5314 = vadd.f32 %v3969, %v5313
        %v5315 = vpop.f32.mrf.mxu0
        %5316 = vmatprep.mubr.f32.mxu0 0.0
        %5317 = vmatmul.mubr.f32.gmra.mxu0 %v1206
        %v5318 = vpop.f32.mrf.mxu0
        %v5319 = vadd.f32 %v3974, %v5318
        %v5320 = vpop.f32.mrf.mxu0
        %5321 = vmatprep.mubr.f32.mxu0 0.0
        %5322 = vmatmul.mubr.f32.gmra.mxu0 %v1211
        %v5323 = vpop.f32.mrf.mxu0
        %v5324 = vadd.f32 %v3979, %v5323
        %v5325 = vpop.f32.mrf.mxu0
        %5326 = vmatprep.mubr.f32.mxu0 0.0
        %5327 = vmatmul.mubr.f32.gmra.mxu0 %v1216
        %v5328 = vpop.f32.mrf.mxu0
        %v5329 = vadd.f32 %v3984, %v5328
        %v5330 = vpop.f32.mrf.mxu0
        %5331 = vmatprep.mubr.f32.mxu0 0.0
        %5332 = vmatmul.mubr.f32.gmra.mxu0 %v1221
        %v5333 = vpop.f32.mrf.mxu0
        %v5334 = vadd.f32 %v3989, %v5333
        %v5335 = vpop.f32.mrf.mxu0
        %5336 = vmatprep.mubr.f32.mxu0 0.0
        %5337 = vmatmul.mubr.f32.gmra.mxu0 %v1226
        %v5338 = vpop.f32.mrf.mxu0
        %v5339 = vadd.f32 %v3994, %v5338
        %v5340 = vpop.f32.mrf.mxu0
        %5341 = vmatprep.mubr.f32.mxu0 0.0
        %5342 = vmatmul.mubr.f32.gmra.mxu0 %v1231
        %v5343 = vpop.f32.mrf.mxu0
        %v5344 = vadd.f32 %v3999, %v5343
        %v5345 = vpop.f32.mrf.mxu0
        %5346 = vmatprep.mubr.f32.mxu0 0.0
        %5347 = vmatmul.mubr.f32.gmra.mxu0 %v1236
        %v5348 = vpop.f32.mrf.mxu0
        %v5349 = vadd.f32 %v4004, %v5348
        %v5350 = vpop.f32.mrf.mxu0
        %5351 = vmatprep.mubr.f32.mxu0 0.0
        %5352 = vmatmul.mubr.f32.gmra.mxu0 %v1241
        %v5353 = vpop.f32.mrf.mxu0
        %v5354 = vadd.f32 %v4009, %v5353
        %v5355 = vpop.f32.mrf.mxu0
        %5356 = vmatprep.mubr.f32.mxu0 0.0
        %5357 = vmatmul.mubr.f32.gmra.mxu0 %v1246
        %v5358 = vpop.f32.mrf.mxu0
        %v5359 = vadd.f32 %v4014, %v5358
        %v5360 = vpop.f32.mrf.mxu0
        %5361 = vmatprep.mubr.f32.mxu0 0.0
        %5362 = vmatmul.mubr.f32.gmra.mxu0 %v1251
        %v5363 = vpop.f32.mrf.mxu0
        %v5364 = vadd.f32 %v4019, %v5363
        %v5365 = vpop.f32.mrf.mxu0
        %5366 = vmatprep.mubr.f32.mxu0 0.0
        %5367 = vmatmul.mubr.f32.gmra.mxu0 %v1256
        %v5368 = vpop.f32.mrf.mxu0
        %v5369 = vadd.f32 %v4024, %v5368
        %v5370 = vpop.f32.mrf.mxu0
        %5371 = vmatprep.mubr.f32.mxu0 0.0
        %5372 = vmatmul.mubr.f32.gmra.mxu0 %v1261
        %v5373 = vpop.f32.mrf.mxu0
        %v5374 = vadd.f32 %v4029, %v5373
        %v5375 = vpop.f32.mrf.mxu0
        %5376 = vmatprep.mubr.f32.mxu0 0.0
        %5377 = vmatmul.mubr.f32.gmra.mxu0 %v1266
        %v5378 = vpop.f32.mrf.mxu0
        %v5379 = vadd.f32 %v4034, %v5378
        %v5380 = vpop.f32.mrf.mxu0
        %5381 = vmatprep.mubr.f32.mxu0 0.0
        %5382 = vmatmul.mubr.f32.gmra.mxu0 %v1271
        %v5383 = vpop.f32.mrf.mxu0
        %v5384 = vadd.f32 %v4039, %v5383
        %v5385 = vpop.f32.mrf.mxu0
        %5386 = vmatprep.mubr.f32.mxu0 0.0
        %5387 = vmatmul.mubr.f32.gmra.mxu0 %v1276
        %v5388 = vpop.f32.mrf.mxu0
        %v5389 = vadd.f32 %v4044, %v5388
        %v5390 = vpop.f32.mrf.mxu0
        %5391 = vmatprep.mubr.f32.mxu0 0.0
        %5392 = vmatmul.mubr.f32.gmra.mxu0 %v1281
        %v5393 = vpop.f32.mrf.mxu0
        %v5394 = vadd.f32 %v4049, %v5393
        %v5395 = vpop.f32.mrf.mxu0
        %5396 = vmatprep.mubr.f32.mxu0 0.0
        %5397 = vmatmul.mubr.f32.gmra.mxu0 %v1286
        %v5398 = vpop.f32.mrf.mxu0
        %v5399 = vadd.f32 %v4054, %v5398
        %v5400 = vpop.f32.mrf.mxu0
        %5401 = vmatprep.mubr.f32.mxu0 0.0
        %5402 = vmatmul.mubr.f32.gmra.mxu0 %v1291
        %v5403 = vpop.f32.mrf.mxu0
        %v5404 = vadd.f32 %v4059, %v5403
        %v5405 = vpop.f32.mrf.mxu0
        %5406 = vmatprep.mubr.f32.mxu0 0.0
        %5407 = vmatmul.mubr.f32.gmra.mxu0 %v1296
        %v5408 = vpop.f32.mrf.mxu0
        %v5409 = vadd.f32 %v4064, %v5408
        %v5410 = vpop.f32.mrf.mxu0
        %5411 = vmatprep.mubr.f32.mxu0 0.0
        %5412 = vmatmul.mubr.f32.gmra.mxu0 %v1301
        %v5413 = vpop.f32.mrf.mxu0
        %v5414 = vadd.f32 %v4069, %v5413
        %v5415 = vpop.f32.mrf.mxu0
        %5416 = vmatprep.mubr.f32.mxu0 0.0
        %5417 = vmatmul.mubr.f32.gmra.mxu0 %v1306
        %v5418 = vpop.f32.mrf.mxu0
        %v5419 = vadd.f32 %v4074, %v5418
        %v5420 = vpop.f32.mrf.mxu0
        %5421 = vmatprep.mubr.f32.mxu0 0.0
        %5422 = vmatmul.mubr.f32.gmra.mxu0 %v1311
        %v5423 = vpop.f32.mrf.mxu0
        %v5424 = vadd.f32 %v4079, %v5423
        %v5425 = vpop.f32.mrf.mxu0
        %5426 = vmatprep.mubr.f32.mxu0 0.0
        %5427 = vmatmul.mubr.f32.gmra.mxu0 %v1316
        %v5428 = vpop.f32.mrf.mxu0
        %v5429 = vadd.f32 %v4084, %v5428
        %v5430 = vpop.f32.mrf.mxu0
        %5431 = vmatprep.mubr.f32.mxu0 0.0
        %5432 = vmatmul.mubr.f32.gmra.mxu0 %v1321
        %v5433 = vpop.f32.mrf.mxu0
        %v5434 = vadd.f32 %v4089, %v5433
        %v5435 = vpop.f32.mrf.mxu0
        %5436 = vmatprep.mubr.f32.mxu0 0.0
        %5437 = vmatmul.mubr.f32.gmra.mxu0 %v1326
        %v5438 = vpop.f32.mrf.mxu0
        %v5439 = vadd.f32 %v4094, %v5438
        %v5440 = vpop.f32.mrf.mxu0
        %5441 = vmatprep.mubr.f32.mxu0 0.0
        %5442 = vmatmul.mubr.f32.gmra.mxu0 %v1331
        %v5443 = vpop.f32.mrf.mxu0
        %v5444 = vadd.f32 %v4099, %v5443
        %v5445 = vpop.f32.mrf.mxu0
        %5446 = vmatprep.mubr.f32.mxu0 0.0
        %5447 = vmatmul.mubr.f32.gmra.mxu0 %v1336
        %v5448 = vpop.f32.mrf.mxu0
        %v5449 = vadd.f32 %v4104, %v5448
        %v5450 = vpop.f32.mrf.mxu0
        %5451 = vmatprep.mubr.f32.mxu0 0.0
        %5452 = vmatmul.mubr.f32.gmra.mxu0 %v1341
        %v5453 = vpop.f32.mrf.mxu0
        %v5454 = vadd.f32 %v4109, %v5453
        %v5455 = vpop.f32.mrf.mxu0
        %5456 = vmatprep.mubr.f32.mxu0 0.0
        %5457 = vmatmul.mubr.f32.gmra.mxu0 %v1346
        %v5458 = vpop.f32.mrf.mxu0
        %v5459 = vadd.f32 %v4114, %v5458
        %v5460 = vpop.f32.mrf.mxu0
        %5461 = vmatprep.mubr.f32.mxu0 0.0
        %5462 = vmatmul.mubr.f32.gmra.mxu0 %v1351
        %v5463 = vpop.f32.mrf.mxu0
        %v5464 = vadd.f32 %v4119, %v5463
        %v5465 = vpop.f32.mrf.mxu0
        %5466 = vmatprep.mubr.f32.mxu0 0.0
        %5467 = vmatmul.mubr.f32.gmra.mxu0 %v1356
        %v5468 = vpop.f32.mrf.mxu0
        %v5469 = vadd.f32 %v4124, %v5468
        %v5470 = vpop.f32.mrf.mxu0
        %5471 = vmatprep.mubr.f32.mxu0 0.0
        %5472 = vmatmul.mubr.f32.gmra.mxu0 %v1361
        %v5473 = vpop.f32.mrf.mxu0
        %v5474 = vadd.f32 %v4129, %v5473
        %v5475 = vpop.f32.mrf.mxu0
        %5476 = vmatprep.mubr.f32.mxu0 0.0
        %5477 = vmatmul.mubr.f32.gmra.mxu0 %v1366
        %v5478 = vpop.f32.mrf.mxu0
        %v5479 = vadd.f32 %v4134, %v5478
        %v5480 = vpop.f32.mrf.mxu0
        %5481 = vmatprep.mubr.f32.mxu0 0.0
        %5482 = vmatmul.mubr.f32.gmra.mxu0 %v1371
        %v5483 = vpop.f32.mrf.mxu0
        %v5484 = vadd.f32 %v4139, %v5483
        %v5485 = vpop.f32.mrf.mxu0
        %5486 = vmatprep.mubr.f32.mxu0 0.0
        %5487 = vmatmul.mubr.f32.gmra.mxu0 %v1376
        %v5488 = vpop.f32.mrf.mxu0
        %v5489 = vadd.f32 %v4144, %v5488
        %v5490 = vpop.f32.mrf.mxu0
        %5491 = vmatprep.mubr.f32.mxu0 0.0
        %5492 = vmatmul.mubr.f32.gmra.mxu0 %v1381
        %v5493 = vpop.f32.mrf.mxu0
        %v5494 = vadd.f32 %v4149, %v5493
        %v5495 = vpop.f32.mrf.mxu0
        %5496 = vmatprep.mubr.f32.mxu0 0.0
        %5497 = vmatmul.mubr.f32.gmra.mxu0 %v1386
        %v5498 = vpop.f32.mrf.mxu0
        %v5499 = vadd.f32 %v4154, %v5498
        %v5500 = vpop.f32.mrf.mxu0
        %5501 = vmatprep.mubr.f32.mxu0 0.0
        %5502 = vmatmul.mubr.f32.gmra.mxu0 %v1391
        %v5503 = vpop.f32.mrf.mxu0
        %v5504 = vadd.f32 %v4159, %v5503
        %v5505 = vpop.f32.mrf.mxu0
        %5506 = vmatprep.mubr.f32.mxu0 0.0
        %5507 = vmatmul.mubr.f32.gmra.mxu0 %v1396
        %v5508 = vpop.f32.mrf.mxu0
        %v5509 = vadd.f32 %v4164, %v5508
        %v5510 = vpop.f32.mrf.mxu0
        %5511 = vmatprep.mubr.f32.mxu0 0.0
        %5512 = vmatmul.mubr.f32.gmra.mxu0 %v1401
        %v5513 = vpop.f32.mrf.mxu0
        %v5514 = vadd.f32 %v4169, %v5513
        %v5515 = vpop.f32.mrf.mxu0
        %5516 = vmatprep.mubr.f32.mxu0 0.0
        %5517 = vmatmul.mubr.f32.gmra.mxu0 %v1406
        %v5518 = vpop.f32.mrf.mxu0
        %v5519 = vadd.f32 %v4174, %v5518
        %v5520 = vpop.f32.mrf.mxu0
        %5521 = vmatprep.mubr.f32.mxu0 0.0
        %5522 = vmatmul.mubr.f32.gmra.mxu0 %v1411
        %v5523 = vpop.f32.mrf.mxu0
        %v5524 = vadd.f32 %v4179, %v5523
        %v5525 = vpop.f32.mrf.mxu0
        %5526 = vmatprep.mubr.f32.mxu0 0.0
        %5527 = vmatmul.mubr.f32.gmra.mxu0 %v1416
        %v5528 = vpop.f32.mrf.mxu0
        %v5529 = vadd.f32 %v4184, %v5528
        %v5530 = vpop.f32.mrf.mxu0
        %5531 = vmatprep.mubr.f32.mxu0 0.0
        %5532 = vmatmul.mubr.f32.gmra.mxu0 %v1421
        %v5533 = vpop.f32.mrf.mxu0
        %v5534 = vadd.f32 %v4189, %v5533
        %v5535 = vpop.f32.mrf.mxu0
        %5536 = vmatprep.mubr.f32.mxu0 0.0
        %5537 = vmatmul.mubr.f32.gmra.mxu0 %v1426
        %v5538 = vpop.f32.mrf.mxu0
        %v5539 = vadd.f32 %v4194, %v5538
        %v5540 = vpop.f32.mrf.mxu0
        %5541 = vmatprep.mubr.f32.mxu0 0.0
        %5542 = vmatmul.mubr.f32.gmra.mxu0 %v1431
        %v5543 = vpop.f32.mrf.mxu0
        %v5544 = vadd.f32 %v4199, %v5543
        %v5545 = vpop.f32.mrf.mxu0
        %5546 = vmatprep.mubr.f32.mxu0 0.0
        %5547 = vmatmul.mubr.f32.gmra.mxu0 %v1436
        %v5548 = vpop.f32.mrf.mxu0
        %v5549 = vadd.f32 %v4204, %v5548
        %v5550 = vpop.f32.mrf.mxu0
        %5551 = vmatprep.mubr.f32.mxu0 0.0
        %5552 = vmatmul.mubr.f32.gmra.mxu0 %v1441
        %v5553 = vpop.f32.mrf.mxu0
        %v5554 = vadd.f32 %v4209, %v5553
        %v5555 = vpop.f32.mrf.mxu0
        %5556 = vmatprep.mubr.f32.mxu0 0.0
        %5557 = vmatmul.mubr.f32.gmra.mxu0 %v1446
        %v5558 = vpop.f32.mrf.mxu0
        %v5559 = vadd.f32 %v4214, %v5558
        %v5560 = vpop.f32.mrf.mxu0
        %5561 = vmatprep.mubr.f32.mxu0 0.0
        %5562 = vmatmul.mubr.f32.gmra.mxu0 %v1451
        %v5563 = vpop.f32.mrf.mxu0
        %v5564 = vadd.f32 %v4219, %v5563
        %v5565 = vpop.f32.mrf.mxu0
        %5566 = vmatprep.mubr.f32.mxu0 0.0
        %5567 = vmatmul.mubr.f32.gmra.mxu0 %v1456
        %v5568 = vpop.f32.mrf.mxu0
        %v5569 = vadd.f32 %v4224, %v5568
        %v5570 = vpop.f32.mrf.mxu0
        %5571 = vmatprep.mubr.f32.mxu0 0.0
        %5572 = vmatmul.mubr.f32.gmra.mxu0 %v1461
        %v5573 = vpop.f32.mrf.mxu0
        %v5574 = vadd.f32 %v4229, %v5573
        %v5575 = vpop.f32.mrf.mxu0
        %5576 = vmatprep.mubr.f32.mxu0 0.0
        %5577 = vmatmul.mubr.f32.gmra.mxu0 %v1466
        %v5578 = vpop.f32.mrf.mxu0
        %v5579 = vadd.f32 %v4234, %v5578
        %v5580 = vpop.f32.mrf.mxu0
        %5581 = vmatprep.mubr.f32.mxu0 0.0
        %5582 = vmatmul.mubr.f32.gmra.mxu0 %v1471
        %v5583 = vpop.f32.mrf.mxu0
        %v5584 = vadd.f32 %v4239, %v5583
        %v5585 = vpop.f32.mrf.mxu0
        %5586 = vmatprep.mubr.f32.mxu0 0.0
        %5587 = vmatmul.mubr.f32.gmra.mxu0 %v1476
        %v5588 = vpop.f32.mrf.mxu0
        %v5589 = vadd.f32 %v4244, %v5588
        %v5590 = vpop.f32.mrf.mxu0
        %5591 = vmatprep.mubr.f32.mxu0 0.0
        %5592 = vmatmul.mubr.f32.gmra.mxu0 %v1481
        %v5593 = vpop.f32.mrf.mxu0
        %v5594 = vadd.f32 %v4249, %v5593
        %v5595 = vpop.f32.mrf.mxu0
        %5596 = vmatprep.mubr.f32.mxu0 0.0
        %5597 = vmatmul.mubr.f32.gmra.mxu0 %v1486
        %v5598 = vpop.f32.mrf.mxu0
        %v5599 = vadd.f32 %v4254, %v5598
        %v5600 = vpop.f32.mrf.mxu0
        %5601 = vmatprep.mubr.f32.mxu0 0.0
        %5602 = vmatmul.mubr.f32.gmra.mxu0 %v1491
        %v5603 = vpop.f32.mrf.mxu0
        %v5604 = vadd.f32 %v4259, %v5603
        %v5605 = vpop.f32.mrf.mxu0
        %5606 = vmatprep.mubr.f32.mxu0 0.0
        %5607 = vmatmul.mubr.f32.gmra.mxu0 %v1496
        %v5608 = vpop.f32.mrf.mxu0
        %v5609 = vadd.f32 %v4264, %v5608
        %v5610 = vpop.f32.mrf.mxu0
        %5611 = vmatprep.mubr.f32.mxu0 0.0
        %5612 = vmatmul.mubr.f32.gmra.mxu0 %v1501
        %v5613 = vpop.f32.mrf.mxu0
        %v5614 = vadd.f32 %v4269, %v5613
        %v5615 = vpop.f32.mrf.mxu0
        %5616 = vmatprep.mubr.f32.mxu0 0.0
        %5617 = vmatmul.mubr.f32.gmra.mxu0 %v1506
        %v5618 = vpop.f32.mrf.mxu0
        %v5619 = vadd.f32 %v4274, %v5618
        %v5620 = vpop.f32.mrf.mxu0
        %5621 = vmatprep.mubr.f32.mxu0 0.0
        %5622 = vmatmul.mubr.f32.gmra.mxu0 %v1511
        %v5623 = vpop.f32.mrf.mxu0
        %v5624 = vadd.f32 %v4279, %v5623
        %v5625 = vpop.f32.mrf.mxu0
        %5626 = vmatprep.mubr.f32.mxu0 0.0
        %5627 = vmatmul.mubr.f32.gmra.mxu0 %v1516
        %v5628 = vpop.f32.mrf.mxu0
        %v5629 = vadd.f32 %v4284, %v5628
        %v5630 = vpop.f32.mrf.mxu0
        %5631 = vmatprep.mubr.f32.mxu0 0.0
        %5632 = vmatmul.mubr.f32.gmra.mxu0 %v1521
        %v5633 = vpop.f32.mrf.mxu0
        %v5634 = vadd.f32 %v4289, %v5633
        %v5635 = vpop.f32.mrf.mxu0
        %5636 = vmatprep.mubr.f32.mxu0 0.0
        %5637 = vmatmul.mubr.f32.gmra.mxu0 %v1526
        %v5638 = vpop.f32.mrf.mxu0
        %v5639 = vadd.f32 %v4294, %v5638
        %v5640 = vpop.f32.mrf.mxu0
        %5641 = vmatprep.mubr.f32.mxu0 0.0
        %5642 = vmatmul.mubr.f32.gmra.mxu0 %v1531
        %v5643 = vpop.f32.mrf.mxu0
        %v5644 = vadd.f32 %v4299, %v5643
        %v5645 = vpop.f32.mrf.mxu0
        %5646 = vmatprep.mubr.f32.mxu0 0.0
        %5647 = vmatmul.mubr.f32.gmra.mxu0 %v1536
        %v5648 = vpop.f32.mrf.mxu0
        %v5649 = vadd.f32 %v4304, %v5648
        %v5650 = vpop.f32.mrf.mxu0
        %5651 = vmatprep.mubr.f32.mxu0 0.0
        %5652 = vmatmul.mubr.f32.gmra.mxu0 %v1541
        %v5653 = vpop.f32.mrf.mxu0
        %v5654 = vadd.f32 %v4309, %v5653
        %v5655 = vpop.f32.mrf.mxu0
        %5656 = vmatprep.mubr.f32.mxu0 0.0
        %5657 = vmatmul.mubr.f32.gmra.mxu0 %v1546
        %v5658 = vpop.f32.mrf.mxu0
        %v5659 = vadd.f32 %v4314, %v5658
        %v5660 = vpop.f32.mrf.mxu0
        %5661 = vmatprep.mubr.f32.mxu0 0.0
        %5662 = vmatmul.mubr.f32.gmra.mxu0 %v1551
        %v5663 = vpop.f32.mrf.mxu0
        %v5664 = vadd.f32 %v4319, %v5663
        %v5665 = vpop.f32.mrf.mxu0
        %5666 = vmatprep.mubr.f32.mxu0 0.0
        %5667 = vmatmul.mubr.f32.gmra.mxu0 %v1556
        %v5668 = vpop.f32.mrf.mxu0
        %v5669 = vadd.f32 %v4324, %v5668
        %v5670 = vpop.f32.mrf.mxu0
        %5671 = vmatprep.mubr.f32.mxu0 0.0
        %5672 = vmatmul.mubr.f32.gmra.mxu0 %v1561
        %v5673 = vpop.f32.mrf.mxu0
        %v5674 = vadd.f32 %v4329, %v5673
        %v5675 = vpop.f32.mrf.mxu0
        %5676 = vmatprep.mubr.f32.mxu0 0.0
        %5677 = vmatmul.mubr.f32.gmra.mxu0 %v1566
        %v5678 = vpop.f32.mrf.mxu0
        %v5679 = vadd.f32 %v4334, %v5678
        %v5680 = vpop.f32.mrf.mxu0
        %5681 = vmatprep.mubr.f32.mxu0 0.0
        %5682 = vmatmul.mubr.f32.gmra.mxu0 %v1571
        %v5683 = vpop.f32.mrf.mxu0
        %v5684 = vadd.f32 %v4339, %v5683
        %v5685 = vpop.f32.mrf.mxu0
        %5686 = vmatprep.mubr.f32.mxu0 0.0
        %5687 = vmatmul.mubr.f32.gmra.mxu0 %v1576
        %v5688 = vpop.f32.mrf.mxu0
        %v5689 = vadd.f32 %v4344, %v5688
        %v5690 = vpop.f32.mrf.mxu0
        %5691 = vmatprep.mubr.f32.mxu0 0.0
        %5692 = vmatmul.mubr.f32.gmra.mxu0 %v1581
        %v5693 = vpop.f32.mrf.mxu0
        %v5694 = vadd.f32 %v4349, %v5693
        %v5695 = vpop.f32.mrf.mxu0
        %5696 = vmatprep.mubr.f32.mxu0 0.0
        %5697 = vmatmul.mubr.f32.gmra.mxu0 %v1586
        %v5698 = vpop.f32.mrf.mxu0
        %v5699 = vadd.f32 %v4354, %v5698
        %v5700 = vpop.f32.mrf.mxu0
        %5701 = vmatprep.mubr.f32.mxu0 0.0
        %5702 = vmatmul.mubr.f32.gmra.mxu0 %v1591
        %v5703 = vpop.f32.mrf.mxu0
        %v5704 = vadd.f32 %v4359, %v5703
        %v5705 = vpop.f32.mrf.mxu0
        %5706 = vmatprep.mubr.f32.mxu0 0.0
        %5707 = vmatmul.mubr.f32.gmra.mxu0 %v1596
        %v5708 = vpop.f32.mrf.mxu0
        %v5709 = vadd.f32 %v4364, %v5708
        %v5710 = vpop.f32.mrf.mxu0
        %5711 = vmatprep.mubr.f32.mxu0 0.0
        %5712 = vmatmul.mubr.f32.gmra.mxu0 %v1601
        %v5713 = vpop.f32.mrf.mxu0
        %v5714 = vadd.f32 %v4369, %v5713
        %v5715 = vpop.f32.mrf.mxu0
        %5716 = vmatprep.mubr.f32.mxu0 0.0
        %5717 = vmatmul.mubr.f32.gmra.mxu0 %v1606
        %v5718 = vpop.f32.mrf.mxu0
        %v5719 = vadd.f32 %v4374, %v5718
        %v5720 = vpop.f32.mrf.mxu0
        %5721 = vmatprep.mubr.f32.mxu0 0.0
        %5722 = vmatmul.mubr.f32.gmra.mxu0 %v1611
        %v5723 = vpop.f32.mrf.mxu0
        %v5724 = vadd.f32 %v4379, %v5723
        %v5725 = vpop.f32.mrf.mxu0
        %5726 = vmatprep.mubr.f32.mxu0 0.0
        %5727 = vmatmul.mubr.f32.gmra.mxu0 %v1616
        %v5728 = vpop.f32.mrf.mxu0
        %v5729 = vadd.f32 %v4384, %v5728
        %v5730 = vpop.f32.mrf.mxu0
        %5731 = vmatprep.mubr.f32.mxu0 0.0
        %5732 = vmatmul.mubr.f32.gmra.mxu0 %v1621
        %v5733 = vpop.f32.mrf.mxu0
        %v5734 = vadd.f32 %v4389, %v5733
        %v5735 = vpop.f32.mrf.mxu0
        %5736 = vmatprep.mubr.f32.mxu0 0.0
        %5737 = vmatmul.mubr.f32.gmra.mxu0 %v1626
        %v5738 = vpop.f32.mrf.mxu0
        %v5739 = vadd.f32 %v4394, %v5738
        %v5740 = vpop.f32.mrf.mxu0
        %5741 = vmatprep.mubr.f32.mxu0 0.0
        %5742 = vmatmul.mubr.f32.gmra.mxu0 %v1631
        %v5743 = vpop.f32.mrf.mxu0
        %v5744 = vadd.f32 %v4399, %v5743
        %v5745 = vpop.f32.mrf.mxu0
        %5746 = vmatprep.mubr.f32.mxu0 0.0
        %5747 = vmatmul.mubr.f32.gmra.mxu0 %v1636
        %v5748 = vpop.f32.mrf.mxu0
        %v5749 = vadd.f32 %v4404, %v5748
        %v5750 = vpop.f32.mrf.mxu0
        %5751 = vmatprep.mubr.f32.mxu0 0.0
        %5752 = vmatmul.mubr.f32.gmra.mxu0 %v1641
        %v5753 = vpop.f32.mrf.mxu0
        %v5754 = vadd.f32 %v4409, %v5753
        %v5755 = vpop.f32.mrf.mxu0
        %5756 = vmatprep.mubr.f32.mxu0 0.0
        %5757 = vmatmul.mubr.f32.gmra.mxu0 %v1646
        %v5758 = vpop.f32.mrf.mxu0
        %v5759 = vadd.f32 %v4414, %v5758
        %v5760 = vpop.f32.mrf.mxu0
        %5761 = vmatprep.mubr.f32.mxu0 0.0
        %5762 = vmatmul.mubr.f32.gmra.mxu0 %v1651
        %v5763 = vpop.f32.mrf.mxu0
        %v5764 = vadd.f32 %v4419, %v5763
        %v5765 = vpop.f32.mrf.mxu0
        %5766 = vmatprep.mubr.f32.mxu0 0.0
        %5767 = vmatmul.mubr.f32.gmra.mxu0 %v1656
        %v5768 = vpop.f32.mrf.mxu0
        %v5769 = vadd.f32 %v4424, %v5768
        %v5770 = vpop.f32.mrf.mxu0
        %5771 = vmatprep.mubr.f32.mxu0 0.0
        %5772 = vmatmul.mubr.f32.gmra.mxu0 %v1661
        %v5773 = vpop.f32.mrf.mxu0
        %v5774 = vadd.f32 %v4429, %v5773
        %v5775 = vpop.f32.mrf.mxu0
        %5776 = vmatprep.mubr.f32.mxu0 0.0
        %5777 = vmatmul.mubr.f32.gmra.mxu0 %v1666
        %v5778 = vpop.f32.mrf.mxu0
        %v5779 = vadd.f32 %v4434, %v5778
        %v5780 = vpop.f32.mrf.mxu0
        %5781 = vmatprep.mubr.f32.mxu0 0.0
        %5782 = vmatmul.mubr.f32.gmra.mxu0 %v1671
        %v5783 = vpop.f32.mrf.mxu0
        %v5784 = vadd.f32 %v4439, %v5783
        %v5785 = vpop.f32.mrf.mxu0
        %5786 = vmatprep.mubr.f32.mxu0 0.0
        %5787 = vmatmul.mubr.f32.gmra.mxu0 %v1676
        %v5788 = vpop.f32.mrf.mxu0
        %v5789 = vadd.f32 %v4444, %v5788
        %v5790 = vpop.f32.mrf.mxu0
        %5791 = vmatprep.mubr.f32.mxu0 0.0
        %5792 = vmatmul.mubr.f32.gmra.mxu0 %v1681
        %v5793 = vpop.f32.mrf.mxu0
        %v5794 = vadd.f32 %v4449, %v5793
        %v5795 = vpop.f32.mrf.mxu0
        %5796 = vmatprep.mubr.f32.mxu0 0.0
        %5797 = vmatmul.mubr.f32.gmra.mxu0 %v1686
        %v5798 = vpop.f32.mrf.mxu0
        %v5799 = vadd.f32 %v4454, %v5798
        %v5800 = vpop.f32.mrf.mxu0
        %5801 = vmatprep.mubr.f32.mxu0 0.0
        %5802 = vmatmul.mubr.f32.gmra.mxu0 %v1691
        %v5803 = vpop.f32.mrf.mxu0
        %v5804 = vadd.f32 %v4459, %v5803
        %v5805 = vpop.f32.mrf.mxu0
        %5806 = vmatprep.mubr.f32.mxu0 0.0
        %5807 = vmatmul.mubr.f32.gmra.mxu0 %v1696
        %v5808 = vpop.f32.mrf.mxu0
        %v5809 = vadd.f32 %v4464, %v5808
        %v5810 = vpop.f32.mrf.mxu0
        %5811 = vmatprep.mubr.f32.mxu0 0.0
        %5812 = vmatmul.mubr.f32.gmra.mxu0 %v1701
        %v5813 = vpop.f32.mrf.mxu0
        %v5814 = vadd.f32 %v4469, %v5813
        %v5815 = vpop.f32.mrf.mxu0
        %5816 = vmatprep.mubr.f32.mxu0 0.0
        %5817 = vmatmul.mubr.f32.gmra.mxu0 %v1706
        %v5818 = vpop.f32.mrf.mxu0
        %v5819 = vadd.f32 %v4474, %v5818
        %v5820 = vpop.f32.mrf.mxu0
        %5821 = vmatprep.mubr.f32.mxu0 0.0
        %5822 = vmatmul.mubr.f32.gmra.mxu0 %v1711
        %v5823 = vpop.f32.mrf.mxu0
        %v5824 = vadd.f32 %v4479, %v5823
        %v5825 = vpop.f32.mrf.mxu0
        %5826 = vmatprep.mubr.f32.mxu0 0.0
        %5827 = vmatmul.mubr.f32.gmra.mxu0 %v1716
        %v5828 = vpop.f32.mrf.mxu0
        %v5829 = vadd.f32 %v4484, %v5828
        %v5830 = vpop.f32.mrf.mxu0
        %5831 = vmatprep.mubr.f32.mxu0 0.0
        %5832 = vmatmul.mubr.f32.gmra.mxu0 %v1721
        %v5833 = vpop.f32.mrf.mxu0
        %v5834 = vadd.f32 %v4489, %v5833
        %v5835 = vpop.f32.mrf.mxu0
        %5836 = vmatprep.mubr.f32.mxu0 0.0
        %5837 = vmatmul.mubr.f32.gmra.mxu0 %v1726
        %v5838 = vpop.f32.mrf.mxu0
        %v5839 = vadd.f32 %v4494, %v5838
        %v5840 = vpop.f32.mrf.mxu0
        %5841 = vmatprep.mubr.f32.mxu0 0.0
        %5842 = vmatmul.mubr.f32.gmra.mxu0 %v1731
        %v5843 = vpop.f32.mrf.mxu0
        %v5844 = vadd.f32 %v4499, %v5843
        %v5845 = vpop.f32.mrf.mxu0
        %5846 = vmatprep.mubr.f32.mxu0 0.0
        %5847 = vmatmul.mubr.f32.gmra.mxu0 %v1736
        %v5848 = vpop.f32.mrf.mxu0
        %v5849 = vadd.f32 %v4504, %v5848
        %v5850 = vpop.f32.mrf.mxu0
        %5851 = vmatprep.mubr.f32.mxu0 0.0
        %5852 = vmatmul.mubr.f32.gmra.mxu0 %v1741
        %v5853 = vpop.f32.mrf.mxu0
        %v5854 = vadd.f32 %v4509, %v5853
        %v5855 = vpop.f32.mrf.mxu0
        %5856 = vmatprep.mubr.f32.mxu0 0.0
        %5857 = vmatmul.mubr.f32.gmra.mxu0 %v1746
        %v5858 = vpop.f32.mrf.mxu0
        %v5859 = vadd.f32 %v4514, %v5858
        %v5860 = vpop.f32.mrf.mxu0
        %5861 = vmatprep.mubr.f32.mxu0 0.0
        %5862 = vmatmul.mubr.f32.gmra.mxu0 %v1751
        %v5863 = vpop.f32.mrf.mxu0
        %v5864 = vadd.f32 %v4519, %v5863
        %v5865 = vpop.f32.mrf.mxu0
        %5866 = vmatprep.mubr.f32.mxu0 0.0
        %5867 = vmatmul.mubr.f32.gmra.mxu0 %v1756
        %v5868 = vpop.f32.mrf.mxu0
        %v5869 = vadd.f32 %v4524, %v5868
        %v5870 = vpop.f32.mrf.mxu0
        %5871 = vmatprep.mubr.f32.mxu0 0.0
        %5872 = vmatmul.mubr.f32.gmra.mxu0 %v1761
        %v5873 = vpop.f32.mrf.mxu0
        %v5874 = vadd.f32 %v4529, %v5873
        %v5875 = vpop.f32.mrf.mxu0
        %5876 = vmatprep.mubr.f32.mxu0 0.0
        %5877 = vmatmul.mubr.f32.gmra.mxu0 %v1766
        %v5878 = vpop.f32.mrf.mxu0
        %v5879 = vadd.f32 %v4534, %v5878
        %v5880 = vpop.f32.mrf.mxu0
        %5881 = vmatprep.mubr.f32.mxu0 0.0
        %5882 = vmatmul.mubr.f32.gmra.mxu0 %v1771
        %v5883 = vpop.f32.mrf.mxu0
        %v5884 = vadd.f32 %v4539, %v5883
        %v5885 = vpop.f32.mrf.mxu0
        %5886 = vmatprep.mubr.f32.mxu0 0.0
        %5887 = vmatmul.mubr.f32.gmra.mxu0 %v1776
        %v5888 = vpop.f32.mrf.mxu0
        %v5889 = vadd.f32 %v4544, %v5888
        %v5890 = vpop.f32.mrf.mxu0
        %5891 = vmatprep.mubr.f32.mxu0 0.0
        %5892 = vmatmul.mubr.f32.gmra.mxu0 %v1781
        %v5893 = vpop.f32.mrf.mxu0
        %v5894 = vadd.f32 %v4549, %v5893
        %v5895 = vpop.f32.mrf.mxu0
        %5896 = vmatprep.mubr.f32.mxu0 0.0
        %5897 = vmatmul.mubr.f32.gmra.mxu0 %v1786
        %v5898 = vpop.f32.mrf.mxu0
        %v5899 = vadd.f32 %v4554, %v5898
        %v5900 = vpop.f32.mrf.mxu0
        %5901 = vmatprep.mubr.f32.mxu0 0.0
        %5902 = vmatmul.mubr.f32.gmra.mxu0 %v1791
        %v5903 = vpop.f32.mrf.mxu0
        %v5904 = vadd.f32 %v4559, %v5903
        %v5905 = vpop.f32.mrf.mxu0
        %5906 = vmatprep.mubr.f32.mxu0 0.0
        %5907 = vmatmul.mubr.f32.gmra.mxu0 %v1796
        %v5908 = vpop.f32.mrf.mxu0
        %v5909 = vadd.f32 %v4564, %v5908
        %v5910 = vpop.f32.mrf.mxu0
        %5911 = vmatprep.mubr.f32.mxu0 0.0
        %5912 = vmatmul.mubr.f32.gmra.mxu0 %v1801
        %v5913 = vpop.f32.mrf.mxu0
        %v5914 = vadd.f32 %v4569, %v5913
        %v5915 = vpop.f32.mrf.mxu0
        %5916 = vmatprep.mubr.f32.mxu0 0.0
        %5917 = vmatmul.mubr.f32.gmra.mxu0 %v1806
        %v5918 = vpop.f32.mrf.mxu0
        %v5919 = vadd.f32 %v4574, %v5918
        %v5920 = vpop.f32.mrf.mxu0
        %5921 = vmatprep.mubr.f32.mxu0 0.0
        %5922 = vmatmul.mubr.f32.gmra.mxu0 %v1811
        %v5923 = vpop.f32.mrf.mxu0
        %v5924 = vadd.f32 %v4579, %v5923
        %v5925 = vpop.f32.mrf.mxu0
        %5926 = vmatprep.mubr.f32.mxu0 0.0
        %5927 = vmatmul.mubr.f32.gmra.mxu0 %v1816
        %v5928 = vpop.f32.mrf.mxu0
        %v5929 = vadd.f32 %v4584, %v5928
        %v5930 = vpop.f32.mrf.mxu0
        %5931 = vmatprep.mubr.f32.mxu0 0.0
        %5932 = vmatmul.mubr.f32.gmra.mxu0 %v1821
        %v5933 = vpop.f32.mrf.mxu0
        %v5934 = vadd.f32 %v4589, %v5933
        %v5935 = vpop.f32.mrf.mxu0
        %5936 = vmatprep.mubr.f32.mxu0 0.0
        %5937 = vmatmul.mubr.f32.gmra.mxu0 %v1826
        %v5938 = vpop.f32.mrf.mxu0
        %v5939 = vadd.f32 %v4594, %v5938
        %v5940 = vpop.f32.mrf.mxu0
        %5941 = vdwg.mxu0
        %v5942 = vmax.f32 %v4664, %v5304
        %v5943 = vmax.f32 %v4669, %v5309
        %v5944 = vmax.f32 %v4674, %v5314
        %v5945 = vmax.f32 %v4679, %v5319
        %v5946 = vmax.f32 %v4684, %v5324
        %v5947 = vmax.f32 %v4689, %v5329
        %v5948 = vmax.f32 %v4694, %v5334
        %v5949 = vmax.f32 %v4699, %v5339
        %v5950 = vmax.f32 %v4704, %v5344
        %v5951 = vmax.f32 %v4709, %v5349
        %v5952 = vmax.f32 %v4714, %v5354
        %v5953 = vmax.f32 %v4719, %v5359
        %v5954 = vmax.f32 %v4724, %v5364
        %v5955 = vmax.f32 %v4729, %v5369
        %v5956 = vmax.f32 %v4734, %v5374
        %v5957 = vmax.f32 %v4739, %v5379
        %v5958 = vmax.f32 %v4744, %v5384
        %v5959 = vmax.f32 %v4749, %v5389
        %v5960 = vmax.f32 %v4754, %v5394
        %v5961 = vmax.f32 %v4759, %v5399
        %v5962 = vmax.f32 %v4764, %v5404
        %v5963 = vmax.f32 %v4769, %v5409
        %v5964 = vmax.f32 %v4774, %v5414
        %v5965 = vmax.f32 %v4779, %v5419
        %v5966 = vmax.f32 %v4784, %v5424
        %v5967 = vmax.f32 %v4789, %v5429
        %v5968 = vmax.f32 %v4794, %v5434
        %v5969 = vmax.f32 %v4799, %v5439
        %v5970 = vmax.f32 %v4804, %v5444
        %v5971 = vmax.f32 %v4809, %v5449
        %v5972 = vmax.f32 %v4814, %v5454
        %v5973 = vmax.f32 %v4819, %v5459
        %v5974 = vmax.f32 %v4824, %v5464
        %v5975 = vmax.f32 %v4829, %v5469
        %v5976 = vmax.f32 %v4834, %v5474
        %v5977 = vmax.f32 %v4839, %v5479
        %v5978 = vmax.f32 %v4844, %v5484
        %v5979 = vmax.f32 %v4849, %v5489
        %v5980 = vmax.f32 %v4854, %v5494
        %v5981 = vmax.f32 %v4859, %v5499
        %v5982 = vmax.f32 %v4864, %v5504
        %v5983 = vmax.f32 %v4869, %v5509
        %v5984 = vmax.f32 %v4874, %v5514
        %v5985 = vmax.f32 %v4879, %v5519
        %v5986 = vmax.f32 %v4884, %v5524
        %v5987 = vmax.f32 %v4889, %v5529
        %v5988 = vmax.f32 %v4894, %v5534
        %v5989 = vmax.f32 %v4899, %v5539
        %v5990 = vmax.f32 %v4904, %v5544
        %v5991 = vmax.f32 %v4909, %v5549
        %v5992 = vmax.f32 %v4914, %v5554
        %v5993 = vmax.f32 %v4919, %v5559
        %v5994 = vmax.f32 %v4924, %v5564
        %v5995 = vmax.f32 %v4929, %v5569
        %v5996 = vmax.f32 %v4934, %v5574
        %v5997 = vmax.f32 %v4939, %v5579
        %v5998 = vmax.f32 %v4944, %v5584
        %v5999 = vmax.f32 %v4949, %v5589
        %v6000 = vmax.f32 %v4954, %v5594
        %v6001 = vmax.f32 %v4959, %v5599
        %v6002 = vmax.f32 %v4964, %v5604
        %v6003 = vmax.f32 %v4969, %v5609
        %v6004 = vmax.f32 %v4974, %v5614
        %v6005 = vmax.f32 %v4979, %v5619
        %v6006 = vmax.f32 %v4984, %v5624
        %v6007 = vmax.f32 %v4989, %v5629
        %v6008 = vmax.f32 %v4994, %v5634
        %v6009 = vmax.f32 %v4999, %v5639
        %v6010 = vmax.f32 %v5004, %v5644
        %v6011 = vmax.f32 %v5009, %v5649
        %v6012 = vmax.f32 %v5014, %v5654
        %v6013 = vmax.f32 %v5019, %v5659
        %v6014 = vmax.f32 %v5024, %v5664
        %v6015 = vmax.f32 %v5029, %v5669
        %v6016 = vmax.f32 %v5034, %v5674
        %v6017 = vmax.f32 %v5039, %v5679
        %v6018 = vmax.f32 %v5044, %v5684
        %v6019 = vmax.f32 %v5049, %v5689
        %v6020 = vmax.f32 %v5054, %v5694
        %v6021 = vmax.f32 %v5059, %v5699
        %v6022 = vmax.f32 %v5064, %v5704
        %v6023 = vmax.f32 %v5069, %v5709
        %v6024 = vmax.f32 %v5074, %v5714
        %v6025 = vmax.f32 %v5079, %v5719
        %v6026 = vmax.f32 %v5084, %v5724
        %v6027 = vmax.f32 %v5089, %v5729
        %v6028 = vmax.f32 %v5094, %v5734
        %v6029 = vmax.f32 %v5099, %v5739
        %v6030 = vmax.f32 %v5104, %v5744
        %v6031 = vmax.f32 %v5109, %v5749
        %v6032 = vmax.f32 %v5114, %v5754
        %v6033 = vmax.f32 %v5119, %v5759
        %v6034 = vmax.f32 %v5124, %v5764
        %v6035 = vmax.f32 %v5129, %v5769
        %v6036 = vmax.f32 %v5134, %v5774
        %v6037 = vmax.f32 %v5139, %v5779
        %v6038 = vmax.f32 %v5144, %v5784
        %v6039 = vmax.f32 %v5149, %v5789
        %v6040 = vmax.f32 %v5154, %v5794
        %v6041 = vmax.f32 %v5159, %v5799
        %v6042 = vmax.f32 %v5164, %v5804
        %v6043 = vmax.f32 %v5169, %v5809
        %v6044 = vmax.f32 %v5174, %v5814
        %v6045 = vmax.f32 %v5179, %v5819
        %v6046 = vmax.f32 %v5184, %v5824
        %v6047 = vmax.f32 %v5189, %v5829
        %v6048 = vmax.f32 %v5194, %v5834
        %v6049 = vmax.f32 %v5199, %v5839
        %v6050 = vmax.f32 %v5204, %v5844
        %v6051 = vmax.f32 %v5209, %v5849
        %v6052 = vmax.f32 %v5214, %v5854
        %v6053 = vmax.f32 %v5219, %v5859
        %v6054 = vmax.f32 %v5224, %v5864
        %v6055 = vmax.f32 %v5229, %v5869
        %v6056 = vmax.f32 %v5234, %v5874
        %v6057 = vmax.f32 %v5239, %v5879
        %v6058 = vmax.f32 %v5244, %v5884
        %v6059 = vmax.f32 %v5249, %v5889
        %v6060 = vmax.f32 %v5254, %v5894
        %v6061 = vmax.f32 %v5259, %v5899
        %v6062 = vmax.f32 %v5264, %v5904
        %v6063 = vmax.f32 %v5269, %v5909
        %v6064 = vmax.f32 %v5274, %v5914
        %v6065 = vmax.f32 %v5279, %v5919
        %v6066 = vmax.f32 %v5284, %v5924
        %v6067 = vmax.f32 %v5289, %v5929
        %v6068 = vmax.f32 %v5294, %v5934
        %v6069 = vmax.f32 %v5299, %v5939
        %v6070 = vmax.f32 %v5942, %v6006
        %v6071 = vmax.f32 %v5943, %v6007
        %v6072 = vmax.f32 %v5944, %v6008
        %v6073 = vmax.f32 %v5945, %v6009
        %v6074 = vmax.f32 %v5946, %v6010
        %v6075 = vmax.f32 %v5947, %v6011
        %v6076 = vmax.f32 %v5948, %v6012
        %v6077 = vmax.f32 %v5949, %v6013
        %v6078 = vmax.f32 %v5950, %v6014
        %v6079 = vmax.f32 %v5951, %v6015
        %v6080 = vmax.f32 %v5952, %v6016
        %v6081 = vmax.f32 %v5953, %v6017
        %v6082 = vmax.f32 %v5954, %v6018
        %v6083 = vmax.f32 %v5955, %v6019
        %v6084 = vmax.f32 %v5956, %v6020
        %v6085 = vmax.f32 %v5957, %v6021
        %v6086 = vmax.f32 %v5958, %v6022
        %v6087 = vmax.f32 %v5959, %v6023
        %v6088 = vmax.f32 %v5960, %v6024
        %v6089 = vmax.f32 %v5961, %v6025
        %v6090 = vmax.f32 %v5962, %v6026
        %v6091 = vmax.f32 %v5963, %v6027
        %v6092 = vmax.f32 %v5964, %v6028
        %v6093 = vmax.f32 %v5965, %v6029
        %v6094 = vmax.f32 %v5966, %v6030
        %v6095 = vmax.f32 %v5967, %v6031
        %v6096 = vmax.f32 %v5968, %v6032
        %v6097 = vmax.f32 %v5969, %v6033
        %v6098 = vmax.f32 %v5970, %v6034
        %v6099 = vmax.f32 %v5971, %v6035
        %v6100 = vmax.f32 %v5972, %v6036
        %v6101 = vmax.f32 %v5973, %v6037
        %v6102 = vmax.f32 %v5974, %v6038
        %v6103 = vmax.f32 %v5975, %v6039
        %v6104 = vmax.f32 %v5976, %v6040
        %v6105 = vmax.f32 %v5977, %v6041
        %v6106 = vmax.f32 %v5978, %v6042
        %v6107 = vmax.f32 %v5979, %v6043
        %v6108 = vmax.f32 %v5980, %v6044
        %v6109 = vmax.f32 %v5981, %v6045
        %v6110 = vmax.f32 %v5982, %v6046
        %v6111 = vmax.f32 %v5983, %v6047
        %v6112 = vmax.f32 %v5984, %v6048
        %v6113 = vmax.f32 %v5985, %v6049
        %v6114 = vmax.f32 %v5986, %v6050
        %v6115 = vmax.f32 %v5987, %v6051
        %v6116 = vmax.f32 %v5988, %v6052
        %v6117 = vmax.f32 %v5989, %v6053
        %v6118 = vmax.f32 %v5990, %v6054
        %v6119 = vmax.f32 %v5991, %v6055
        %v6120 = vmax.f32 %v5992, %v6056
        %v6121 = vmax.f32 %v5993, %v6057
        %v6122 = vmax.f32 %v5994, %v6058
        %v6123 = vmax.f32 %v5995, %v6059
        %v6124 = vmax.f32 %v5996, %v6060
        %v6125 = vmax.f32 %v5997, %v6061
        %v6126 = vmax.f32 %v5998, %v6062
        %v6127 = vmax.f32 %v5999, %v6063
        %v6128 = vmax.f32 %v6000, %v6064
        %v6129 = vmax.f32 %v6001, %v6065
        %v6130 = vmax.f32 %v6002, %v6066
        %v6131 = vmax.f32 %v6003, %v6067
        %v6132 = vmax.f32 %v6004, %v6068
        %v6133 = vmax.f32 %v6005, %v6069
        %v6134 = vmax.f32 %v6070, %v6102
        %v6135 = vmax.f32 %v6071, %v6103
        %v6136 = vmax.f32 %v6072, %v6104
        %v6137 = vmax.f32 %v6073, %v6105
        %v6138 = vmax.f32 %v6074, %v6106
        %v6139 = vmax.f32 %v6075, %v6107
        %v6140 = vmax.f32 %v6076, %v6108
        %v6141 = vmax.f32 %v6077, %v6109
        %v6142 = vmax.f32 %v6078, %v6110
        %v6143 = vmax.f32 %v6079, %v6111
        %v6144 = vmax.f32 %v6080, %v6112
        %v6145 = vmax.f32 %v6081, %v6113
        %v6146 = vmax.f32 %v6082, %v6114
        %v6147 = vmax.f32 %v6083, %v6115
        %v6148 = vmax.f32 %v6084, %v6116
        %v6149 = vmax.f32 %v6085, %v6117
        %v6150 = vmax.f32 %v6086, %v6118
        %v6151 = vmax.f32 %v6087, %v6119
        %v6152 = vmax.f32 %v6088, %v6120
        %v6153 = vmax.f32 %v6089, %v6121
        %v6154 = vmax.f32 %v6090, %v6122
        %v6155 = vmax.f32 %v6091, %v6123
        %v6156 = vmax.f32 %v6092, %v6124
        %v6157 = vmax.f32 %v6093, %v6125
        %v6158 = vmax.f32 %v6094, %v6126
        %v6159 = vmax.f32 %v6095, %v6127
        %v6160 = vmax.f32 %v6096, %v6128
        %v6161 = vmax.f32 %v6097, %v6129
        %v6162 = vmax.f32 %v6098, %v6130
        %v6163 = vmax.f32 %v6099, %v6131
        %v6164 = vmax.f32 %v6100, %v6132
        %v6165 = vmax.f32 %v6101, %v6133
        %v6166 = vmax.f32 %v6134, %v6150
        %v6167 = vmax.f32 %v6135, %v6151
        %v6168 = vmax.f32 %v6136, %v6152
        %v6169 = vmax.f32 %v6137, %v6153
        %v6170 = vmax.f32 %v6138, %v6154
        %v6171 = vmax.f32 %v6139, %v6155
        %v6172 = vmax.f32 %v6140, %v6156
        %v6173 = vmax.f32 %v6141, %v6157
        %v6174 = vmax.f32 %v6142, %v6158
        %v6175 = vmax.f32 %v6143, %v6159
        %v6176 = vmax.f32 %v6144, %v6160
        %v6177 = vmax.f32 %v6145, %v6161
        %v6178 = vmax.f32 %v6146, %v6162
        %v6179 = vmax.f32 %v6147, %v6163
        %v6180 = vmax.f32 %v6148, %v6164
        %v6181 = vmax.f32 %v6149, %v6165
        %v6182 = vmax.f32 %v6166, %v6174
        %v6183 = vmax.f32 %v6167, %v6175
        %v6184 = vmax.f32 %v6168, %v6176
        %v6185 = vmax.f32 %v6169, %v6177
        %v6186 = vmax.f32 %v6170, %v6178
        %v6187 = vmax.f32 %v6171, %v6179
        %v6188 = vmax.f32 %v6172, %v6180
        %v6189 = vmax.f32 %v6173, %v6181
        %v6190 = vmax.f32 %v6182, %v6186
        %v6191 = vmax.f32 %v6183, %v6187
        %v6192 = vmax.f32 %v6184, %v6188
        %v6193 = vmax.f32 %v6185, %v6189
        %v6194 = vmax.f32 %v6190, %v6192
        %v6195 = vmax.f32 %v6191, %v6193
        %v6196 = vmax.f32 %v6194, 0.0
        %v6197 = vmax.f32 %v6195, 0.0
        %v6198 = vld [vmem:[%s2] sm:$0xff]
        %v6199 = vld [vmem:[%s2 + $0x8] sm:$0xff]
        %6201 = vset.pattern.permute.xlu0 0
        %6202 = vperm.xlu0 %6201, %v6198
        %v6203 = vpop.permute.xlu0 %6202
        %6206 = vset.pattern.permute.xlu0 0
        %6207 = vperm.xlu0 %6206, %v6199
        %v6208 = vpop.permute.xlu0 %6207
        %v6210 = vmul.f32 %v6196, %v6203
        %v6211 = vmul.f32 %v6197, %v6208
        %v6212 = vadd.f32 %v6210, %v6211
        %v6213 = vrot.slane %v6212, 4
        %v6214 = vadd.f32 %v6212, %v6213
        %v6215 = vrot.slane %v6214, 2
        %v6216 = vadd.f32 %v6214, %v6215
        %v6217 = vrot.slane %v6216, 1
        %v6218 = vadd.f32 %v6216, %v6217
        %v6219 = vld [vmem:[#allocation2] sm:$0x1]
        %6221 = vset.pattern.permute.xlu0 0
        %6222 = vperm.xlu0 %6221, %v6219
        %v6223 = vpop.permute.xlu0 %6222
        %v6225 = vlaneseq
        %v6226 = vshrl.u32 %v6225, 7
        %v6227 = vsub.s32 0, %v6226
        %v6228 = vrot.slane %v6223, %v6227
        %v6229 = vadd.f32 %v6218, %v6228
        %v6230 = vxor.u32 %v6229, 2147483648
        %v6231 = vmul.f32 %v6230, 1.442695
        %v6232 = vpow.pop %v6231
        %v6233 = vadd.f32 %v6232, 1.0
        %v6234 = vrcp.pop %v6233
        %v6235 = vmul.f32 1.0, %v6234
        %6236 = vst [vmem:[%s546] sm:$0x1] %v6235
        %p6237 = scmp.lt.s32.totalorder %s17, 1
        %s6238 = scalar_select %p6237, %s17, 1
        %s6239 = scalar_lea.vmem %s4, %s6238
        // Predicated region
        $region75: #{deepbind_forward.1} parent=69 // pred_check
          %p6240 = pneg %p124
        $region76: #{deepbind_forward.1} parent=69 // pred_check_branch
          %6242 = sbr.rel (%p6240) target = $region78
        $region77: #{deepbind_forward.1} parent=69 // pred_region
          _
        $region78: #{deepbind_forward.1} parent=69 // pred_fallthru
          _
      $region70: #{deepbind_forward.1} parent=5 // pred_fallthru
        _
      %p6243 = scmp.le.s32.totalorder 2, %s12
      // Predicated region
      $region79: #{deepbind_forward.1} parent=5 // pred_check
        %p6244 = pneg %p6243
      $region80: #{deepbind_forward.1} parent=5 // pred_check_branch
        %6246 = sbr.rel (%p6244) target = $region82
      $region81: #{deepbind_forward.1} parent=5 // pred_region
        %s6247 = ssub.s32 %s12, 2
        // Predicated region
        $region83: #{deepbind_forward.1} parent=81 // pred_check
          %p6248 = pneg %p130
        $region84: #{deepbind_forward.1} parent=81 // pred_check_branch
          %6250 = sbr.rel (%p6248) target = $region86
        $region85: #{deepbind_forward.1} parent=81 // pred_region
          %p6251 = scmp.lt.s32.totalorder %s18, 1
          %s6252 = scalar_select %p6251, %s18, 1
          %s6253 = scalar_lea.vmem %s4, %s6252
        $region86: #{deepbind_forward.1} parent=81 // pred_fallthru
          _
      $region82: #{deepbind_forward.1} parent=5 // pred_fallthru
        _
    $region6: #{deepbind_forward.1} parent=1 // loop_footer
      %s16 = sadd.s32 1, %s12
    $region7: #{deepbind_forward.1} parent=1 // loop_footer_branch
      %11 = sbr.rel target = $region3
    $region8: #{deepbind_forward.1} parent=1 // loop_exit
      _

</llo_original>
